<compile_context>
chip_gen: v6e
topology: v6e:2x2x1
jax: 0.10.0
libtpu: 0.0.40
codegen_flags: <defaults>
</compile_context>

<pallas_src>
import functools

import jax
import jax.numpy as jnp
from jax.experimental import pallas as pl
from jax.experimental.pallas import tpu as pltpu

EPS = 1e-4        # scn.BatchNormLeakyReLU default eps
LEAKINESS = 0.0   # cfg 'leakiness_enc' default (0 -> ReLU)


# ----------------------------------------------------------------------- fused kernel

def _encoder_kernel(cols_ref, mask_ref, w0t_ref, wc_ref, gamma_ref, beta_ref,
                    wl_ref, bl_ref, out_ref, *, B, M, L, Df3, leakiness, use_linear):
    """Whole encoder forward in a single kernel.

    cols_ref : (27, Nvox)     im2col of the zero-padded input grid (permuted voxel order)
    mask_ref : (1, Nvox)      active-site mask, same voxel order
    w0t_ref  : (M, 27)        SubmanifoldConvolution weights, [co, tap]
    wc_ref   : (L', 8, M, M)  per-stride Convolution(2,2) weights, [stage, tap, co, ci]
    gamma/beta_ref: (L', M, 1) BN affine parameters
    wl_ref   : (M, Df3, O)    Linear weights, [ci, site, co]
    bl_ref   : (1, O)         Linear bias
    out_ref  : (B, O) if use_linear else (B, M*Df3)
    """
    mask = mask_ref[...]                                    # (1, N)

    # scn.SubmanifoldConvolution(3^3, 1 -> M, no bias): one MXU contraction over 27 taps;
    # outputs exist only at active input sites.
    feat = jnp.dot(w0t_ref[...], cols_ref[...],
                   preferred_element_type=jnp.float32)      # (M, N) lane-dense
    feat = feat * mask

    for i in range(L):
        n = feat.shape[1]
        nh = n // 8           # stride-2 conv output sites (per tap block)
        nq = n // 64          # pooled (stride-4) output sites (per pool block)

        # ---- scn.BatchNormLeakyReLU: batch statistics over active sites only ----
        n_act = jnp.maximum(jnp.sum(mask), 1.0)
        s1 = jnp.sum(feat, axis=1, keepdims=True)           # (M, 1)
        s2 = jnp.sum(feat * feat, axis=1, keepdims=True)
        mean = s1 / n_act
        var = jnp.maximum(s2 / n_act - mean * mean, 0.0)    # clamp cancellation noise
        scale = gamma_ref[i] * jax.lax.rsqrt(var + EPS)
        z = (feat - mean) * scale + beta_ref[i]
        z = jnp.where(z > 0, z, leakiness * z)              # leakiness=0 -> ReLU
        z = z * mask                                         # keep inactive sites at zero

        # ---- scn.Convolution(k=2, s=2, no bias): 8 tap matmuls on contiguous lane blocks ----
        acc = jnp.zeros((M, nh), jnp.float32)
        anyact = jnp.zeros((1, nh), jnp.float32)
        for k in range(8):
            acc = acc + jnp.dot(wc_ref[i, k], z[:, k * nh:(k + 1) * nh],
                                preferred_element_type=jnp.float32)
            anyact = jnp.maximum(anyact, mask[:, k * nh:(k + 1) * nh])
        conv = acc * anyact                                  # conv outputs only at active sites

        # ---- scn.AveragePooling(2, 2): sum the 8 contiguous pool blocks, 1/8 divisor ----
        pooled = jnp.zeros((M, nq), jnp.float32)
        mout = jnp.zeros((1, nq), jnp.float32)
        for p in range(8):
            pooled = pooled + conv[:, p * nq:(p + 1) * nq]
            mout = jnp.maximum(mout, anyact[:, p * nq:(p + 1) * nq])
        feat = pooled * 0.125
        mask = mout

    # feat: (M, B*Df3), columns ordered (b, z, y, x).  scn.SparseToDense is implicit
    # (inactive sites are already zero); column order matches torch .view(-1, Df^3*M).
    if use_linear:
        for b in range(B):
            row = bl_ref[...]                                # (1, O)
            for c in range(M):
                row = row + jnp.dot(feat[c:c + 1, b * Df3:(b + 1) * Df3], wl_ref[c],
                                    preferred_element_type=jnp.float32)
            out_ref[pl.ds(b, 1), :] = row
    else:
        for b in range(B):
            for c in range(M):
                out_ref[pl.ds(b, 1), pl.ds(c * Df3, Df3)] = \
                    feat[c:c + 1, b * Df3:(b + 1) * Df3]


# ----------------------------------------------------------------------- host-side glue

def _voxelize(point_cloud, dimension, batch_size, S):
    """scn.InputLayer(dim, S, mode=3): sum features of duplicate integer coordinates."""
    pc = point_cloud.astype(jnp.float32)
    coords = pc[:, 0:dimension + 1].astype(jnp.int32)
    feats = pc[:, dimension + 1:]
    z, y, x, b = coords[:, 0], coords[:, 1], coords[:, 2], coords[:, 3]
    lin = ((b * S + z) * S + y) * S + x
    nvox = batch_size * S ** 3
    dense = jax.ops.segment_sum(feats[:, 0], lin, num_segments=nvox)
    cnt = jax.ops.segment_sum(jnp.ones(lin.shape, jnp.float32), lin, num_segments=nvox)
    dense = dense.reshape(batch_size, S, S, S)
    mask = (cnt > 0).astype(jnp.float32).reshape(batch_size, S, S, S)
    return dense, mask


def _to_cols(vol, num_levels, final_size):
    """Permute a (..., B, S, S, S) volume to (..., B*S^3) in the recursive
    (tap0, pool0, tap1, pool1, ..., batch, final-site) column order used by the kernel."""
    lead = vol.shape[:-4]
    B = vol.shape[-4]
    per_axis = (final_size,) + (2, 2) * num_levels   # per-axis digits MSB->LSB: u, p_{L-1}, k_{L-1}, ..., p_0, k_0
    vol = vol.reshape(lead + (B,) + per_axis * 3)
    nL = len(lead)
    naxis = 1 + 2 * num_levels
    bax = nL
    zax = [nL + 1 + i for i in range(naxis)]
    yax = [nL + 1 + naxis + i for i in range(naxis)]
    xax = [nL + 1 + 2 * naxis + i for i in range(naxis)]
    order = list(range(nL))
    for lev in range(num_levels):                    # stage 0 (finest) is the outermost block
        kpos = naxis - 1 - 2 * lev
        ppos = naxis - 2 - 2 * lev
        order += [zax[kpos], yax[kpos], xax[kpos]]
        order += [zax[ppos], yax[ppos], xax[ppos]]
    order += [bax, zax[0], yax[0], xax[0]]
    return vol.transpose(order).reshape(lead + (-1,))


def encoder_forward(point_cloud, params, *, dimension=3, num_strides=2, spatial_size=16,
                    batch_size=2, use_linear_output=True, num_output_feats=32,
                    leakiness=LEAKINESS):
    S, B = spatial_size, batch_size
    L = num_strides - 1
    M = params['w0'].shape[-1]
    assert S % (4 ** L) == 0
    Df = S // 4 ** L
    Df3 = Df ** 3

    dense, mask = _voxelize(point_cloud, dimension, B, S)

    # im2col for the 3x3x3 submanifold conv (27 shifted views of the zero-padded grid),
    # permuted once into the kernel's blocked column order.  This is the only XLA data
    # prep; everything downstream runs inside a single pallas_call.
    xp = jnp.pad(dense, ((0, 0), (1, 1), (1, 1), (1, 1)))
    patches = jnp.stack([xp[:, tz:tz + S, ty:ty + S, tx:tx + S]
                         for tz in range(3) for ty in range(3) for tx in range(3)], axis=0)
    cols = _to_cols(patches, L, Df)                  # (27, B*S^3)
    mask_cols = _to_cols(mask, L, Df)[None, :]       # (1, B*S^3)

    w0t = params['w0'].reshape(27, M).T.astype(jnp.float32)             # (M, 27) [co, tap]
    if L > 0:
        wc_all = jnp.stack([w.reshape(8, M, M).transpose(0, 2, 1)
                            for w in params['wc']]).astype(jnp.float32)  # (L, 8, M, M) [stage, tap, co, ci]
        g_all = jnp.stack(params['bn_gamma']).astype(jnp.float32)[:, :, None]
        b_all = jnp.stack(params['bn_beta']).astype(jnp.float32)[:, :, None]
    else:
        wc_all = jnp.zeros((1, 8, M, M), jnp.float32)
        g_all = jnp.ones((1, M, 1), jnp.float32)
        b_all = jnp.zeros((1, M, 1), jnp.float32)

    if use_linear_output:
        out_cols = num_output_feats
        wl = params['w_lin'].reshape(num_output_feats, M, Df3).transpose(1, 2, 0).astype(jnp.float32)
        bl = params['b_lin'].reshape(1, num_output_feats).astype(jnp.float32)
    else:
        out_cols = M * Df3
        wl = jnp.zeros((M, Df3, 1), jnp.float32)
        bl = jnp.zeros((1, 1), jnp.float32)

    vmem = pl.BlockSpec(memory_space=pltpu.MemorySpace.VMEM)
    kernel = functools.partial(_encoder_kernel, B=B, M=M, L=L, Df3=Df3,
                               leakiness=float(leakiness), use_linear=use_linear_output)
    return pl.pallas_call(
        kernel,
        out_shape=jax.ShapeDtypeStruct((B, out_cols), jnp.float32),
        in_specs=[vmem] * 8,
        out_specs=vmem,
    )(cols, mask_cols, w0t, wc_all, g_all, b_all, wl, bl)


# ----------------------------------------------------------------------- main

if __name__ == "__main__":
    B, S, M, NS = 2, 16, 4, 2           # batch, inp_spatial_size, feat_per_pixel, num_stride
    NUM_OUT = 32                        # num_output_feats
    DF = S // 4 ** (NS - 1)             # out_spatial_size = 4
    N = 64                              # number of points

    key = jax.random.PRNGKey(0)
    kz, ky, kx, kb, kf, kw0, kwc, kwl, kbl = jax.random.split(key, 9)

    cz = jax.random.randint(kz, (N, 1), 0, S).astype(jnp.float32)
    cy = jax.random.randint(ky, (N, 1), 0, S).astype(jnp.float32)
    cx = jax.random.randint(kx, (N, 1), 0, S).astype(jnp.float32)
    cb = jax.random.randint(kb, (N, 1), 0, B).astype(jnp.float32)
    feats = jax.random.normal(kf, (N, 1), jnp.float32)
    point_cloud = jnp.concatenate([cz, cy, cx, cb, feats], axis=1)      # (N, 5)

    params = {
        # SubmanifoldConvolution weights (3,3,3,Cin=1,Cout=M)
        'w0': (0.1 * jax.random.normal(kw0, (3, 3, 3, 1, M))).astype(jnp.float32),
        # per-stride Convolution(k=2,s=2) weights (2,2,2,Cin=M,Cout=M)
        'wc': [(0.1 * jax.random.normal(kwc, (2, 2, 2, M, M))).astype(jnp.float32)
               for _ in range(NS - 1)],
        'bn_gamma': [jnp.ones((M,), jnp.float32) for _ in range(NS - 1)],
        'bn_beta': [jnp.zeros((M,), jnp.float32) for _ in range(NS - 1)],
        # torch.nn.Linear(M * DF**3, NUM_OUT): torch layout (out, in)
        'w_lin': (0.05 * jax.random.normal(kwl, (NUM_OUT, M * DF ** 3))).astype(jnp.float32),
        'b_lin': (0.05 * jax.random.normal(kbl, (NUM_OUT,))).astype(jnp.float32),
    }

    fwd = jax.jit(functools.partial(encoder_forward, dimension=3, num_strides=NS,
                                    spatial_size=S, batch_size=B, use_linear_output=True,
                                    num_output_feats=NUM_OUT))
    out = jax.block_until_ready(fwd(point_cloud, params))

    assert out.shape == (B, NUM_OUT), out.shape
    assert bool(jnp.all(jnp.isfinite(out)))
    print("KERNEL_OK")
</pallas_src>

<mosaic_0001>
module attributes {stable_mosaic.version = 11 : i64} {
  func.func private @main(%arg0: i32) attributes {dimension_semantics = [#tpu.dimension_semantics<core_parallel>], iteration_bounds = array<i64: 2>, tpu.core_type = #tpu.core_type<sc_scalar_subcore>, window_params = []} {
    return
  }
}

module attributes {stable_mosaic.version = 11 : i64} {
  func.func private @main(%arg0: i32) attributes {dimension_semantics = [#tpu.dimension_semantics<core_parallel>], iteration_bounds = array<i64: 2>, tpu.core_type = #tpu.core_type<sc_scalar_subcore>, window_params = []} {
    return
  }
}

module attributes {stable_mosaic.version = 11 : i64} {
  func.func @_encoder_kernel(%arg0: memref<27x8192xf32, #tpu.memory_space<vmem>>, %arg1: memref<1x8192xf32, #tpu.memory_space<vmem>>, %arg2: memref<4x27xf32, #tpu.memory_space<vmem>>, %arg3: memref<1x8x4x4xf32, #tpu.memory_space<vmem>>, %arg4: memref<1x4x1xf32, #tpu.memory_space<vmem>>, %arg5: memref<1x4x1xf32, #tpu.memory_space<vmem>>, %arg6: memref<4x64x32xf32, #tpu.memory_space<vmem>>, %arg7: memref<1x32xf32, #tpu.memory_space<vmem>>, %arg8: memref<2x32xf32, #tpu.memory_space<vmem>>) attributes {dimension_semantics = [], scalar_prefetch = 0 : i64, scratch_operands = 0 : i64, tpu.core_type = #tpu.core_type<tc>} {
    %c0 = arith.constant 0 : index
    %c0_0 = arith.constant 0 : index
    %0 = vector.load %arg1[%c0, %c0_0] : memref<1x8192xf32, #tpu.memory_space<vmem>>, vector<1x8192xf32>
    %c0_1 = arith.constant 0 : index
    %c0_2 = arith.constant 0 : index
    %1 = vector.load %arg2[%c0_1, %c0_2] : memref<4x27xf32, #tpu.memory_space<vmem>>, vector<4x27xf32>
    %c0_3 = arith.constant 0 : index
    %c0_4 = arith.constant 0 : index
    %2 = vector.load %arg0[%c0_3, %c0_4] : memref<27x8192xf32, #tpu.memory_space<vmem>>, vector<27x8192xf32>
    %cst = arith.constant dense<0.000000e+00> : vector<4x8192xf32>
    %3 = tpu.matmul %1, %2, %cst {dimension_numbers = #tpu.dot_dimension_numbers<[1], [0], [0], [1], [0, 0, 1, 1], [], []>} : vector<4x27xf32>, vector<27x8192xf32>, vector<4x8192xf32> -> vector<4x8192xf32>
    %4 = vector.broadcast %0 : vector<1x8192xf32> to vector<4x8192xf32>
    %5 = arith.mulf %3, %4 : vector<4x8192xf32>
    %6 = vector.shape_cast %0 : vector<1x8192xf32> to vector<1x1x8192xf32>
    %cst_5 = arith.constant dense<0.000000e+00> : vector<1xf32>
    %7 = vector.multi_reduction <add>, %6, %cst_5 [1, 2] : vector<1x1x8192xf32> to vector<1xf32>
    %8 = vector.shape_cast %7 : vector<1xf32> to vector<1x1x1xf32>
    %9 = vector.extract %8[0, 0, 0] : f32 from vector<1x1x1xf32>
    %cst_6 = arith.constant 1.000000e+00 : f32
    %10 = arith.maximumf %9, %cst_6 : f32
    %cst_7 = arith.constant dense<0.000000e+00> : vector<4xf32>
    %11 = vector.multi_reduction <add>, %5, %cst_7 [1] : vector<4x8192xf32> to vector<4xf32>
    %12 = vector.shape_cast %11 : vector<4xf32> to vector<4x1xf32>
    %13 = arith.mulf %5, %5 : vector<4x8192xf32>
    %cst_8 = arith.constant dense<0.000000e+00> : vector<4xf32>
    %14 = vector.multi_reduction <add>, %13, %cst_8 [1] : vector<4x8192xf32> to vector<4xf32>
    %15 = vector.shape_cast %14 : vector<4xf32> to vector<4x1xf32>
    %16 = vector.broadcast %10 : f32 to vector<4x1xf32>
    %17 = arith.divf %12, %16 : vector<4x1xf32>
    %18 = vector.broadcast %10 : f32 to vector<4x1xf32>
    %19 = arith.divf %15, %18 : vector<4x1xf32>
    %20 = arith.mulf %17, %17 : vector<4x1xf32>
    %21 = arith.subf %19, %20 : vector<4x1xf32>
    %cst_9 = arith.constant 0.000000e+00 : f32
    %22 = vector.broadcast %cst_9 : f32 to vector<4x1xf32>
    %23 = arith.maximumf %21, %22 : vector<4x1xf32>
    %c0_10 = arith.constant 0 : index
    %c0_11 = arith.constant 0 : index
    %c0_12 = arith.constant 0 : index
    %24 = vector.load %arg4[%c0_10, %c0_11, %c0_12] : memref<1x4x1xf32, #tpu.memory_space<vmem>>, vector<1x4x1xf32>
    %25 = vector.shape_cast %24 : vector<1x4x1xf32> to vector<4x1xf32>
    %cst_13 = arith.constant 9.99999974E-5 : f32
    %26 = vector.broadcast %cst_13 : f32 to vector<4x1xf32>
    %27 = arith.addf %23, %26 : vector<4x1xf32>
    %28 = math.rsqrt %27 : vector<4x1xf32>
    %29 = arith.mulf %25, %28 : vector<4x1xf32>
    %30 = vector.broadcast %17 : vector<4x1xf32> to vector<4x8192xf32>
    %31 = arith.subf %5, %30 : vector<4x8192xf32>
    %32 = vector.broadcast %29 : vector<4x1xf32> to vector<4x8192xf32>
    %33 = arith.mulf %31, %32 : vector<4x8192xf32>
    %c0_14 = arith.constant 0 : index
    %c0_15 = arith.constant 0 : index
    %c0_16 = arith.constant 0 : index
    %34 = vector.load %arg5[%c0_14, %c0_15, %c0_16] : memref<1x4x1xf32, #tpu.memory_space<vmem>>, vector<1x4x1xf32>
    %35 = vector.shape_cast %34 : vector<1x4x1xf32> to vector<4x1xf32>
    %36 = vector.broadcast %35 : vector<4x1xf32> to vector<4x8192xf32>
    %37 = arith.addf %33, %36 : vector<4x8192xf32>
    %cst_17 = arith.constant 0.000000e+00 : f32
    %38 = vector.broadcast %cst_17 : f32 to vector<4x8192xf32>
    %39 = arith.cmpf ogt, %37, %38 : vector<4x8192xf32>
    %cst_18 = arith.constant 0.000000e+00 : f32
    %40 = vector.broadcast %cst_18 : f32 to vector<4x8192xf32>
    %41 = arith.mulf %40, %37 : vector<4x8192xf32>
    %42 = arith.select %39, %37, %41 : vector<4x8192xi1>, vector<4x8192xf32>
    %43 = vector.broadcast %0 : vector<1x8192xf32> to vector<4x8192xf32>
    %44 = arith.mulf %42, %43 : vector<4x8192xf32>
    %cst_19 = arith.constant 0.000000e+00 : f32
    %45 = vector.broadcast %cst_19 : f32 to vector<4x1024xf32>
    %cst_20 = arith.constant 0.000000e+00 : f32
    %46 = vector.broadcast %cst_20 : f32 to vector<1x1024xf32>
    %c0_21 = arith.constant 0 : index
    %c0_22 = arith.constant 0 : index
    %c0_23 = arith.constant 0 : index
    %c0_24 = arith.constant 0 : index
    %47 = vector.load %arg3[%c0_21, %c0_22, %c0_23, %c0_24] : memref<1x8x4x4xf32, #tpu.memory_space<vmem>>, vector<1x1x4x4xf32>
    %48 = vector.shape_cast %47 : vector<1x1x4x4xf32> to vector<4x4xf32>
    %49 = vector.extract_strided_slice %44 {offsets = [0, 0], sizes = [4, 1024], strides = [1, 1]} : vector<4x8192xf32> to vector<4x1024xf32>
    %cst_25 = arith.constant dense<0.000000e+00> : vector<4x1024xf32>
    %50 = tpu.matmul %48, %49, %cst_25 {dimension_numbers = #tpu.dot_dimension_numbers<[1], [0], [0], [1], [0, 0, 1, 1], [], []>} : vector<4x4xf32>, vector<4x1024xf32>, vector<4x1024xf32> -> vector<4x1024xf32>
    %51 = arith.addf %45, %50 : vector<4x1024xf32>
    %52 = vector.extract_strided_slice %0 {offsets = [0, 0], sizes = [1, 1024], strides = [1, 1]} : vector<1x8192xf32> to vector<1x1024xf32>
    %53 = arith.maximumf %46, %52 : vector<1x1024xf32>
    %c0_26 = arith.constant 0 : index
    %c1 = arith.constant 1 : index
    %c0_27 = arith.constant 0 : index
    %c0_28 = arith.constant 0 : index
    %54 = vector.load %arg3[%c0_26, %c1, %c0_27, %c0_28] : memref<1x8x4x4xf32, #tpu.memory_space<vmem>>, vector<1x1x4x4xf32>
    %55 = vector.shape_cast %54 : vector<1x1x4x4xf32> to vector<4x4xf32>
    %56 = vector.extract_strided_slice %44 {offsets = [0, 1024], sizes = [4, 1024], strides = [1, 1]} : vector<4x8192xf32> to vector<4x1024xf32>
    %cst_29 = arith.constant dense<0.000000e+00> : vector<4x1024xf32>
    %57 = tpu.matmul %55, %56, %cst_29 {dimension_numbers = #tpu.dot_dimension_numbers<[1], [0], [0], [1], [0, 0, 1, 1], [], []>} : vector<4x4xf32>, vector<4x1024xf32>, vector<4x1024xf32> -> vector<4x1024xf32>
    %58 = arith.addf %51, %57 : vector<4x1024xf32>
    %59 = vector.extract_strided_slice %0 {offsets = [0, 1024], sizes = [1, 1024], strides = [1, 1]} : vector<1x8192xf32> to vector<1x1024xf32>
    %60 = arith.maximumf %53, %59 : vector<1x1024xf32>
    %c0_30 = arith.constant 0 : index
    %c2 = arith.constant 2 : index
    %c0_31 = arith.constant 0 : index
    %c0_32 = arith.constant 0 : index
    %61 = vector.load %arg3[%c0_30, %c2, %c0_31, %c0_32] : memref<1x8x4x4xf32, #tpu.memory_space<vmem>>, vector<1x1x4x4xf32>
    %62 = vector.shape_cast %61 : vector<1x1x4x4xf32> to vector<4x4xf32>
    %63 = vector.extract_strided_slice %44 {offsets = [0, 2048], sizes = [4, 1024], strides = [1, 1]} : vector<4x8192xf32> to vector<4x1024xf32>
    %cst_33 = arith.constant dense<0.000000e+00> : vector<4x1024xf32>
    %64 = tpu.matmul %62, %63, %cst_33 {dimension_numbers = #tpu.dot_dimension_numbers<[1], [0], [0], [1], [0, 0, 1, 1], [], []>} : vector<4x4xf32>, vector<4x1024xf32>, vector<4x1024xf32> -> vector<4x1024xf32>
    %65 = arith.addf %58, %64 : vector<4x1024xf32>
    %66 = vector.extract_strided_slice %0 {offsets = [0, 2048], sizes = [1, 1024], strides = [1, 1]} : vector<1x8192xf32> to vector<1x1024xf32>
    %67 = arith.maximumf %60, %66 : vector<1x1024xf32>
    %c0_34 = arith.constant 0 : index
    %c3 = arith.constant 3 : index
    %c0_35 = arith.constant 0 : index
    %c0_36 = arith.constant 0 : index
    %68 = vector.load %arg3[%c0_34, %c3, %c0_35, %c0_36] : memref<1x8x4x4xf32, #tpu.memory_space<vmem>>, vector<1x1x4x4xf32>
    %69 = vector.shape_cast %68 : vector<1x1x4x4xf32> to vector<4x4xf32>
    %70 = vector.extract_strided_slice %44 {offsets = [0, 3072], sizes = [4, 1024], strides = [1, 1]} : vector<4x8192xf32> to vector<4x1024xf32>
    %cst_37 = arith.constant dense<0.000000e+00> : vector<4x1024xf32>
    %71 = tpu.matmul %69, %70, %cst_37 {dimension_numbers = #tpu.dot_dimension_numbers<[1], [0], [0], [1], [0, 0, 1, 1], [], []>} : vector<4x4xf32>, vector<4x1024xf32>, vector<4x1024xf32> -> vector<4x1024xf32>
    %72 = arith.addf %65, %71 : vector<4x1024xf32>
    %73 = vector.extract_strided_slice %0 {offsets = [0, 3072], sizes = [1, 1024], strides = [1, 1]} : vector<1x8192xf32> to vector<1x1024xf32>
    %74 = arith.maximumf %67, %73 : vector<1x1024xf32>
    %c0_38 = arith.constant 0 : index
    %c4 = arith.constant 4 : index
    %c0_39 = arith.constant 0 : index
    %c0_40 = arith.constant 0 : index
    %75 = vector.load %arg3[%c0_38, %c4, %c0_39, %c0_40] : memref<1x8x4x4xf32, #tpu.memory_space<vmem>>, vector<1x1x4x4xf32>
    %76 = vector.shape_cast %75 : vector<1x1x4x4xf32> to vector<4x4xf32>
    %77 = vector.extract_strided_slice %44 {offsets = [0, 4096], sizes = [4, 1024], strides = [1, 1]} : vector<4x8192xf32> to vector<4x1024xf32>
    %cst_41 = arith.constant dense<0.000000e+00> : vector<4x1024xf32>
    %78 = tpu.matmul %76, %77, %cst_41 {dimension_numbers = #tpu.dot_dimension_numbers<[1], [0], [0], [1], [0, 0, 1, 1], [], []>} : vector<4x4xf32>, vector<4x1024xf32>, vector<4x1024xf32> -> vector<4x1024xf32>
    %79 = arith.addf %72, %78 : vector<4x1024xf32>
    %80 = vector.extract_strided_slice %0 {offsets = [0, 4096], sizes = [1, 1024], strides = [1, 1]} : vector<1x8192xf32> to vector<1x1024xf32>
    %81 = arith.maximumf %74, %80 : vector<1x1024xf32>
    %c0_42 = arith.constant 0 : index
    %c5 = arith.constant 5 : index
    %c0_43 = arith.constant 0 : index
    %c0_44 = arith.constant 0 : index
    %82 = vector.load %arg3[%c0_42, %c5, %c0_43, %c0_44] : memref<1x8x4x4xf32, #tpu.memory_space<vmem>>, vector<1x1x4x4xf32>
    %83 = vector.shape_cast %82 : vector<1x1x4x4xf32> to vector<4x4xf32>
    %84 = vector.extract_strided_slice %44 {offsets = [0, 5120], sizes = [4, 1024], strides = [1, 1]} : vector<4x8192xf32> to vector<4x1024xf32>
    %cst_45 = arith.constant dense<0.000000e+00> : vector<4x1024xf32>
    %85 = tpu.matmul %83, %84, %cst_45 {dimension_numbers = #tpu.dot_dimension_numbers<[1], [0], [0], [1], [0, 0, 1, 1], [], []>} : vector<4x4xf32>, vector<4x1024xf32>, vector<4x1024xf32> -> vector<4x1024xf32>
    %86 = arith.addf %79, %85 : vector<4x1024xf32>
    %87 = vector.extract_strided_slice %0 {offsets = [0, 5120], sizes = [1, 1024], strides = [1, 1]} : vector<1x8192xf32> to vector<1x1024xf32>
    %88 = arith.maximumf %81, %87 : vector<1x1024xf32>
    %c0_46 = arith.constant 0 : index
    %c6 = arith.constant 6 : index
    %c0_47 = arith.constant 0 : index
    %c0_48 = arith.constant 0 : index
    %89 = vector.load %arg3[%c0_46, %c6, %c0_47, %c0_48] : memref<1x8x4x4xf32, #tpu.memory_space<vmem>>, vector<1x1x4x4xf32>
    %90 = vector.shape_cast %89 : vector<1x1x4x4xf32> to vector<4x4xf32>
    %91 = vector.extract_strided_slice %44 {offsets = [0, 6144], sizes = [4, 1024], strides = [1, 1]} : vector<4x8192xf32> to vector<4x1024xf32>
    %cst_49 = arith.constant dense<0.000000e+00> : vector<4x1024xf32>
    %92 = tpu.matmul %90, %91, %cst_49 {dimension_numbers = #tpu.dot_dimension_numbers<[1], [0], [0], [1], [0, 0, 1, 1], [], []>} : vector<4x4xf32>, vector<4x1024xf32>, vector<4x1024xf32> -> vector<4x1024xf32>
    %93 = arith.addf %86, %92 : vector<4x1024xf32>
    %94 = vector.extract_strided_slice %0 {offsets = [0, 6144], sizes = [1, 1024], strides = [1, 1]} : vector<1x8192xf32> to vector<1x1024xf32>
    %95 = arith.maximumf %88, %94 : vector<1x1024xf32>
    %c0_50 = arith.constant 0 : index
    %c7 = arith.constant 7 : index
    %c0_51 = arith.constant 0 : index
    %c0_52 = arith.constant 0 : index
    %96 = vector.load %arg3[%c0_50, %c7, %c0_51, %c0_52] : memref<1x8x4x4xf32, #tpu.memory_space<vmem>>, vector<1x1x4x4xf32>
    %97 = vector.shape_cast %96 : vector<1x1x4x4xf32> to vector<4x4xf32>
    %98 = vector.extract_strided_slice %44 {offsets = [0, 7168], sizes = [4, 1024], strides = [1, 1]} : vector<4x8192xf32> to vector<4x1024xf32>
    %cst_53 = arith.constant dense<0.000000e+00> : vector<4x1024xf32>
    %99 = tpu.matmul %97, %98, %cst_53 {dimension_numbers = #tpu.dot_dimension_numbers<[1], [0], [0], [1], [0, 0, 1, 1], [], []>} : vector<4x4xf32>, vector<4x1024xf32>, vector<4x1024xf32> -> vector<4x1024xf32>
    %100 = arith.addf %93, %99 : vector<4x1024xf32>
    %101 = vector.extract_strided_slice %0 {offsets = [0, 7168], sizes = [1, 1024], strides = [1, 1]} : vector<1x8192xf32> to vector<1x1024xf32>
    %102 = arith.maximumf %95, %101 : vector<1x1024xf32>
    %103 = vector.broadcast %102 : vector<1x1024xf32> to vector<4x1024xf32>
    %104 = arith.mulf %100, %103 : vector<4x1024xf32>
    %cst_54 = arith.constant 0.000000e+00 : f32
    %105 = vector.broadcast %cst_54 : f32 to vector<4x128xf32>
    %106 = vector.extract_strided_slice %104 {offsets = [0, 0], sizes = [4, 128], strides = [1, 1]} : vector<4x1024xf32> to vector<4x128xf32>
    %107 = arith.addf %105, %106 : vector<4x128xf32>
    %108 = vector.extract_strided_slice %104 {offsets = [0, 128], sizes = [4, 128], strides = [1, 1]} : vector<4x1024xf32> to vector<4x128xf32>
    %109 = arith.addf %107, %108 : vector<4x128xf32>
    %110 = vector.extract_strided_slice %104 {offsets = [0, 256], sizes = [4, 128], strides = [1, 1]} : vector<4x1024xf32> to vector<4x128xf32>
    %111 = arith.addf %109, %110 : vector<4x128xf32>
    %112 = vector.extract_strided_slice %104 {offsets = [0, 384], sizes = [4, 128], strides = [1, 1]} : vector<4x1024xf32> to vector<4x128xf32>
    %113 = arith.addf %111, %112 : vector<4x128xf32>
    %114 = vector.extract_strided_slice %104 {offsets = [0, 512], sizes = [4, 128], strides = [1, 1]} : vector<4x1024xf32> to vector<4x128xf32>
    %115 = arith.addf %113, %114 : vector<4x128xf32>
    %116 = vector.extract_strided_slice %104 {offsets = [0, 640], sizes = [4, 128], strides = [1, 1]} : vector<4x1024xf32> to vector<4x128xf32>
    %117 = arith.addf %115, %116 : vector<4x128xf32>
    %118 = vector.extract_strided_slice %104 {offsets = [0, 768], sizes = [4, 128], strides = [1, 1]} : vector<4x1024xf32> to vector<4x128xf32>
    %119 = arith.addf %117, %118 : vector<4x128xf32>
    %120 = vector.extract_strided_slice %104 {offsets = [0, 896], sizes = [4, 128], strides = [1, 1]} : vector<4x1024xf32> to vector<4x128xf32>
    %121 = arith.addf %119, %120 : vector<4x128xf32>
    %cst_55 = arith.constant 1.250000e-01 : f32
    %122 = vector.broadcast %cst_55 : f32 to vector<4x128xf32>
    %123 = arith.mulf %121, %122 : vector<4x128xf32>
    %c0_56 = arith.constant 0 : index
    %c0_57 = arith.constant 0 : index
    %124 = vector.load %arg7[%c0_56, %c0_57] : memref<1x32xf32, #tpu.memory_space<vmem>>, vector<1x32xf32>
    %125 = vector.extract_strided_slice %123 {offsets = [0, 0], sizes = [1, 64], strides = [1, 1]} : vector<4x128xf32> to vector<1x64xf32>
    %c0_58 = arith.constant 0 : index
    %c0_59 = arith.constant 0 : index
    %c0_60 = arith.constant 0 : index
    %126 = vector.load %arg6[%c0_58, %c0_59, %c0_60] : memref<4x64x32xf32, #tpu.memory_space<vmem>>, vector<1x64x32xf32>
    %127 = vector.shape_cast %126 : vector<1x64x32xf32> to vector<64x32xf32>
    %cst_61 = arith.constant dense<0.000000e+00> : vector<1x32xf32>
    %128 = tpu.matmul %125, %127, %cst_61 {dimension_numbers = #tpu.dot_dimension_numbers<[1], [0], [0], [1], [0, 0, 1, 1], [], []>} : vector<1x64xf32>, vector<64x32xf32>, vector<1x32xf32> -> vector<1x32xf32>
    %129 = arith.addf %124, %128 : vector<1x32xf32>
    %130 = vector.extract_strided_slice %123 {offsets = [1, 0], sizes = [1, 64], strides = [1, 1]} : vector<4x128xf32> to vector<1x64xf32>
    %c1_62 = arith.constant 1 : index
    %c0_63 = arith.constant 0 : index
    %c0_64 = arith.constant 0 : index
    %131 = vector.load %arg6[%c1_62, %c0_63, %c0_64] : memref<4x64x32xf32, #tpu.memory_space<vmem>>, vector<1x64x32xf32>
    %132 = vector.shape_cast %131 : vector<1x64x32xf32> to vector<64x32xf32>
    %cst_65 = arith.constant dense<0.000000e+00> : vector<1x32xf32>
    %133 = tpu.matmul %130, %132, %cst_65 {dimension_numbers = #tpu.dot_dimension_numbers<[1], [0], [0], [1], [0, 0, 1, 1], [], []>} : vector<1x64xf32>, vector<64x32xf32>, vector<1x32xf32> -> vector<1x32xf32>
    %134 = arith.addf %129, %133 : vector<1x32xf32>
    %135 = vector.extract_strided_slice %123 {offsets = [2, 0], sizes = [1, 64], strides = [1, 1]} : vector<4x128xf32> to vector<1x64xf32>
    %c2_66 = arith.constant 2 : index
    %c0_67 = arith.constant 0 : index
    %c0_68 = arith.constant 0 : index
    %136 = vector.load %arg6[%c2_66, %c0_67, %c0_68] : memref<4x64x32xf32, #tpu.memory_space<vmem>>, vector<1x64x32xf32>
    %137 = vector.shape_cast %136 : vector<1x64x32xf32> to vector<64x32xf32>
    %cst_69 = arith.constant dense<0.000000e+00> : vector<1x32xf32>
    %138 = tpu.matmul %135, %137, %cst_69 {dimension_numbers = #tpu.dot_dimension_numbers<[1], [0], [0], [1], [0, 0, 1, 1], [], []>} : vector<1x64xf32>, vector<64x32xf32>, vector<1x32xf32> -> vector<1x32xf32>
    %139 = arith.addf %134, %138 : vector<1x32xf32>
    %140 = vector.extract_strided_slice %123 {offsets = [3, 0], sizes = [1, 64], strides = [1, 1]} : vector<4x128xf32> to vector<1x64xf32>
    %c3_70 = arith.constant 3 : index
    %c0_71 = arith.constant 0 : index
    %c0_72 = arith.constant 0 : index
    %141 = vector.load %arg6[%c3_70, %c0_71, %c0_72] : memref<4x64x32xf32, #tpu.memory_space<vmem>>, vector<1x64x32xf32>
    %142 = vector.shape_cast %141 : vector<1x64x32xf32> to vector<64x32xf32>
    %cst_73 = arith.constant dense<0.000000e+00> : vector<1x32xf32>
    %143 = tpu.matmul %140, %142, %cst_73 {dimension_numbers = #tpu.dot_dimension_numbers<[1], [0], [0], [1], [0, 0, 1, 1], [], []>} : vector<1x64xf32>, vector<64x32xf32>, vector<1x32xf32> -> vector<1x32xf32>
    %144 = arith.addf %139, %143 : vector<1x32xf32>
    %c0_74 = arith.constant 0 : index
    %c0_75 = arith.constant 0 : index
    %145 = vector.load %arg8[%c0_74, %c0_75] : memref<2x32xf32, #tpu.memory_space<vmem>>, vector<1x32xf32>
    tpu.vector_store %arg8[%c0_74, %c0_75], %144 {strides = array<i32>} : memref<2x32xf32, #tpu.memory_space<vmem>>, vector<1x32xf32>,
    %c0_76 = arith.constant 0 : index
    %c0_77 = arith.constant 0 : index
    %146 = vector.load %arg7[%c0_76, %c0_77] : memref<1x32xf32, #tpu.memory_space<vmem>>, vector<1x32xf32>
    %147 = vector.extract_strided_slice %123 {offsets = [0, 64], sizes = [1, 64], strides = [1, 1]} : vector<4x128xf32> to vector<1x64xf32>
    %c0_78 = arith.constant 0 : index
    %c0_79 = arith.constant 0 : index
    %c0_80 = arith.constant 0 : index
    %148 = vector.load %arg6[%c0_78, %c0_79, %c0_80] : memref<4x64x32xf32, #tpu.memory_space<vmem>>, vector<1x64x32xf32>
    %149 = vector.shape_cast %148 : vector<1x64x32xf32> to vector<64x32xf32>
    %cst_81 = arith.constant dense<0.000000e+00> : vector<1x32xf32>
    %150 = tpu.matmul %147, %149, %cst_81 {dimension_numbers = #tpu.dot_dimension_numbers<[1], [0], [0], [1], [0, 0, 1, 1], [], []>} : vector<1x64xf32>, vector<64x32xf32>, vector<1x32xf32> -> vector<1x32xf32>
    %151 = arith.addf %146, %150 : vector<1x32xf32>
    %152 = vector.extract_strided_slice %123 {offsets = [1, 64], sizes = [1, 64], strides = [1, 1]} : vector<4x128xf32> to vector<1x64xf32>
    %c1_82 = arith.constant 1 : index
    %c0_83 = arith.constant 0 : index
    %c0_84 = arith.constant 0 : index
    %153 = vector.load %arg6[%c1_82, %c0_83, %c0_84] : memref<4x64x32xf32, #tpu.memory_space<vmem>>, vector<1x64x32xf32>
    %154 = vector.shape_cast %153 : vector<1x64x32xf32> to vector<64x32xf32>
    %cst_85 = arith.constant dense<0.000000e+00> : vector<1x32xf32>
    %155 = tpu.matmul %152, %154, %cst_85 {dimension_numbers = #tpu.dot_dimension_numbers<[1], [0], [0], [1], [0, 0, 1, 1], [], []>} : vector<1x64xf32>, vector<64x32xf32>, vector<1x32xf32> -> vector<1x32xf32>
    %156 = arith.addf %151, %155 : vector<1x32xf32>
    %157 = vector.extract_strided_slice %123 {offsets = [2, 64], sizes = [1, 64], strides = [1, 1]} : vector<4x128xf32> to vector<1x64xf32>
    %c2_86 = arith.constant 2 : index
    %c0_87 = arith.constant 0 : index
    %c0_88 = arith.constant 0 : index
    %158 = vector.load %arg6[%c2_86, %c0_87, %c0_88] : memref<4x64x32xf32, #tpu.memory_space<vmem>>, vector<1x64x32xf32>
    %159 = vector.shape_cast %158 : vector<1x64x32xf32> to vector<64x32xf32>
    %cst_89 = arith.constant dense<0.000000e+00> : vector<1x32xf32>
    %160 = tpu.matmul %157, %159, %cst_89 {dimension_numbers = #tpu.dot_dimension_numbers<[1], [0], [0], [1], [0, 0, 1, 1], [], []>} : vector<1x64xf32>, vector<64x32xf32>, vector<1x32xf32> -> vector<1x32xf32>
    %161 = arith.addf %156, %160 : vector<1x32xf32>
    %162 = vector.extract_strided_slice %123 {offsets = [3, 64], sizes = [1, 64], strides = [1, 1]} : vector<4x128xf32> to vector<1x64xf32>
    %c3_90 = arith.constant 3 : index
    %c0_91 = arith.constant 0 : index
    %c0_92 = arith.constant 0 : index
    %163 = vector.load %arg6[%c3_90, %c0_91, %c0_92] : memref<4x64x32xf32, #tpu.memory_space<vmem>>, vector<1x64x32xf32>
    %164 = vector.shape_cast %163 : vector<1x64x32xf32> to vector<64x32xf32>
    %cst_93 = arith.constant dense<0.000000e+00> : vector<1x32xf32>
    %165 = tpu.matmul %162, %164, %cst_93 {dimension_numbers = #tpu.dot_dimension_numbers<[1], [0], [0], [1], [0, 0, 1, 1], [], []>} : vector<1x64xf32>, vector<64x32xf32>, vector<1x32xf32> -> vector<1x32xf32>
    %166 = arith.addf %161, %165 : vector<1x32xf32>
    %c1_94 = arith.constant 1 : index
    %c0_95 = arith.constant 0 : index
    %167 = vector.load %arg8[%c1_94, %c0_95] : memref<2x32xf32, #tpu.memory_space<vmem>>, vector<1x32xf32>
    tpu.vector_store %arg8[%c1_94, %c0_95], %166 {strides = array<i32>} : memref<2x32xf32, #tpu.memory_space<vmem>>, vector<1x32xf32>,
    return
  }
}

</mosaic_0001>

<llo_original>
// kernel: encoder_forward.1
$region0: #{encoder_forward.1}
  #allocation0 [shape = 'u32[]', space=smem, size = 0x4, offset = 0x4, fixed_abs, tag = 'smem constant byte address 0x4 - core index']
  #allocation1 [shape = 'u32[144,128]{1,0:T(1,128)}', space=vmem, size = 0x12000, scoped, tag = 'internal scratch']
  %s0 = inlined_call_operand.vmem [shape: f32[27,8192], index: 0, kind: input, shape index: {}]
  %s1 = inlined_call_operand.vmem [shape: f32[1,8192], index: 1, kind: input, shape index: {}]
  %s2 = inlined_call_operand.vmem [shape: f32[4,27], index: 2, kind: input, shape index: {}]
  %s3 = inlined_call_operand.vmem [shape: f32[1,8,4,4], index: 3, kind: input, shape index: {}]
  %s4 = inlined_call_operand.vmem [shape: f32[1,4,1], index: 4, kind: input, shape index: {}]
  %s5 = inlined_call_operand.vmem [shape: f32[1,4,1], index: 5, kind: input, shape index: {}]
  %s6 = inlined_call_operand.vmem [shape: f32[4,64,32], index: 6, kind: input, shape index: {}]
  %s7 = inlined_call_operand.vmem [shape: f32[1,32], index: 7, kind: input, shape index: {}]
  %s8 = inlined_call_operand.hbm [shape: f32[2,32], index: 8, kind: output, shape index: {}]
  %s9 = sld [smem:[#allocation0]]
  $region42: #{encoder_forward.1} parent=0
    _
  %s11 = ssub.s32 1, %s9
  %s12 = scalar_select 0, %s11, %s9
  $region1: #{encoder_forward.1} parent=0
    #allocation2 [shape = 'u8[1024]{0}', space=vmem, size = 0x400, scoped, tag = 'output window, operand 0, single buffered']
    #allocation3 [shape = 's32[1]{0}', space=sflag, size = 0x4, scoped, tag = 'scoped memory for encoder_forward.1']
    %13 = vsyncpa [#allocation3], 0
    // Predicated region
    $region2: #{encoder_forward.1} parent=1 // pred_check
      _
    $region3: #{encoder_forward.1} parent=1 // pred_check_branch
      %15 = sbr.rel (0) target = $region5
    $region4: #{encoder_forward.1} parent=1 // pred_region
      _
    $region5: #{encoder_forward.1} parent=1 // pred_fallthru
      _
    // Predicated region
    $region6: #{encoder_forward.1} parent=1 // pred_check
      _
    $region7: #{encoder_forward.1} parent=1 // pred_check_branch
      %17 = sbr.rel (0) target = $region9
    $region8: #{encoder_forward.1} parent=1 // pred_region
      _
    $region9: #{encoder_forward.1} parent=1 // pred_fallthru
      _
    // Predicated region
    $region10: #{encoder_forward.1} parent=1 // pred_check
      _
    $region11: #{encoder_forward.1} parent=1 // pred_check_branch
      %19 = sbr.rel (0) target = $region13
    $region12: #{encoder_forward.1} parent=1 // pred_region
      _
    $region13: #{encoder_forward.1} parent=1 // pred_fallthru
      _
    // Predicated region
    $region14: #{encoder_forward.1} parent=1 // pred_check
      _
    $region15: #{encoder_forward.1} parent=1 // pred_check_branch
      %21 = sbr.rel (0) target = $region17
    $region16: #{encoder_forward.1} parent=1 // pred_region
      _
    $region17: #{encoder_forward.1} parent=1 // pred_fallthru
      _
    // Predicated region
    $region18: #{encoder_forward.1} parent=1 // pred_check
      _
    $region19: #{encoder_forward.1} parent=1 // pred_check_branch
      %23 = sbr.rel (0) target = $region21
    $region20: #{encoder_forward.1} parent=1 // pred_region
      _
    $region21: #{encoder_forward.1} parent=1 // pred_fallthru
      _
    // Predicated region
    $region22: #{encoder_forward.1} parent=1 // pred_check
      _
    $region23: #{encoder_forward.1} parent=1 // pred_check_branch
      %25 = sbr.rel (0) target = $region25
    $region24: #{encoder_forward.1} parent=1 // pred_region
      _
    $region25: #{encoder_forward.1} parent=1 // pred_fallthru
      _
    // Predicated region
    $region26: #{encoder_forward.1} parent=1 // pred_check
      _
    $region27: #{encoder_forward.1} parent=1 // pred_check_branch
      %27 = sbr.rel (0) target = $region29
    $region28: #{encoder_forward.1} parent=1 // pred_region
      _
    $region29: #{encoder_forward.1} parent=1 // pred_fallthru
      _
    // Predicated region
    $region30: #{encoder_forward.1} parent=1 // pred_check
      _
    $region31: #{encoder_forward.1} parent=1 // pred_check_branch
      %29 = sbr.rel (0) target = $region33
    $region32: #{encoder_forward.1} parent=1 // pred_region
      _
    $region33: #{encoder_forward.1} parent=1 // pred_fallthru
      _
    %v30 = vld [vmem:[%s1] sm:$0xff]
    %v31 = vld [vmem:[%s1 + $0x8] sm:$0xff]
    %v32 = vld [vmem:[%s1 + $0x10] sm:$0xff]
    %v33 = vld [vmem:[%s1 + $0x18] sm:$0xff]
    %v34 = vld [vmem:[%s1 + $0x20] sm:$0xff]
    %v35 = vld [vmem:[%s1 + $0x28] sm:$0xff]
    %v36 = vld [vmem:[%s1 + $0x30] sm:$0xff]
    %v37 = vld [vmem:[%s1 + $0x38] sm:$0xff]
    %v38 = vld [vmem:[%s2] sm:$0xf]
    %v39 = vld [vmem:[%s0] sm:$0xff]
    %v40 = vld [vmem:[%s0 + $0x8] sm:$0xff]
    %v41 = vld [vmem:[%s0 + $0x10] sm:$0xff]
    %v42 = vld [vmem:[%s0 + $0x18] sm:$0xff]
    %v43 = vld [vmem:[%s0 + $0x20] sm:$0xff]
    %v44 = vld [vmem:[%s0 + $0x28] sm:$0xff]
    %v45 = vld [vmem:[%s0 + $0x30] sm:$0xff]
    %v46 = vld [vmem:[%s0 + $0x38] sm:$0xff]
    %v47 = vld [vmem:[%s0 + $0x40] sm:$0xff]
    %v48 = vld [vmem:[%s0 + $0x48] sm:$0xff]
    %v49 = vld [vmem:[%s0 + $0x50] sm:$0xff]
    %v50 = vld [vmem:[%s0 + $0x58] sm:$0xff]
    %v51 = vld [vmem:[%s0 + $0x60] sm:$0xff]
    %v52 = vld [vmem:[%s0 + $0x68] sm:$0xff]
    %v53 = vld [vmem:[%s0 + $0x70] sm:$0xff]
    %v54 = vld [vmem:[%s0 + $0x78] sm:$0xff]
    %v55 = vld [vmem:[%s0 + $0x80] sm:$0xff]
    %v56 = vld [vmem:[%s0 + $0x88] sm:$0xff]
    %v57 = vld [vmem:[%s0 + $0x90] sm:$0xff]
    %v58 = vld [vmem:[%s0 + $0x98] sm:$0xff]
    %v59 = vld [vmem:[%s0 + $0xa0] sm:$0xff]
    %v60 = vld [vmem:[%s0 + $0xa8] sm:$0xff]
    %v61 = vld [vmem:[%s0 + $0xb0] sm:$0xff]
    %v62 = vld [vmem:[%s0 + $0xb8] sm:$0xff]
    %v63 = vld [vmem:[%s0 + $0xc0] sm:$0xff]
    %v64 = vld [vmem:[%s0 + $0xc8] sm:$0xff]
    %v65 = vld [vmem:[%s0 + $0xd0] sm:$0xff]
    %v66 = vld [vmem:[%s0 + $0xd8] sm:$0xff]
    %v67 = vld [vmem:[%s0 + $0xe0] sm:$0xff]
    %v68 = vld [vmem:[%s0 + $0xe8] sm:$0xff]
    %v69 = vld [vmem:[%s0 + $0xf0] sm:$0xff]
    %v70 = vld [vmem:[%s0 + $0xf8] sm:$0xff]
    %v71 = vld [vmem:[%s0 + $0x100] sm:$0xff]
    %v72 = vld [vmem:[%s0 + $0x108] sm:$0xff]
    %v73 = vld [vmem:[%s0 + $0x110] sm:$0xff]
    %v74 = vld [vmem:[%s0 + $0x118] sm:$0xff]
    %v75 = vld [vmem:[%s0 + $0x120] sm:$0xff]
    %v76 = vld [vmem:[%s0 + $0x128] sm:$0xff]
    %v77 = vld [vmem:[%s0 + $0x130] sm:$0xff]
    %v78 = vld [vmem:[%s0 + $0x138] sm:$0xff]
    %v79 = vld [vmem:[%s0 + $0x140] sm:$0xff]
    %v80 = vld [vmem:[%s0 + $0x148] sm:$0xff]
    %v81 = vld [vmem:[%s0 + $0x150] sm:$0xff]
    %v82 = vld [vmem:[%s0 + $0x158] sm:$0xff]
    %v83 = vld [vmem:[%s0 + $0x160] sm:$0xff]
    %v84 = vld [vmem:[%s0 + $0x168] sm:$0xff]
    %v85 = vld [vmem:[%s0 + $0x170] sm:$0xff]
    %v86 = vld [vmem:[%s0 + $0x178] sm:$0xff]
    %v87 = vld [vmem:[%s0 + $0x180] sm:$0xff]
    %v88 = vld [vmem:[%s0 + $0x188] sm:$0xff]
    %v89 = vld [vmem:[%s0 + $0x190] sm:$0xff]
    %v90 = vld [vmem:[%s0 + $0x198] sm:$0xff]
    %v91 = vld [vmem:[%s0 + $0x1a0] sm:$0xff]
    %v92 = vld [vmem:[%s0 + $0x1a8] sm:$0xff]
    %v93 = vld [vmem:[%s0 + $0x1b0] sm:$0xff]
    %v94 = vld [vmem:[%s0 + $0x1b8] sm:$0xff]
    %v95 = vld [vmem:[%s0 + $0x1c0] sm:$0xff]
    %v96 = vld [vmem:[%s0 + $0x1c8] sm:$0xff]
    %v97 = vld [vmem:[%s0 + $0x1d0] sm:$0xff]
    %v98 = vld [vmem:[%s0 + $0x1d8] sm:$0xff]
    %v99 = vld [vmem:[%s0 + $0x1e0] sm:$0xff]
    %v100 = vld [vmem:[%s0 + $0x1e8] sm:$0xff]
    %v101 = vld [vmem:[%s0 + $0x1f0] sm:$0xff]
    %v102 = vld [vmem:[%s0 + $0x1f8] sm:$0xff]
    %v103 = vld [vmem:[%s0 + $0x200] sm:$0xff]
    %v104 = vld [vmem:[%s0 + $0x208] sm:$0xff]
    %v105 = vld [vmem:[%s0 + $0x210] sm:$0xff]
    %v106 = vld [vmem:[%s0 + $0x218] sm:$0xff]
    %v107 = vld [vmem:[%s0 + $0x220] sm:$0xff]
    %v108 = vld [vmem:[%s0 + $0x228] sm:$0xff]
    %v109 = vld [vmem:[%s0 + $0x230] sm:$0xff]
    %v110 = vld [vmem:[%s0 + $0x238] sm:$0xff]
    %v111 = vld [vmem:[%s0 + $0x240] sm:$0xff]
    %v112 = vld [vmem:[%s0 + $0x248] sm:$0xff]
    %v113 = vld [vmem:[%s0 + $0x250] sm:$0xff]
    %v114 = vld [vmem:[%s0 + $0x258] sm:$0xff]
    %v115 = vld [vmem:[%s0 + $0x260] sm:$0xff]
    %v116 = vld [vmem:[%s0 + $0x268] sm:$0xff]
    %v117 = vld [vmem:[%s0 + $0x270] sm:$0xff]
    %v118 = vld [vmem:[%s0 + $0x278] sm:$0xff]
    %v119 = vld [vmem:[%s0 + $0x280] sm:$0xff]
    %v120 = vld [vmem:[%s0 + $0x288] sm:$0xff]
    %v121 = vld [vmem:[%s0 + $0x290] sm:$0xff]
    %v122 = vld [vmem:[%s0 + $0x298] sm:$0xff]
    %v123 = vld [vmem:[%s0 + $0x2a0] sm:$0xff]
    %v124 = vld [vmem:[%s0 + $0x2a8] sm:$0xff]
    %v125 = vld [vmem:[%s0 + $0x2b0] sm:$0xff]
    %v126 = vld [vmem:[%s0 + $0x2b8] sm:$0xff]
    %v127 = vld [vmem:[%s0 + $0x2c0] sm:$0xff]
    %v128 = vld [vmem:[%s0 + $0x2c8] sm:$0xff]
    %v129 = vld [vmem:[%s0 + $0x2d0] sm:$0xff]
    %v130 = vld [vmem:[%s0 + $0x2d8] sm:$0xff]
    %v131 = vld [vmem:[%s0 + $0x2e0] sm:$0xff]
    %v132 = vld [vmem:[%s0 + $0x2e8] sm:$0xff]
    %v133 = vld [vmem:[%s0 + $0x2f0] sm:$0xff]
    %v134 = vld [vmem:[%s0 + $0x2f8] sm:$0xff]
    %v135 = vld [vmem:[%s0 + $0x300] sm:$0xff]
    %v136 = vld [vmem:[%s0 + $0x308] sm:$0xff]
    %v137 = vld [vmem:[%s0 + $0x310] sm:$0xff]
    %v138 = vld [vmem:[%s0 + $0x318] sm:$0xff]
    %v139 = vld [vmem:[%s0 + $0x320] sm:$0xff]
    %v140 = vld [vmem:[%s0 + $0x328] sm:$0xff]
    %v141 = vld [vmem:[%s0 + $0x330] sm:$0xff]
    %v142 = vld [vmem:[%s0 + $0x338] sm:$0xff]
    %v143 = vld [vmem:[%s0 + $0x340] sm:$0xff]
    %v144 = vld [vmem:[%s0 + $0x348] sm:$0xff]
    %v145 = vld [vmem:[%s0 + $0x350] sm:$0xff]
    %v146 = vld [vmem:[%s0 + $0x358] sm:$0xff]
    %v147 = vld [vmem:[%s0 + $0x360] sm:$0xff]
    %v148 = vld [vmem:[%s0 + $0x368] sm:$0xff]
    %v149 = vld [vmem:[%s0 + $0x370] sm:$0xff]
    %v150 = vld [vmem:[%s0 + $0x378] sm:$0xff]
    %v151 = vld [vmem:[%s0 + $0x380] sm:$0xff]
    %v152 = vld [vmem:[%s0 + $0x388] sm:$0xff]
    %v153 = vld [vmem:[%s0 + $0x390] sm:$0xff]
    %v154 = vld [vmem:[%s0 + $0x398] sm:$0xff]
    %v155 = vld [vmem:[%s0 + $0x3a0] sm:$0xff]
    %v156 = vld [vmem:[%s0 + $0x3a8] sm:$0xff]
    %v157 = vld [vmem:[%s0 + $0x3b0] sm:$0xff]
    %v158 = vld [vmem:[%s0 + $0x3b8] sm:$0xff]
    %v159 = vld [vmem:[%s0 + $0x3c0] sm:$0xff]
    %v160 = vld [vmem:[%s0 + $0x3c8] sm:$0xff]
    %v161 = vld [vmem:[%s0 + $0x3d0] sm:$0xff]
    %v162 = vld [vmem:[%s0 + $0x3d8] sm:$0xff]
    %v163 = vld [vmem:[%s0 + $0x3e0] sm:$0xff]
    %v164 = vld [vmem:[%s0 + $0x3e8] sm:$0xff]
    %v165 = vld [vmem:[%s0 + $0x3f0] sm:$0xff]
    %v166 = vld [vmem:[%s0 + $0x3f8] sm:$0xff]
    %v167 = vld [vmem:[%s0 + $0x400] sm:$0xff]
    %v168 = vld [vmem:[%s0 + $0x408] sm:$0xff]
    %v169 = vld [vmem:[%s0 + $0x410] sm:$0xff]
    %v170 = vld [vmem:[%s0 + $0x418] sm:$0xff]
    %v171 = vld [vmem:[%s0 + $0x420] sm:$0xff]
    %v172 = vld [vmem:[%s0 + $0x428] sm:$0xff]
    %v173 = vld [vmem:[%s0 + $0x430] sm:$0xff]
    %v174 = vld [vmem:[%s0 + $0x438] sm:$0xff]
    %v175 = vld [vmem:[%s0 + $0x440] sm:$0xff]
    %v176 = vld [vmem:[%s0 + $0x448] sm:$0xff]
    %v177 = vld [vmem:[%s0 + $0x450] sm:$0xff]
    %v178 = vld [vmem:[%s0 + $0x458] sm:$0xff]
    %v179 = vld [vmem:[%s0 + $0x460] sm:$0xff]
    %v180 = vld [vmem:[%s0 + $0x468] sm:$0xff]
    %v181 = vld [vmem:[%s0 + $0x470] sm:$0xff]
    %v182 = vld [vmem:[%s0 + $0x478] sm:$0xff]
    %v183 = vld [vmem:[%s0 + $0x480] sm:$0xff]
    %v184 = vld [vmem:[%s0 + $0x488] sm:$0xff]
    %v185 = vld [vmem:[%s0 + $0x490] sm:$0xff]
    %v186 = vld [vmem:[%s0 + $0x498] sm:$0xff]
    %v187 = vld [vmem:[%s0 + $0x4a0] sm:$0xff]
    %v188 = vld [vmem:[%s0 + $0x4a8] sm:$0xff]
    %v189 = vld [vmem:[%s0 + $0x4b0] sm:$0xff]
    %v190 = vld [vmem:[%s0 + $0x4b8] sm:$0xff]
    %v191 = vld [vmem:[%s0 + $0x4c0] sm:$0xff]
    %v192 = vld [vmem:[%s0 + $0x4c8] sm:$0xff]
    %v193 = vld [vmem:[%s0 + $0x4d0] sm:$0xff]
    %v194 = vld [vmem:[%s0 + $0x4d8] sm:$0xff]
    %v195 = vld [vmem:[%s0 + $0x4e0] sm:$0xff]
    %v196 = vld [vmem:[%s0 + $0x4e8] sm:$0xff]
    %v197 = vld [vmem:[%s0 + $0x4f0] sm:$0xff]
    %v198 = vld [vmem:[%s0 + $0x4f8] sm:$0xff]
    %v199 = vld [vmem:[%s0 + $0x500] sm:$0xff]
    %v200 = vld [vmem:[%s0 + $0x508] sm:$0xff]
    %v201 = vld [vmem:[%s0 + $0x510] sm:$0xff]
    %v202 = vld [vmem:[%s0 + $0x518] sm:$0xff]
    %v203 = vld [vmem:[%s0 + $0x520] sm:$0xff]
    %v204 = vld [vmem:[%s0 + $0x528] sm:$0xff]
    %v205 = vld [vmem:[%s0 + $0x530] sm:$0xff]
    %v206 = vld [vmem:[%s0 + $0x538] sm:$0xff]
    %v207 = vld [vmem:[%s0 + $0x540] sm:$0xff]
    %v208 = vld [vmem:[%s0 + $0x548] sm:$0xff]
    %v209 = vld [vmem:[%s0 + $0x550] sm:$0xff]
    %v210 = vld [vmem:[%s0 + $0x558] sm:$0xff]
    %v211 = vld [vmem:[%s0 + $0x560] sm:$0xff]
    %v212 = vld [vmem:[%s0 + $0x568] sm:$0xff]
    %v213 = vld [vmem:[%s0 + $0x570] sm:$0xff]
    %v214 = vld [vmem:[%s0 + $0x578] sm:$0xff]
    %v215 = vld [vmem:[%s0 + $0x580] sm:$0xff]
    %v216 = vld [vmem:[%s0 + $0x588] sm:$0xff]
    %v217 = vld [vmem:[%s0 + $0x590] sm:$0xff]
    %v218 = vld [vmem:[%s0 + $0x598] sm:$0xff]
    %v219 = vld [vmem:[%s0 + $0x5a0] sm:$0xff]
    %v220 = vld [vmem:[%s0 + $0x5a8] sm:$0xff]
    %v221 = vld [vmem:[%s0 + $0x5b0] sm:$0xff]
    %v222 = vld [vmem:[%s0 + $0x5b8] sm:$0xff]
    %v223 = vld [vmem:[%s0 + $0x5c0] sm:$0xff]
    %v224 = vld [vmem:[%s0 + $0x5c8] sm:$0xff]
    %v225 = vld [vmem:[%s0 + $0x5d0] sm:$0xff]
    %v226 = vld [vmem:[%s0 + $0x5d8] sm:$0xff]
    %v227 = vld [vmem:[%s0 + $0x5e0] sm:$0xff]
    %v228 = vld [vmem:[%s0 + $0x5e8] sm:$0xff]
    %v229 = vld [vmem:[%s0 + $0x5f0] sm:$0xff]
    %v230 = vld [vmem:[%s0 + $0x5f8] sm:$0xff]
    %v231 = vld [vmem:[%s0 + $0x600] sm:$0x7]
    %v232 = vld [vmem:[%s0 + $0x608] sm:$0x7]
    %v233 = vld [vmem:[%s0 + $0x610] sm:$0x7]
    %v234 = vld [vmem:[%s0 + $0x618] sm:$0x7]
    %v235 = vld [vmem:[%s0 + $0x620] sm:$0x7]
    %v236 = vld [vmem:[%s0 + $0x628] sm:$0x7]
    %v237 = vld [vmem:[%s0 + $0x630] sm:$0x7]
    %v238 = vld [vmem:[%s0 + $0x638] sm:$0x7]
    %v239 = vld [vmem:[%s0 + $0x640] sm:$0x7]
    %v240 = vld [vmem:[%s0 + $0x648] sm:$0x7]
    %v241 = vld [vmem:[%s0 + $0x650] sm:$0x7]
    %v242 = vld [vmem:[%s0 + $0x658] sm:$0x7]
    %v243 = vld [vmem:[%s0 + $0x660] sm:$0x7]
    %v244 = vld [vmem:[%s0 + $0x668] sm:$0x7]
    %v245 = vld [vmem:[%s0 + $0x670] sm:$0x7]
    %v246 = vld [vmem:[%s0 + $0x678] sm:$0x7]
    %v247 = vld [vmem:[%s0 + $0x680] sm:$0x7]
    %v248 = vld [vmem:[%s0 + $0x688] sm:$0x7]
    %v249 = vld [vmem:[%s0 + $0x690] sm:$0x7]
    %v250 = vld [vmem:[%s0 + $0x698] sm:$0x7]
    %v251 = vld [vmem:[%s0 + $0x6a0] sm:$0x7]
    %v252 = vld [vmem:[%s0 + $0x6a8] sm:$0x7]
    %v253 = vld [vmem:[%s0 + $0x6b0] sm:$0x7]
    %v254 = vld [vmem:[%s0 + $0x6b8] sm:$0x7]
    %v255 = vld [vmem:[%s0 + $0x6c0] sm:$0x7]
    %v256 = vld [vmem:[%s0 + $0x6c8] sm:$0x7]
    %v257 = vld [vmem:[%s0 + $0x6d0] sm:$0x7]
    %v258 = vld [vmem:[%s0 + $0x6d8] sm:$0x7]
    %v259 = vld [vmem:[%s0 + $0x6e0] sm:$0x7]
    %v260 = vld [vmem:[%s0 + $0x6e8] sm:$0x7]
    %v261 = vld [vmem:[%s0 + $0x6f0] sm:$0x7]
    %v262 = vld [vmem:[%s0 + $0x6f8] sm:$0x7]
    %v263 = vld [vmem:[%s0 + $0x700] sm:$0x7]
    %v264 = vld [vmem:[%s0 + $0x708] sm:$0x7]
    %v265 = vld [vmem:[%s0 + $0x710] sm:$0x7]
    %v266 = vld [vmem:[%s0 + $0x718] sm:$0x7]
    %v267 = vld [vmem:[%s0 + $0x720] sm:$0x7]
    %v268 = vld [vmem:[%s0 + $0x728] sm:$0x7]
    %v269 = vld [vmem:[%s0 + $0x730] sm:$0x7]
    %v270 = vld [vmem:[%s0 + $0x738] sm:$0x7]
    %v271 = vld [vmem:[%s0 + $0x740] sm:$0x7]
    %v272 = vld [vmem:[%s0 + $0x748] sm:$0x7]
    %v273 = vld [vmem:[%s0 + $0x750] sm:$0x7]
    %v274 = vld [vmem:[%s0 + $0x758] sm:$0x7]
    %v275 = vld [vmem:[%s0 + $0x760] sm:$0x7]
    %v276 = vld [vmem:[%s0 + $0x768] sm:$0x7]
    %v277 = vld [vmem:[%s0 + $0x770] sm:$0x7]
    %v278 = vld [vmem:[%s0 + $0x778] sm:$0x7]
    %v279 = vld [vmem:[%s0 + $0x780] sm:$0x7]
    %v280 = vld [vmem:[%s0 + $0x788] sm:$0x7]
    %v281 = vld [vmem:[%s0 + $0x790] sm:$0x7]
    %v282 = vld [vmem:[%s0 + $0x798] sm:$0x7]
    %v283 = vld [vmem:[%s0 + $0x7a0] sm:$0x7]
    %v284 = vld [vmem:[%s0 + $0x7a8] sm:$0x7]
    %v285 = vld [vmem:[%s0 + $0x7b0] sm:$0x7]
    %v286 = vld [vmem:[%s0 + $0x7b8] sm:$0x7]
    %v287 = vld [vmem:[%s0 + $0x7c0] sm:$0x7]
    %v288 = vld [vmem:[%s0 + $0x7c8] sm:$0x7]
    %v289 = vld [vmem:[%s0 + $0x7d0] sm:$0x7]
    %v290 = vld [vmem:[%s0 + $0x7d8] sm:$0x7]
    %v291 = vld [vmem:[%s0 + $0x7e0] sm:$0x7]
    %v292 = vld [vmem:[%s0 + $0x7e8] sm:$0x7]
    %v293 = vld [vmem:[%s0 + $0x7f0] sm:$0x7]
    %v294 = vld [vmem:[%s0 + $0x7f8] sm:$0x7]
    %vm295 = vcmask 220160
    %v297 = vsel %vm295, %v38, 0
    %vm299 = vcmask 1042432
    %v301 = vsel %vm299, %v231, 0
    %v304 = vsel %vm299, %v232, 0
    %v307 = vsel %vm299, %v233, 0
    %v310 = vsel %vm299, %v234, 0
    %v313 = vsel %vm299, %v235, 0
    %v316 = vsel %vm299, %v236, 0
    %v319 = vsel %vm299, %v237, 0
    %v322 = vsel %vm299, %v238, 0
    %v325 = vsel %vm299, %v239, 0
    %v328 = vsel %vm299, %v240, 0
    %v331 = vsel %vm299, %v241, 0
    %v334 = vsel %vm299, %v242, 0
    %v337 = vsel %vm299, %v243, 0
    %v340 = vsel %vm299, %v244, 0
    %v343 = vsel %vm299, %v245, 0
    %v346 = vsel %vm299, %v246, 0
    %v349 = vsel %vm299, %v247, 0
    %v352 = vsel %vm299, %v248, 0
    %v355 = vsel %vm299, %v249, 0
    %v358 = vsel %vm299, %v250, 0
    %v361 = vsel %vm299, %v251, 0
    %v364 = vsel %vm299, %v252, 0
    %v367 = vsel %vm299, %v253, 0
    %v370 = vsel %vm299, %v254, 0
    %v373 = vsel %vm299, %v255, 0
    %v376 = vsel %vm299, %v256, 0
    %v379 = vsel %vm299, %v257, 0
    %v382 = vsel %vm299, %v258, 0
    %v385 = vsel %vm299, %v259, 0
    %v388 = vsel %vm299, %v260, 0
    %v391 = vsel %vm299, %v261, 0
    %v394 = vsel %vm299, %v262, 0
    %v397 = vsel %vm299, %v263, 0
    %v400 = vsel %vm299, %v264, 0
    %v403 = vsel %vm299, %v265, 0
    %v406 = vsel %vm299, %v266, 0
    %v409 = vsel %vm299, %v267, 0
    %v412 = vsel %vm299, %v268, 0
    %v415 = vsel %vm299, %v269, 0
    %v418 = vsel %vm299, %v270, 0
    %v421 = vsel %vm299, %v271, 0
    %v424 = vsel %vm299, %v272, 0
    %v427 = vsel %vm299, %v273, 0
    %v430 = vsel %vm299, %v274, 0
    %v433 = vsel %vm299, %v275, 0
    %v436 = vsel %vm299, %v276, 0
    %v439 = vsel %vm299, %v277, 0
    %v442 = vsel %vm299, %v278, 0
    %v445 = vsel %vm299, %v279, 0
    %v448 = vsel %vm299, %v280, 0
    %v451 = vsel %vm299, %v281, 0
    %v454 = vsel %vm299, %v282, 0
    %v457 = vsel %vm299, %v283, 0
    %v460 = vsel %vm299, %v284, 0
    %v463 = vsel %vm299, %v285, 0
    %v466 = vsel %vm299, %v286, 0
    %v469 = vsel %vm299, %v287, 0
    %v472 = vsel %vm299, %v288, 0
    %v475 = vsel %vm299, %v289, 0
    %v478 = vsel %vm299, %v290, 0
    %v481 = vsel %vm299, %v291, 0
    %v484 = vsel %vm299, %v292, 0
    %v487 = vsel %vm299, %v293, 0
    %v490 = vsel %vm299, %v294, 0
    %492 = vmatprep.subr.mxu0 0.0
    %493 = vmatpush1.msra.mxu0 0.0
    %494 = vmatprep.subr.mxu0 0.0
    %495 = vmatpush1.msra.mxu0 0.0
    %496 = vmatprep.subr.mxu0 0.0
    %497 = vmatpush1.msra.mxu0 0.0
    %498 = vmatprep.subr.mxu0 0.0
    %499 = vmatpush1.msra.mxu0 0.0
    %500 = vmatprep.subr.mxu0 0.0
    %501 = vmatpush1.msra.mxu0 0.0
    %502 = vmatprep.subr.mxu0 0.0
    %503 = vmatpush1.msra.mxu0 0.0
    %504 = vmatprep.subr.mxu0 0.0
    %505 = vmatpush1.msra.mxu0 0.0
    %506 = vmatprep.subr.mxu0 0.0
    %507 = vmatpush1.msra.mxu0 0.0
    %508 = vmatprep.subr.mxu0 0.0
    %509 = vmatpush1.msra.mxu0 0.0
    %510 = vmatprep.subr.mxu0 0.0
    %511 = vmatpush1.msra.mxu0 0.0
    %512 = vmatprep.subr.mxu0 0.0
    %513 = vmatpush1.msra.mxu0 0.0
    %514 = vmatprep.subr.mxu0 0.0
    %515 = vmatpush1.msra.mxu0 0.0
    %516 = vmatprep.subr.mxu0 %v304
    %517 = vmatpush1.msra.mxu0 %v301
    %518 = vmatprep.subr.mxu0 %v168
    %519 = vmatpush1.msra.mxu0 %v167
    %520 = vmatprep.subr.mxu0 %v104
    %521 = vmatpush1.msra.mxu0 %v103
    %522 = vmatprep.subr.mxu0 %v40
    %523 = vmatpush1.msra.mxu0 %v39
    %524 = vmatprep.subr.mxu0 0.0
    %525 = vmatpush2.msra.mxu0 0.0
    %526 = vmatprep.subr.mxu0 0.0
    %527 = vmatpush2.msra.mxu0 0.0
    %528 = vmatprep.subr.mxu0 0.0
    %529 = vmatpush2.msra.mxu0 0.0
    %530 = vmatprep.subr.mxu0 0.0
    %531 = vmatpush2.msra.mxu0 0.0
    %532 = vmatprep.subr.mxu0 0.0
    %533 = vmatpush2.msra.mxu0 0.0
    %534 = vmatprep.subr.mxu0 0.0
    %535 = vmatpush2.msra.mxu0 0.0
    %536 = vmatprep.subr.mxu0 0.0
    %537 = vmatpush2.msra.mxu0 0.0
    %538 = vmatprep.subr.mxu0 0.0
    %539 = vmatpush2.msra.mxu0 0.0
    %540 = vmatprep.subr.mxu0 0.0
    %541 = vmatpush2.msra.mxu0 0.0
    %542 = vmatprep.subr.mxu0 0.0
    %543 = vmatpush2.msra.mxu0 0.0
    %544 = vmatprep.subr.mxu0 0.0
    %545 = vmatpush2.msra.mxu0 0.0
    %546 = vmatprep.subr.mxu0 0.0
    %547 = vmatpush2.msra.mxu0 0.0
    %548 = vmatprep.subr.mxu0 0.0
    %549 = vmatpush2.msra.mxu0 0.0
    %550 = vmatprep.subr.mxu0 0.0
    %551 = vmatpush2.msra.mxu0 0.0
    %552 = vmatprep.subr.mxu0 0.0
    %553 = vmatpush2.msra.mxu0 0.0
    %554 = vmatprep.subr.mxu0 0.0
    %555 = vmatpush2.msra.mxu0 0.0
    %556 = vmatprep.mubr.f32.mxu0 0.0
    %557 = vmatmul.mubr.f32.gmra.mxu0 %v297
    %v558 = vpop.f32.mrf.mxu0
    %v559 = vadd.f32 0.0, %v558
    %v560 = vpop.f32.mrf.mxu0
    %v561 = vadd.f32 0.0, %v560
    %562 = vdwg.mxu0
    %563 = vmatprep.subr.mxu0 0.0
    %564 = vmatpush1.msra.mxu0 0.0
    %565 = vmatprep.subr.mxu0 0.0
    %566 = vmatpush1.msra.mxu0 0.0
    %567 = vmatprep.subr.mxu0 0.0
    %568 = vmatpush1.msra.mxu0 0.0
    %569 = vmatprep.subr.mxu0 0.0
    %570 = vmatpush1.msra.mxu0 0.0
    %571 = vmatprep.subr.mxu0 0.0
    %572 = vmatpush1.msra.mxu0 0.0
    %573 = vmatprep.subr.mxu0 0.0
    %574 = vmatpush1.msra.mxu0 0.0
    %575 = vmatprep.subr.mxu0 0.0
    %576 = vmatpush1.msra.mxu0 0.0
    %577 = vmatprep.subr.mxu0 0.0
    %578 = vmatpush1.msra.mxu0 0.0
    %579 = vmatprep.subr.mxu0 0.0
    %580 = vmatpush1.msra.mxu0 0.0
    %581 = vmatprep.subr.mxu0 0.0
    %582 = vmatpush1.msra.mxu0 0.0
    %583 = vmatprep.subr.mxu0 0.0
    %584 = vmatpush1.msra.mxu0 0.0
    %585 = vmatprep.subr.mxu0 0.0
    %586 = vmatpush1.msra.mxu0 0.0
    %587 = vmatprep.subr.mxu0 %v310
    %588 = vmatpush1.msra.mxu0 %v307
    %589 = vmatprep.subr.mxu0 %v170
    %590 = vmatpush1.msra.mxu0 %v169
    %591 = vmatprep.subr.mxu0 %v106
    %592 = vmatpush1.msra.mxu0 %v105
    %593 = vmatprep.subr.mxu0 %v42
    %594 = vmatpush1.msra.mxu0 %v41
    %595 = vmatprep.subr.mxu0 0.0
    %596 = vmatpush2.msra.mxu0 0.0
    %597 = vmatprep.subr.mxu0 0.0
    %598 = vmatpush2.msra.mxu0 0.0
    %599 = vmatprep.subr.mxu0 0.0
    %600 = vmatpush2.msra.mxu0 0.0
    %601 = vmatprep.subr.mxu0 0.0
    %602 = vmatpush2.msra.mxu0 0.0
    %603 = vmatprep.subr.mxu0 0.0
    %604 = vmatpush2.msra.mxu0 0.0
    %605 = vmatprep.subr.mxu0 0.0
    %606 = vmatpush2.msra.mxu0 0.0
    %607 = vmatprep.subr.mxu0 0.0
    %608 = vmatpush2.msra.mxu0 0.0
    %609 = vmatprep.subr.mxu0 0.0
    %610 = vmatpush2.msra.mxu0 0.0
    %611 = vmatprep.subr.mxu0 0.0
    %612 = vmatpush2.msra.mxu0 0.0
    %613 = vmatprep.subr.mxu0 0.0
    %614 = vmatpush2.msra.mxu0 0.0
    %615 = vmatprep.subr.mxu0 0.0
    %616 = vmatpush2.msra.mxu0 0.0
    %617 = vmatprep.subr.mxu0 0.0
    %618 = vmatpush2.msra.mxu0 0.0
    %619 = vmatprep.subr.mxu0 0.0
    %620 = vmatpush2.msra.mxu0 0.0
    %621 = vmatprep.subr.mxu0 0.0
    %622 = vmatpush2.msra.mxu0 0.0
    %623 = vmatprep.subr.mxu0 0.0
    %624 = vmatpush2.msra.mxu0 0.0
    %625 = vmatprep.subr.mxu0 0.0
    %626 = vmatpush2.msra.mxu0 0.0
    %627 = vmatprep.mubr.f32.mxu0 0.0
    %628 = vmatmul.mubr.f32.gmra.mxu0 %v297
    %v629 = vpop.f32.mrf.mxu0
    %v630 = vadd.f32 0.0, %v629
    %v631 = vpop.f32.mrf.mxu0
    %v632 = vadd.f32 0.0, %v631
    %633 = vdwg.mxu0
    %634 = vmatprep.subr.mxu0 0.0
    %635 = vmatpush1.msra.mxu0 0.0
    %636 = vmatprep.subr.mxu0 0.0
    %637 = vmatpush1.msra.mxu0 0.0
    %638 = vmatprep.subr.mxu0 0.0
    %639 = vmatpush1.msra.mxu0 0.0
    %640 = vmatprep.subr.mxu0 0.0
    %641 = vmatpush1.msra.mxu0 0.0
    %642 = vmatprep.subr.mxu0 0.0
    %643 = vmatpush1.msra.mxu0 0.0
    %644 = vmatprep.subr.mxu0 0.0
    %645 = vmatpush1.msra.mxu0 0.0
    %646 = vmatprep.subr.mxu0 0.0
    %647 = vmatpush1.msra.mxu0 0.0
    %648 = vmatprep.subr.mxu0 0.0
    %649 = vmatpush1.msra.mxu0 0.0
    %650 = vmatprep.subr.mxu0 0.0
    %651 = vmatpush1.msra.mxu0 0.0
    %652 = vmatprep.subr.mxu0 0.0
    %653 = vmatpush1.msra.mxu0 0.0
    %654 = vmatprep.subr.mxu0 0.0
    %655 = vmatpush1.msra.mxu0 0.0
    %656 = vmatprep.subr.mxu0 0.0
    %657 = vmatpush1.msra.mxu0 0.0
    %658 = vmatprep.subr.mxu0 %v316
    %659 = vmatpush1.msra.mxu0 %v313
    %660 = vmatprep.subr.mxu0 %v172
    %661 = vmatpush1.msra.mxu0 %v171
    %662 = vmatprep.subr.mxu0 %v108
    %663 = vmatpush1.msra.mxu0 %v107
    %664 = vmatprep.subr.mxu0 %v44
    %665 = vmatpush1.msra.mxu0 %v43
    %666 = vmatprep.subr.mxu0 0.0
    %667 = vmatpush2.msra.mxu0 0.0
    %668 = vmatprep.subr.mxu0 0.0
    %669 = vmatpush2.msra.mxu0 0.0
    %670 = vmatprep.subr.mxu0 0.0
    %671 = vmatpush2.msra.mxu0 0.0
    %672 = vmatprep.subr.mxu0 0.0
    %673 = vmatpush2.msra.mxu0 0.0
    %674 = vmatprep.subr.mxu0 0.0
    %675 = vmatpush2.msra.mxu0 0.0
    %676 = vmatprep.subr.mxu0 0.0
    %677 = vmatpush2.msra.mxu0 0.0
    %678 = vmatprep.subr.mxu0 0.0
    %679 = vmatpush2.msra.mxu0 0.0
    %680 = vmatprep.subr.mxu0 0.0
    %681 = vmatpush2.msra.mxu0 0.0
    %682 = vmatprep.subr.mxu0 0.0
    %683 = vmatpush2.msra.mxu0 0.0
    %684 = vmatprep.subr.mxu0 0.0
    %685 = vmatpush2.msra.mxu0 0.0
    %686 = vmatprep.subr.mxu0 0.0
    %687 = vmatpush2.msra.mxu0 0.0
    %688 = vmatprep.subr.mxu0 0.0
    %689 = vmatpush2.msra.mxu0 0.0
    %690 = vmatprep.subr.mxu0 0.0
    %691 = vmatpush2.msra.mxu0 0.0
    %692 = vmatprep.subr.mxu0 0.0
    %693 = vmatpush2.msra.mxu0 0.0
    %694 = vmatprep.subr.mxu0 0.0
    %695 = vmatpush2.msra.mxu0 0.0
    %696 = vmatprep.subr.mxu0 0.0
    %697 = vmatpush2.msra.mxu0 0.0
    %698 = vmatprep.mubr.f32.mxu0 0.0
    %699 = vmatmul.mubr.f32.gmra.mxu0 %v297
    %v700 = vpop.f32.mrf.mxu0
    %v701 = vadd.f32 0.0, %v700
    %v702 = vpop.f32.mrf.mxu0
    %v703 = vadd.f32 0.0, %v702
    %704 = vdwg.mxu0
    %705 = vmatprep.subr.mxu0 0.0
    %706 = vmatpush1.msra.mxu0 0.0
    %707 = vmatprep.subr.mxu0 0.0
    %708 = vmatpush1.msra.mxu0 0.0
    %709 = vmatprep.subr.mxu0 0.0
    %710 = vmatpush1.msra.mxu0 0.0
    %711 = vmatprep.subr.mxu0 0.0
    %712 = vmatpush1.msra.mxu0 0.0
    %713 = vmatprep.subr.mxu0 0.0
    %714 = vmatpush1.msra.mxu0 0.0
    %715 = vmatprep.subr.mxu0 0.0
    %716 = vmatpush1.msra.mxu0 0.0
    %717 = vmatprep.subr.mxu0 0.0
    %718 = vmatpush1.msra.mxu0 0.0
    %719 = vmatprep.subr.mxu0 0.0
    %720 = vmatpush1.msra.mxu0 0.0
    %721 = vmatprep.subr.mxu0 0.0
    %722 = vmatpush1.msra.mxu0 0.0
    %723 = vmatprep.subr.mxu0 0.0
    %724 = vmatpush1.msra.mxu0 0.0
    %725 = vmatprep.subr.mxu0 0.0
    %726 = vmatpush1.msra.mxu0 0.0
    %727 = vmatprep.subr.mxu0 0.0
    %728 = vmatpush1.msra.mxu0 0.0
    %729 = vmatprep.subr.mxu0 %v322
    %730 = vmatpush1.msra.mxu0 %v319
    %731 = vmatprep.subr.mxu0 %v174
    %732 = vmatpush1.msra.mxu0 %v173
    %733 = vmatprep.subr.mxu0 %v110
    %734 = vmatpush1.msra.mxu0 %v109
    %735 = vmatprep.subr.mxu0 %v46
    %736 = vmatpush1.msra.mxu0 %v45
    %737 = vmatprep.subr.mxu0 0.0
    %738 = vmatpush2.msra.mxu0 0.0
    %739 = vmatprep.subr.mxu0 0.0
    %740 = vmatpush2.msra.mxu0 0.0
    %741 = vmatprep.subr.mxu0 0.0
    %742 = vmatpush2.msra.mxu0 0.0
    %743 = vmatprep.subr.mxu0 0.0
    %744 = vmatpush2.msra.mxu0 0.0
    %745 = vmatprep.subr.mxu0 0.0
    %746 = vmatpush2.msra.mxu0 0.0
    %747 = vmatprep.subr.mxu0 0.0
    %748 = vmatpush2.msra.mxu0 0.0
    %749 = vmatprep.subr.mxu0 0.0
    %750 = vmatpush2.msra.mxu0 0.0
    %751 = vmatprep.subr.mxu0 0.0
    %752 = vmatpush2.msra.mxu0 0.0
    %753 = vmatprep.subr.mxu0 0.0
    %754 = vmatpush2.msra.mxu0 0.0
    %755 = vmatprep.subr.mxu0 0.0
    %756 = vmatpush2.msra.mxu0 0.0
    %757 = vmatprep.subr.mxu0 0.0
    %758 = vmatpush2.msra.mxu0 0.0
    %759 = vmatprep.subr.mxu0 0.0
    %760 = vmatpush2.msra.mxu0 0.0
    %761 = vmatprep.subr.mxu0 0.0
    %762 = vmatpush2.msra.mxu0 0.0
    %763 = vmatprep.subr.mxu0 0.0
    %764 = vmatpush2.msra.mxu0 0.0
    %765 = vmatprep.subr.mxu0 0.0
    %766 = vmatpush2.msra.mxu0 0.0
    %767 = vmatprep.subr.mxu0 0.0
    %768 = vmatpush2.msra.mxu0 0.0
    %769 = vmatprep.mubr.f32.mxu0 0.0
    %770 = vmatmul.mubr.f32.gmra.mxu0 %v297
    %v771 = vpop.f32.mrf.mxu0
    %v772 = vadd.f32 0.0, %v771
    %v773 = vpop.f32.mrf.mxu0
    %v774 = vadd.f32 0.0, %v773
    %775 = vdwg.mxu0
    %776 = vmatprep.subr.mxu0 0.0
    %777 = vmatpush1.msra.mxu0 0.0
    %778 = vmatprep.subr.mxu0 0.0
    %779 = vmatpush1.msra.mxu0 0.0
    %780 = vmatprep.subr.mxu0 0.0
    %781 = vmatpush1.msra.mxu0 0.0
    %782 = vmatprep.subr.mxu0 0.0
    %783 = vmatpush1.msra.mxu0 0.0
    %784 = vmatprep.subr.mxu0 0.0
    %785 = vmatpush1.msra.mxu0 0.0
    %786 = vmatprep.subr.mxu0 0.0
    %787 = vmatpush1.msra.mxu0 0.0
    %788 = vmatprep.subr.mxu0 0.0
    %789 = vmatpush1.msra.mxu0 0.0
    %790 = vmatprep.subr.mxu0 0.0
    %791 = vmatpush1.msra.mxu0 0.0
    %792 = vmatprep.subr.mxu0 0.0
    %793 = vmatpush1.msra.mxu0 0.0
    %794 = vmatprep.subr.mxu0 0.0
    %795 = vmatpush1.msra.mxu0 0.0
    %796 = vmatprep.subr.mxu0 0.0
    %797 = vmatpush1.msra.mxu0 0.0
    %798 = vmatprep.subr.mxu0 0.0
    %799 = vmatpush1.msra.mxu0 0.0
    %800 = vmatprep.subr.mxu0 %v328
    %801 = vmatpush1.msra.mxu0 %v325
    %802 = vmatprep.subr.mxu0 %v176
    %803 = vmatpush1.msra.mxu0 %v175
    %804 = vmatprep.subr.mxu0 %v112
    %805 = vmatpush1.msra.mxu0 %v111
    %806 = vmatprep.subr.mxu0 %v48
    %807 = vmatpush1.msra.mxu0 %v47
    %808 = vmatprep.subr.mxu0 0.0
    %809 = vmatpush2.msra.mxu0 0.0
    %810 = vmatprep.subr.mxu0 0.0
    %811 = vmatpush2.msra.mxu0 0.0
    %812 = vmatprep.subr.mxu0 0.0
    %813 = vmatpush2.msra.mxu0 0.0
    %814 = vmatprep.subr.mxu0 0.0
    %815 = vmatpush2.msra.mxu0 0.0
    %816 = vmatprep.subr.mxu0 0.0
    %817 = vmatpush2.msra.mxu0 0.0
    %818 = vmatprep.subr.mxu0 0.0
    %819 = vmatpush2.msra.mxu0 0.0
    %820 = vmatprep.subr.mxu0 0.0
    %821 = vmatpush2.msra.mxu0 0.0
    %822 = vmatprep.subr.mxu0 0.0
    %823 = vmatpush2.msra.mxu0 0.0
    %824 = vmatprep.subr.mxu0 0.0
    %825 = vmatpush2.msra.mxu0 0.0
    %826 = vmatprep.subr.mxu0 0.0
    %827 = vmatpush2.msra.mxu0 0.0
    %828 = vmatprep.subr.mxu0 0.0
    %829 = vmatpush2.msra.mxu0 0.0
    %830 = vmatprep.subr.mxu0 0.0
    %831 = vmatpush2.msra.mxu0 0.0
    %832 = vmatprep.subr.mxu0 0.0
    %833 = vmatpush2.msra.mxu0 0.0
    %834 = vmatprep.subr.mxu0 0.0
    %835 = vmatpush2.msra.mxu0 0.0
    %836 = vmatprep.subr.mxu0 0.0
    %837 = vmatpush2.msra.mxu0 0.0
    %838 = vmatprep.subr.mxu0 0.0
    %839 = vmatpush2.msra.mxu0 0.0
    %840 = vmatprep.mubr.f32.mxu0 0.0
    %841 = vmatmul.mubr.f32.gmra.mxu0 %v297
    %v842 = vpop.f32.mrf.mxu0
    %v843 = vadd.f32 0.0, %v842
    %v844 = vpop.f32.mrf.mxu0
    %v845 = vadd.f32 0.0, %v844
    %846 = vdwg.mxu0
    %847 = vmatprep.subr.mxu0 0.0
    %848 = vmatpush1.msra.mxu0 0.0
    %849 = vmatprep.subr.mxu0 0.0
    %850 = vmatpush1.msra.mxu0 0.0
    %851 = vmatprep.subr.mxu0 0.0
    %852 = vmatpush1.msra.mxu0 0.0
    %853 = vmatprep.subr.mxu0 0.0
    %854 = vmatpush1.msra.mxu0 0.0
    %855 = vmatprep.subr.mxu0 0.0
    %856 = vmatpush1.msra.mxu0 0.0
    %857 = vmatprep.subr.mxu0 0.0
    %858 = vmatpush1.msra.mxu0 0.0
    %859 = vmatprep.subr.mxu0 0.0
    %860 = vmatpush1.msra.mxu0 0.0
    %861 = vmatprep.subr.mxu0 0.0
    %862 = vmatpush1.msra.mxu0 0.0
    %863 = vmatprep.subr.mxu0 0.0
    %864 = vmatpush1.msra.mxu0 0.0
    %865 = vmatprep.subr.mxu0 0.0
    %866 = vmatpush1.msra.mxu0 0.0
    %867 = vmatprep.subr.mxu0 0.0
    %868 = vmatpush1.msra.mxu0 0.0
    %869 = vmatprep.subr.mxu0 0.0
    %870 = vmatpush1.msra.mxu0 0.0
    %871 = vmatprep.subr.mxu0 %v334
    %872 = vmatpush1.msra.mxu0 %v331
    %873 = vmatprep.subr.mxu0 %v178
    %874 = vmatpush1.msra.mxu0 %v177
    %875 = vmatprep.subr.mxu0 %v114
    %876 = vmatpush1.msra.mxu0 %v113
    %877 = vmatprep.subr.mxu0 %v50
    %878 = vmatpush1.msra.mxu0 %v49
    %879 = vmatprep.subr.mxu0 0.0
    %880 = vmatpush2.msra.mxu0 0.0
    %881 = vmatprep.subr.mxu0 0.0
    %882 = vmatpush2.msra.mxu0 0.0
    %883 = vmatprep.subr.mxu0 0.0
    %884 = vmatpush2.msra.mxu0 0.0
    %885 = vmatprep.subr.mxu0 0.0
    %886 = vmatpush2.msra.mxu0 0.0
    %887 = vmatprep.subr.mxu0 0.0
    %888 = vmatpush2.msra.mxu0 0.0
    %889 = vmatprep.subr.mxu0 0.0
    %890 = vmatpush2.msra.mxu0 0.0
    %891 = vmatprep.subr.mxu0 0.0
    %892 = vmatpush2.msra.mxu0 0.0
    %893 = vmatprep.subr.mxu0 0.0
    %894 = vmatpush2.msra.mxu0 0.0
    %895 = vmatprep.subr.mxu0 0.0
    %896 = vmatpush2.msra.mxu0 0.0
    %897 = vmatprep.subr.mxu0 0.0
    %898 = vmatpush2.msra.mxu0 0.0
    %899 = vmatprep.subr.mxu0 0.0
    %900 = vmatpush2.msra.mxu0 0.0
    %901 = vmatprep.subr.mxu0 0.0
    %902 = vmatpush2.msra.mxu0 0.0
    %903 = vmatprep.subr.mxu0 0.0
    %904 = vmatpush2.msra.mxu0 0.0
    %905 = vmatprep.subr.mxu0 0.0
    %906 = vmatpush2.msra.mxu0 0.0
    %907 = vmatprep.subr.mxu0 0.0
    %908 = vmatpush2.msra.mxu0 0.0
    %909 = vmatprep.subr.mxu0 0.0
    %910 = vmatpush2.msra.mxu0 0.0
    %911 = vmatprep.mubr.f32.mxu0 0.0
    %912 = vmatmul.mubr.f32.gmra.mxu0 %v297
    %v913 = vpop.f32.mrf.mxu0
    %v914 = vadd.f32 0.0, %v913
    %v915 = vpop.f32.mrf.mxu0
    %v916 = vadd.f32 0.0, %v915
    %917 = vdwg.mxu0
    %918 = vmatprep.subr.mxu0 0.0
    %919 = vmatpush1.msra.mxu0 0.0
    %920 = vmatprep.subr.mxu0 0.0
    %921 = vmatpush1.msra.mxu0 0.0
    %922 = vmatprep.subr.mxu0 0.0
    %923 = vmatpush1.msra.mxu0 0.0
    %924 = vmatprep.subr.mxu0 0.0
    %925 = vmatpush1.msra.mxu0 0.0
    %926 = vmatprep.subr.mxu0 0.0
    %927 = vmatpush1.msra.mxu0 0.0
    %928 = vmatprep.subr.mxu0 0.0
    %929 = vmatpush1.msra.mxu0 0.0
    %930 = vmatprep.subr.mxu0 0.0
    %931 = vmatpush1.msra.mxu0 0.0
    %932 = vmatprep.subr.mxu0 0.0
    %933 = vmatpush1.msra.mxu0 0.0
    %934 = vmatprep.subr.mxu0 0.0
    %935 = vmatpush1.msra.mxu0 0.0
    %936 = vmatprep.subr.mxu0 0.0
    %937 = vmatpush1.msra.mxu0 0.0
    %938 = vmatprep.subr.mxu0 0.0
    %939 = vmatpush1.msra.mxu0 0.0
    %940 = vmatprep.subr.mxu0 0.0
    %941 = vmatpush1.msra.mxu0 0.0
    %942 = vmatprep.subr.mxu0 %v340
    %943 = vmatpush1.msra.mxu0 %v337
    %944 = vmatprep.subr.mxu0 %v180
    %945 = vmatpush1.msra.mxu0 %v179
    %946 = vmatprep.subr.mxu0 %v116
    %947 = vmatpush1.msra.mxu0 %v115
    %948 = vmatprep.subr.mxu0 %v52
    %949 = vmatpush1.msra.mxu0 %v51
    %950 = vmatprep.subr.mxu0 0.0
    %951 = vmatpush2.msra.mxu0 0.0
    %952 = vmatprep.subr.mxu0 0.0
    %953 = vmatpush2.msra.mxu0 0.0
    %954 = vmatprep.subr.mxu0 0.0
    %955 = vmatpush2.msra.mxu0 0.0
    %956 = vmatprep.subr.mxu0 0.0
    %957 = vmatpush2.msra.mxu0 0.0
    %958 = vmatprep.subr.mxu0 0.0
    %959 = vmatpush2.msra.mxu0 0.0
    %960 = vmatprep.subr.mxu0 0.0
    %961 = vmatpush2.msra.mxu0 0.0
    %962 = vmatprep.subr.mxu0 0.0
    %963 = vmatpush2.msra.mxu0 0.0
    %964 = vmatprep.subr.mxu0 0.0
    %965 = vmatpush2.msra.mxu0 0.0
    %966 = vmatprep.subr.mxu0 0.0
    %967 = vmatpush2.msra.mxu0 0.0
    %968 = vmatprep.subr.mxu0 0.0
    %969 = vmatpush2.msra.mxu0 0.0
    %970 = vmatprep.subr.mxu0 0.0
    %971 = vmatpush2.msra.mxu0 0.0
    %972 = vmatprep.subr.mxu0 0.0
    %973 = vmatpush2.msra.mxu0 0.0
    %974 = vmatprep.subr.mxu0 0.0
    %975 = vmatpush2.msra.mxu0 0.0
    %976 = vmatprep.subr.mxu0 0.0
    %977 = vmatpush2.msra.mxu0 0.0
    %978 = vmatprep.subr.mxu0 0.0
    %979 = vmatpush2.msra.mxu0 0.0
    %980 = vmatprep.subr.mxu0 0.0
    %981 = vmatpush2.msra.mxu0 0.0
    %982 = vmatprep.mubr.f32.mxu0 0.0
    %983 = vmatmul.mubr.f32.gmra.mxu0 %v297
    %v984 = vpop.f32.mrf.mxu0
    %v985 = vadd.f32 0.0, %v984
    %v986 = vpop.f32.mrf.mxu0
    %v987 = vadd.f32 0.0, %v986
    %988 = vdwg.mxu0
    %989 = vmatprep.subr.mxu0 0.0
    %990 = vmatpush1.msra.mxu0 0.0
    %991 = vmatprep.subr.mxu0 0.0
    %992 = vmatpush1.msra.mxu0 0.0
    %993 = vmatprep.subr.mxu0 0.0
    %994 = vmatpush1.msra.mxu0 0.0
    %995 = vmatprep.subr.mxu0 0.0
    %996 = vmatpush1.msra.mxu0 0.0
    %997 = vmatprep.subr.mxu0 0.0
    %998 = vmatpush1.msra.mxu0 0.0
    %999 = vmatprep.subr.mxu0 0.0
    %1000 = vmatpush1.msra.mxu0 0.0
    %1001 = vmatprep.subr.mxu0 0.0
    %1002 = vmatpush1.msra.mxu0 0.0
    %1003 = vmatprep.subr.mxu0 0.0
    %1004 = vmatpush1.msra.mxu0 0.0
    %1005 = vmatprep.subr.mxu0 0.0
    %1006 = vmatpush1.msra.mxu0 0.0
    %1007 = vmatprep.subr.mxu0 0.0
    %1008 = vmatpush1.msra.mxu0 0.0
    %1009 = vmatprep.subr.mxu0 0.0
    %1010 = vmatpush1.msra.mxu0 0.0
    %1011 = vmatprep.subr.mxu0 0.0
    %1012 = vmatpush1.msra.mxu0 0.0
    %1013 = vmatprep.subr.mxu0 %v346
    %1014 = vmatpush1.msra.mxu0 %v343
    %1015 = vmatprep.subr.mxu0 %v182
    %1016 = vmatpush1.msra.mxu0 %v181
    %1017 = vmatprep.subr.mxu0 %v118
    %1018 = vmatpush1.msra.mxu0 %v117
    %1019 = vmatprep.subr.mxu0 %v54
    %1020 = vmatpush1.msra.mxu0 %v53
    %1021 = vmatprep.subr.mxu0 0.0
    %1022 = vmatpush2.msra.mxu0 0.0
    %1023 = vmatprep.subr.mxu0 0.0
    %1024 = vmatpush2.msra.mxu0 0.0
    %1025 = vmatprep.subr.mxu0 0.0
    %1026 = vmatpush2.msra.mxu0 0.0
    %1027 = vmatprep.subr.mxu0 0.0
    %1028 = vmatpush2.msra.mxu0 0.0
    %1029 = vmatprep.subr.mxu0 0.0
    %1030 = vmatpush2.msra.mxu0 0.0
    %1031 = vmatprep.subr.mxu0 0.0
    %1032 = vmatpush2.msra.mxu0 0.0
    %1033 = vmatprep.subr.mxu0 0.0
    %1034 = vmatpush2.msra.mxu0 0.0
    %1035 = vmatprep.subr.mxu0 0.0
    %1036 = vmatpush2.msra.mxu0 0.0
    %1037 = vmatprep.subr.mxu0 0.0
    %1038 = vmatpush2.msra.mxu0 0.0
    %1039 = vmatprep.subr.mxu0 0.0
    %1040 = vmatpush2.msra.mxu0 0.0
    %1041 = vmatprep.subr.mxu0 0.0
    %1042 = vmatpush2.msra.mxu0 0.0
    %1043 = vmatprep.subr.mxu0 0.0
    %1044 = vmatpush2.msra.mxu0 0.0
    %1045 = vmatprep.subr.mxu0 0.0
    %1046 = vmatpush2.msra.mxu0 0.0
    %1047 = vmatprep.subr.mxu0 0.0
    %1048 = vmatpush2.msra.mxu0 0.0
    %1049 = vmatprep.subr.mxu0 0.0
    %1050 = vmatpush2.msra.mxu0 0.0
    %1051 = vmatprep.subr.mxu0 0.0
    %1052 = vmatpush2.msra.mxu0 0.0
    %1053 = vmatprep.mubr.f32.mxu0 0.0
    %1054 = vmatmul.mubr.f32.gmra.mxu0 %v297
    %v1055 = vpop.f32.mrf.mxu0
    %v1056 = vadd.f32 0.0, %v1055
    %v1057 = vpop.f32.mrf.mxu0
    %v1058 = vadd.f32 0.0, %v1057
    %1059 = vdwg.mxu0
    %1060 = vmatprep.subr.mxu0 0.0
    %1061 = vmatpush1.msra.mxu0 0.0
    %1062 = vmatprep.subr.mxu0 0.0
    %1063 = vmatpush1.msra.mxu0 0.0
    %1064 = vmatprep.subr.mxu0 0.0
    %1065 = vmatpush1.msra.mxu0 0.0
    %1066 = vmatprep.subr.mxu0 0.0
    %1067 = vmatpush1.msra.mxu0 0.0
    %1068 = vmatprep.subr.mxu0 0.0
    %1069 = vmatpush1.msra.mxu0 0.0
    %1070 = vmatprep.subr.mxu0 0.0
    %1071 = vmatpush1.msra.mxu0 0.0
    %1072 = vmatprep.subr.mxu0 0.0
    %1073 = vmatpush1.msra.mxu0 0.0
    %1074 = vmatprep.subr.mxu0 0.0
    %1075 = vmatpush1.msra.mxu0 0.0
    %1076 = vmatprep.subr.mxu0 0.0
    %1077 = vmatpush1.msra.mxu0 0.0
    %1078 = vmatprep.subr.mxu0 0.0
    %1079 = vmatpush1.msra.mxu0 0.0
    %1080 = vmatprep.subr.mxu0 0.0
    %1081 = vmatpush1.msra.mxu0 0.0
    %1082 = vmatprep.subr.mxu0 0.0
    %1083 = vmatpush1.msra.mxu0 0.0
    %1084 = vmatprep.subr.mxu0 %v352
    %1085 = vmatpush1.msra.mxu0 %v349
    %1086 = vmatprep.subr.mxu0 %v184
    %1087 = vmatpush1.msra.mxu0 %v183
    %1088 = vmatprep.subr.mxu0 %v120
    %1089 = vmatpush1.msra.mxu0 %v119
    %1090 = vmatprep.subr.mxu0 %v56
    %1091 = vmatpush1.msra.mxu0 %v55
    %1092 = vmatprep.subr.mxu0 0.0
    %1093 = vmatpush2.msra.mxu0 0.0
    %1094 = vmatprep.subr.mxu0 0.0
    %1095 = vmatpush2.msra.mxu0 0.0
    %1096 = vmatprep.subr.mxu0 0.0
    %1097 = vmatpush2.msra.mxu0 0.0
    %1098 = vmatprep.subr.mxu0 0.0
    %1099 = vmatpush2.msra.mxu0 0.0
    %1100 = vmatprep.subr.mxu0 0.0
    %1101 = vmatpush2.msra.mxu0 0.0
    %1102 = vmatprep.subr.mxu0 0.0
    %1103 = vmatpush2.msra.mxu0 0.0
    %1104 = vmatprep.subr.mxu0 0.0
    %1105 = vmatpush2.msra.mxu0 0.0
    %1106 = vmatprep.subr.mxu0 0.0
    %1107 = vmatpush2.msra.mxu0 0.0
    %1108 = vmatprep.subr.mxu0 0.0
    %1109 = vmatpush2.msra.mxu0 0.0
    %1110 = vmatprep.subr.mxu0 0.0
    %1111 = vmatpush2.msra.mxu0 0.0
    %1112 = vmatprep.subr.mxu0 0.0
    %1113 = vmatpush2.msra.mxu0 0.0
    %1114 = vmatprep.subr.mxu0 0.0
    %1115 = vmatpush2.msra.mxu0 0.0
    %1116 = vmatprep.subr.mxu0 0.0
    %1117 = vmatpush2.msra.mxu0 0.0
    %1118 = vmatprep.subr.mxu0 0.0
    %1119 = vmatpush2.msra.mxu0 0.0
    %1120 = vmatprep.subr.mxu0 0.0
    %1121 = vmatpush2.msra.mxu0 0.0
    %1122 = vmatprep.subr.mxu0 0.0
    %1123 = vmatpush2.msra.mxu0 0.0
    %1124 = vmatprep.mubr.f32.mxu0 0.0
    %1125 = vmatmul.mubr.f32.gmra.mxu0 %v297
    %v1126 = vpop.f32.mrf.mxu0
    %v1127 = vadd.f32 0.0, %v1126
    %v1128 = vpop.f32.mrf.mxu0
    %v1129 = vadd.f32 0.0, %v1128
    %1130 = vdwg.mxu0
    %1131 = vmatprep.subr.mxu0 0.0
    %1132 = vmatpush1.msra.mxu0 0.0
    %1133 = vmatprep.subr.mxu0 0.0
    %1134 = vmatpush1.msra.mxu0 0.0
    %1135 = vmatprep.subr.mxu0 0.0
    %1136 = vmatpush1.msra.mxu0 0.0
    %1137 = vmatprep.subr.mxu0 0.0
    %1138 = vmatpush1.msra.mxu0 0.0
    %1139 = vmatprep.subr.mxu0 0.0
    %1140 = vmatpush1.msra.mxu0 0.0
    %1141 = vmatprep.subr.mxu0 0.0
    %1142 = vmatpush1.msra.mxu0 0.0
    %1143 = vmatprep.subr.mxu0 0.0
    %1144 = vmatpush1.msra.mxu0 0.0
    %1145 = vmatprep.subr.mxu0 0.0
    %1146 = vmatpush1.msra.mxu0 0.0
    %1147 = vmatprep.subr.mxu0 0.0
    %1148 = vmatpush1.msra.mxu0 0.0
    %1149 = vmatprep.subr.mxu0 0.0
    %1150 = vmatpush1.msra.mxu0 0.0
    %1151 = vmatprep.subr.mxu0 0.0
    %1152 = vmatpush1.msra.mxu0 0.0
    %1153 = vmatprep.subr.mxu0 0.0
    %1154 = vmatpush1.msra.mxu0 0.0
    %1155 = vmatprep.subr.mxu0 %v358
    %1156 = vmatpush1.msra.mxu0 %v355
    %1157 = vmatprep.subr.mxu0 %v186
    %1158 = vmatpush1.msra.mxu0 %v185
    %1159 = vmatprep.subr.mxu0 %v122
    %1160 = vmatpush1.msra.mxu0 %v121
    %1161 = vmatprep.subr.mxu0 %v58
    %1162 = vmatpush1.msra.mxu0 %v57
    %1163 = vmatprep.subr.mxu0 0.0
    %1164 = vmatpush2.msra.mxu0 0.0
    %1165 = vmatprep.subr.mxu0 0.0
    %1166 = vmatpush2.msra.mxu0 0.0
    %1167 = vmatprep.subr.mxu0 0.0
    %1168 = vmatpush2.msra.mxu0 0.0
    %1169 = vmatprep.subr.mxu0 0.0
    %1170 = vmatpush2.msra.mxu0 0.0
    %1171 = vmatprep.subr.mxu0 0.0
    %1172 = vmatpush2.msra.mxu0 0.0
    %1173 = vmatprep.subr.mxu0 0.0
    %1174 = vmatpush2.msra.mxu0 0.0
    %1175 = vmatprep.subr.mxu0 0.0
    %1176 = vmatpush2.msra.mxu0 0.0
    %1177 = vmatprep.subr.mxu0 0.0
    %1178 = vmatpush2.msra.mxu0 0.0
    %1179 = vmatprep.subr.mxu0 0.0
    %1180 = vmatpush2.msra.mxu0 0.0
    %1181 = vmatprep.subr.mxu0 0.0
    %1182 = vmatpush2.msra.mxu0 0.0
    %1183 = vmatprep.subr.mxu0 0.0
    %1184 = vmatpush2.msra.mxu0 0.0
    %1185 = vmatprep.subr.mxu0 0.0
    %1186 = vmatpush2.msra.mxu0 0.0
    %1187 = vmatprep.subr.mxu0 0.0
    %1188 = vmatpush2.msra.mxu0 0.0
    %1189 = vmatprep.subr.mxu0 0.0
    %1190 = vmatpush2.msra.mxu0 0.0
    %1191 = vmatprep.subr.mxu0 0.0
    %1192 = vmatpush2.msra.mxu0 0.0
    %1193 = vmatprep.subr.mxu0 0.0
    %1194 = vmatpush2.msra.mxu0 0.0
    %1195 = vmatprep.mubr.f32.mxu0 0.0
    %1196 = vmatmul.mubr.f32.gmra.mxu0 %v297
    %v1197 = vpop.f32.mrf.mxu0
    %v1198 = vadd.f32 0.0, %v1197
    %v1199 = vpop.f32.mrf.mxu0
    %v1200 = vadd.f32 0.0, %v1199
    %1201 = vdwg.mxu0
    %1202 = vmatprep.subr.mxu0 0.0
    %1203 = vmatpush1.msra.mxu0 0.0
    %1204 = vmatprep.subr.mxu0 0.0
    %1205 = vmatpush1.msra.mxu0 0.0
    %1206 = vmatprep.subr.mxu0 0.0
    %1207 = vmatpush1.msra.mxu0 0.0
    %1208 = vmatprep.subr.mxu0 0.0
    %1209 = vmatpush1.msra.mxu0 0.0
    %1210 = vmatprep.subr.mxu0 0.0
    %1211 = vmatpush1.msra.mxu0 0.0
    %1212 = vmatprep.subr.mxu0 0.0
    %1213 = vmatpush1.msra.mxu0 0.0
    %1214 = vmatprep.subr.mxu0 0.0
    %1215 = vmatpush1.msra.mxu0 0.0
    %1216 = vmatprep.subr.mxu0 0.0
    %1217 = vmatpush1.msra.mxu0 0.0
    %1218 = vmatprep.subr.mxu0 0.0
    %1219 = vmatpush1.msra.mxu0 0.0
    %1220 = vmatprep.subr.mxu0 0.0
    %1221 = vmatpush1.msra.mxu0 0.0
    %1222 = vmatprep.subr.mxu0 0.0
    %1223 = vmatpush1.msra.mxu0 0.0
    %1224 = vmatprep.subr.mxu0 0.0
    %1225 = vmatpush1.msra.mxu0 0.0
    %1226 = vmatprep.subr.mxu0 %v364
    %1227 = vmatpush1.msra.mxu0 %v361
    %1228 = vmatprep.subr.mxu0 %v188
    %1229 = vmatpush1.msra.mxu0 %v187
    %1230 = vmatprep.subr.mxu0 %v124
    %1231 = vmatpush1.msra.mxu0 %v123
    %1232 = vmatprep.subr.mxu0 %v60
    %1233 = vmatpush1.msra.mxu0 %v59
    %1234 = vmatprep.subr.mxu0 0.0
    %1235 = vmatpush2.msra.mxu0 0.0
    %1236 = vmatprep.subr.mxu0 0.0
    %1237 = vmatpush2.msra.mxu0 0.0
    %1238 = vmatprep.subr.mxu0 0.0
    %1239 = vmatpush2.msra.mxu0 0.0
    %1240 = vmatprep.subr.mxu0 0.0
    %1241 = vmatpush2.msra.mxu0 0.0
    %1242 = vmatprep.subr.mxu0 0.0
    %1243 = vmatpush2.msra.mxu0 0.0
    %1244 = vmatprep.subr.mxu0 0.0
    %1245 = vmatpush2.msra.mxu0 0.0
    %1246 = vmatprep.subr.mxu0 0.0
    %1247 = vmatpush2.msra.mxu0 0.0
    %1248 = vmatprep.subr.mxu0 0.0
    %1249 = vmatpush2.msra.mxu0 0.0
    %1250 = vmatprep.subr.mxu0 0.0
    %1251 = vmatpush2.msra.mxu0 0.0
    %1252 = vmatprep.subr.mxu0 0.0
    %1253 = vmatpush2.msra.mxu0 0.0
    %1254 = vmatprep.subr.mxu0 0.0
    %1255 = vmatpush2.msra.mxu0 0.0
    %1256 = vmatprep.subr.mxu0 0.0
    %1257 = vmatpush2.msra.mxu0 0.0
    %1258 = vmatprep.subr.mxu0 0.0
    %1259 = vmatpush2.msra.mxu0 0.0
    %1260 = vmatprep.subr.mxu0 0.0
    %1261 = vmatpush2.msra.mxu0 0.0
    %1262 = vmatprep.subr.mxu0 0.0
    %1263 = vmatpush2.msra.mxu0 0.0
    %1264 = vmatprep.subr.mxu0 0.0
    %1265 = vmatpush2.msra.mxu0 0.0
    %1266 = vmatprep.mubr.f32.mxu0 0.0
    %1267 = vmatmul.mubr.f32.gmra.mxu0 %v297
    %v1268 = vpop.f32.mrf.mxu0
    %v1269 = vadd.f32 0.0, %v1268
    %v1270 = vpop.f32.mrf.mxu0
    %v1271 = vadd.f32 0.0, %v1270
    %1272 = vdwg.mxu0
    %1273 = vmatprep.subr.mxu0 0.0
    %1274 = vmatpush1.msra.mxu0 0.0
    %1275 = vmatprep.subr.mxu0 0.0
    %1276 = vmatpush1.msra.mxu0 0.0
    %1277 = vmatprep.subr.mxu0 0.0
    %1278 = vmatpush1.msra.mxu0 0.0
    %1279 = vmatprep.subr.mxu0 0.0
    %1280 = vmatpush1.msra.mxu0 0.0
    %1281 = vmatprep.subr.mxu0 0.0
    %1282 = vmatpush1.msra.mxu0 0.0
    %1283 = vmatprep.subr.mxu0 0.0
    %1284 = vmatpush1.msra.mxu0 0.0
    %1285 = vmatprep.subr.mxu0 0.0
    %1286 = vmatpush1.msra.mxu0 0.0
    %1287 = vmatprep.subr.mxu0 0.0
    %1288 = vmatpush1.msra.mxu0 0.0
    %1289 = vmatprep.subr.mxu0 0.0
    %1290 = vmatpush1.msra.mxu0 0.0
    %1291 = vmatprep.subr.mxu0 0.0
    %1292 = vmatpush1.msra.mxu0 0.0
    %1293 = vmatprep.subr.mxu0 0.0
    %1294 = vmatpush1.msra.mxu0 0.0
    %1295 = vmatprep.subr.mxu0 0.0
    %1296 = vmatpush1.msra.mxu0 0.0
    %1297 = vmatprep.subr.mxu0 %v370
    %1298 = vmatpush1.msra.mxu0 %v367
    %1299 = vmatprep.subr.mxu0 %v190
    %1300 = vmatpush1.msra.mxu0 %v189
    %1301 = vmatprep.subr.mxu0 %v126
    %1302 = vmatpush1.msra.mxu0 %v125
    %1303 = vmatprep.subr.mxu0 %v62
    %1304 = vmatpush1.msra.mxu0 %v61
    %1305 = vmatprep.subr.mxu0 0.0
    %1306 = vmatpush2.msra.mxu0 0.0
    %1307 = vmatprep.subr.mxu0 0.0
    %1308 = vmatpush2.msra.mxu0 0.0
    %1309 = vmatprep.subr.mxu0 0.0
    %1310 = vmatpush2.msra.mxu0 0.0
    %1311 = vmatprep.subr.mxu0 0.0
    %1312 = vmatpush2.msra.mxu0 0.0
    %1313 = vmatprep.subr.mxu0 0.0
    %1314 = vmatpush2.msra.mxu0 0.0
    %1315 = vmatprep.subr.mxu0 0.0
    %1316 = vmatpush2.msra.mxu0 0.0
    %1317 = vmatprep.subr.mxu0 0.0
    %1318 = vmatpush2.msra.mxu0 0.0
    %1319 = vmatprep.subr.mxu0 0.0
    %1320 = vmatpush2.msra.mxu0 0.0
    %1321 = vmatprep.subr.mxu0 0.0
    %1322 = vmatpush2.msra.mxu0 0.0
    %1323 = vmatprep.subr.mxu0 0.0
    %1324 = vmatpush2.msra.mxu0 0.0
    %1325 = vmatprep.subr.mxu0 0.0
    %1326 = vmatpush2.msra.mxu0 0.0
    %1327 = vmatprep.subr.mxu0 0.0
    %1328 = vmatpush2.msra.mxu0 0.0
    %1329 = vmatprep.subr.mxu0 0.0
    %1330 = vmatpush2.msra.mxu0 0.0
    %1331 = vmatprep.subr.mxu0 0.0
    %1332 = vmatpush2.msra.mxu0 0.0
    %1333 = vmatprep.subr.mxu0 0.0
    %1334 = vmatpush2.msra.mxu0 0.0
    %1335 = vmatprep.subr.mxu0 0.0
    %1336 = vmatpush2.msra.mxu0 0.0
    %1337 = vmatprep.mubr.f32.mxu0 0.0
    %1338 = vmatmul.mubr.f32.gmra.mxu0 %v297
    %v1339 = vpop.f32.mrf.mxu0
    %v1340 = vadd.f32 0.0, %v1339
    %v1341 = vpop.f32.mrf.mxu0
    %v1342 = vadd.f32 0.0, %v1341
    %1343 = vdwg.mxu0
    %1344 = vmatprep.subr.mxu0 0.0
    %1345 = vmatpush1.msra.mxu0 0.0
    %1346 = vmatprep.subr.mxu0 0.0
    %1347 = vmatpush1.msra.mxu0 0.0
    %1348 = vmatprep.subr.mxu0 0.0
    %1349 = vmatpush1.msra.mxu0 0.0
    %1350 = vmatprep.subr.mxu0 0.0
    %1351 = vmatpush1.msra.mxu0 0.0
    %1352 = vmatprep.subr.mxu0 0.0
    %1353 = vmatpush1.msra.mxu0 0.0
    %1354 = vmatprep.subr.mxu0 0.0
    %1355 = vmatpush1.msra.mxu0 0.0
    %1356 = vmatprep.subr.mxu0 0.0
    %1357 = vmatpush1.msra.mxu0 0.0
    %1358 = vmatprep.subr.mxu0 0.0
    %1359 = vmatpush1.msra.mxu0 0.0
    %1360 = vmatprep.subr.mxu0 0.0
    %1361 = vmatpush1.msra.mxu0 0.0
    %1362 = vmatprep.subr.mxu0 0.0
    %1363 = vmatpush1.msra.mxu0 0.0
    %1364 = vmatprep.subr.mxu0 0.0
    %1365 = vmatpush1.msra.mxu0 0.0
    %1366 = vmatprep.subr.mxu0 0.0
    %1367 = vmatpush1.msra.mxu0 0.0
    %1368 = vmatprep.subr.mxu0 %v376
    %1369 = vmatpush1.msra.mxu0 %v373
    %1370 = vmatprep.subr.mxu0 %v192
    %1371 = vmatpush1.msra.mxu0 %v191
    %1372 = vmatprep.subr.mxu0 %v128
    %1373 = vmatpush1.msra.mxu0 %v127
    %1374 = vmatprep.subr.mxu0 %v64
    %1375 = vmatpush1.msra.mxu0 %v63
    %1376 = vmatprep.subr.mxu0 0.0
    %1377 = vmatpush2.msra.mxu0 0.0
    %1378 = vmatprep.subr.mxu0 0.0
    %1379 = vmatpush2.msra.mxu0 0.0
    %1380 = vmatprep.subr.mxu0 0.0
    %1381 = vmatpush2.msra.mxu0 0.0
    %1382 = vmatprep.subr.mxu0 0.0
    %1383 = vmatpush2.msra.mxu0 0.0
    %1384 = vmatprep.subr.mxu0 0.0
    %1385 = vmatpush2.msra.mxu0 0.0
    %1386 = vmatprep.subr.mxu0 0.0
    %1387 = vmatpush2.msra.mxu0 0.0
    %1388 = vmatprep.subr.mxu0 0.0
    %1389 = vmatpush2.msra.mxu0 0.0
    %1390 = vmatprep.subr.mxu0 0.0
    %1391 = vmatpush2.msra.mxu0 0.0
    %1392 = vmatprep.subr.mxu0 0.0
    %1393 = vmatpush2.msra.mxu0 0.0
    %1394 = vmatprep.subr.mxu0 0.0
    %1395 = vmatpush2.msra.mxu0 0.0
    %1396 = vmatprep.subr.mxu0 0.0
    %1397 = vmatpush2.msra.mxu0 0.0
    %1398 = vmatprep.subr.mxu0 0.0
    %1399 = vmatpush2.msra.mxu0 0.0
    %1400 = vmatprep.subr.mxu0 0.0
    %1401 = vmatpush2.msra.mxu0 0.0
    %1402 = vmatprep.subr.mxu0 0.0
    %1403 = vmatpush2.msra.mxu0 0.0
    %1404 = vmatprep.subr.mxu0 0.0
    %1405 = vmatpush2.msra.mxu0 0.0
    %1406 = vmatprep.subr.mxu0 0.0
    %1407 = vmatpush2.msra.mxu0 0.0
    %1408 = vmatprep.mubr.f32.mxu0 0.0
    %1409 = vmatmul.mubr.f32.gmra.mxu0 %v297
    %v1410 = vpop.f32.mrf.mxu0
    %v1411 = vadd.f32 0.0, %v1410
    %v1412 = vpop.f32.mrf.mxu0
    %v1413 = vadd.f32 0.0, %v1412
    %1414 = vdwg.mxu0
    %1415 = vmatprep.subr.mxu0 0.0
    %1416 = vmatpush1.msra.mxu0 0.0
    %1417 = vmatprep.subr.mxu0 0.0
    %1418 = vmatpush1.msra.mxu0 0.0
    %1419 = vmatprep.subr.mxu0 0.0
    %1420 = vmatpush1.msra.mxu0 0.0
    %1421 = vmatprep.subr.mxu0 0.0
    %1422 = vmatpush1.msra.mxu0 0.0
    %1423 = vmatprep.subr.mxu0 0.0
    %1424 = vmatpush1.msra.mxu0 0.0
    %1425 = vmatprep.subr.mxu0 0.0
    %1426 = vmatpush1.msra.mxu0 0.0
    %1427 = vmatprep.subr.mxu0 0.0
    %1428 = vmatpush1.msra.mxu0 0.0
    %1429 = vmatprep.subr.mxu0 0.0
    %1430 = vmatpush1.msra.mxu0 0.0
    %1431 = vmatprep.subr.mxu0 0.0
    %1432 = vmatpush1.msra.mxu0 0.0
    %1433 = vmatprep.subr.mxu0 0.0
    %1434 = vmatpush1.msra.mxu0 0.0
    %1435 = vmatprep.subr.mxu0 0.0
    %1436 = vmatpush1.msra.mxu0 0.0
    %1437 = vmatprep.subr.mxu0 0.0
    %1438 = vmatpush1.msra.mxu0 0.0
    %1439 = vmatprep.subr.mxu0 %v382
    %1440 = vmatpush1.msra.mxu0 %v379
    %1441 = vmatprep.subr.mxu0 %v194
    %1442 = vmatpush1.msra.mxu0 %v193
    %1443 = vmatprep.subr.mxu0 %v130
    %1444 = vmatpush1.msra.mxu0 %v129
    %1445 = vmatprep.subr.mxu0 %v66
    %1446 = vmatpush1.msra.mxu0 %v65
    %1447 = vmatprep.subr.mxu0 0.0
    %1448 = vmatpush2.msra.mxu0 0.0
    %1449 = vmatprep.subr.mxu0 0.0
    %1450 = vmatpush2.msra.mxu0 0.0
    %1451 = vmatprep.subr.mxu0 0.0
    %1452 = vmatpush2.msra.mxu0 0.0
    %1453 = vmatprep.subr.mxu0 0.0
    %1454 = vmatpush2.msra.mxu0 0.0
    %1455 = vmatprep.subr.mxu0 0.0
    %1456 = vmatpush2.msra.mxu0 0.0
    %1457 = vmatprep.subr.mxu0 0.0
    %1458 = vmatpush2.msra.mxu0 0.0
    %1459 = vmatprep.subr.mxu0 0.0
    %1460 = vmatpush2.msra.mxu0 0.0
    %1461 = vmatprep.subr.mxu0 0.0
    %1462 = vmatpush2.msra.mxu0 0.0
    %1463 = vmatprep.subr.mxu0 0.0
    %1464 = vmatpush2.msra.mxu0 0.0
    %1465 = vmatprep.subr.mxu0 0.0
    %1466 = vmatpush2.msra.mxu0 0.0
    %1467 = vmatprep.subr.mxu0 0.0
    %1468 = vmatpush2.msra.mxu0 0.0
    %1469 = vmatprep.subr.mxu0 0.0
    %1470 = vmatpush2.msra.mxu0 0.0
    %1471 = vmatprep.subr.mxu0 0.0
    %1472 = vmatpush2.msra.mxu0 0.0
    %1473 = vmatprep.subr.mxu0 0.0
    %1474 = vmatpush2.msra.mxu0 0.0
    %1475 = vmatprep.subr.mxu0 0.0
    %1476 = vmatpush2.msra.mxu0 0.0
    %1477 = vmatprep.subr.mxu0 0.0
    %1478 = vmatpush2.msra.mxu0 0.0
    %1479 = vmatprep.mubr.f32.mxu0 0.0
    %1480 = vmatmul.mubr.f32.gmra.mxu0 %v297
    %v1481 = vpop.f32.mrf.mxu0
    %v1482 = vadd.f32 0.0, %v1481
    %v1483 = vpop.f32.mrf.mxu0
    %v1484 = vadd.f32 0.0, %v1483
    %1485 = vdwg.mxu0
    %1486 = vmatprep.subr.mxu0 0.0
    %1487 = vmatpush1.msra.mxu0 0.0
    %1488 = vmatprep.subr.mxu0 0.0
    %1489 = vmatpush1.msra.mxu0 0.0
    %1490 = vmatprep.subr.mxu0 0.0
    %1491 = vmatpush1.msra.mxu0 0.0
    %1492 = vmatprep.subr.mxu0 0.0
    %1493 = vmatpush1.msra.mxu0 0.0
    %1494 = vmatprep.subr.mxu0 0.0
    %1495 = vmatpush1.msra.mxu0 0.0
    %1496 = vmatprep.subr.mxu0 0.0
    %1497 = vmatpush1.msra.mxu0 0.0
    %1498 = vmatprep.subr.mxu0 0.0
    %1499 = vmatpush1.msra.mxu0 0.0
    %1500 = vmatprep.subr.mxu0 0.0
    %1501 = vmatpush1.msra.mxu0 0.0
    %1502 = vmatprep.subr.mxu0 0.0
    %1503 = vmatpush1.msra.mxu0 0.0
    %1504 = vmatprep.subr.mxu0 0.0
    %1505 = vmatpush1.msra.mxu0 0.0
    %1506 = vmatprep.subr.mxu0 0.0
    %1507 = vmatpush1.msra.mxu0 0.0
    %1508 = vmatprep.subr.mxu0 0.0
    %1509 = vmatpush1.msra.mxu0 0.0
    %1510 = vmatprep.subr.mxu0 %v388
    %1511 = vmatpush1.msra.mxu0 %v385
    %1512 = vmatprep.subr.mxu0 %v196
    %1513 = vmatpush1.msra.mxu0 %v195
    %1514 = vmatprep.subr.mxu0 %v132
    %1515 = vmatpush1.msra.mxu0 %v131
    %1516 = vmatprep.subr.mxu0 %v68
    %1517 = vmatpush1.msra.mxu0 %v67
    %1518 = vmatprep.subr.mxu0 0.0
    %1519 = vmatpush2.msra.mxu0 0.0
    %1520 = vmatprep.subr.mxu0 0.0
    %1521 = vmatpush2.msra.mxu0 0.0
    %1522 = vmatprep.subr.mxu0 0.0
    %1523 = vmatpush2.msra.mxu0 0.0
    %1524 = vmatprep.subr.mxu0 0.0
    %1525 = vmatpush2.msra.mxu0 0.0
    %1526 = vmatprep.subr.mxu0 0.0
    %1527 = vmatpush2.msra.mxu0 0.0
    %1528 = vmatprep.subr.mxu0 0.0
    %1529 = vmatpush2.msra.mxu0 0.0
    %1530 = vmatprep.subr.mxu0 0.0
    %1531 = vmatpush2.msra.mxu0 0.0
    %1532 = vmatprep.subr.mxu0 0.0
    %1533 = vmatpush2.msra.mxu0 0.0
    %1534 = vmatprep.subr.mxu0 0.0
    %1535 = vmatpush2.msra.mxu0 0.0
    %1536 = vmatprep.subr.mxu0 0.0
    %1537 = vmatpush2.msra.mxu0 0.0
    %1538 = vmatprep.subr.mxu0 0.0
    %1539 = vmatpush2.msra.mxu0 0.0
    %1540 = vmatprep.subr.mxu0 0.0
    %1541 = vmatpush2.msra.mxu0 0.0
    %1542 = vmatprep.subr.mxu0 0.0
    %1543 = vmatpush2.msra.mxu0 0.0
    %1544 = vmatprep.subr.mxu0 0.0
    %1545 = vmatpush2.msra.mxu0 0.0
    %1546 = vmatprep.subr.mxu0 0.0
    %1547 = vmatpush2.msra.mxu0 0.0
    %1548 = vmatprep.subr.mxu0 0.0
    %1549 = vmatpush2.msra.mxu0 0.0
    %1550 = vmatprep.mubr.f32.mxu0 0.0
    %1551 = vmatmul.mubr.f32.gmra.mxu0 %v297
    %v1552 = vpop.f32.mrf.mxu0
    %v1553 = vadd.f32 0.0, %v1552
    %v1554 = vpop.f32.mrf.mxu0
    %v1555 = vadd.f32 0.0, %v1554
    %1556 = vdwg.mxu0
    %1557 = vmatprep.subr.mxu0 0.0
    %1558 = vmatpush1.msra.mxu0 0.0
    %1559 = vmatprep.subr.mxu0 0.0
    %1560 = vmatpush1.msra.mxu0 0.0
    %1561 = vmatprep.subr.mxu0 0.0
    %1562 = vmatpush1.msra.mxu0 0.0
    %1563 = vmatprep.subr.mxu0 0.0
    %1564 = vmatpush1.msra.mxu0 0.0
    %1565 = vmatprep.subr.mxu0 0.0
    %1566 = vmatpush1.msra.mxu0 0.0
    %1567 = vmatprep.subr.mxu0 0.0
    %1568 = vmatpush1.msra.mxu0 0.0
    %1569 = vmatprep.subr.mxu0 0.0
    %1570 = vmatpush1.msra.mxu0 0.0
    %1571 = vmatprep.subr.mxu0 0.0
    %1572 = vmatpush1.msra.mxu0 0.0
    %1573 = vmatprep.subr.mxu0 0.0
    %1574 = vmatpush1.msra.mxu0 0.0
    %1575 = vmatprep.subr.mxu0 0.0
    %1576 = vmatpush1.msra.mxu0 0.0
    %1577 = vmatprep.subr.mxu0 0.0
    %1578 = vmatpush1.msra.mxu0 0.0
    %1579 = vmatprep.subr.mxu0 0.0
    %1580 = vmatpush1.msra.mxu0 0.0
    %1581 = vmatprep.subr.mxu0 %v394
    %1582 = vmatpush1.msra.mxu0 %v391
    %1583 = vmatprep.subr.mxu0 %v198
    %1584 = vmatpush1.msra.mxu0 %v197
    %1585 = vmatprep.subr.mxu0 %v134
    %1586 = vmatpush1.msra.mxu0 %v133
    %1587 = vmatprep.subr.mxu0 %v70
    %1588 = vmatpush1.msra.mxu0 %v69
    %1589 = vmatprep.subr.mxu0 0.0
    %1590 = vmatpush2.msra.mxu0 0.0
    %1591 = vmatprep.subr.mxu0 0.0
    %1592 = vmatpush2.msra.mxu0 0.0
    %1593 = vmatprep.subr.mxu0 0.0
    %1594 = vmatpush2.msra.mxu0 0.0
    %1595 = vmatprep.subr.mxu0 0.0
    %1596 = vmatpush2.msra.mxu0 0.0
    %1597 = vmatprep.subr.mxu0 0.0
    %1598 = vmatpush2.msra.mxu0 0.0
    %1599 = vmatprep.subr.mxu0 0.0
    %1600 = vmatpush2.msra.mxu0 0.0
    %1601 = vmatprep.subr.mxu0 0.0
    %1602 = vmatpush2.msra.mxu0 0.0
    %1603 = vmatprep.subr.mxu0 0.0
    %1604 = vmatpush2.msra.mxu0 0.0
    %1605 = vmatprep.subr.mxu0 0.0
    %1606 = vmatpush2.msra.mxu0 0.0
    %1607 = vmatprep.subr.mxu0 0.0
    %1608 = vmatpush2.msra.mxu0 0.0
    %1609 = vmatprep.subr.mxu0 0.0
    %1610 = vmatpush2.msra.mxu0 0.0
    %1611 = vmatprep.subr.mxu0 0.0
    %1612 = vmatpush2.msra.mxu0 0.0
    %1613 = vmatprep.subr.mxu0 0.0
    %1614 = vmatpush2.msra.mxu0 0.0
    %1615 = vmatprep.subr.mxu0 0.0
    %1616 = vmatpush2.msra.mxu0 0.0
    %1617 = vmatprep.subr.mxu0 0.0
    %1618 = vmatpush2.msra.mxu0 0.0
    %1619 = vmatprep.subr.mxu0 0.0
    %1620 = vmatpush2.msra.mxu0 0.0
    %1621 = vmatprep.mubr.f32.mxu0 0.0
    %1622 = vmatmul.mubr.f32.gmra.mxu0 %v297
    %v1623 = vpop.f32.mrf.mxu0
    %v1624 = vadd.f32 0.0, %v1623
    %v1625 = vpop.f32.mrf.mxu0
    %v1626 = vadd.f32 0.0, %v1625
    %1627 = vdwg.mxu0
    %1628 = vmatprep.subr.mxu0 0.0
    %1629 = vmatpush1.msra.mxu0 0.0
    %1630 = vmatprep.subr.mxu0 0.0
    %1631 = vmatpush1.msra.mxu0 0.0
    %1632 = vmatprep.subr.mxu0 0.0
    %1633 = vmatpush1.msra.mxu0 0.0
    %1634 = vmatprep.subr.mxu0 0.0
    %1635 = vmatpush1.msra.mxu0 0.0
    %1636 = vmatprep.subr.mxu0 0.0
    %1637 = vmatpush1.msra.mxu0 0.0
    %1638 = vmatprep.subr.mxu0 0.0
    %1639 = vmatpush1.msra.mxu0 0.0
    %1640 = vmatprep.subr.mxu0 0.0
    %1641 = vmatpush1.msra.mxu0 0.0
    %1642 = vmatprep.subr.mxu0 0.0
    %1643 = vmatpush1.msra.mxu0 0.0
    %1644 = vmatprep.subr.mxu0 0.0
    %1645 = vmatpush1.msra.mxu0 0.0
    %1646 = vmatprep.subr.mxu0 0.0
    %1647 = vmatpush1.msra.mxu0 0.0
    %1648 = vmatprep.subr.mxu0 0.0
    %1649 = vmatpush1.msra.mxu0 0.0
    %1650 = vmatprep.subr.mxu0 0.0
    %1651 = vmatpush1.msra.mxu0 0.0
    %1652 = vmatprep.subr.mxu0 %v400
    %1653 = vmatpush1.msra.mxu0 %v397
    %1654 = vmatprep.subr.mxu0 %v200
    %1655 = vmatpush1.msra.mxu0 %v199
    %1656 = vmatprep.subr.mxu0 %v136
    %1657 = vmatpush1.msra.mxu0 %v135
    %1658 = vmatprep.subr.mxu0 %v72
    %1659 = vmatpush1.msra.mxu0 %v71
    %1660 = vmatprep.subr.mxu0 0.0
    %1661 = vmatpush2.msra.mxu0 0.0
    %1662 = vmatprep.subr.mxu0 0.0
    %1663 = vmatpush2.msra.mxu0 0.0
    %1664 = vmatprep.subr.mxu0 0.0
    %1665 = vmatpush2.msra.mxu0 0.0
    %1666 = vmatprep.subr.mxu0 0.0
    %1667 = vmatpush2.msra.mxu0 0.0
    %1668 = vmatprep.subr.mxu0 0.0
    %1669 = vmatpush2.msra.mxu0 0.0
    %1670 = vmatprep.subr.mxu0 0.0
    %1671 = vmatpush2.msra.mxu0 0.0
    %1672 = vmatprep.subr.mxu0 0.0
    %1673 = vmatpush2.msra.mxu0 0.0
    %1674 = vmatprep.subr.mxu0 0.0
    %1675 = vmatpush2.msra.mxu0 0.0
    %1676 = vmatprep.subr.mxu0 0.0
    %1677 = vmatpush2.msra.mxu0 0.0
    %1678 = vmatprep.subr.mxu0 0.0
    %1679 = vmatpush2.msra.mxu0 0.0
    %1680 = vmatprep.subr.mxu0 0.0
    %1681 = vmatpush2.msra.mxu0 0.0
    %1682 = vmatprep.subr.mxu0 0.0
    %1683 = vmatpush2.msra.mxu0 0.0
    %1684 = vmatprep.subr.mxu0 0.0
    %1685 = vmatpush2.msra.mxu0 0.0
    %1686 = vmatprep.subr.mxu0 0.0
    %1687 = vmatpush2.msra.mxu0 0.0
    %1688 = vmatprep.subr.mxu0 0.0
    %1689 = vmatpush2.msra.mxu0 0.0
    %1690 = vmatprep.subr.mxu0 0.0
    %1691 = vmatpush2.msra.mxu0 0.0
    %1692 = vmatprep.mubr.f32.mxu0 0.0
    %1693 = vmatmul.mubr.f32.gmra.mxu0 %v297
    %v1694 = vpop.f32.mrf.mxu0
    %v1695 = vadd.f32 0.0, %v1694
    %v1696 = vpop.f32.mrf.mxu0
    %v1697 = vadd.f32 0.0, %v1696
    %1698 = vdwg.mxu0
    %1699 = vmatprep.subr.mxu0 0.0
    %1700 = vmatpush1.msra.mxu0 0.0
    %1701 = vmatprep.subr.mxu0 0.0
    %1702 = vmatpush1.msra.mxu0 0.0
    %1703 = vmatprep.subr.mxu0 0.0
    %1704 = vmatpush1.msra.mxu0 0.0
    %1705 = vmatprep.subr.mxu0 0.0
    %1706 = vmatpush1.msra.mxu0 0.0
    %1707 = vmatprep.subr.mxu0 0.0
    %1708 = vmatpush1.msra.mxu0 0.0
    %1709 = vmatprep.subr.mxu0 0.0
    %1710 = vmatpush1.msra.mxu0 0.0
    %1711 = vmatprep.subr.mxu0 0.0
    %1712 = vmatpush1.msra.mxu0 0.0
    %1713 = vmatprep.subr.mxu0 0.0
    %1714 = vmatpush1.msra.mxu0 0.0
    %1715 = vmatprep.subr.mxu0 0.0
    %1716 = vmatpush1.msra.mxu0 0.0
    %1717 = vmatprep.subr.mxu0 0.0
    %1718 = vmatpush1.msra.mxu0 0.0
    %1719 = vmatprep.subr.mxu0 0.0
    %1720 = vmatpush1.msra.mxu0 0.0
    %1721 = vmatprep.subr.mxu0 0.0
    %1722 = vmatpush1.msra.mxu0 0.0
    %1723 = vmatprep.subr.mxu0 %v406
    %1724 = vmatpush1.msra.mxu0 %v403
    %1725 = vmatprep.subr.mxu0 %v202
    %1726 = vmatpush1.msra.mxu0 %v201
    %1727 = vmatprep.subr.mxu0 %v138
    %1728 = vmatpush1.msra.mxu0 %v137
    %1729 = vmatprep.subr.mxu0 %v74
    %1730 = vmatpush1.msra.mxu0 %v73
    %1731 = vmatprep.subr.mxu0 0.0
    %1732 = vmatpush2.msra.mxu0 0.0
    %1733 = vmatprep.subr.mxu0 0.0
    %1734 = vmatpush2.msra.mxu0 0.0
    %1735 = vmatprep.subr.mxu0 0.0
    %1736 = vmatpush2.msra.mxu0 0.0
    %1737 = vmatprep.subr.mxu0 0.0
    %1738 = vmatpush2.msra.mxu0 0.0
    %1739 = vmatprep.subr.mxu0 0.0
    %1740 = vmatpush2.msra.mxu0 0.0
    %1741 = vmatprep.subr.mxu0 0.0
    %1742 = vmatpush2.msra.mxu0 0.0
    %1743 = vmatprep.subr.mxu0 0.0
    %1744 = vmatpush2.msra.mxu0 0.0
    %1745 = vmatprep.subr.mxu0 0.0
    %1746 = vmatpush2.msra.mxu0 0.0
    %1747 = vmatprep.subr.mxu0 0.0
    %1748 = vmatpush2.msra.mxu0 0.0
    %1749 = vmatprep.subr.mxu0 0.0
    %1750 = vmatpush2.msra.mxu0 0.0
    %1751 = vmatprep.subr.mxu0 0.0
    %1752 = vmatpush2.msra.mxu0 0.0
    %1753 = vmatprep.subr.mxu0 0.0
    %1754 = vmatpush2.msra.mxu0 0.0
    %1755 = vmatprep.subr.mxu0 0.0
    %1756 = vmatpush2.msra.mxu0 0.0
    %1757 = vmatprep.subr.mxu0 0.0
    %1758 = vmatpush2.msra.mxu0 0.0
    %1759 = vmatprep.subr.mxu0 0.0
    %1760 = vmatpush2.msra.mxu0 0.0
    %1761 = vmatprep.subr.mxu0 0.0
    %1762 = vmatpush2.msra.mxu0 0.0
    %1763 = vmatprep.mubr.f32.mxu0 0.0
    %1764 = vmatmul.mubr.f32.gmra.mxu0 %v297
    %v1765 = vpop.f32.mrf.mxu0
    %v1766 = vadd.f32 0.0, %v1765
    %v1767 = vpop.f32.mrf.mxu0
    %v1768 = vadd.f32 0.0, %v1767
    %1769 = vdwg.mxu0
    %1770 = vmatprep.subr.mxu0 0.0
    %1771 = vmatpush1.msra.mxu0 0.0
    %1772 = vmatprep.subr.mxu0 0.0
    %1773 = vmatpush1.msra.mxu0 0.0
    %1774 = vmatprep.subr.mxu0 0.0
    %1775 = vmatpush1.msra.mxu0 0.0
    %1776 = vmatprep.subr.mxu0 0.0
    %1777 = vmatpush1.msra.mxu0 0.0
    %1778 = vmatprep.subr.mxu0 0.0
    %1779 = vmatpush1.msra.mxu0 0.0
    %1780 = vmatprep.subr.mxu0 0.0
    %1781 = vmatpush1.msra.mxu0 0.0
    %1782 = vmatprep.subr.mxu0 0.0
    %1783 = vmatpush1.msra.mxu0 0.0
    %1784 = vmatprep.subr.mxu0 0.0
    %1785 = vmatpush1.msra.mxu0 0.0
    %1786 = vmatprep.subr.mxu0 0.0
    %1787 = vmatpush1.msra.mxu0 0.0
    %1788 = vmatprep.subr.mxu0 0.0
    %1789 = vmatpush1.msra.mxu0 0.0
    %1790 = vmatprep.subr.mxu0 0.0
    %1791 = vmatpush1.msra.mxu0 0.0
    %1792 = vmatprep.subr.mxu0 0.0
    %1793 = vmatpush1.msra.mxu0 0.0
    %1794 = vmatprep.subr.mxu0 %v412
    %1795 = vmatpush1.msra.mxu0 %v409
    %1796 = vmatprep.subr.mxu0 %v204
    %1797 = vmatpush1.msra.mxu0 %v203
    %1798 = vmatprep.subr.mxu0 %v140
    %1799 = vmatpush1.msra.mxu0 %v139
    %1800 = vmatprep.subr.mxu0 %v76
    %1801 = vmatpush1.msra.mxu0 %v75
    %1802 = vmatprep.subr.mxu0 0.0
    %1803 = vmatpush2.msra.mxu0 0.0
    %1804 = vmatprep.subr.mxu0 0.0
    %1805 = vmatpush2.msra.mxu0 0.0
    %1806 = vmatprep.subr.mxu0 0.0
    %1807 = vmatpush2.msra.mxu0 0.0
    %1808 = vmatprep.subr.mxu0 0.0
    %1809 = vmatpush2.msra.mxu0 0.0
    %1810 = vmatprep.subr.mxu0 0.0
    %1811 = vmatpush2.msra.mxu0 0.0
    %1812 = vmatprep.subr.mxu0 0.0
    %1813 = vmatpush2.msra.mxu0 0.0
    %1814 = vmatprep.subr.mxu0 0.0
    %1815 = vmatpush2.msra.mxu0 0.0
    %1816 = vmatprep.subr.mxu0 0.0
    %1817 = vmatpush2.msra.mxu0 0.0
    %1818 = vmatprep.subr.mxu0 0.0
    %1819 = vmatpush2.msra.mxu0 0.0
    %1820 = vmatprep.subr.mxu0 0.0
    %1821 = vmatpush2.msra.mxu0 0.0
    %1822 = vmatprep.subr.mxu0 0.0
    %1823 = vmatpush2.msra.mxu0 0.0
    %1824 = vmatprep.subr.mxu0 0.0
    %1825 = vmatpush2.msra.mxu0 0.0
    %1826 = vmatprep.subr.mxu0 0.0
    %1827 = vmatpush2.msra.mxu0 0.0
    %1828 = vmatprep.subr.mxu0 0.0
    %1829 = vmatpush2.msra.mxu0 0.0
    %1830 = vmatprep.subr.mxu0 0.0
    %1831 = vmatpush2.msra.mxu0 0.0
    %1832 = vmatprep.subr.mxu0 0.0
    %1833 = vmatpush2.msra.mxu0 0.0
    %1834 = vmatprep.mubr.f32.mxu0 0.0
    %1835 = vmatmul.mubr.f32.gmra.mxu0 %v297
    %v1836 = vpop.f32.mrf.mxu0
    %v1837 = vadd.f32 0.0, %v1836
    %v1838 = vpop.f32.mrf.mxu0
    %v1839 = vadd.f32 0.0, %v1838
    %1840 = vdwg.mxu0
    %1841 = vmatprep.subr.mxu0 0.0
    %1842 = vmatpush1.msra.mxu0 0.0
    %1843 = vmatprep.subr.mxu0 0.0
    %1844 = vmatpush1.msra.mxu0 0.0
    %1845 = vmatprep.subr.mxu0 0.0
    %1846 = vmatpush1.msra.mxu0 0.0
    %1847 = vmatprep.subr.mxu0 0.0
    %1848 = vmatpush1.msra.mxu0 0.0
    %1849 = vmatprep.subr.mxu0 0.0
    %1850 = vmatpush1.msra.mxu0 0.0
    %1851 = vmatprep.subr.mxu0 0.0
    %1852 = vmatpush1.msra.mxu0 0.0
    %1853 = vmatprep.subr.mxu0 0.0
    %1854 = vmatpush1.msra.mxu0 0.0
    %1855 = vmatprep.subr.mxu0 0.0
    %1856 = vmatpush1.msra.mxu0 0.0
    %1857 = vmatprep.subr.mxu0 0.0
    %1858 = vmatpush1.msra.mxu0 0.0
    %1859 = vmatprep.subr.mxu0 0.0
    %1860 = vmatpush1.msra.mxu0 0.0
    %1861 = vmatprep.subr.mxu0 0.0
    %1862 = vmatpush1.msra.mxu0 0.0
    %1863 = vmatprep.subr.mxu0 0.0
    %1864 = vmatpush1.msra.mxu0 0.0
    %1865 = vmatprep.subr.mxu0 %v418
    %1866 = vmatpush1.msra.mxu0 %v415
    %1867 = vmatprep.subr.mxu0 %v206
    %1868 = vmatpush1.msra.mxu0 %v205
    %1869 = vmatprep.subr.mxu0 %v142
    %1870 = vmatpush1.msra.mxu0 %v141
    %1871 = vmatprep.subr.mxu0 %v78
    %1872 = vmatpush1.msra.mxu0 %v77
    %1873 = vmatprep.subr.mxu0 0.0
    %1874 = vmatpush2.msra.mxu0 0.0
    %1875 = vmatprep.subr.mxu0 0.0
    %1876 = vmatpush2.msra.mxu0 0.0
    %1877 = vmatprep.subr.mxu0 0.0
    %1878 = vmatpush2.msra.mxu0 0.0
    %1879 = vmatprep.subr.mxu0 0.0
    %1880 = vmatpush2.msra.mxu0 0.0
    %1881 = vmatprep.subr.mxu0 0.0
    %1882 = vmatpush2.msra.mxu0 0.0
    %1883 = vmatprep.subr.mxu0 0.0
    %1884 = vmatpush2.msra.mxu0 0.0
    %1885 = vmatprep.subr.mxu0 0.0
    %1886 = vmatpush2.msra.mxu0 0.0
    %1887 = vmatprep.subr.mxu0 0.0
    %1888 = vmatpush2.msra.mxu0 0.0
    %1889 = vmatprep.subr.mxu0 0.0
    %1890 = vmatpush2.msra.mxu0 0.0
    %1891 = vmatprep.subr.mxu0 0.0
    %1892 = vmatpush2.msra.mxu0 0.0
    %1893 = vmatprep.subr.mxu0 0.0
    %1894 = vmatpush2.msra.mxu0 0.0
    %1895 = vmatprep.subr.mxu0 0.0
    %1896 = vmatpush2.msra.mxu0 0.0
    %1897 = vmatprep.subr.mxu0 0.0
    %1898 = vmatpush2.msra.mxu0 0.0
    %1899 = vmatprep.subr.mxu0 0.0
    %1900 = vmatpush2.msra.mxu0 0.0
    %1901 = vmatprep.subr.mxu0 0.0
    %1902 = vmatpush2.msra.mxu0 0.0
    %1903 = vmatprep.subr.mxu0 0.0
    %1904 = vmatpush2.msra.mxu0 0.0
    %1905 = vmatprep.mubr.f32.mxu0 0.0
    %1906 = vmatmul.mubr.f32.gmra.mxu0 %v297
    %v1907 = vpop.f32.mrf.mxu0
    %v1908 = vadd.f32 0.0, %v1907
    %v1909 = vpop.f32.mrf.mxu0
    %v1910 = vadd.f32 0.0, %v1909
    %1911 = vdwg.mxu0
    %1912 = vmatprep.subr.mxu0 0.0
    %1913 = vmatpush1.msra.mxu0 0.0
    %1914 = vmatprep.subr.mxu0 0.0
    %1915 = vmatpush1.msra.mxu0 0.0
    %1916 = vmatprep.subr.mxu0 0.0
    %1917 = vmatpush1.msra.mxu0 0.0
    %1918 = vmatprep.subr.mxu0 0.0
    %1919 = vmatpush1.msra.mxu0 0.0
    %1920 = vmatprep.subr.mxu0 0.0
    %1921 = vmatpush1.msra.mxu0 0.0
    %1922 = vmatprep.subr.mxu0 0.0
    %1923 = vmatpush1.msra.mxu0 0.0
    %1924 = vmatprep.subr.mxu0 0.0
    %1925 = vmatpush1.msra.mxu0 0.0
    %1926 = vmatprep.subr.mxu0 0.0
    %1927 = vmatpush1.msra.mxu0 0.0
    %1928 = vmatprep.subr.mxu0 0.0
    %1929 = vmatpush1.msra.mxu0 0.0
    %1930 = vmatprep.subr.mxu0 0.0
    %1931 = vmatpush1.msra.mxu0 0.0
    %1932 = vmatprep.subr.mxu0 0.0
    %1933 = vmatpush1.msra.mxu0 0.0
    %1934 = vmatprep.subr.mxu0 0.0
    %1935 = vmatpush1.msra.mxu0 0.0
    %1936 = vmatprep.subr.mxu0 %v424
    %1937 = vmatpush1.msra.mxu0 %v421
    %1938 = vmatprep.subr.mxu0 %v208
    %1939 = vmatpush1.msra.mxu0 %v207
    %1940 = vmatprep.subr.mxu0 %v144
    %1941 = vmatpush1.msra.mxu0 %v143
    %1942 = vmatprep.subr.mxu0 %v80
    %1943 = vmatpush1.msra.mxu0 %v79
    %1944 = vmatprep.subr.mxu0 0.0
    %1945 = vmatpush2.msra.mxu0 0.0
    %1946 = vmatprep.subr.mxu0 0.0
    %1947 = vmatpush2.msra.mxu0 0.0
    %1948 = vmatprep.subr.mxu0 0.0
    %1949 = vmatpush2.msra.mxu0 0.0
    %1950 = vmatprep.subr.mxu0 0.0
    %1951 = vmatpush2.msra.mxu0 0.0
    %1952 = vmatprep.subr.mxu0 0.0
    %1953 = vmatpush2.msra.mxu0 0.0
    %1954 = vmatprep.subr.mxu0 0.0
    %1955 = vmatpush2.msra.mxu0 0.0
    %1956 = vmatprep.subr.mxu0 0.0
    %1957 = vmatpush2.msra.mxu0 0.0
    %1958 = vmatprep.subr.mxu0 0.0
    %1959 = vmatpush2.msra.mxu0 0.0
    %1960 = vmatprep.subr.mxu0 0.0
    %1961 = vmatpush2.msra.mxu0 0.0
    %1962 = vmatprep.subr.mxu0 0.0
    %1963 = vmatpush2.msra.mxu0 0.0
    %1964 = vmatprep.subr.mxu0 0.0
    %1965 = vmatpush2.msra.mxu0 0.0
    %1966 = vmatprep.subr.mxu0 0.0
    %1967 = vmatpush2.msra.mxu0 0.0
    %1968 = vmatprep.subr.mxu0 0.0
    %1969 = vmatpush2.msra.mxu0 0.0
    %1970 = vmatprep.subr.mxu0 0.0
    %1971 = vmatpush2.msra.mxu0 0.0
    %1972 = vmatprep.subr.mxu0 0.0
    %1973 = vmatpush2.msra.mxu0 0.0
    %1974 = vmatprep.subr.mxu0 0.0
    %1975 = vmatpush2.msra.mxu0 0.0
    %1976 = vmatprep.mubr.f32.mxu0 0.0
    %1977 = vmatmul.mubr.f32.gmra.mxu0 %v297
    %v1978 = vpop.f32.mrf.mxu0
    %v1979 = vadd.f32 0.0, %v1978
    %v1980 = vpop.f32.mrf.mxu0
    %v1981 = vadd.f32 0.0, %v1980
    %1982 = vdwg.mxu0
    %1983 = vmatprep.subr.mxu0 0.0
    %1984 = vmatpush1.msra.mxu0 0.0
    %1985 = vmatprep.subr.mxu0 0.0
    %1986 = vmatpush1.msra.mxu0 0.0
    %1987 = vmatprep.subr.mxu0 0.0
    %1988 = vmatpush1.msra.mxu0 0.0
    %1989 = vmatprep.subr.mxu0 0.0
    %1990 = vmatpush1.msra.mxu0 0.0
    %1991 = vmatprep.subr.mxu0 0.0
    %1992 = vmatpush1.msra.mxu0 0.0
    %1993 = vmatprep.subr.mxu0 0.0
    %1994 = vmatpush1.msra.mxu0 0.0
    %1995 = vmatprep.subr.mxu0 0.0
    %1996 = vmatpush1.msra.mxu0 0.0
    %1997 = vmatprep.subr.mxu0 0.0
    %1998 = vmatpush1.msra.mxu0 0.0
    %1999 = vmatprep.subr.mxu0 0.0
    %2000 = vmatpush1.msra.mxu0 0.0
    %2001 = vmatprep.subr.mxu0 0.0
    %2002 = vmatpush1.msra.mxu0 0.0
    %2003 = vmatprep.subr.mxu0 0.0
    %2004 = vmatpush1.msra.mxu0 0.0
    %2005 = vmatprep.subr.mxu0 0.0
    %2006 = vmatpush1.msra.mxu0 0.0
    %2007 = vmatprep.subr.mxu0 %v430
    %2008 = vmatpush1.msra.mxu0 %v427
    %2009 = vmatprep.subr.mxu0 %v210
    %2010 = vmatpush1.msra.mxu0 %v209
    %2011 = vmatprep.subr.mxu0 %v146
    %2012 = vmatpush1.msra.mxu0 %v145
    %2013 = vmatprep.subr.mxu0 %v82
    %2014 = vmatpush1.msra.mxu0 %v81
    %2015 = vmatprep.subr.mxu0 0.0
    %2016 = vmatpush2.msra.mxu0 0.0
    %2017 = vmatprep.subr.mxu0 0.0
    %2018 = vmatpush2.msra.mxu0 0.0
    %2019 = vmatprep.subr.mxu0 0.0
    %2020 = vmatpush2.msra.mxu0 0.0
    %2021 = vmatprep.subr.mxu0 0.0
    %2022 = vmatpush2.msra.mxu0 0.0
    %2023 = vmatprep.subr.mxu0 0.0
    %2024 = vmatpush2.msra.mxu0 0.0
    %2025 = vmatprep.subr.mxu0 0.0
    %2026 = vmatpush2.msra.mxu0 0.0
    %2027 = vmatprep.subr.mxu0 0.0
    %2028 = vmatpush2.msra.mxu0 0.0
    %2029 = vmatprep.subr.mxu0 0.0
    %2030 = vmatpush2.msra.mxu0 0.0
    %2031 = vmatprep.subr.mxu0 0.0
    %2032 = vmatpush2.msra.mxu0 0.0
    %2033 = vmatprep.subr.mxu0 0.0
    %2034 = vmatpush2.msra.mxu0 0.0
    %2035 = vmatprep.subr.mxu0 0.0
    %2036 = vmatpush2.msra.mxu0 0.0
    %2037 = vmatprep.subr.mxu0 0.0
    %2038 = vmatpush2.msra.mxu0 0.0
    %2039 = vmatprep.subr.mxu0 0.0
    %2040 = vmatpush2.msra.mxu0 0.0
    %2041 = vmatprep.subr.mxu0 0.0
    %2042 = vmatpush2.msra.mxu0 0.0
    %2043 = vmatprep.subr.mxu0 0.0
    %2044 = vmatpush2.msra.mxu0 0.0
    %2045 = vmatprep.subr.mxu0 0.0
    %2046 = vmatpush2.msra.mxu0 0.0
    %2047 = vmatprep.mubr.f32.mxu0 0.0
    %2048 = vmatmul.mubr.f32.gmra.mxu0 %v297
    %v2049 = vpop.f32.mrf.mxu0
    %v2050 = vadd.f32 0.0, %v2049
    %v2051 = vpop.f32.mrf.mxu0
    %v2052 = vadd.f32 0.0, %v2051
    %2053 = vdwg.mxu0
    %2054 = vmatprep.subr.mxu0 0.0
    %2055 = vmatpush1.msra.mxu0 0.0
    %2056 = vmatprep.subr.mxu0 0.0
    %2057 = vmatpush1.msra.mxu0 0.0
    %2058 = vmatprep.subr.mxu0 0.0
    %2059 = vmatpush1.msra.mxu0 0.0
    %2060 = vmatprep.subr.mxu0 0.0
    %2061 = vmatpush1.msra.mxu0 0.0
    %2062 = vmatprep.subr.mxu0 0.0
    %2063 = vmatpush1.msra.mxu0 0.0
    %2064 = vmatprep.subr.mxu0 0.0
    %2065 = vmatpush1.msra.mxu0 0.0
    %2066 = vmatprep.subr.mxu0 0.0
    %2067 = vmatpush1.msra.mxu0 0.0
    %2068 = vmatprep.subr.mxu0 0.0
    %2069 = vmatpush1.msra.mxu0 0.0
    %2070 = vmatprep.subr.mxu0 0.0
    %2071 = vmatpush1.msra.mxu0 0.0
    %2072 = vmatprep.subr.mxu0 0.0
    %2073 = vmatpush1.msra.mxu0 0.0
    %2074 = vmatprep.subr.mxu0 0.0
    %2075 = vmatpush1.msra.mxu0 0.0
    %2076 = vmatprep.subr.mxu0 0.0
    %2077 = vmatpush1.msra.mxu0 0.0
    %2078 = vmatprep.subr.mxu0 %v436
    %2079 = vmatpush1.msra.mxu0 %v433
    %2080 = vmatprep.subr.mxu0 %v212
    %2081 = vmatpush1.msra.mxu0 %v211
    %2082 = vmatprep.subr.mxu0 %v148
    %2083 = vmatpush1.msra.mxu0 %v147
    %2084 = vmatprep.subr.mxu0 %v84
    %2085 = vmatpush1.msra.mxu0 %v83
    %2086 = vmatprep.subr.mxu0 0.0
    %2087 = vmatpush2.msra.mxu0 0.0
    %2088 = vmatprep.subr.mxu0 0.0
    %2089 = vmatpush2.msra.mxu0 0.0
    %2090 = vmatprep.subr.mxu0 0.0
    %2091 = vmatpush2.msra.mxu0 0.0
    %2092 = vmatprep.subr.mxu0 0.0
    %2093 = vmatpush2.msra.mxu0 0.0
    %2094 = vmatprep.subr.mxu0 0.0
    %2095 = vmatpush2.msra.mxu0 0.0
    %2096 = vmatprep.subr.mxu0 0.0
    %2097 = vmatpush2.msra.mxu0 0.0
    %2098 = vmatprep.subr.mxu0 0.0
    %2099 = vmatpush2.msra.mxu0 0.0
    %2100 = vmatprep.subr.mxu0 0.0
    %2101 = vmatpush2.msra.mxu0 0.0
    %2102 = vmatprep.subr.mxu0 0.0
    %2103 = vmatpush2.msra.mxu0 0.0
    %2104 = vmatprep.subr.mxu0 0.0
    %2105 = vmatpush2.msra.mxu0 0.0
    %2106 = vmatprep.subr.mxu0 0.0
    %2107 = vmatpush2.msra.mxu0 0.0
    %2108 = vmatprep.subr.mxu0 0.0
    %2109 = vmatpush2.msra.mxu0 0.0
    %2110 = vmatprep.subr.mxu0 0.0
    %2111 = vmatpush2.msra.mxu0 0.0
    %2112 = vmatprep.subr.mxu0 0.0
    %2113 = vmatpush2.msra.mxu0 0.0
    %2114 = vmatprep.subr.mxu0 0.0
    %2115 = vmatpush2.msra.mxu0 0.0
    %2116 = vmatprep.subr.mxu0 0.0
    %2117 = vmatpush2.msra.mxu0 0.0
    %2118 = vmatprep.mubr.f32.mxu0 0.0
    %2119 = vmatmul.mubr.f32.gmra.mxu0 %v297
    %v2120 = vpop.f32.mrf.mxu0
    %v2121 = vadd.f32 0.0, %v2120
    %v2122 = vpop.f32.mrf.mxu0
    %v2123 = vadd.f32 0.0, %v2122
    %2124 = vdwg.mxu0
    %2125 = vmatprep.subr.mxu0 0.0
    %2126 = vmatpush1.msra.mxu0 0.0
    %2127 = vmatprep.subr.mxu0 0.0
    %2128 = vmatpush1.msra.mxu0 0.0
    %2129 = vmatprep.subr.mxu0 0.0
    %2130 = vmatpush1.msra.mxu0 0.0
    %2131 = vmatprep.subr.mxu0 0.0
    %2132 = vmatpush1.msra.mxu0 0.0
    %2133 = vmatprep.subr.mxu0 0.0
    %2134 = vmatpush1.msra.mxu0 0.0
    %2135 = vmatprep.subr.mxu0 0.0
    %2136 = vmatpush1.msra.mxu0 0.0
    %2137 = vmatprep.subr.mxu0 0.0
    %2138 = vmatpush1.msra.mxu0 0.0
    %2139 = vmatprep.subr.mxu0 0.0
    %2140 = vmatpush1.msra.mxu0 0.0
    %2141 = vmatprep.subr.mxu0 0.0
    %2142 = vmatpush1.msra.mxu0 0.0
    %2143 = vmatprep.subr.mxu0 0.0
    %2144 = vmatpush1.msra.mxu0 0.0
    %2145 = vmatprep.subr.mxu0 0.0
    %2146 = vmatpush1.msra.mxu0 0.0
    %2147 = vmatprep.subr.mxu0 0.0
    %2148 = vmatpush1.msra.mxu0 0.0
    %2149 = vmatprep.subr.mxu0 %v442
    %2150 = vmatpush1.msra.mxu0 %v439
    %2151 = vmatprep.subr.mxu0 %v214
    %2152 = vmatpush1.msra.mxu0 %v213
    %2153 = vmatprep.subr.mxu0 %v150
    %2154 = vmatpush1.msra.mxu0 %v149
    %2155 = vmatprep.subr.mxu0 %v86
    %2156 = vmatpush1.msra.mxu0 %v85
    %2157 = vmatprep.subr.mxu0 0.0
    %2158 = vmatpush2.msra.mxu0 0.0
    %2159 = vmatprep.subr.mxu0 0.0
    %2160 = vmatpush2.msra.mxu0 0.0
    %2161 = vmatprep.subr.mxu0 0.0
    %2162 = vmatpush2.msra.mxu0 0.0
    %2163 = vmatprep.subr.mxu0 0.0
    %2164 = vmatpush2.msra.mxu0 0.0
    %2165 = vmatprep.subr.mxu0 0.0
    %2166 = vmatpush2.msra.mxu0 0.0
    %2167 = vmatprep.subr.mxu0 0.0
    %2168 = vmatpush2.msra.mxu0 0.0
    %2169 = vmatprep.subr.mxu0 0.0
    %2170 = vmatpush2.msra.mxu0 0.0
    %2171 = vmatprep.subr.mxu0 0.0
    %2172 = vmatpush2.msra.mxu0 0.0
    %2173 = vmatprep.subr.mxu0 0.0
    %2174 = vmatpush2.msra.mxu0 0.0
    %2175 = vmatprep.subr.mxu0 0.0
    %2176 = vmatpush2.msra.mxu0 0.0
    %2177 = vmatprep.subr.mxu0 0.0
    %2178 = vmatpush2.msra.mxu0 0.0
    %2179 = vmatprep.subr.mxu0 0.0
    %2180 = vmatpush2.msra.mxu0 0.0
    %2181 = vmatprep.subr.mxu0 0.0
    %2182 = vmatpush2.msra.mxu0 0.0
    %2183 = vmatprep.subr.mxu0 0.0
    %2184 = vmatpush2.msra.mxu0 0.0
    %2185 = vmatprep.subr.mxu0 0.0
    %2186 = vmatpush2.msra.mxu0 0.0
    %2187 = vmatprep.subr.mxu0 0.0
    %2188 = vmatpush2.msra.mxu0 0.0
    %2189 = vmatprep.mubr.f32.mxu0 0.0
    %2190 = vmatmul.mubr.f32.gmra.mxu0 %v297
    %v2191 = vpop.f32.mrf.mxu0
    %v2192 = vadd.f32 0.0, %v2191
    %v2193 = vpop.f32.mrf.mxu0
    %v2194 = vadd.f32 0.0, %v2193
    %2195 = vdwg.mxu0
    %2196 = vmatprep.subr.mxu0 0.0
    %2197 = vmatpush1.msra.mxu0 0.0
    %2198 = vmatprep.subr.mxu0 0.0
    %2199 = vmatpush1.msra.mxu0 0.0
    %2200 = vmatprep.subr.mxu0 0.0
    %2201 = vmatpush1.msra.mxu0 0.0
    %2202 = vmatprep.subr.mxu0 0.0
    %2203 = vmatpush1.msra.mxu0 0.0
    %2204 = vmatprep.subr.mxu0 0.0
    %2205 = vmatpush1.msra.mxu0 0.0
    %2206 = vmatprep.subr.mxu0 0.0
    %2207 = vmatpush1.msra.mxu0 0.0
    %2208 = vmatprep.subr.mxu0 0.0
    %2209 = vmatpush1.msra.mxu0 0.0
    %2210 = vmatprep.subr.mxu0 0.0
    %2211 = vmatpush1.msra.mxu0 0.0
    %2212 = vmatprep.subr.mxu0 0.0
    %2213 = vmatpush1.msra.mxu0 0.0
    %2214 = vmatprep.subr.mxu0 0.0
    %2215 = vmatpush1.msra.mxu0 0.0
    %2216 = vmatprep.subr.mxu0 0.0
    %2217 = vmatpush1.msra.mxu0 0.0
    %2218 = vmatprep.subr.mxu0 0.0
    %2219 = vmatpush1.msra.mxu0 0.0
    %2220 = vmatprep.subr.mxu0 %v448
    %2221 = vmatpush1.msra.mxu0 %v445
    %2222 = vmatprep.subr.mxu0 %v216
    %2223 = vmatpush1.msra.mxu0 %v215
    %2224 = vmatprep.subr.mxu0 %v152
    %2225 = vmatpush1.msra.mxu0 %v151
    %2226 = vmatprep.subr.mxu0 %v88
    %2227 = vmatpush1.msra.mxu0 %v87
    %2228 = vmatprep.subr.mxu0 0.0
    %2229 = vmatpush2.msra.mxu0 0.0
    %2230 = vmatprep.subr.mxu0 0.0
    %2231 = vmatpush2.msra.mxu0 0.0
    %2232 = vmatprep.subr.mxu0 0.0
    %2233 = vmatpush2.msra.mxu0 0.0
    %2234 = vmatprep.subr.mxu0 0.0
    %2235 = vmatpush2.msra.mxu0 0.0
    %2236 = vmatprep.subr.mxu0 0.0
    %2237 = vmatpush2.msra.mxu0 0.0
    %2238 = vmatprep.subr.mxu0 0.0
    %2239 = vmatpush2.msra.mxu0 0.0
    %2240 = vmatprep.subr.mxu0 0.0
    %2241 = vmatpush2.msra.mxu0 0.0
    %2242 = vmatprep.subr.mxu0 0.0
    %2243 = vmatpush2.msra.mxu0 0.0
    %2244 = vmatprep.subr.mxu0 0.0
    %2245 = vmatpush2.msra.mxu0 0.0
    %2246 = vmatprep.subr.mxu0 0.0
    %2247 = vmatpush2.msra.mxu0 0.0
    %2248 = vmatprep.subr.mxu0 0.0
    %2249 = vmatpush2.msra.mxu0 0.0
    %2250 = vmatprep.subr.mxu0 0.0
    %2251 = vmatpush2.msra.mxu0 0.0
    %2252 = vmatprep.subr.mxu0 0.0
    %2253 = vmatpush2.msra.mxu0 0.0
    %2254 = vmatprep.subr.mxu0 0.0
    %2255 = vmatpush2.msra.mxu0 0.0
    %2256 = vmatprep.subr.mxu0 0.0
    %2257 = vmatpush2.msra.mxu0 0.0
    %2258 = vmatprep.subr.mxu0 0.0
    %2259 = vmatpush2.msra.mxu0 0.0
    %2260 = vmatprep.mubr.f32.mxu0 0.0
    %2261 = vmatmul.mubr.f32.gmra.mxu0 %v297
    %v2262 = vpop.f32.mrf.mxu0
    %v2263 = vadd.f32 0.0, %v2262
    %v2264 = vpop.f32.mrf.mxu0
    %v2265 = vadd.f32 0.0, %v2264
    %2266 = vdwg.mxu0
    %2267 = vmatprep.subr.mxu0 0.0
    %2268 = vmatpush1.msra.mxu0 0.0
    %2269 = vmatprep.subr.mxu0 0.0
    %2270 = vmatpush1.msra.mxu0 0.0
    %2271 = vmatprep.subr.mxu0 0.0
    %2272 = vmatpush1.msra.mxu0 0.0
    %2273 = vmatprep.subr.mxu0 0.0
    %2274 = vmatpush1.msra.mxu0 0.0
    %2275 = vmatprep.subr.mxu0 0.0
    %2276 = vmatpush1.msra.mxu0 0.0
    %2277 = vmatprep.subr.mxu0 0.0
    %2278 = vmatpush1.msra.mxu0 0.0
    %2279 = vmatprep.subr.mxu0 0.0
    %2280 = vmatpush1.msra.mxu0 0.0
    %2281 = vmatprep.subr.mxu0 0.0
    %2282 = vmatpush1.msra.mxu0 0.0
    %2283 = vmatprep.subr.mxu0 0.0
    %2284 = vmatpush1.msra.mxu0 0.0
    %2285 = vmatprep.subr.mxu0 0.0
    %2286 = vmatpush1.msra.mxu0 0.0
    %2287 = vmatprep.subr.mxu0 0.0
    %2288 = vmatpush1.msra.mxu0 0.0
    %2289 = vmatprep.subr.mxu0 0.0
    %2290 = vmatpush1.msra.mxu0 0.0
    %2291 = vmatprep.subr.mxu0 %v454
    %2292 = vmatpush1.msra.mxu0 %v451
    %2293 = vmatprep.subr.mxu0 %v218
    %2294 = vmatpush1.msra.mxu0 %v217
    %2295 = vmatprep.subr.mxu0 %v154
    %2296 = vmatpush1.msra.mxu0 %v153
    %2297 = vmatprep.subr.mxu0 %v90
    %2298 = vmatpush1.msra.mxu0 %v89
    %2299 = vmatprep.subr.mxu0 0.0
    %2300 = vmatpush2.msra.mxu0 0.0
    %2301 = vmatprep.subr.mxu0 0.0
    %2302 = vmatpush2.msra.mxu0 0.0
    %2303 = vmatprep.subr.mxu0 0.0
    %2304 = vmatpush2.msra.mxu0 0.0
    %2305 = vmatprep.subr.mxu0 0.0
    %2306 = vmatpush2.msra.mxu0 0.0
    %2307 = vmatprep.subr.mxu0 0.0
    %2308 = vmatpush2.msra.mxu0 0.0
    %2309 = vmatprep.subr.mxu0 0.0
    %2310 = vmatpush2.msra.mxu0 0.0
    %2311 = vmatprep.subr.mxu0 0.0
    %2312 = vmatpush2.msra.mxu0 0.0
    %2313 = vmatprep.subr.mxu0 0.0
    %2314 = vmatpush2.msra.mxu0 0.0
    %2315 = vmatprep.subr.mxu0 0.0
    %2316 = vmatpush2.msra.mxu0 0.0
    %2317 = vmatprep.subr.mxu0 0.0
    %2318 = vmatpush2.msra.mxu0 0.0
    %2319 = vmatprep.subr.mxu0 0.0
    %2320 = vmatpush2.msra.mxu0 0.0
    %2321 = vmatprep.subr.mxu0 0.0
    %2322 = vmatpush2.msra.mxu0 0.0
    %2323 = vmatprep.subr.mxu0 0.0
    %2324 = vmatpush2.msra.mxu0 0.0
    %2325 = vmatprep.subr.mxu0 0.0
    %2326 = vmatpush2.msra.mxu0 0.0
    %2327 = vmatprep.subr.mxu0 0.0
    %2328 = vmatpush2.msra.mxu0 0.0
    %2329 = vmatprep.subr.mxu0 0.0
    %2330 = vmatpush2.msra.mxu0 0.0
    %2331 = vmatprep.mubr.f32.mxu0 0.0
    %2332 = vmatmul.mubr.f32.gmra.mxu0 %v297
    %v2333 = vpop.f32.mrf.mxu0
    %v2334 = vadd.f32 0.0, %v2333
    %v2335 = vpop.f32.mrf.mxu0
    %v2336 = vadd.f32 0.0, %v2335
    %2337 = vdwg.mxu0
    %2338 = vmatprep.subr.mxu0 0.0
    %2339 = vmatpush1.msra.mxu0 0.0
    %2340 = vmatprep.subr.mxu0 0.0
    %2341 = vmatpush1.msra.mxu0 0.0
    %2342 = vmatprep.subr.mxu0 0.0
    %2343 = vmatpush1.msra.mxu0 0.0
    %2344 = vmatprep.subr.mxu0 0.0
    %2345 = vmatpush1.msra.mxu0 0.0
    %2346 = vmatprep.subr.mxu0 0.0
    %2347 = vmatpush1.msra.mxu0 0.0
    %2348 = vmatprep.subr.mxu0 0.0
    %2349 = vmatpush1.msra.mxu0 0.0
    %2350 = vmatprep.subr.mxu0 0.0
    %2351 = vmatpush1.msra.mxu0 0.0
    %2352 = vmatprep.subr.mxu0 0.0
    %2353 = vmatpush1.msra.mxu0 0.0
    %2354 = vmatprep.subr.mxu0 0.0
    %2355 = vmatpush1.msra.mxu0 0.0
    %2356 = vmatprep.subr.mxu0 0.0
    %2357 = vmatpush1.msra.mxu0 0.0
    %2358 = vmatprep.subr.mxu0 0.0
    %2359 = vmatpush1.msra.mxu0 0.0
    %2360 = vmatprep.subr.mxu0 0.0
    %2361 = vmatpush1.msra.mxu0 0.0
    %2362 = vmatprep.subr.mxu0 %v460
    %2363 = vmatpush1.msra.mxu0 %v457
    %2364 = vmatprep.subr.mxu0 %v220
    %2365 = vmatpush1.msra.mxu0 %v219
    %2366 = vmatprep.subr.mxu0 %v156
    %2367 = vmatpush1.msra.mxu0 %v155
    %2368 = vmatprep.subr.mxu0 %v92
    %2369 = vmatpush1.msra.mxu0 %v91
    %2370 = vmatprep.subr.mxu0 0.0
    %2371 = vmatpush2.msra.mxu0 0.0
    %2372 = vmatprep.subr.mxu0 0.0
    %2373 = vmatpush2.msra.mxu0 0.0
    %2374 = vmatprep.subr.mxu0 0.0
    %2375 = vmatpush2.msra.mxu0 0.0
    %2376 = vmatprep.subr.mxu0 0.0
    %2377 = vmatpush2.msra.mxu0 0.0
    %2378 = vmatprep.subr.mxu0 0.0
    %2379 = vmatpush2.msra.mxu0 0.0
    %2380 = vmatprep.subr.mxu0 0.0
    %2381 = vmatpush2.msra.mxu0 0.0
    %2382 = vmatprep.subr.mxu0 0.0
    %2383 = vmatpush2.msra.mxu0 0.0
    %2384 = vmatprep.subr.mxu0 0.0
    %2385 = vmatpush2.msra.mxu0 0.0
    %2386 = vmatprep.subr.mxu0 0.0
    %2387 = vmatpush2.msra.mxu0 0.0
    %2388 = vmatprep.subr.mxu0 0.0
    %2389 = vmatpush2.msra.mxu0 0.0
    %2390 = vmatprep.subr.mxu0 0.0
    %2391 = vmatpush2.msra.mxu0 0.0
    %2392 = vmatprep.subr.mxu0 0.0
    %2393 = vmatpush2.msra.mxu0 0.0
    %2394 = vmatprep.subr.mxu0 0.0
    %2395 = vmatpush2.msra.mxu0 0.0
    %2396 = vmatprep.subr.mxu0 0.0
    %2397 = vmatpush2.msra.mxu0 0.0
    %2398 = vmatprep.subr.mxu0 0.0
    %2399 = vmatpush2.msra.mxu0 0.0
    %2400 = vmatprep.subr.mxu0 0.0
    %2401 = vmatpush2.msra.mxu0 0.0
    %2402 = vmatprep.mubr.f32.mxu0 0.0
    %2403 = vmatmul.mubr.f32.gmra.mxu0 %v297
    %v2404 = vpop.f32.mrf.mxu0
    %v2405 = vadd.f32 0.0, %v2404
    %v2406 = vpop.f32.mrf.mxu0
    %v2407 = vadd.f32 0.0, %v2406
    %2408 = vdwg.mxu0
    %2409 = vmatprep.subr.mxu0 0.0
    %2410 = vmatpush1.msra.mxu0 0.0
    %2411 = vmatprep.subr.mxu0 0.0
    %2412 = vmatpush1.msra.mxu0 0.0
    %2413 = vmatprep.subr.mxu0 0.0
    %2414 = vmatpush1.msra.mxu0 0.0
    %2415 = vmatprep.subr.mxu0 0.0
    %2416 = vmatpush1.msra.mxu0 0.0
    %2417 = vmatprep.subr.mxu0 0.0
    %2418 = vmatpush1.msra.mxu0 0.0
    %2419 = vmatprep.subr.mxu0 0.0
    %2420 = vmatpush1.msra.mxu0 0.0
    %2421 = vmatprep.subr.mxu0 0.0
    %2422 = vmatpush1.msra.mxu0 0.0
    %2423 = vmatprep.subr.mxu0 0.0
    %2424 = vmatpush1.msra.mxu0 0.0
    %2425 = vmatprep.subr.mxu0 0.0
    %2426 = vmatpush1.msra.mxu0 0.0
    %2427 = vmatprep.subr.mxu0 0.0
    %2428 = vmatpush1.msra.mxu0 0.0
    %2429 = vmatprep.subr.mxu0 0.0
    %2430 = vmatpush1.msra.mxu0 0.0
    %2431 = vmatprep.subr.mxu0 0.0
    %2432 = vmatpush1.msra.mxu0 0.0
    %2433 = vmatprep.subr.mxu0 %v466
    %2434 = vmatpush1.msra.mxu0 %v463
    %2435 = vmatprep.subr.mxu0 %v222
    %2436 = vmatpush1.msra.mxu0 %v221
    %2437 = vmatprep.subr.mxu0 %v158
    %2438 = vmatpush1.msra.mxu0 %v157
    %2439 = vmatprep.subr.mxu0 %v94
    %2440 = vmatpush1.msra.mxu0 %v93
    %2441 = vmatprep.subr.mxu0 0.0
    %2442 = vmatpush2.msra.mxu0 0.0
    %2443 = vmatprep.subr.mxu0 0.0
    %2444 = vmatpush2.msra.mxu0 0.0
    %2445 = vmatprep.subr.mxu0 0.0
    %2446 = vmatpush2.msra.mxu0 0.0
    %2447 = vmatprep.subr.mxu0 0.0
    %2448 = vmatpush2.msra.mxu0 0.0
    %2449 = vmatprep.subr.mxu0 0.0
    %2450 = vmatpush2.msra.mxu0 0.0
    %2451 = vmatprep.subr.mxu0 0.0
    %2452 = vmatpush2.msra.mxu0 0.0
    %2453 = vmatprep.subr.mxu0 0.0
    %2454 = vmatpush2.msra.mxu0 0.0
    %2455 = vmatprep.subr.mxu0 0.0
    %2456 = vmatpush2.msra.mxu0 0.0
    %2457 = vmatprep.subr.mxu0 0.0
    %2458 = vmatpush2.msra.mxu0 0.0
    %2459 = vmatprep.subr.mxu0 0.0
    %2460 = vmatpush2.msra.mxu0 0.0
    %2461 = vmatprep.subr.mxu0 0.0
    %2462 = vmatpush2.msra.mxu0 0.0
    %2463 = vmatprep.subr.mxu0 0.0
    %2464 = vmatpush2.msra.mxu0 0.0
    %2465 = vmatprep.subr.mxu0 0.0
    %2466 = vmatpush2.msra.mxu0 0.0
    %2467 = vmatprep.subr.mxu0 0.0
    %2468 = vmatpush2.msra.mxu0 0.0
    %2469 = vmatprep.subr.mxu0 0.0
    %2470 = vmatpush2.msra.mxu0 0.0
    %2471 = vmatprep.subr.mxu0 0.0
    %2472 = vmatpush2.msra.mxu0 0.0
    %2473 = vmatprep.mubr.f32.mxu0 0.0
    %2474 = vmatmul.mubr.f32.gmra.mxu0 %v297
    %v2475 = vpop.f32.mrf.mxu0
    %v2476 = vadd.f32 0.0, %v2475
    %v2477 = vpop.f32.mrf.mxu0
    %v2478 = vadd.f32 0.0, %v2477
    %2479 = vdwg.mxu0
    %2480 = vmatprep.subr.mxu0 0.0
    %2481 = vmatpush1.msra.mxu0 0.0
    %2482 = vmatprep.subr.mxu0 0.0
    %2483 = vmatpush1.msra.mxu0 0.0
    %2484 = vmatprep.subr.mxu0 0.0
    %2485 = vmatpush1.msra.mxu0 0.0
    %2486 = vmatprep.subr.mxu0 0.0
    %2487 = vmatpush1.msra.mxu0 0.0
    %2488 = vmatprep.subr.mxu0 0.0
    %2489 = vmatpush1.msra.mxu0 0.0
    %2490 = vmatprep.subr.mxu0 0.0
    %2491 = vmatpush1.msra.mxu0 0.0
    %2492 = vmatprep.subr.mxu0 0.0
    %2493 = vmatpush1.msra.mxu0 0.0
    %2494 = vmatprep.subr.mxu0 0.0
    %2495 = vmatpush1.msra.mxu0 0.0
    %2496 = vmatprep.subr.mxu0 0.0
    %2497 = vmatpush1.msra.mxu0 0.0
    %2498 = vmatprep.subr.mxu0 0.0
    %2499 = vmatpush1.msra.mxu0 0.0
    %2500 = vmatprep.subr.mxu0 0.0
    %2501 = vmatpush1.msra.mxu0 0.0
    %2502 = vmatprep.subr.mxu0 0.0
    %2503 = vmatpush1.msra.mxu0 0.0
    %2504 = vmatprep.subr.mxu0 %v472
    %2505 = vmatpush1.msra.mxu0 %v469
    %2506 = vmatprep.subr.mxu0 %v224
    %2507 = vmatpush1.msra.mxu0 %v223
    %2508 = vmatprep.subr.mxu0 %v160
    %2509 = vmatpush1.msra.mxu0 %v159
    %2510 = vmatprep.subr.mxu0 %v96
    %2511 = vmatpush1.msra.mxu0 %v95
    %2512 = vmatprep.subr.mxu0 0.0
    %2513 = vmatpush2.msra.mxu0 0.0
    %2514 = vmatprep.subr.mxu0 0.0
    %2515 = vmatpush2.msra.mxu0 0.0
    %2516 = vmatprep.subr.mxu0 0.0
    %2517 = vmatpush2.msra.mxu0 0.0
    %2518 = vmatprep.subr.mxu0 0.0
    %2519 = vmatpush2.msra.mxu0 0.0
    %2520 = vmatprep.subr.mxu0 0.0
    %2521 = vmatpush2.msra.mxu0 0.0
    %2522 = vmatprep.subr.mxu0 0.0
    %2523 = vmatpush2.msra.mxu0 0.0
    %2524 = vmatprep.subr.mxu0 0.0
    %2525 = vmatpush2.msra.mxu0 0.0
    %2526 = vmatprep.subr.mxu0 0.0
    %2527 = vmatpush2.msra.mxu0 0.0
    %2528 = vmatprep.subr.mxu0 0.0
    %2529 = vmatpush2.msra.mxu0 0.0
    %2530 = vmatprep.subr.mxu0 0.0
    %2531 = vmatpush2.msra.mxu0 0.0
    %2532 = vmatprep.subr.mxu0 0.0
    %2533 = vmatpush2.msra.mxu0 0.0
    %2534 = vmatprep.subr.mxu0 0.0
    %2535 = vmatpush2.msra.mxu0 0.0
    %2536 = vmatprep.subr.mxu0 0.0
    %2537 = vmatpush2.msra.mxu0 0.0
    %2538 = vmatprep.subr.mxu0 0.0
    %2539 = vmatpush2.msra.mxu0 0.0
    %2540 = vmatprep.subr.mxu0 0.0
    %2541 = vmatpush2.msra.mxu0 0.0
    %2542 = vmatprep.subr.mxu0 0.0
    %2543 = vmatpush2.msra.mxu0 0.0
    %2544 = vmatprep.mubr.f32.mxu0 0.0
    %2545 = vmatmul.mubr.f32.gmra.mxu0 %v297
    %v2546 = vpop.f32.mrf.mxu0
    %v2547 = vadd.f32 0.0, %v2546
    %v2548 = vpop.f32.mrf.mxu0
    %v2549 = vadd.f32 0.0, %v2548
    %2550 = vdwg.mxu0
    %2551 = vmatprep.subr.mxu0 0.0
    %2552 = vmatpush1.msra.mxu0 0.0
    %2553 = vmatprep.subr.mxu0 0.0
    %2554 = vmatpush1.msra.mxu0 0.0
    %2555 = vmatprep.subr.mxu0 0.0
    %2556 = vmatpush1.msra.mxu0 0.0
    %2557 = vmatprep.subr.mxu0 0.0
    %2558 = vmatpush1.msra.mxu0 0.0
    %2559 = vmatprep.subr.mxu0 0.0
    %2560 = vmatpush1.msra.mxu0 0.0
    %2561 = vmatprep.subr.mxu0 0.0
    %2562 = vmatpush1.msra.mxu0 0.0
    %2563 = vmatprep.subr.mxu0 0.0
    %2564 = vmatpush1.msra.mxu0 0.0
    %2565 = vmatprep.subr.mxu0 0.0
    %2566 = vmatpush1.msra.mxu0 0.0
    %2567 = vmatprep.subr.mxu0 0.0
    %2568 = vmatpush1.msra.mxu0 0.0
    %2569 = vmatprep.subr.mxu0 0.0
    %2570 = vmatpush1.msra.mxu0 0.0
    %2571 = vmatprep.subr.mxu0 0.0
    %2572 = vmatpush1.msra.mxu0 0.0
    %2573 = vmatprep.subr.mxu0 0.0
    %2574 = vmatpush1.msra.mxu0 0.0
    %2575 = vmatprep.subr.mxu0 %v478
    %2576 = vmatpush1.msra.mxu0 %v475
    %2577 = vmatprep.subr.mxu0 %v226
    %2578 = vmatpush1.msra.mxu0 %v225
    %2579 = vmatprep.subr.mxu0 %v162
    %2580 = vmatpush1.msra.mxu0 %v161
    %2581 = vmatprep.subr.mxu0 %v98
    %2582 = vmatpush1.msra.mxu0 %v97
    %2583 = vmatprep.subr.mxu0 0.0
    %2584 = vmatpush2.msra.mxu0 0.0
    %2585 = vmatprep.subr.mxu0 0.0
    %2586 = vmatpush2.msra.mxu0 0.0
    %2587 = vmatprep.subr.mxu0 0.0
    %2588 = vmatpush2.msra.mxu0 0.0
    %2589 = vmatprep.subr.mxu0 0.0
    %2590 = vmatpush2.msra.mxu0 0.0
    %2591 = vmatprep.subr.mxu0 0.0
    %2592 = vmatpush2.msra.mxu0 0.0
    %2593 = vmatprep.subr.mxu0 0.0
    %2594 = vmatpush2.msra.mxu0 0.0
    %2595 = vmatprep.subr.mxu0 0.0
    %2596 = vmatpush2.msra.mxu0 0.0
    %2597 = vmatprep.subr.mxu0 0.0
    %2598 = vmatpush2.msra.mxu0 0.0
    %2599 = vmatprep.subr.mxu0 0.0
    %2600 = vmatpush2.msra.mxu0 0.0
    %2601 = vmatprep.subr.mxu0 0.0
    %2602 = vmatpush2.msra.mxu0 0.0
    %2603 = vmatprep.subr.mxu0 0.0
    %2604 = vmatpush2.msra.mxu0 0.0
    %2605 = vmatprep.subr.mxu0 0.0
    %2606 = vmatpush2.msra.mxu0 0.0
    %2607 = vmatprep.subr.mxu0 0.0
    %2608 = vmatpush2.msra.mxu0 0.0
    %2609 = vmatprep.subr.mxu0 0.0
    %2610 = vmatpush2.msra.mxu0 0.0
    %2611 = vmatprep.subr.mxu0 0.0
    %2612 = vmatpush2.msra.mxu0 0.0
    %2613 = vmatprep.subr.mxu0 0.0
    %2614 = vmatpush2.msra.mxu0 0.0
    %2615 = vmatprep.mubr.f32.mxu0 0.0
    %2616 = vmatmul.mubr.f32.gmra.mxu0 %v297
    %v2617 = vpop.f32.mrf.mxu0
    %v2618 = vadd.f32 0.0, %v2617
    %v2619 = vpop.f32.mrf.mxu0
    %v2620 = vadd.f32 0.0, %v2619
    %2621 = vdwg.mxu0
    %2622 = vmatprep.subr.mxu0 0.0
    %2623 = vmatpush1.msra.mxu0 0.0
    %2624 = vmatprep.subr.mxu0 0.0
    %2625 = vmatpush1.msra.mxu0 0.0
    %2626 = vmatprep.subr.mxu0 0.0
    %2627 = vmatpush1.msra.mxu0 0.0
    %2628 = vmatprep.subr.mxu0 0.0
    %2629 = vmatpush1.msra.mxu0 0.0
    %2630 = vmatprep.subr.mxu0 0.0
    %2631 = vmatpush1.msra.mxu0 0.0
    %2632 = vmatprep.subr.mxu0 0.0
    %2633 = vmatpush1.msra.mxu0 0.0
    %2634 = vmatprep.subr.mxu0 0.0
    %2635 = vmatpush1.msra.mxu0 0.0
    %2636 = vmatprep.subr.mxu0 0.0
    %2637 = vmatpush1.msra.mxu0 0.0
    %2638 = vmatprep.subr.mxu0 0.0
    %2639 = vmatpush1.msra.mxu0 0.0
    %2640 = vmatprep.subr.mxu0 0.0
    %2641 = vmatpush1.msra.mxu0 0.0
    %2642 = vmatprep.subr.mxu0 0.0
    %2643 = vmatpush1.msra.mxu0 0.0
    %2644 = vmatprep.subr.mxu0 0.0
    %2645 = vmatpush1.msra.mxu0 0.0
    %2646 = vmatprep.subr.mxu0 %v484
    %2647 = vmatpush1.msra.mxu0 %v481
    %2648 = vmatprep.subr.mxu0 %v228
    %2649 = vmatpush1.msra.mxu0 %v227
    %2650 = vmatprep.subr.mxu0 %v164
    %2651 = vmatpush1.msra.mxu0 %v163
    %2652 = vmatprep.subr.mxu0 %v100
    %2653 = vmatpush1.msra.mxu0 %v99
    %2654 = vmatprep.subr.mxu0 0.0
    %2655 = vmatpush2.msra.mxu0 0.0
    %2656 = vmatprep.subr.mxu0 0.0
    %2657 = vmatpush2.msra.mxu0 0.0
    %2658 = vmatprep.subr.mxu0 0.0
    %2659 = vmatpush2.msra.mxu0 0.0
    %2660 = vmatprep.subr.mxu0 0.0
    %2661 = vmatpush2.msra.mxu0 0.0
    %2662 = vmatprep.subr.mxu0 0.0
    %2663 = vmatpush2.msra.mxu0 0.0
    %2664 = vmatprep.subr.mxu0 0.0
    %2665 = vmatpush2.msra.mxu0 0.0
    %2666 = vmatprep.subr.mxu0 0.0
    %2667 = vmatpush2.msra.mxu0 0.0
    %2668 = vmatprep.subr.mxu0 0.0
    %2669 = vmatpush2.msra.mxu0 0.0
    %2670 = vmatprep.subr.mxu0 0.0
    %2671 = vmatpush2.msra.mxu0 0.0
    %2672 = vmatprep.subr.mxu0 0.0
    %2673 = vmatpush2.msra.mxu0 0.0
    %2674 = vmatprep.subr.mxu0 0.0
    %2675 = vmatpush2.msra.mxu0 0.0
    %2676 = vmatprep.subr.mxu0 0.0
    %2677 = vmatpush2.msra.mxu0 0.0
    %2678 = vmatprep.subr.mxu0 0.0
    %2679 = vmatpush2.msra.mxu0 0.0
    %2680 = vmatprep.subr.mxu0 0.0
    %2681 = vmatpush2.msra.mxu0 0.0
    %2682 = vmatprep.subr.mxu0 0.0
    %2683 = vmatpush2.msra.mxu0 0.0
    %2684 = vmatprep.subr.mxu0 0.0
    %2685 = vmatpush2.msra.mxu0 0.0
    %2686 = vmatprep.mubr.f32.mxu0 0.0
    %2687 = vmatmul.mubr.f32.gmra.mxu0 %v297
    %v2688 = vpop.f32.mrf.mxu0
    %v2689 = vadd.f32 0.0, %v2688
    %v2690 = vpop.f32.mrf.mxu0
    %v2691 = vadd.f32 0.0, %v2690
    %2692 = vdwg.mxu0
    %2693 = vmatprep.subr.mxu0 0.0
    %2694 = vmatpush1.msra.mxu0 0.0
    %2695 = vmatprep.subr.mxu0 0.0
    %2696 = vmatpush1.msra.mxu0 0.0
    %2697 = vmatprep.subr.mxu0 0.0
    %2698 = vmatpush1.msra.mxu0 0.0
    %2699 = vmatprep.subr.mxu0 0.0
    %2700 = vmatpush1.msra.mxu0 0.0
    %2701 = vmatprep.subr.mxu0 0.0
    %2702 = vmatpush1.msra.mxu0 0.0
    %2703 = vmatprep.subr.mxu0 0.0
    %2704 = vmatpush1.msra.mxu0 0.0
    %2705 = vmatprep.subr.mxu0 0.0
    %2706 = vmatpush1.msra.mxu0 0.0
    %2707 = vmatprep.subr.mxu0 0.0
    %2708 = vmatpush1.msra.mxu0 0.0
    %2709 = vmatprep.subr.mxu0 0.0
    %2710 = vmatpush1.msra.mxu0 0.0
    %2711 = vmatprep.subr.mxu0 0.0
    %2712 = vmatpush1.msra.mxu0 0.0
    %2713 = vmatprep.subr.mxu0 0.0
    %2714 = vmatpush1.msra.mxu0 0.0
    %2715 = vmatprep.subr.mxu0 0.0
    %2716 = vmatpush1.msra.mxu0 0.0
    %2717 = vmatprep.subr.mxu0 %v490
    %2718 = vmatpush1.msra.mxu0 %v487
    %2719 = vmatprep.subr.mxu0 %v230
    %2720 = vmatpush1.msra.mxu0 %v229
    %2721 = vmatprep.subr.mxu0 %v166
    %2722 = vmatpush1.msra.mxu0 %v165
    %2723 = vmatprep.subr.mxu0 %v102
    %2724 = vmatpush1.msra.mxu0 %v101
    %2725 = vmatprep.subr.mxu0 0.0
    %2726 = vmatpush2.msra.mxu0 0.0
    %2727 = vmatprep.subr.mxu0 0.0
    %2728 = vmatpush2.msra.mxu0 0.0
    %2729 = vmatprep.subr.mxu0 0.0
    %2730 = vmatpush2.msra.mxu0 0.0
    %2731 = vmatprep.subr.mxu0 0.0
    %2732 = vmatpush2.msra.mxu0 0.0
    %2733 = vmatprep.subr.mxu0 0.0
    %2734 = vmatpush2.msra.mxu0 0.0
    %2735 = vmatprep.subr.mxu0 0.0
    %2736 = vmatpush2.msra.mxu0 0.0
    %2737 = vmatprep.subr.mxu0 0.0
    %2738 = vmatpush2.msra.mxu0 0.0
    %2739 = vmatprep.subr.mxu0 0.0
    %2740 = vmatpush2.msra.mxu0 0.0
    %2741 = vmatprep.subr.mxu0 0.0
    %2742 = vmatpush2.msra.mxu0 0.0
    %2743 = vmatprep.subr.mxu0 0.0
    %2744 = vmatpush2.msra.mxu0 0.0
    %2745 = vmatprep.subr.mxu0 0.0
    %2746 = vmatpush2.msra.mxu0 0.0
    %2747 = vmatprep.subr.mxu0 0.0
    %2748 = vmatpush2.msra.mxu0 0.0
    %2749 = vmatprep.subr.mxu0 0.0
    %2750 = vmatpush2.msra.mxu0 0.0
    %2751 = vmatprep.subr.mxu0 0.0
    %2752 = vmatpush2.msra.mxu0 0.0
    %2753 = vmatprep.subr.mxu0 0.0
    %2754 = vmatpush2.msra.mxu0 0.0
    %2755 = vmatprep.subr.mxu0 0.0
    %2756 = vmatpush2.msra.mxu0 0.0
    %2757 = vmatprep.mubr.f32.mxu0 0.0
    %2758 = vmatmul.mubr.f32.gmra.mxu0 %v297
    %v2759 = vpop.f32.mrf.mxu0
    %v2760 = vadd.f32 0.0, %v2759
    %v2761 = vpop.f32.mrf.mxu0
    %v2762 = vadd.f32 0.0, %v2761
    %2763 = vdwg.mxu0
    %v2772 = vlaneseq
    %v2773 = vshrl.u32 %v2772, 7
    %v2774 = vsub.s32 0, %v2773
    %v2775 = vrot.slane %v30, %v2774
    %v2776 = vlaneseq
    %v2777 = vshrl.u32 %v2776, 7
    %v2778 = vsub.s32 1, %v2777
    %v2779 = vrot.slane %v30, %v2778
    %v2780 = vlaneseq
    %v2781 = vshrl.u32 %v2780, 7
    %v2782 = vsub.s32 2, %v2781
    %v2783 = vrot.slane %v30, %v2782
    %v2784 = vlaneseq
    %v2785 = vshrl.u32 %v2784, 7
    %v2786 = vsub.s32 3, %v2785
    %v2787 = vrot.slane %v30, %v2786
    %v2788 = vlaneseq
    %v2789 = vshrl.u32 %v2788, 7
    %v2790 = vsub.s32 4, %v2789
    %v2791 = vrot.slane %v30, %v2790
    %v2792 = vlaneseq
    %v2793 = vshrl.u32 %v2792, 7
    %v2794 = vsub.s32 5, %v2793
    %v2795 = vrot.slane %v30, %v2794
    %v2796 = vlaneseq
    %v2797 = vshrl.u32 %v2796, 7
    %v2798 = vsub.s32 6, %v2797
    %v2799 = vrot.slane %v30, %v2798
    %v2800 = vlaneseq
    %v2801 = vshrl.u32 %v2800, 7
    %v2802 = vsub.s32 7, %v2801
    %v2803 = vrot.slane %v30, %v2802
    %v2804 = vlaneseq
    %v2805 = vshrl.u32 %v2804, 7
    %v2806 = vsub.s32 0, %v2805
    %v2807 = vrot.slane %v31, %v2806
    %v2808 = vlaneseq
    %v2809 = vshrl.u32 %v2808, 7
    %v2810 = vsub.s32 1, %v2809
    %v2811 = vrot.slane %v31, %v2810
    %v2812 = vlaneseq
    %v2813 = vshrl.u32 %v2812, 7
    %v2814 = vsub.s32 2, %v2813
    %v2815 = vrot.slane %v31, %v2814
    %v2816 = vlaneseq
    %v2817 = vshrl.u32 %v2816, 7
    %v2818 = vsub.s32 3, %v2817
    %v2819 = vrot.slane %v31, %v2818
    %v2820 = vlaneseq
    %v2821 = vshrl.u32 %v2820, 7
    %v2822 = vsub.s32 4, %v2821
    %v2823 = vrot.slane %v31, %v2822
    %v2824 = vlaneseq
    %v2825 = vshrl.u32 %v2824, 7
    %v2826 = vsub.s32 5, %v2825
    %v2827 = vrot.slane %v31, %v2826
    %v2828 = vlaneseq
    %v2829 = vshrl.u32 %v2828, 7
    %v2830 = vsub.s32 6, %v2829
    %v2831 = vrot.slane %v31, %v2830
    %v2832 = vlaneseq
    %v2833 = vshrl.u32 %v2832, 7
    %v2834 = vsub.s32 7, %v2833
    %v2835 = vrot.slane %v31, %v2834
    %v2836 = vlaneseq
    %v2837 = vshrl.u32 %v2836, 7
    %v2838 = vsub.s32 0, %v2837
    %v2839 = vrot.slane %v32, %v2838
    %v2840 = vlaneseq
    %v2841 = vshrl.u32 %v2840, 7
    %v2842 = vsub.s32 1, %v2841
    %v2843 = vrot.slane %v32, %v2842
    %v2844 = vlaneseq
    %v2845 = vshrl.u32 %v2844, 7
    %v2846 = vsub.s32 2, %v2845
    %v2847 = vrot.slane %v32, %v2846
    %v2848 = vlaneseq
    %v2849 = vshrl.u32 %v2848, 7
    %v2850 = vsub.s32 3, %v2849
    %v2851 = vrot.slane %v32, %v2850
    %v2852 = vlaneseq
    %v2853 = vshrl.u32 %v2852, 7
    %v2854 = vsub.s32 4, %v2853
    %v2855 = vrot.slane %v32, %v2854
    %v2856 = vlaneseq
    %v2857 = vshrl.u32 %v2856, 7
    %v2858 = vsub.s32 5, %v2857
    %v2859 = vrot.slane %v32, %v2858
    %v2860 = vlaneseq
    %v2861 = vshrl.u32 %v2860, 7
    %v2862 = vsub.s32 6, %v2861
    %v2863 = vrot.slane %v32, %v2862
    %v2864 = vlaneseq
    %v2865 = vshrl.u32 %v2864, 7
    %v2866 = vsub.s32 7, %v2865
    %v2867 = vrot.slane %v32, %v2866
    %v2868 = vlaneseq
    %v2869 = vshrl.u32 %v2868, 7
    %v2870 = vsub.s32 0, %v2869
    %v2871 = vrot.slane %v33, %v2870
    %v2872 = vlaneseq
    %v2873 = vshrl.u32 %v2872, 7
    %v2874 = vsub.s32 1, %v2873
    %v2875 = vrot.slane %v33, %v2874
    %v2876 = vlaneseq
    %v2877 = vshrl.u32 %v2876, 7
    %v2878 = vsub.s32 2, %v2877
    %v2879 = vrot.slane %v33, %v2878
    %v2880 = vlaneseq
    %v2881 = vshrl.u32 %v2880, 7
    %v2882 = vsub.s32 3, %v2881
    %v2883 = vrot.slane %v33, %v2882
    %v2884 = vlaneseq
    %v2885 = vshrl.u32 %v2884, 7
    %v2886 = vsub.s32 4, %v2885
    %v2887 = vrot.slane %v33, %v2886
    %v2888 = vlaneseq
    %v2889 = vshrl.u32 %v2888, 7
    %v2890 = vsub.s32 5, %v2889
    %v2891 = vrot.slane %v33, %v2890
    %v2892 = vlaneseq
    %v2893 = vshrl.u32 %v2892, 7
    %v2894 = vsub.s32 6, %v2893
    %v2895 = vrot.slane %v33, %v2894
    %v2896 = vlaneseq
    %v2897 = vshrl.u32 %v2896, 7
    %v2898 = vsub.s32 7, %v2897
    %v2899 = vrot.slane %v33, %v2898
    %v2900 = vlaneseq
    %v2901 = vshrl.u32 %v2900, 7
    %v2902 = vsub.s32 0, %v2901
    %v2903 = vrot.slane %v34, %v2902
    %v2904 = vlaneseq
    %v2905 = vshrl.u32 %v2904, 7
    %v2906 = vsub.s32 1, %v2905
    %v2907 = vrot.slane %v34, %v2906
    %v2908 = vlaneseq
    %v2909 = vshrl.u32 %v2908, 7
    %v2910 = vsub.s32 2, %v2909
    %v2911 = vrot.slane %v34, %v2910
    %v2912 = vlaneseq
    %v2913 = vshrl.u32 %v2912, 7
    %v2914 = vsub.s32 3, %v2913
    %v2915 = vrot.slane %v34, %v2914
    %v2916 = vlaneseq
    %v2917 = vshrl.u32 %v2916, 7
    %v2918 = vsub.s32 4, %v2917
    %v2919 = vrot.slane %v34, %v2918
    %v2920 = vlaneseq
    %v2921 = vshrl.u32 %v2920, 7
    %v2922 = vsub.s32 5, %v2921
    %v2923 = vrot.slane %v34, %v2922
    %v2924 = vlaneseq
    %v2925 = vshrl.u32 %v2924, 7
    %v2926 = vsub.s32 6, %v2925
    %v2927 = vrot.slane %v34, %v2926
    %v2928 = vlaneseq
    %v2929 = vshrl.u32 %v2928, 7
    %v2930 = vsub.s32 7, %v2929
    %v2931 = vrot.slane %v34, %v2930
    %v2932 = vlaneseq
    %v2933 = vshrl.u32 %v2932, 7
    %v2934 = vsub.s32 0, %v2933
    %v2935 = vrot.slane %v35, %v2934
    %v2936 = vlaneseq
    %v2937 = vshrl.u32 %v2936, 7
    %v2938 = vsub.s32 1, %v2937
    %v2939 = vrot.slane %v35, %v2938
    %v2940 = vlaneseq
    %v2941 = vshrl.u32 %v2940, 7
    %v2942 = vsub.s32 2, %v2941
    %v2943 = vrot.slane %v35, %v2942
    %v2944 = vlaneseq
    %v2945 = vshrl.u32 %v2944, 7
    %v2946 = vsub.s32 3, %v2945
    %v2947 = vrot.slane %v35, %v2946
    %v2948 = vlaneseq
    %v2949 = vshrl.u32 %v2948, 7
    %v2950 = vsub.s32 4, %v2949
    %v2951 = vrot.slane %v35, %v2950
    %v2952 = vlaneseq
    %v2953 = vshrl.u32 %v2952, 7
    %v2954 = vsub.s32 5, %v2953
    %v2955 = vrot.slane %v35, %v2954
    %v2956 = vlaneseq
    %v2957 = vshrl.u32 %v2956, 7
    %v2958 = vsub.s32 6, %v2957
    %v2959 = vrot.slane %v35, %v2958
    %v2960 = vlaneseq
    %v2961 = vshrl.u32 %v2960, 7
    %v2962 = vsub.s32 7, %v2961
    %v2963 = vrot.slane %v35, %v2962
    %v2964 = vlaneseq
    %v2965 = vshrl.u32 %v2964, 7
    %v2966 = vsub.s32 0, %v2965
    %v2967 = vrot.slane %v36, %v2966
    %v2968 = vlaneseq
    %v2969 = vshrl.u32 %v2968, 7
    %v2970 = vsub.s32 1, %v2969
    %v2971 = vrot.slane %v36, %v2970
    %v2972 = vlaneseq
    %v2973 = vshrl.u32 %v2972, 7
    %v2974 = vsub.s32 2, %v2973
    %v2975 = vrot.slane %v36, %v2974
    %v2976 = vlaneseq
    %v2977 = vshrl.u32 %v2976, 7
    %v2978 = vsub.s32 3, %v2977
    %v2979 = vrot.slane %v36, %v2978
    %v2980 = vlaneseq
    %v2981 = vshrl.u32 %v2980, 7
    %v2982 = vsub.s32 4, %v2981
    %v2983 = vrot.slane %v36, %v2982
    %v2984 = vlaneseq
    %v2985 = vshrl.u32 %v2984, 7
    %v2986 = vsub.s32 5, %v2985
    %v2987 = vrot.slane %v36, %v2986
    %v2988 = vlaneseq
    %v2989 = vshrl.u32 %v2988, 7
    %v2990 = vsub.s32 6, %v2989
    %v2991 = vrot.slane %v36, %v2990
    %v2992 = vlaneseq
    %v2993 = vshrl.u32 %v2992, 7
    %v2994 = vsub.s32 7, %v2993
    %v2995 = vrot.slane %v36, %v2994
    %v2996 = vlaneseq
    %v2997 = vshrl.u32 %v2996, 7
    %v2998 = vsub.s32 0, %v2997
    %v2999 = vrot.slane %v37, %v2998
    %v3000 = vlaneseq
    %v3001 = vshrl.u32 %v3000, 7
    %v3002 = vsub.s32 1, %v3001
    %v3003 = vrot.slane %v37, %v3002
    %v3004 = vlaneseq
    %v3005 = vshrl.u32 %v3004, 7
    %v3006 = vsub.s32 2, %v3005
    %v3007 = vrot.slane %v37, %v3006
    %v3008 = vlaneseq
    %v3009 = vshrl.u32 %v3008, 7
    %v3010 = vsub.s32 3, %v3009
    %v3011 = vrot.slane %v37, %v3010
    %v3012 = vlaneseq
    %v3013 = vshrl.u32 %v3012, 7
    %v3014 = vsub.s32 4, %v3013
    %v3015 = vrot.slane %v37, %v3014
    %v3016 = vlaneseq
    %v3017 = vshrl.u32 %v3016, 7
    %v3018 = vsub.s32 5, %v3017
    %v3019 = vrot.slane %v37, %v3018
    %v3020 = vlaneseq
    %v3021 = vshrl.u32 %v3020, 7
    %v3022 = vsub.s32 6, %v3021
    %v3023 = vrot.slane %v37, %v3022
    %v3024 = vlaneseq
    %v3025 = vshrl.u32 %v3024, 7
    %v3026 = vsub.s32 7, %v3025
    %v3027 = vrot.slane %v37, %v3026
    %v3092 = vmul.f32 %v559, %v2775
    %v3093 = vmul.f32 %v561, %v2779
    %v3094 = vmul.f32 %v630, %v2783
    %v3095 = vmul.f32 %v632, %v2787
    %v3096 = vmul.f32 %v701, %v2791
    %v3097 = vmul.f32 %v703, %v2795
    %v3098 = vmul.f32 %v772, %v2799
    %v3099 = vmul.f32 %v774, %v2803
    %v3100 = vmul.f32 %v843, %v2807
    %v3101 = vmul.f32 %v845, %v2811
    %v3102 = vmul.f32 %v914, %v2815
    %v3103 = vmul.f32 %v916, %v2819
    %v3104 = vmul.f32 %v985, %v2823
    %v3105 = vmul.f32 %v987, %v2827
    %v3106 = vmul.f32 %v1056, %v2831
    %v3107 = vmul.f32 %v1058, %v2835
    %v3108 = vmul.f32 %v1127, %v2839
    %v3109 = vmul.f32 %v1129, %v2843
    %v3110 = vmul.f32 %v1198, %v2847
    %v3111 = vmul.f32 %v1200, %v2851
    %v3112 = vmul.f32 %v1269, %v2855
    %v3113 = vmul.f32 %v1271, %v2859
    %v3114 = vmul.f32 %v1340, %v2863
    %v3115 = vmul.f32 %v1342, %v2867
    %v3116 = vmul.f32 %v1411, %v2871
    %v3117 = vmul.f32 %v1413, %v2875
    %v3118 = vmul.f32 %v1482, %v2879
    %v3119 = vmul.f32 %v1484, %v2883
    %v3120 = vmul.f32 %v1553, %v2887
    %v3121 = vmul.f32 %v1555, %v2891
    %v3122 = vmul.f32 %v1624, %v2895
    %v3123 = vmul.f32 %v1626, %v2899
    %v3124 = vmul.f32 %v1695, %v2903
    %v3125 = vmul.f32 %v1697, %v2907
    %v3126 = vmul.f32 %v1766, %v2911
    %v3127 = vmul.f32 %v1768, %v2915
    %v3128 = vmul.f32 %v1837, %v2919
    %v3129 = vmul.f32 %v1839, %v2923
    %v3130 = vmul.f32 %v1908, %v2927
    %v3131 = vmul.f32 %v1910, %v2931
    %v3132 = vmul.f32 %v1979, %v2935
    %v3133 = vmul.f32 %v1981, %v2939
    %v3134 = vmul.f32 %v2050, %v2943
    %v3135 = vmul.f32 %v2052, %v2947
    %v3136 = vmul.f32 %v2121, %v2951
    %v3137 = vmul.f32 %v2123, %v2955
    %v3138 = vmul.f32 %v2192, %v2959
    %v3139 = vmul.f32 %v2194, %v2963
    %v3140 = vmul.f32 %v2263, %v2967
    %v3141 = vmul.f32 %v2265, %v2971
    %v3142 = vmul.f32 %v2334, %v2975
    %v3143 = vmul.f32 %v2336, %v2979
    %v3144 = vmul.f32 %v2405, %v2983
    %v3145 = vmul.f32 %v2407, %v2987
    %v3146 = vmul.f32 %v2476, %v2991
    %v3147 = vmul.f32 %v2478, %v2995
    %v3148 = vmul.f32 %v2547, %v2999
    %v3149 = vmul.f32 %v2549, %v3003
    %v3150 = vmul.f32 %v2618, %v3007
    %v3151 = vmul.f32 %v2620, %v3011
    %v3152 = vmul.f32 %v2689, %v3015
    %v3153 = vmul.f32 %v2691, %v3019
    %v3154 = vmul.f32 %v2760, %v3023
    %v3155 = vmul.f32 %v2762, %v3027
    %vm3156 = vcmask 1040384
    %v3157 = vsel %vm3156, %v2775, 0.0
    %v3158 = vsel %vm3156, %v2779, 0.0
    %v3159 = vadd.f32 %v3157, %v3158
    %v3160 = vsel %vm3156, %v2783, 0.0
    %v3161 = vadd.f32 %v3159, %v3160
    %v3162 = vsel %vm3156, %v2787, 0.0
    %v3163 = vadd.f32 %v3161, %v3162
    %v3164 = vsel %vm3156, %v2791, 0.0
    %v3165 = vadd.f32 %v3163, %v3164
    %v3166 = vsel %vm3156, %v2795, 0.0
    %v3167 = vadd.f32 %v3165, %v3166
    %v3168 = vsel %vm3156, %v2799, 0.0
    %v3169 = vadd.f32 %v3167, %v3168
    %v3170 = vsel %vm3156, %v2803, 0.0
    %v3171 = vadd.f32 %v3169, %v3170
    %v3172 = vsel %vm3156, %v2807, 0.0
    %v3173 = vadd.f32 %v3171, %v3172
    %v3174 = vsel %vm3156, %v2811, 0.0
    %v3175 = vadd.f32 %v3173, %v3174
    %v3176 = vsel %vm3156, %v2815, 0.0
    %v3177 = vadd.f32 %v3175, %v3176
    %v3178 = vsel %vm3156, %v2819, 0.0
    %v3179 = vadd.f32 %v3177, %v3178
    %v3180 = vsel %vm3156, %v2823, 0.0
    %v3181 = vadd.f32 %v3179, %v3180
    %v3182 = vsel %vm3156, %v2827, 0.0
    %v3183 = vadd.f32 %v3181, %v3182
    %v3184 = vsel %vm3156, %v2831, 0.0
    %v3185 = vadd.f32 %v3183, %v3184
    %v3186 = vsel %vm3156, %v2835, 0.0
    %v3187 = vadd.f32 %v3185, %v3186
    %v3188 = vsel %vm3156, %v2839, 0.0
    %v3189 = vadd.f32 %v3187, %v3188
    %v3190 = vsel %vm3156, %v2843, 0.0
    %v3191 = vadd.f32 %v3189, %v3190
    %v3192 = vsel %vm3156, %v2847, 0.0
    %v3193 = vadd.f32 %v3191, %v3192
    %v3194 = vsel %vm3156, %v2851, 0.0
    %v3195 = vadd.f32 %v3193, %v3194
    %v3196 = vsel %vm3156, %v2855, 0.0
    %v3197 = vadd.f32 %v3195, %v3196
    %v3198 = vsel %vm3156, %v2859, 0.0
    %v3199 = vadd.f32 %v3197, %v3198
    %v3200 = vsel %vm3156, %v2863, 0.0
    %v3201 = vadd.f32 %v3199, %v3200
    %v3202 = vsel %vm3156, %v2867, 0.0
    %v3203 = vadd.f32 %v3201, %v3202
    %v3204 = vsel %vm3156, %v2871, 0.0
    %v3205 = vadd.f32 %v3203, %v3204
    %v3206 = vsel %vm3156, %v2875, 0.0
    %v3207 = vadd.f32 %v3205, %v3206
    %v3208 = vsel %vm3156, %v2879, 0.0
    %v3209 = vadd.f32 %v3207, %v3208
    %v3210 = vsel %vm3156, %v2883, 0.0
    %v3211 = vadd.f32 %v3209, %v3210
    %v3212 = vsel %vm3156, %v2887, 0.0
    %v3213 = vadd.f32 %v3211, %v3212
    %v3214 = vsel %vm3156, %v2891, 0.0
    %v3215 = vadd.f32 %v3213, %v3214
    %v3216 = vsel %vm3156, %v2895, 0.0
    %v3217 = vadd.f32 %v3215, %v3216
    %v3218 = vsel %vm3156, %v2899, 0.0
    %v3219 = vadd.f32 %v3217, %v3218
    %v3220 = vsel %vm3156, %v2903, 0.0
    %v3221 = vadd.f32 %v3219, %v3220
    %v3222 = vsel %vm3156, %v2907, 0.0
    %v3223 = vadd.f32 %v3221, %v3222
    %v3224 = vsel %vm3156, %v2911, 0.0
    %v3225 = vadd.f32 %v3223, %v3224
    %v3226 = vsel %vm3156, %v2915, 0.0
    %v3227 = vadd.f32 %v3225, %v3226
    %v3228 = vsel %vm3156, %v2919, 0.0
    %v3229 = vadd.f32 %v3227, %v3228
    %v3230 = vsel %vm3156, %v2923, 0.0
    %v3231 = vadd.f32 %v3229, %v3230
    %v3232 = vsel %vm3156, %v2927, 0.0
    %v3233 = vadd.f32 %v3231, %v3232
    %v3234 = vsel %vm3156, %v2931, 0.0
    %v3235 = vadd.f32 %v3233, %v3234
    %v3236 = vsel %vm3156, %v2935, 0.0
    %v3237 = vadd.f32 %v3235, %v3236
    %v3238 = vsel %vm3156, %v2939, 0.0
    %v3239 = vadd.f32 %v3237, %v3238
    %v3240 = vsel %vm3156, %v2943, 0.0
    %v3241 = vadd.f32 %v3239, %v3240
    %v3242 = vsel %vm3156, %v2947, 0.0
    %v3243 = vadd.f32 %v3241, %v3242
    %v3244 = vsel %vm3156, %v2951, 0.0
    %v3245 = vadd.f32 %v3243, %v3244
    %v3246 = vsel %vm3156, %v2955, 0.0
    %v3247 = vadd.f32 %v3245, %v3246
    %v3248 = vsel %vm3156, %v2959, 0.0
    %v3249 = vadd.f32 %v3247, %v3248
    %v3250 = vsel %vm3156, %v2963, 0.0
    %v3251 = vadd.f32 %v3249, %v3250
    %v3252 = vsel %vm3156, %v2967, 0.0
    %v3253 = vadd.f32 %v3251, %v3252
    %v3254 = vsel %vm3156, %v2971, 0.0
    %v3255 = vadd.f32 %v3253, %v3254
    %v3256 = vsel %vm3156, %v2975, 0.0
    %v3257 = vadd.f32 %v3255, %v3256
    %v3258 = vsel %vm3156, %v2979, 0.0
    %v3259 = vadd.f32 %v3257, %v3258
    %v3260 = vsel %vm3156, %v2983, 0.0
    %v3261 = vadd.f32 %v3259, %v3260
    %v3262 = vsel %vm3156, %v2987, 0.0
    %v3263 = vadd.f32 %v3261, %v3262
    %v3264 = vsel %vm3156, %v2991, 0.0
    %v3265 = vadd.f32 %v3263, %v3264
    %v3266 = vsel %vm3156, %v2995, 0.0
    %v3267 = vadd.f32 %v3265, %v3266
    %v3268 = vsel %vm3156, %v2999, 0.0
    %v3269 = vadd.f32 %v3267, %v3268
    %v3270 = vsel %vm3156, %v3003, 0.0
    %v3271 = vadd.f32 %v3269, %v3270
    %v3272 = vsel %vm3156, %v3007, 0.0
    %v3273 = vadd.f32 %v3271, %v3272
    %v3274 = vsel %vm3156, %v3011, 0.0
    %v3275 = vadd.f32 %v3273, %v3274
    %v3276 = vsel %vm3156, %v3015, 0.0
    %v3277 = vadd.f32 %v3275, %v3276
    %v3278 = vsel %vm3156, %v3019, 0.0
    %v3279 = vadd.f32 %v3277, %v3278
    %v3280 = vsel %vm3156, %v3023, 0.0
    %v3281 = vadd.f32 %v3279, %v3280
    %v3282 = vsel %vm3156, %v3027, 0.0
    %v3283 = vadd.f32 %v3281, %v3282
    %3284 = vadd.xlane.f32.xlu0 %v3283
    %v3285 = vpop.xlane.xlu0 %3284
    %v3286 = vrot.slane %v3285, 4
    %v3287 = vadd.f32 %v3285, %v3286
    %v3288 = vrot.slane %v3287, 2
    %v3289 = vadd.f32 %v3287, %v3288
    %v3290 = vrot.slane %v3289, 1
    %v3291 = vadd.f32 %v3289, %v3290
    %s3292 = vtos %v3291
    %s3293 = smax.f32 %s3292, 1.0
    %vm3294 = vcmask 1043456
    %v3295 = vsel %vm3294, %v3092, 0.0
    %v3296 = vsel %vm3294, %v3093, 0.0
    %v3297 = vadd.f32 %v3295, %v3296
    %v3298 = vsel %vm3294, %v3094, 0.0
    %v3299 = vadd.f32 %v3297, %v3298
    %v3300 = vsel %vm3294, %v3095, 0.0
    %v3301 = vadd.f32 %v3299, %v3300
    %v3302 = vsel %vm3294, %v3096, 0.0
    %v3303 = vadd.f32 %v3301, %v3302
    %v3304 = vsel %vm3294, %v3097, 0.0
    %v3305 = vadd.f32 %v3303, %v3304
    %v3306 = vsel %vm3294, %v3098, 0.0
    %v3307 = vadd.f32 %v3305, %v3306
    %v3308 = vsel %vm3294, %v3099, 0.0
    %v3309 = vadd.f32 %v3307, %v3308
    %v3310 = vsel %vm3294, %v3100, 0.0
    %v3311 = vadd.f32 %v3309, %v3310
    %v3312 = vsel %vm3294, %v3101, 0.0
    %v3313 = vadd.f32 %v3311, %v3312
    %v3314 = vsel %vm3294, %v3102, 0.0
    %v3315 = vadd.f32 %v3313, %v3314
    %v3316 = vsel %vm3294, %v3103, 0.0
    %v3317 = vadd.f32 %v3315, %v3316
    %v3318 = vsel %vm3294, %v3104, 0.0
    %v3319 = vadd.f32 %v3317, %v3318
    %v3320 = vsel %vm3294, %v3105, 0.0
    %v3321 = vadd.f32 %v3319, %v3320
    %v3322 = vsel %vm3294, %v3106, 0.0
    %v3323 = vadd.f32 %v3321, %v3322
    %v3324 = vsel %vm3294, %v3107, 0.0
    %v3325 = vadd.f32 %v3323, %v3324
    %v3326 = vsel %vm3294, %v3108, 0.0
    %v3327 = vadd.f32 %v3325, %v3326
    %v3328 = vsel %vm3294, %v3109, 0.0
    %v3329 = vadd.f32 %v3327, %v3328
    %v3330 = vsel %vm3294, %v3110, 0.0
    %v3331 = vadd.f32 %v3329, %v3330
    %v3332 = vsel %vm3294, %v3111, 0.0
    %v3333 = vadd.f32 %v3331, %v3332
    %v3334 = vsel %vm3294, %v3112, 0.0
    %v3335 = vadd.f32 %v3333, %v3334
    %v3336 = vsel %vm3294, %v3113, 0.0
    %v3337 = vadd.f32 %v3335, %v3336
    %v3338 = vsel %vm3294, %v3114, 0.0
    %v3339 = vadd.f32 %v3337, %v3338
    %v3340 = vsel %vm3294, %v3115, 0.0
    %v3341 = vadd.f32 %v3339, %v3340
    %v3342 = vsel %vm3294, %v3116, 0.0
    %v3343 = vadd.f32 %v3341, %v3342
    %v3344 = vsel %vm3294, %v3117, 0.0
    %v3345 = vadd.f32 %v3343, %v3344
    %v3346 = vsel %vm3294, %v3118, 0.0
    %v3347 = vadd.f32 %v3345, %v3346
    %v3348 = vsel %vm3294, %v3119, 0.0
    %v3349 = vadd.f32 %v3347, %v3348
    %v3350 = vsel %vm3294, %v3120, 0.0
    %v3351 = vadd.f32 %v3349, %v3350
    %v3352 = vsel %vm3294, %v3121, 0.0
    %v3353 = vadd.f32 %v3351, %v3352
    %v3354 = vsel %vm3294, %v3122, 0.0
    %v3355 = vadd.f32 %v3353, %v3354
    %v3356 = vsel %vm3294, %v3123, 0.0
    %v3357 = vadd.f32 %v3355, %v3356
    %v3358 = vsel %vm3294, %v3124, 0.0
    %v3359 = vadd.f32 %v3357, %v3358
    %v3360 = vsel %vm3294, %v3125, 0.0
    %v3361 = vadd.f32 %v3359, %v3360
    %v3362 = vsel %vm3294, %v3126, 0.0
    %v3363 = vadd.f32 %v3361, %v3362
    %v3364 = vsel %vm3294, %v3127, 0.0
    %v3365 = vadd.f32 %v3363, %v3364
    %v3366 = vsel %vm3294, %v3128, 0.0
    %v3367 = vadd.f32 %v3365, %v3366
    %v3368 = vsel %vm3294, %v3129, 0.0
    %v3369 = vadd.f32 %v3367, %v3368
    %v3370 = vsel %vm3294, %v3130, 0.0
    %v3371 = vadd.f32 %v3369, %v3370
    %v3372 = vsel %vm3294, %v3131, 0.0
    %v3373 = vadd.f32 %v3371, %v3372
    %v3374 = vsel %vm3294, %v3132, 0.0
    %v3375 = vadd.f32 %v3373, %v3374
    %v3376 = vsel %vm3294, %v3133, 0.0
    %v3377 = vadd.f32 %v3375, %v3376
    %v3378 = vsel %vm3294, %v3134, 0.0
    %v3379 = vadd.f32 %v3377, %v3378
    %v3380 = vsel %vm3294, %v3135, 0.0
    %v3381 = vadd.f32 %v3379, %v3380
    %v3382 = vsel %vm3294, %v3136, 0.0
    %v3383 = vadd.f32 %v3381, %v3382
    %v3384 = vsel %vm3294, %v3137, 0.0
    %v3385 = vadd.f32 %v3383, %v3384
    %v3386 = vsel %vm3294, %v3138, 0.0
    %v3387 = vadd.f32 %v3385, %v3386
    %v3388 = vsel %vm3294, %v3139, 0.0
    %v3389 = vadd.f32 %v3387, %v3388
    %v3390 = vsel %vm3294, %v3140, 0.0
    %v3391 = vadd.f32 %v3389, %v3390
    %v3392 = vsel %vm3294, %v3141, 0.0
    %v3393 = vadd.f32 %v3391, %v3392
    %v3394 = vsel %vm3294, %v3142, 0.0
    %v3395 = vadd.f32 %v3393, %v3394
    %v3396 = vsel %vm3294, %v3143, 0.0
    %v3397 = vadd.f32 %v3395, %v3396
    %v3398 = vsel %vm3294, %v3144, 0.0
    %v3399 = vadd.f32 %v3397, %v3398
    %v3400 = vsel %vm3294, %v3145, 0.0
    %v3401 = vadd.f32 %v3399, %v3400
    %v3402 = vsel %vm3294, %v3146, 0.0
    %v3403 = vadd.f32 %v3401, %v3402
    %v3404 = vsel %vm3294, %v3147, 0.0
    %v3405 = vadd.f32 %v3403, %v3404
    %v3406 = vsel %vm3294, %v3148, 0.0
    %v3407 = vadd.f32 %v3405, %v3406
    %v3408 = vsel %vm3294, %v3149, 0.0
    %v3409 = vadd.f32 %v3407, %v3408
    %v3410 = vsel %vm3294, %v3150, 0.0
    %v3411 = vadd.f32 %v3409, %v3410
    %v3412 = vsel %vm3294, %v3151, 0.0
    %v3413 = vadd.f32 %v3411, %v3412
    %v3414 = vsel %vm3294, %v3152, 0.0
    %v3415 = vadd.f32 %v3413, %v3414
    %v3416 = vsel %vm3294, %v3153, 0.0
    %v3417 = vadd.f32 %v3415, %v3416
    %v3418 = vsel %vm3294, %v3154, 0.0
    %v3419 = vadd.f32 %v3417, %v3418
    %v3420 = vsel %vm3294, %v3155, 0.0
    %v3421 = vadd.f32 %v3419, %v3420
    %3422 = vadd.xlane.f32.xlu0 %v3421
    %v3423 = vpop.xlane.xlu0 %3422
    %v3424 = vmul.f32 %v3092, %v3092
    %v3425 = vmul.f32 %v3093, %v3093
    %v3426 = vmul.f32 %v3094, %v3094
    %v3427 = vmul.f32 %v3095, %v3095
    %v3428 = vmul.f32 %v3096, %v3096
    %v3429 = vmul.f32 %v3097, %v3097
    %v3430 = vmul.f32 %v3098, %v3098
    %v3431 = vmul.f32 %v3099, %v3099
    %v3432 = vmul.f32 %v3100, %v3100
    %v3433 = vmul.f32 %v3101, %v3101
    %v3434 = vmul.f32 %v3102, %v3102
    %v3435 = vmul.f32 %v3103, %v3103
    %v3436 = vmul.f32 %v3104, %v3104
    %v3437 = vmul.f32 %v3105, %v3105
    %v3438 = vmul.f32 %v3106, %v3106
    %v3439 = vmul.f32 %v3107, %v3107
    %v3440 = vmul.f32 %v3108, %v3108
    %v3441 = vmul.f32 %v3109, %v3109
    %v3442 = vmul.f32 %v3110, %v3110
    %v3443 = vmul.f32 %v3111, %v3111
    %v3444 = vmul.f32 %v3112, %v3112
    %v3445 = vmul.f32 %v3113, %v3113
    %v3446 = vmul.f32 %v3114, %v3114
    %v3447 = vmul.f32 %v3115, %v3115
    %v3448 = vmul.f32 %v3116, %v3116
    %v3449 = vmul.f32 %v3117, %v3117
    %v3450 = vmul.f32 %v3118, %v3118
    %v3451 = vmul.f32 %v3119, %v3119
    %v3452 = vmul.f32 %v3120, %v3120
    %v3453 = vmul.f32 %v3121, %v3121
    %v3454 = vmul.f32 %v3122, %v3122
    %v3455 = vmul.f32 %v3123, %v3123
    %v3456 = vmul.f32 %v3124, %v3124
    %v3457 = vmul.f32 %v3125, %v3125
    %v3458 = vmul.f32 %v3126, %v3126
    %v3459 = vmul.f32 %v3127, %v3127
    %v3460 = vmul.f32 %v3128, %v3128
    %v3461 = vmul.f32 %v3129, %v3129
    %v3462 = vmul.f32 %v3130, %v3130
    %v3463 = vmul.f32 %v3131, %v3131
    %v3464 = vmul.f32 %v3132, %v3132
    %v3465 = vmul.f32 %v3133, %v3133
    %v3466 = vmul.f32 %v3134, %v3134
    %v3467 = vmul.f32 %v3135, %v3135
    %v3468 = vmul.f32 %v3136, %v3136
    %v3469 = vmul.f32 %v3137, %v3137
    %v3470 = vmul.f32 %v3138, %v3138
    %v3471 = vmul.f32 %v3139, %v3139
    %v3472 = vmul.f32 %v3140, %v3140
    %v3473 = vmul.f32 %v3141, %v3141
    %v3474 = vmul.f32 %v3142, %v3142
    %v3475 = vmul.f32 %v3143, %v3143
    %v3476 = vmul.f32 %v3144, %v3144
    %v3477 = vmul.f32 %v3145, %v3145
    %v3478 = vmul.f32 %v3146, %v3146
    %v3479 = vmul.f32 %v3147, %v3147
    %v3480 = vmul.f32 %v3148, %v3148
    %v3481 = vmul.f32 %v3149, %v3149
    %v3482 = vmul.f32 %v3150, %v3150
    %v3483 = vmul.f32 %v3151, %v3151
    %v3484 = vmul.f32 %v3152, %v3152
    %v3485 = vmul.f32 %v3153, %v3153
    %v3486 = vmul.f32 %v3154, %v3154
    %v3487 = vmul.f32 %v3155, %v3155
    %v3488 = vsel %vm3294, %v3424, 0.0
    %v3489 = vsel %vm3294, %v3425, 0.0
    %v3490 = vadd.f32 %v3488, %v3489
    %v3491 = vsel %vm3294, %v3426, 0.0
    %v3492 = vadd.f32 %v3490, %v3491
    %v3493 = vsel %vm3294, %v3427, 0.0
    %v3494 = vadd.f32 %v3492, %v3493
    %v3495 = vsel %vm3294, %v3428, 0.0
    %v3496 = vadd.f32 %v3494, %v3495
    %v3497 = vsel %vm3294, %v3429, 0.0
    %v3498 = vadd.f32 %v3496, %v3497
    %v3499 = vsel %vm3294, %v3430, 0.0
    %v3500 = vadd.f32 %v3498, %v3499
    %v3501 = vsel %vm3294, %v3431, 0.0
    %v3502 = vadd.f32 %v3500, %v3501
    %v3503 = vsel %vm3294, %v3432, 0.0
    %v3504 = vadd.f32 %v3502, %v3503
    %v3505 = vsel %vm3294, %v3433, 0.0
    %v3506 = vadd.f32 %v3504, %v3505
    %v3507 = vsel %vm3294, %v3434, 0.0
    %v3508 = vadd.f32 %v3506, %v3507
    %v3509 = vsel %vm3294, %v3435, 0.0
    %v3510 = vadd.f32 %v3508, %v3509
    %v3511 = vsel %vm3294, %v3436, 0.0
    %v3512 = vadd.f32 %v3510, %v3511
    %v3513 = vsel %vm3294, %v3437, 0.0
    %v3514 = vadd.f32 %v3512, %v3513
    %v3515 = vsel %vm3294, %v3438, 0.0
    %v3516 = vadd.f32 %v3514, %v3515
    %v3517 = vsel %vm3294, %v3439, 0.0
    %v3518 = vadd.f32 %v3516, %v3517
    %v3519 = vsel %vm3294, %v3440, 0.0
    %v3520 = vadd.f32 %v3518, %v3519
    %v3521 = vsel %vm3294, %v3441, 0.0
    %v3522 = vadd.f32 %v3520, %v3521
    %v3523 = vsel %vm3294, %v3442, 0.0
    %v3524 = vadd.f32 %v3522, %v3523
    %v3525 = vsel %vm3294, %v3443, 0.0
    %v3526 = vadd.f32 %v3524, %v3525
    %v3527 = vsel %vm3294, %v3444, 0.0
    %v3528 = vadd.f32 %v3526, %v3527
    %v3529 = vsel %vm3294, %v3445, 0.0
    %v3530 = vadd.f32 %v3528, %v3529
    %v3531 = vsel %vm3294, %v3446, 0.0
    %v3532 = vadd.f32 %v3530, %v3531
    %v3533 = vsel %vm3294, %v3447, 0.0
    %v3534 = vadd.f32 %v3532, %v3533
    %v3535 = vsel %vm3294, %v3448, 0.0
    %v3536 = vadd.f32 %v3534, %v3535
    %v3537 = vsel %vm3294, %v3449, 0.0
    %v3538 = vadd.f32 %v3536, %v3537
    %v3539 = vsel %vm3294, %v3450, 0.0
    %v3540 = vadd.f32 %v3538, %v3539
    %v3541 = vsel %vm3294, %v3451, 0.0
    %v3542 = vadd.f32 %v3540, %v3541
    %v3543 = vsel %vm3294, %v3452, 0.0
    %v3544 = vadd.f32 %v3542, %v3543
    %v3545 = vsel %vm3294, %v3453, 0.0
    %v3546 = vadd.f32 %v3544, %v3545
    %v3547 = vsel %vm3294, %v3454, 0.0
    %v3548 = vadd.f32 %v3546, %v3547
    %v3549 = vsel %vm3294, %v3455, 0.0
    %v3550 = vadd.f32 %v3548, %v3549
    %v3551 = vsel %vm3294, %v3456, 0.0
    %v3552 = vadd.f32 %v3550, %v3551
    %v3553 = vsel %vm3294, %v3457, 0.0
    %v3554 = vadd.f32 %v3552, %v3553
    %v3555 = vsel %vm3294, %v3458, 0.0
    %v3556 = vadd.f32 %v3554, %v3555
    %v3557 = vsel %vm3294, %v3459, 0.0
    %v3558 = vadd.f32 %v3556, %v3557
    %v3559 = vsel %vm3294, %v3460, 0.0
    %v3560 = vadd.f32 %v3558, %v3559
    %v3561 = vsel %vm3294, %v3461, 0.0
    %v3562 = vadd.f32 %v3560, %v3561
    %v3563 = vsel %vm3294, %v3462, 0.0
    %v3564 = vadd.f32 %v3562, %v3563
    %v3565 = vsel %vm3294, %v3463, 0.0
    %v3566 = vadd.f32 %v3564, %v3565
    %v3567 = vsel %vm3294, %v3464, 0.0
    %v3568 = vadd.f32 %v3566, %v3567
    %v3569 = vsel %vm3294, %v3465, 0.0
    %v3570 = vadd.f32 %v3568, %v3569
    %v3571 = vsel %vm3294, %v3466, 0.0
    %v3572 = vadd.f32 %v3570, %v3571
    %v3573 = vsel %vm3294, %v3467, 0.0
    %v3574 = vadd.f32 %v3572, %v3573
    %v3575 = vsel %vm3294, %v3468, 0.0
    %v3576 = vadd.f32 %v3574, %v3575
    %v3577 = vsel %vm3294, %v3469, 0.0
    %v3578 = vadd.f32 %v3576, %v3577
    %v3579 = vsel %vm3294, %v3470, 0.0
    %v3580 = vadd.f32 %v3578, %v3579
    %v3581 = vsel %vm3294, %v3471, 0.0
    %v3582 = vadd.f32 %v3580, %v3581
    %v3583 = vsel %vm3294, %v3472, 0.0
    %v3584 = vadd.f32 %v3582, %v3583
    %v3585 = vsel %vm3294, %v3473, 0.0
    %v3586 = vadd.f32 %v3584, %v3585
    %v3587 = vsel %vm3294, %v3474, 0.0
    %v3588 = vadd.f32 %v3586, %v3587
    %v3589 = vsel %vm3294, %v3475, 0.0
    %v3590 = vadd.f32 %v3588, %v3589
    %v3591 = vsel %vm3294, %v3476, 0.0
    %v3592 = vadd.f32 %v3590, %v3591
    %v3593 = vsel %vm3294, %v3477, 0.0
    %v3594 = vadd.f32 %v3592, %v3593
    %v3595 = vsel %vm3294, %v3478, 0.0
    %v3596 = vadd.f32 %v3594, %v3595
    %v3597 = vsel %vm3294, %v3479, 0.0
    %v3598 = vadd.f32 %v3596, %v3597
    %v3599 = vsel %vm3294, %v3480, 0.0
    %v3600 = vadd.f32 %v3598, %v3599
    %v3601 = vsel %vm3294, %v3481, 0.0
    %v3602 = vadd.f32 %v3600, %v3601
    %v3603 = vsel %vm3294, %v3482, 0.0
    %v3604 = vadd.f32 %v3602, %v3603
    %v3605 = vsel %vm3294, %v3483, 0.0
    %v3606 = vadd.f32 %v3604, %v3605
    %v3607 = vsel %vm3294, %v3484, 0.0
    %v3608 = vadd.f32 %v3606, %v3607
    %v3609 = vsel %vm3294, %v3485, 0.0
    %v3610 = vadd.f32 %v3608, %v3609
    %v3611 = vsel %vm3294, %v3486, 0.0
    %v3612 = vadd.f32 %v3610, %v3611
    %v3613 = vsel %vm3294, %v3487, 0.0
    %v3614 = vadd.f32 %v3612, %v3613
    %3615 = vadd.xlane.f32.xlu0 %v3614
    %v3616 = vpop.xlane.xlu0 %3615
    %v3617 = vstv %s3293
    %v3618 = vrcp.pop %v3617
    %v3619 = vmul.f32 %v3423, %v3618
    %v3620 = vmul.f32 %v3616, %v3618
    %v3621 = vmul.f32 %v3619, %v3619
    %v3622 = vsub.f32 %v3620, %v3621
    %v3623 = vmax.f32 %v3622, 0.0
    %v3624 = vld [vmem:[%s4] sm:$0xf]
    %v3625 = vadd.f32 %v3623, 0.0001
    %v3626 = vrsqrt.pop %v3625
    %v3627 = vmul.f32 %v3624, %v3626
    %v3628 = vsub.f32 %v3092, %v3619
    %v3629 = vsub.f32 %v3093, %v3619
    %v3630 = vsub.f32 %v3094, %v3619
    %v3631 = vsub.f32 %v3095, %v3619
    %v3632 = vsub.f32 %v3096, %v3619
    %v3633 = vsub.f32 %v3097, %v3619
    %v3634 = vsub.f32 %v3098, %v3619
    %v3635 = vsub.f32 %v3099, %v3619
    %v3636 = vsub.f32 %v3100, %v3619
    %v3637 = vsub.f32 %v3101, %v3619
    %v3638 = vsub.f32 %v3102, %v3619
    %v3639 = vsub.f32 %v3103, %v3619
    %v3640 = vsub.f32 %v3104, %v3619
    %v3641 = vsub.f32 %v3105, %v3619
    %v3642 = vsub.f32 %v3106, %v3619
    %v3643 = vsub.f32 %v3107, %v3619
    %v3644 = vsub.f32 %v3108, %v3619
    %v3645 = vsub.f32 %v3109, %v3619
    %v3646 = vsub.f32 %v3110, %v3619
    %v3647 = vsub.f32 %v3111, %v3619
    %v3648 = vsub.f32 %v3112, %v3619
    %v3649 = vsub.f32 %v3113, %v3619
    %v3650 = vsub.f32 %v3114, %v3619
    %v3651 = vsub.f32 %v3115, %v3619
    %v3652 = vsub.f32 %v3116, %v3619
    %v3653 = vsub.f32 %v3117, %v3619
    %v3654 = vsub.f32 %v3118, %v3619
    %v3655 = vsub.f32 %v3119, %v3619
    %v3656 = vsub.f32 %v3120, %v3619
    %v3657 = vsub.f32 %v3121, %v3619
    %v3658 = vsub.f32 %v3122, %v3619
    %v3659 = vsub.f32 %v3123, %v3619
    %v3660 = vsub.f32 %v3124, %v3619
    %v3661 = vsub.f32 %v3125, %v3619
    %v3662 = vsub.f32 %v3126, %v3619
    %v3663 = vsub.f32 %v3127, %v3619
    %v3664 = vsub.f32 %v3128, %v3619
    %v3665 = vsub.f32 %v3129, %v3619
    %v3666 = vsub.f32 %v3130, %v3619
    %v3667 = vsub.f32 %v3131, %v3619
    %v3668 = vsub.f32 %v3132, %v3619
    %v3669 = vsub.f32 %v3133, %v3619
    %v3670 = vsub.f32 %v3134, %v3619
    %v3671 = vsub.f32 %v3135, %v3619
    %v3672 = vsub.f32 %v3136, %v3619
    %v3673 = vsub.f32 %v3137, %v3619
    %v3674 = vsub.f32 %v3138, %v3619
    %v3675 = vsub.f32 %v3139, %v3619
    %v3676 = vsub.f32 %v3140, %v3619
    %v3677 = vsub.f32 %v3141, %v3619
    %v3678 = vsub.f32 %v3142, %v3619
    %v3679 = vsub.f32 %v3143, %v3619
    %v3680 = vsub.f32 %v3144, %v3619
    %v3681 = vsub.f32 %v3145, %v3619
    %v3682 = vsub.f32 %v3146, %v3619
    %v3683 = vsub.f32 %v3147, %v3619
    %v3684 = vsub.f32 %v3148, %v3619
    %v3685 = vsub.f32 %v3149, %v3619
    %v3686 = vsub.f32 %v3150, %v3619
    %v3687 = vsub.f32 %v3151, %v3619
    %v3688 = vsub.f32 %v3152, %v3619
    %v3689 = vsub.f32 %v3153, %v3619
    %v3690 = vsub.f32 %v3154, %v3619
    %v3691 = vsub.f32 %v3155, %v3619
    %3693 = vset.pattern.permute.xlu0 0
    %3694 = vperm.xlu0 %3693, %v3627
    %v3695 = vpop.permute.xlu0 %3694
    %v3697 = vmul.f32 %v3628, %v3695
    %v3698 = vmul.f32 %v3629, %v3695
    %v3699 = vmul.f32 %v3630, %v3695
    %v3700 = vmul.f32 %v3631, %v3695
    %v3701 = vmul.f32 %v3632, %v3695
    %v3702 = vmul.f32 %v3633, %v3695
    %v3703 = vmul.f32 %v3634, %v3695
    %v3704 = vmul.f32 %v3635, %v3695
    %v3705 = vmul.f32 %v3636, %v3695
    %v3706 = vmul.f32 %v3637, %v3695
    %v3707 = vmul.f32 %v3638, %v3695
    %v3708 = vmul.f32 %v3639, %v3695
    %v3709 = vmul.f32 %v3640, %v3695
    %v3710 = vmul.f32 %v3641, %v3695
    %v3711 = vmul.f32 %v3642, %v3695
    %v3712 = vmul.f32 %v3643, %v3695
    %v3713 = vmul.f32 %v3644, %v3695
    %v3714 = vmul.f32 %v3645, %v3695
    %v3715 = vmul.f32 %v3646, %v3695
    %v3716 = vmul.f32 %v3647, %v3695
    %v3717 = vmul.f32 %v3648, %v3695
    %v3718 = vmul.f32 %v3649, %v3695
    %v3719 = vmul.f32 %v3650, %v3695
    %v3720 = vmul.f32 %v3651, %v3695
    %v3721 = vmul.f32 %v3652, %v3695
    %v3722 = vmul.f32 %v3653, %v3695
    %v3723 = vmul.f32 %v3654, %v3695
    %v3724 = vmul.f32 %v3655, %v3695
    %v3725 = vmul.f32 %v3656, %v3695
    %v3726 = vmul.f32 %v3657, %v3695
    %v3727 = vmul.f32 %v3658, %v3695
    %v3728 = vmul.f32 %v3659, %v3695
    %v3729 = vmul.f32 %v3660, %v3695
    %v3730 = vmul.f32 %v3661, %v3695
    %v3731 = vmul.f32 %v3662, %v3695
    %v3732 = vmul.f32 %v3663, %v3695
    %v3733 = vmul.f32 %v3664, %v3695
    %v3734 = vmul.f32 %v3665, %v3695
    %v3735 = vmul.f32 %v3666, %v3695
    %v3736 = vmul.f32 %v3667, %v3695
    %v3737 = vmul.f32 %v3668, %v3695
    %v3738 = vmul.f32 %v3669, %v3695
    %v3739 = vmul.f32 %v3670, %v3695
    %v3740 = vmul.f32 %v3671, %v3695
    %v3741 = vmul.f32 %v3672, %v3695
    %v3742 = vmul.f32 %v3673, %v3695
    %v3743 = vmul.f32 %v3674, %v3695
    %v3744 = vmul.f32 %v3675, %v3695
    %v3745 = vmul.f32 %v3676, %v3695
    %v3746 = vmul.f32 %v3677, %v3695
    %v3747 = vmul.f32 %v3678, %v3695
    %v3748 = vmul.f32 %v3679, %v3695
    %v3749 = vmul.f32 %v3680, %v3695
    %v3750 = vmul.f32 %v3681, %v3695
    %v3751 = vmul.f32 %v3682, %v3695
    %v3752 = vmul.f32 %v3683, %v3695
    %v3753 = vmul.f32 %v3684, %v3695
    %v3754 = vmul.f32 %v3685, %v3695
    %v3755 = vmul.f32 %v3686, %v3695
    %v3756 = vmul.f32 %v3687, %v3695
    %v3757 = vmul.f32 %v3688, %v3695
    %v3758 = vmul.f32 %v3689, %v3695
    %v3759 = vmul.f32 %v3690, %v3695
    %v3760 = vmul.f32 %v3691, %v3695
    %v3761 = vld [vmem:[%s5] sm:$0xf]
    %3763 = vset.pattern.permute.xlu0 0
    %3764 = vperm.xlu0 %3763, %v3761
    %v3765 = vpop.permute.xlu0 %3764
    %v3767 = vadd.f32 %v3697, %v3765
    %v3768 = vadd.f32 %v3698, %v3765
    %v3769 = vadd.f32 %v3699, %v3765
    %v3770 = vadd.f32 %v3700, %v3765
    %v3771 = vadd.f32 %v3701, %v3765
    %v3772 = vadd.f32 %v3702, %v3765
    %v3773 = vadd.f32 %v3703, %v3765
    %v3774 = vadd.f32 %v3704, %v3765
    %v3775 = vadd.f32 %v3705, %v3765
    %v3776 = vadd.f32 %v3706, %v3765
    %v3777 = vadd.f32 %v3707, %v3765
    %v3778 = vadd.f32 %v3708, %v3765
    %v3779 = vadd.f32 %v3709, %v3765
    %v3780 = vadd.f32 %v3710, %v3765
    %v3781 = vadd.f32 %v3711, %v3765
    %v3782 = vadd.f32 %v3712, %v3765
    %v3783 = vadd.f32 %v3713, %v3765
    %v3784 = vadd.f32 %v3714, %v3765
    %v3785 = vadd.f32 %v3715, %v3765
    %v3786 = vadd.f32 %v3716, %v3765
    %v3787 = vadd.f32 %v3717, %v3765
    %v3788 = vadd.f32 %v3718, %v3765
    %v3789 = vadd.f32 %v3719, %v3765
    %v3790 = vadd.f32 %v3720, %v3765
    %v3791 = vadd.f32 %v3721, %v3765
    %v3792 = vadd.f32 %v3722, %v3765
    %v3793 = vadd.f32 %v3723, %v3765
    %v3794 = vadd.f32 %v3724, %v3765
    %v3795 = vadd.f32 %v3725, %v3765
    %v3796 = vadd.f32 %v3726, %v3765
    %v3797 = vadd.f32 %v3727, %v3765
    %v3798 = vadd.f32 %v3728, %v3765
    %v3799 = vadd.f32 %v3729, %v3765
    %v3800 = vadd.f32 %v3730, %v3765
    %v3801 = vadd.f32 %v3731, %v3765
    %v3802 = vadd.f32 %v3732, %v3765
    %v3803 = vadd.f32 %v3733, %v3765
    %v3804 = vadd.f32 %v3734, %v3765
    %v3805 = vadd.f32 %v3735, %v3765
    %v3806 = vadd.f32 %v3736, %v3765
    %v3807 = vadd.f32 %v3737, %v3765
    %v3808 = vadd.f32 %v3738, %v3765
    %v3809 = vadd.f32 %v3739, %v3765
    %v3810 = vadd.f32 %v3740, %v3765
    %v3811 = vadd.f32 %v3741, %v3765
    %v3812 = vadd.f32 %v3742, %v3765
    %v3813 = vadd.f32 %v3743, %v3765
    %v3814 = vadd.f32 %v3744, %v3765
    %v3815 = vadd.f32 %v3745, %v3765
    %v3816 = vadd.f32 %v3746, %v3765
    %v3817 = vadd.f32 %v3747, %v3765
    %v3818 = vadd.f32 %v3748, %v3765
    %v3819 = vadd.f32 %v3749, %v3765
    %v3820 = vadd.f32 %v3750, %v3765
    %v3821 = vadd.f32 %v3751, %v3765
    %v3822 = vadd.f32 %v3752, %v3765
    %v3823 = vadd.f32 %v3753, %v3765
    %v3824 = vadd.f32 %v3754, %v3765
    %v3825 = vadd.f32 %v3755, %v3765
    %v3826 = vadd.f32 %v3756, %v3765
    %v3827 = vadd.f32 %v3757, %v3765
    %v3828 = vadd.f32 %v3758, %v3765
    %v3829 = vadd.f32 %v3759, %v3765
    %v3830 = vadd.f32 %v3760, %v3765
    %vm3831 = vcmp.gt.f32.partialorder %v3767, 0.0
    %vm3832 = vcmp.gt.f32.partialorder %v3768, 0.0
    %vm3833 = vcmp.gt.f32.partialorder %v3769, 0.0
    %vm3834 = vcmp.gt.f32.partialorder %v3770, 0.0
    %vm3835 = vcmp.gt.f32.partialorder %v3771, 0.0
    %vm3836 = vcmp.gt.f32.partialorder %v3772, 0.0
    %vm3837 = vcmp.gt.f32.partialorder %v3773, 0.0
    %vm3838 = vcmp.gt.f32.partialorder %v3774, 0.0
    %vm3839 = vcmp.gt.f32.partialorder %v3775, 0.0
    %vm3840 = vcmp.gt.f32.partialorder %v3776, 0.0
    %vm3841 = vcmp.gt.f32.partialorder %v3777, 0.0
    %vm3842 = vcmp.gt.f32.partialorder %v3778, 0.0
    %vm3843 = vcmp.gt.f32.partialorder %v3779, 0.0
    %vm3844 = vcmp.gt.f32.partialorder %v3780, 0.0
    %vm3845 = vcmp.gt.f32.partialorder %v3781, 0.0
    %vm3846 = vcmp.gt.f32.partialorder %v3782, 0.0
    %vm3847 = vcmp.gt.f32.partialorder %v3783, 0.0
    %vm3848 = vcmp.gt.f32.partialorder %v3784, 0.0
    %vm3849 = vcmp.gt.f32.partialorder %v3785, 0.0
    %vm3850 = vcmp.gt.f32.partialorder %v3786, 0.0
    %vm3851 = vcmp.gt.f32.partialorder %v3787, 0.0
    %vm3852 = vcmp.gt.f32.partialorder %v3788, 0.0
    %vm3853 = vcmp.gt.f32.partialorder %v3789, 0.0
    %vm3854 = vcmp.gt.f32.partialorder %v3790, 0.0
    %vm3855 = vcmp.gt.f32.partialorder %v3791, 0.0
    %vm3856 = vcmp.gt.f32.partialorder %v3792, 0.0
    %vm3857 = vcmp.gt.f32.partialorder %v3793, 0.0
    %vm3858 = vcmp.gt.f32.partialorder %v3794, 0.0
    %vm3859 = vcmp.gt.f32.partialorder %v3795, 0.0
    %vm3860 = vcmp.gt.f32.partialorder %v3796, 0.0
    %vm3861 = vcmp.gt.f32.partialorder %v3797, 0.0
    %vm3862 = vcmp.gt.f32.partialorder %v3798, 0.0
    %vm3863 = vcmp.gt.f32.partialorder %v3799, 0.0
    %vm3864 = vcmp.gt.f32.partialorder %v3800, 0.0
    %vm3865 = vcmp.gt.f32.partialorder %v3801, 0.0
    %vm3866 = vcmp.gt.f32.partialorder %v3802, 0.0
    %vm3867 = vcmp.gt.f32.partialorder %v3803, 0.0
    %vm3868 = vcmp.gt.f32.partialorder %v3804, 0.0
    %vm3869 = vcmp.gt.f32.partialorder %v3805, 0.0
    %vm3870 = vcmp.gt.f32.partialorder %v3806, 0.0
    %vm3871 = vcmp.gt.f32.partialorder %v3807, 0.0
    %vm3872 = vcmp.gt.f32.partialorder %v3808, 0.0
    %vm3873 = vcmp.gt.f32.partialorder %v3809, 0.0
    %vm3874 = vcmp.gt.f32.partialorder %v3810, 0.0
    %vm3875 = vcmp.gt.f32.partialorder %v3811, 0.0
    %vm3876 = vcmp.gt.f32.partialorder %v3812, 0.0
    %vm3877 = vcmp.gt.f32.partialorder %v3813, 0.0
    %vm3878 = vcmp.gt.f32.partialorder %v3814, 0.0
    %vm3879 = vcmp.gt.f32.partialorder %v3815, 0.0
    %vm3880 = vcmp.gt.f32.partialorder %v3816, 0.0
    %vm3881 = vcmp.gt.f32.partialorder %v3817, 0.0
    %vm3882 = vcmp.gt.f32.partialorder %v3818, 0.0
    %vm3883 = vcmp.gt.f32.partialorder %v3819, 0.0
    %vm3884 = vcmp.gt.f32.partialorder %v3820, 0.0
    %vm3885 = vcmp.gt.f32.partialorder %v3821, 0.0
    %vm3886 = vcmp.gt.f32.partialorder %v3822, 0.0
    %vm3887 = vcmp.gt.f32.partialorder %v3823, 0.0
    %vm3888 = vcmp.gt.f32.partialorder %v3824, 0.0
    %vm3889 = vcmp.gt.f32.partialorder %v3825, 0.0
    %vm3890 = vcmp.gt.f32.partialorder %v3826, 0.0
    %vm3891 = vcmp.gt.f32.partialorder %v3827, 0.0
    %vm3892 = vcmp.gt.f32.partialorder %v3828, 0.0
    %vm3893 = vcmp.gt.f32.partialorder %v3829, 0.0
    %vm3894 = vcmp.gt.f32.partialorder %v3830, 0.0
    %v3895 = vmul.f32 %v3767, 0.0
    %v3896 = vmul.f32 %v3768, 0.0
    %v3897 = vmul.f32 %v3769, 0.0
    %v3898 = vmul.f32 %v3770, 0.0
    %v3899 = vmul.f32 %v3771, 0.0
    %v3900 = vmul.f32 %v3772, 0.0
    %v3901 = vmul.f32 %v3773, 0.0
    %v3902 = vmul.f32 %v3774, 0.0
    %v3903 = vmul.f32 %v3775, 0.0
    %v3904 = vmul.f32 %v3776, 0.0
    %v3905 = vmul.f32 %v3777, 0.0
    %v3906 = vmul.f32 %v3778, 0.0
    %v3907 = vmul.f32 %v3779, 0.0
    %v3908 = vmul.f32 %v3780, 0.0
    %v3909 = vmul.f32 %v3781, 0.0
    %v3910 = vmul.f32 %v3782, 0.0
    %v3911 = vmul.f32 %v3783, 0.0
    %v3912 = vmul.f32 %v3784, 0.0
    %v3913 = vmul.f32 %v3785, 0.0
    %v3914 = vmul.f32 %v3786, 0.0
    %v3915 = vmul.f32 %v3787, 0.0
    %v3916 = vmul.f32 %v3788, 0.0
    %v3917 = vmul.f32 %v3789, 0.0
    %v3918 = vmul.f32 %v3790, 0.0
    %v3919 = vmul.f32 %v3791, 0.0
    %v3920 = vmul.f32 %v3792, 0.0
    %v3921 = vmul.f32 %v3793, 0.0
    %v3922 = vmul.f32 %v3794, 0.0
    %v3923 = vmul.f32 %v3795, 0.0
    %v3924 = vmul.f32 %v3796, 0.0
    %v3925 = vmul.f32 %v3797, 0.0
    %v3926 = vmul.f32 %v3798, 0.0
    %v3927 = vmul.f32 %v3799, 0.0
    %v3928 = vmul.f32 %v3800, 0.0
    %v3929 = vmul.f32 %v3801, 0.0
    %v3930 = vmul.f32 %v3802, 0.0
    %v3931 = vmul.f32 %v3803, 0.0
    %v3932 = vmul.f32 %v3804, 0.0
    %v3933 = vmul.f32 %v3805, 0.0
    %v3934 = vmul.f32 %v3806, 0.0
    %v3935 = vmul.f32 %v3807, 0.0
    %v3936 = vmul.f32 %v3808, 0.0
    %v3937 = vmul.f32 %v3809, 0.0
    %v3938 = vmul.f32 %v3810, 0.0
    %v3939 = vmul.f32 %v3811, 0.0
    %v3940 = vmul.f32 %v3812, 0.0
    %v3941 = vmul.f32 %v3813, 0.0
    %v3942 = vmul.f32 %v3814, 0.0
    %v3943 = vmul.f32 %v3815, 0.0
    %v3944 = vmul.f32 %v3816, 0.0
    %v3945 = vmul.f32 %v3817, 0.0
    %v3946 = vmul.f32 %v3818, 0.0
    %v3947 = vmul.f32 %v3819, 0.0
    %v3948 = vmul.f32 %v3820, 0.0
    %v3949 = vmul.f32 %v3821, 0.0
    %v3950 = vmul.f32 %v3822, 0.0
    %v3951 = vmul.f32 %v3823, 0.0
    %v3952 = vmul.f32 %v3824, 0.0
    %v3953 = vmul.f32 %v3825, 0.0
    %v3954 = vmul.f32 %v3826, 0.0
    %v3955 = vmul.f32 %v3827, 0.0
    %v3956 = vmul.f32 %v3828, 0.0
    %v3957 = vmul.f32 %v3829, 0.0
    %v3958 = vmul.f32 %v3830, 0.0
    %v3959 = vsel %vm3831, %v3767, %v3895
    %v3960 = vsel %vm3832, %v3768, %v3896
    %v3961 = vsel %vm3833, %v3769, %v3897
    %v3962 = vsel %vm3834, %v3770, %v3898
    %v3963 = vsel %vm3835, %v3771, %v3899
    %v3964 = vsel %vm3836, %v3772, %v3900
    %v3965 = vsel %vm3837, %v3773, %v3901
    %v3966 = vsel %vm3838, %v3774, %v3902
    %v3967 = vsel %vm3839, %v3775, %v3903
    %v3968 = vsel %vm3840, %v3776, %v3904
    %v3969 = vsel %vm3841, %v3777, %v3905
    %v3970 = vsel %vm3842, %v3778, %v3906
    %v3971 = vsel %vm3843, %v3779, %v3907
    %v3972 = vsel %vm3844, %v3780, %v3908
    %v3973 = vsel %vm3845, %v3781, %v3909
    %v3974 = vsel %vm3846, %v3782, %v3910
    %v3975 = vsel %vm3847, %v3783, %v3911
    %v3976 = vsel %vm3848, %v3784, %v3912
    %v3977 = vsel %vm3849, %v3785, %v3913
    %v3978 = vsel %vm3850, %v3786, %v3914
    %v3979 = vsel %vm3851, %v3787, %v3915
    %v3980 = vsel %vm3852, %v3788, %v3916
    %v3981 = vsel %vm3853, %v3789, %v3917
    %v3982 = vsel %vm3854, %v3790, %v3918
    %v3983 = vsel %vm3855, %v3791, %v3919
    %v3984 = vsel %vm3856, %v3792, %v3920
    %v3985 = vsel %vm3857, %v3793, %v3921
    %v3986 = vsel %vm3858, %v3794, %v3922
    %v3987 = vsel %vm3859, %v3795, %v3923
    %v3988 = vsel %vm3860, %v3796, %v3924
    %v3989 = vsel %vm3861, %v3797, %v3925
    %v3990 = vsel %vm3862, %v3798, %v3926
    %v3991 = vsel %vm3863, %v3799, %v3927
    %v3992 = vsel %vm3864, %v3800, %v3928
    %v3993 = vsel %vm3865, %v3801, %v3929
    %v3994 = vsel %vm3866, %v3802, %v3930
    %v3995 = vsel %vm3867, %v3803, %v3931
    %v3996 = vsel %vm3868, %v3804, %v3932
    %v3997 = vsel %vm3869, %v3805, %v3933
    %v3998 = vsel %vm3870, %v3806, %v3934
    %v3999 = vsel %vm3871, %v3807, %v3935
    %v4000 = vsel %vm3872, %v3808, %v3936
    %v4001 = vsel %vm3873, %v3809, %v3937
    %v4002 = vsel %vm3874, %v3810, %v3938
    %v4003 = vsel %vm3875, %v3811, %v3939
    %v4004 = vsel %vm3876, %v3812, %v3940
    %v4005 = vsel %vm3877, %v3813, %v3941
    %v4006 = vsel %vm3878, %v3814, %v3942
    %v4007 = vsel %vm3879, %v3815, %v3943
    %v4008 = vsel %vm3880, %v3816, %v3944
    %v4009 = vsel %vm3881, %v3817, %v3945
    %v4010 = vsel %vm3882, %v3818, %v3946
    %v4011 = vsel %vm3883, %v3819, %v3947
    %v4012 = vsel %vm3884, %v3820, %v3948
    %v4013 = vsel %vm3885, %v3821, %v3949
    %v4014 = vsel %vm3886, %v3822, %v3950
    %v4015 = vsel %vm3887, %v3823, %v3951
    %v4016 = vsel %vm3888, %v3824, %v3952
    %v4017 = vsel %vm3889, %v3825, %v3953
    %v4018 = vsel %vm3890, %v3826, %v3954
    %v4019 = vsel %vm3891, %v3827, %v3955
    %v4020 = vsel %vm3892, %v3828, %v3956
    %v4021 = vsel %vm3893, %v3829, %v3957
    %v4022 = vsel %vm3894, %v3830, %v3958
    %v4023 = vmul.f32 %v3959, %v2775
    %v4024 = vmul.f32 %v3960, %v2779
    %v4025 = vmul.f32 %v3961, %v2783
    %v4026 = vmul.f32 %v3962, %v2787
    %v4027 = vmul.f32 %v3963, %v2791
    %v4028 = vmul.f32 %v3964, %v2795
    %v4029 = vmul.f32 %v3965, %v2799
    %v4030 = vmul.f32 %v3966, %v2803
    %v4031 = vmul.f32 %v3967, %v2807
    %v4032 = vmul.f32 %v3968, %v2811
    %v4033 = vmul.f32 %v3969, %v2815
    %v4034 = vmul.f32 %v3970, %v2819
    %v4035 = vmul.f32 %v3971, %v2823
    %v4036 = vmul.f32 %v3972, %v2827
    %v4037 = vmul.f32 %v3973, %v2831
    %v4038 = vmul.f32 %v3974, %v2835
    %v4039 = vmul.f32 %v3975, %v2839
    %v4040 = vmul.f32 %v3976, %v2843
    %v4041 = vmul.f32 %v3977, %v2847
    %v4042 = vmul.f32 %v3978, %v2851
    %v4043 = vmul.f32 %v3979, %v2855
    %v4044 = vmul.f32 %v3980, %v2859
    %v4045 = vmul.f32 %v3981, %v2863
    %v4046 = vmul.f32 %v3982, %v2867
    %v4047 = vmul.f32 %v3983, %v2871
    %v4048 = vmul.f32 %v3984, %v2875
    %v4049 = vmul.f32 %v3985, %v2879
    %v4050 = vmul.f32 %v3986, %v2883
    %v4051 = vmul.f32 %v3987, %v2887
    %v4052 = vmul.f32 %v3988, %v2891
    %v4053 = vmul.f32 %v3989, %v2895
    %v4054 = vmul.f32 %v3990, %v2899
    %v4055 = vmul.f32 %v3991, %v2903
    %v4056 = vmul.f32 %v3992, %v2907
    %v4057 = vmul.f32 %v3993, %v2911
    %v4058 = vmul.f32 %v3994, %v2915
    %v4059 = vmul.f32 %v3995, %v2919
    %v4060 = vmul.f32 %v3996, %v2923
    %v4061 = vmul.f32 %v3997, %v2927
    %v4062 = vmul.f32 %v3998, %v2931
    %v4063 = vmul.f32 %v3999, %v2935
    %v4064 = vmul.f32 %v4000, %v2939
    %v4065 = vmul.f32 %v4001, %v2943
    %v4066 = vmul.f32 %v4002, %v2947
    %v4067 = vmul.f32 %v4003, %v2951
    %v4068 = vmul.f32 %v4004, %v2955
    %v4069 = vmul.f32 %v4005, %v2959
    %v4070 = vmul.f32 %v4006, %v2963
    %v4071 = vmul.f32 %v4007, %v2967
    %v4072 = vmul.f32 %v4008, %v2971
    %v4073 = vmul.f32 %v4009, %v2975
    %v4074 = vmul.f32 %v4010, %v2979
    %v4075 = vmul.f32 %v4011, %v2983
    %v4076 = vmul.f32 %v4012, %v2987
    %v4077 = vmul.f32 %v4013, %v2991
    %v4078 = vmul.f32 %v4014, %v2995
    %v4079 = vmul.f32 %v4015, %v2999
    %v4080 = vmul.f32 %v4016, %v3003
    %v4081 = vmul.f32 %v4017, %v3007
    %v4082 = vmul.f32 %v4018, %v3011
    %v4083 = vmul.f32 %v4019, %v3015
    %v4084 = vmul.f32 %v4020, %v3019
    %v4085 = vmul.f32 %v4021, %v3023
    %v4086 = vmul.f32 %v4022, %v3027
    %v4087 = vld [vmem:[%s3] sm:$0xf]
    %v4088 = vmax.f32 %v30, 0.0
    %s4089 = scalar_lea.vmem %s3, 4
    %v4090 = vld [vmem:[%s4089] sm:$0xf]
    %vm4091 = vcmask 31744
    %v4093 = vsel %vm4091, %v4090, 0
    %v4096 = vsel %vm3294, %v4031, 0
    %v4099 = vsel %vm3294, %v4032, 0
    %v4102 = vsel %vm3294, %v4033, 0
    %v4105 = vsel %vm3294, %v4034, 0
    %v4108 = vsel %vm3294, %v4035, 0
    %v4111 = vsel %vm3294, %v4036, 0
    %v4114 = vsel %vm3294, %v4037, 0
    %v4117 = vsel %vm3294, %v4038, 0
    %4119 = vmatprep.subr.mxu0 0.0
    %4120 = vmatpush1.msra.mxu0 0.0
    %4121 = vmatprep.subr.mxu0 0.0
    %4122 = vmatpush1.msra.mxu0 0.0
    %4123 = vmatprep.subr.mxu0 0.0
    %4124 = vmatpush1.msra.mxu0 0.0
    %4125 = vmatprep.subr.mxu0 0.0
    %4126 = vmatpush1.msra.mxu0 0.0
    %4127 = vmatprep.subr.mxu0 0.0
    %4128 = vmatpush1.msra.mxu0 0.0
    %4129 = vmatprep.subr.mxu0 0.0
    %4130 = vmatpush1.msra.mxu0 0.0
    %4131 = vmatprep.subr.mxu0 0.0
    %4132 = vmatpush1.msra.mxu0 0.0
    %4133 = vmatprep.subr.mxu0 0.0
    %4134 = vmatpush1.msra.mxu0 0.0
    %4135 = vmatprep.subr.mxu0 0.0
    %4136 = vmatpush1.msra.mxu0 0.0
    %4137 = vmatprep.subr.mxu0 0.0
    %4138 = vmatpush1.msra.mxu0 0.0
    %4139 = vmatprep.subr.mxu0 0.0
    %4140 = vmatpush1.msra.mxu0 0.0
    %4141 = vmatprep.subr.mxu0 0.0
    %4142 = vmatpush1.msra.mxu0 0.0
    %4143 = vmatprep.subr.mxu0 0.0
    %4144 = vmatpush1.msra.mxu0 0.0
    %4145 = vmatprep.subr.mxu0 0.0
    %4146 = vmatpush1.msra.mxu0 0.0
    %4147 = vmatprep.subr.mxu0 0.0
    %4148 = vmatpush1.msra.mxu0 0.0
    %4149 = vmatprep.subr.mxu0 %v4099
    %4150 = vmatpush1.msra.mxu0 %v4096
    %4151 = vmatprep.subr.mxu0 0.0
    %4152 = vmatpush2.msra.mxu0 0.0
    %4153 = vmatprep.subr.mxu0 0.0
    %4154 = vmatpush2.msra.mxu0 0.0
    %4155 = vmatprep.subr.mxu0 0.0
    %4156 = vmatpush2.msra.mxu0 0.0
    %4157 = vmatprep.subr.mxu0 0.0
    %4158 = vmatpush2.msra.mxu0 0.0
    %4159 = vmatprep.subr.mxu0 0.0
    %4160 = vmatpush2.msra.mxu0 0.0
    %4161 = vmatprep.subr.mxu0 0.0
    %4162 = vmatpush2.msra.mxu0 0.0
    %4163 = vmatprep.subr.mxu0 0.0
    %4164 = vmatpush2.msra.mxu0 0.0
    %4165 = vmatprep.subr.mxu0 0.0
    %4166 = vmatpush2.msra.mxu0 0.0
    %4167 = vmatprep.subr.mxu0 0.0
    %4168 = vmatpush2.msra.mxu0 0.0
    %4169 = vmatprep.subr.mxu0 0.0
    %4170 = vmatpush2.msra.mxu0 0.0
    %4171 = vmatprep.subr.mxu0 0.0
    %4172 = vmatpush2.msra.mxu0 0.0
    %4173 = vmatprep.subr.mxu0 0.0
    %4174 = vmatpush2.msra.mxu0 0.0
    %4175 = vmatprep.subr.mxu0 0.0
    %4176 = vmatpush2.msra.mxu0 0.0
    %4177 = vmatprep.subr.mxu0 0.0
    %4178 = vmatpush2.msra.mxu0 0.0
    %4179 = vmatprep.subr.mxu0 0.0
    %4180 = vmatpush2.msra.mxu0 0.0
    %4181 = vmatprep.subr.mxu0 0.0
    %4182 = vmatpush2.msra.mxu0 0.0
    %4183 = vmatprep.mubr.f32.mxu0 0.0
    %4184 = vmatmul.mubr.f32.gmra.mxu0 %v4093
    %v4185 = vpop.f32.mrf.mxu0
    %v4186 = vadd.f32 0.0, %v4185
    %v4187 = vpop.f32.mrf.mxu0
    %v4188 = vadd.f32 0.0, %v4187
    %4189 = vdwg.mxu0
    %4190 = vmatprep.subr.mxu0 0.0
    %4191 = vmatpush1.msra.mxu0 0.0
    %4192 = vmatprep.subr.mxu0 0.0
    %4193 = vmatpush1.msra.mxu0 0.0
    %4194 = vmatprep.subr.mxu0 0.0
    %4195 = vmatpush1.msra.mxu0 0.0
    %4196 = vmatprep.subr.mxu0 0.0
    %4197 = vmatpush1.msra.mxu0 0.0
    %4198 = vmatprep.subr.mxu0 0.0
    %4199 = vmatpush1.msra.mxu0 0.0
    %4200 = vmatprep.subr.mxu0 0.0
    %4201 = vmatpush1.msra.mxu0 0.0
    %4202 = vmatprep.subr.mxu0 0.0
    %4203 = vmatpush1.msra.mxu0 0.0
    %4204 = vmatprep.subr.mxu0 0.0
    %4205 = vmatpush1.msra.mxu0 0.0
    %4206 = vmatprep.subr.mxu0 0.0
    %4207 = vmatpush1.msra.mxu0 0.0
    %4208 = vmatprep.subr.mxu0 0.0
    %4209 = vmatpush1.msra.mxu0 0.0
    %4210 = vmatprep.subr.mxu0 0.0
    %4211 = vmatpush1.msra.mxu0 0.0
    %4212 = vmatprep.subr.mxu0 0.0
    %4213 = vmatpush1.msra.mxu0 0.0
    %4214 = vmatprep.subr.mxu0 0.0
    %4215 = vmatpush1.msra.mxu0 0.0
    %4216 = vmatprep.subr.mxu0 0.0
    %4217 = vmatpush1.msra.mxu0 0.0
    %4218 = vmatprep.subr.mxu0 0.0
    %4219 = vmatpush1.msra.mxu0 0.0
    %4220 = vmatprep.subr.mxu0 %v4105
    %4221 = vmatpush1.msra.mxu0 %v4102
    %4222 = vmatprep.subr.mxu0 0.0
    %4223 = vmatpush2.msra.mxu0 0.0
    %4224 = vmatprep.subr.mxu0 0.0
    %4225 = vmatpush2.msra.mxu0 0.0
    %4226 = vmatprep.subr.mxu0 0.0
    %4227 = vmatpush2.msra.mxu0 0.0
    %4228 = vmatprep.subr.mxu0 0.0
    %4229 = vmatpush2.msra.mxu0 0.0
    %4230 = vmatprep.subr.mxu0 0.0
    %4231 = vmatpush2.msra.mxu0 0.0
    %4232 = vmatprep.subr.mxu0 0.0
    %4233 = vmatpush2.msra.mxu0 0.0
    %4234 = vmatprep.subr.mxu0 0.0
    %4235 = vmatpush2.msra.mxu0 0.0
    %4236 = vmatprep.subr.mxu0 0.0
    %4237 = vmatpush2.msra.mxu0 0.0
    %4238 = vmatprep.subr.mxu0 0.0
    %4239 = vmatpush2.msra.mxu0 0.0
    %4240 = vmatprep.subr.mxu0 0.0
    %4241 = vmatpush2.msra.mxu0 0.0
    %4242 = vmatprep.subr.mxu0 0.0
    %4243 = vmatpush2.msra.mxu0 0.0
    %4244 = vmatprep.subr.mxu0 0.0
    %4245 = vmatpush2.msra.mxu0 0.0
    %4246 = vmatprep.subr.mxu0 0.0
    %4247 = vmatpush2.msra.mxu0 0.0
    %4248 = vmatprep.subr.mxu0 0.0
    %4249 = vmatpush2.msra.mxu0 0.0
    %4250 = vmatprep.subr.mxu0 0.0
    %4251 = vmatpush2.msra.mxu0 0.0
    %4252 = vmatprep.subr.mxu0 0.0
    %4253 = vmatpush2.msra.mxu0 0.0
    %4254 = vmatprep.mubr.f32.mxu0 0.0
    %4255 = vmatmul.mubr.f32.gmra.mxu0 %v4093
    %v4256 = vpop.f32.mrf.mxu0
    %v4257 = vadd.f32 0.0, %v4256
    %v4258 = vpop.f32.mrf.mxu0
    %v4259 = vadd.f32 0.0, %v4258
    %4260 = vdwg.mxu0
    %4261 = vmatprep.subr.mxu0 0.0
    %4262 = vmatpush1.msra.mxu0 0.0
    %4263 = vmatprep.subr.mxu0 0.0
    %4264 = vmatpush1.msra.mxu0 0.0
    %4265 = vmatprep.subr.mxu0 0.0
    %4266 = vmatpush1.msra.mxu0 0.0
    %4267 = vmatprep.subr.mxu0 0.0
    %4268 = vmatpush1.msra.mxu0 0.0
    %4269 = vmatprep.subr.mxu0 0.0
    %4270 = vmatpush1.msra.mxu0 0.0
    %4271 = vmatprep.subr.mxu0 0.0
    %4272 = vmatpush1.msra.mxu0 0.0
    %4273 = vmatprep.subr.mxu0 0.0
    %4274 = vmatpush1.msra.mxu0 0.0
    %4275 = vmatprep.subr.mxu0 0.0
    %4276 = vmatpush1.msra.mxu0 0.0
    %4277 = vmatprep.subr.mxu0 0.0
    %4278 = vmatpush1.msra.mxu0 0.0
    %4279 = vmatprep.subr.mxu0 0.0
    %4280 = vmatpush1.msra.mxu0 0.0
    %4281 = vmatprep.subr.mxu0 0.0
    %4282 = vmatpush1.msra.mxu0 0.0
    %4283 = vmatprep.subr.mxu0 0.0
    %4284 = vmatpush1.msra.mxu0 0.0
    %4285 = vmatprep.subr.mxu0 0.0
    %4286 = vmatpush1.msra.mxu0 0.0
    %4287 = vmatprep.subr.mxu0 0.0
    %4288 = vmatpush1.msra.mxu0 0.0
    %4289 = vmatprep.subr.mxu0 0.0
    %4290 = vmatpush1.msra.mxu0 0.0
    %4291 = vmatprep.subr.mxu0 %v4111
    %4292 = vmatpush1.msra.mxu0 %v4108
    %4293 = vmatprep.subr.mxu0 0.0
    %4294 = vmatpush2.msra.mxu0 0.0
    %4295 = vmatprep.subr.mxu0 0.0
    %4296 = vmatpush2.msra.mxu0 0.0
    %4297 = vmatprep.subr.mxu0 0.0
    %4298 = vmatpush2.msra.mxu0 0.0
    %4299 = vmatprep.subr.mxu0 0.0
    %4300 = vmatpush2.msra.mxu0 0.0
    %4301 = vmatprep.subr.mxu0 0.0
    %4302 = vmatpush2.msra.mxu0 0.0
    %4303 = vmatprep.subr.mxu0 0.0
    %4304 = vmatpush2.msra.mxu0 0.0
    %4305 = vmatprep.subr.mxu0 0.0
    %4306 = vmatpush2.msra.mxu0 0.0
    %4307 = vmatprep.subr.mxu0 0.0
    %4308 = vmatpush2.msra.mxu0 0.0
    %4309 = vmatprep.subr.mxu0 0.0
    %4310 = vmatpush2.msra.mxu0 0.0
    %4311 = vmatprep.subr.mxu0 0.0
    %4312 = vmatpush2.msra.mxu0 0.0
    %4313 = vmatprep.subr.mxu0 0.0
    %4314 = vmatpush2.msra.mxu0 0.0
    %4315 = vmatprep.subr.mxu0 0.0
    %4316 = vmatpush2.msra.mxu0 0.0
    %4317 = vmatprep.subr.mxu0 0.0
    %4318 = vmatpush2.msra.mxu0 0.0
    %4319 = vmatprep.subr.mxu0 0.0
    %4320 = vmatpush2.msra.mxu0 0.0
    %4321 = vmatprep.subr.mxu0 0.0
    %4322 = vmatpush2.msra.mxu0 0.0
    %4323 = vmatprep.subr.mxu0 0.0
    %4324 = vmatpush2.msra.mxu0 0.0
    %4325 = vmatprep.mubr.f32.mxu0 0.0
    %4326 = vmatmul.mubr.f32.gmra.mxu0 %v4093
    %v4327 = vpop.f32.mrf.mxu0
    %v4328 = vadd.f32 0.0, %v4327
    %v4329 = vpop.f32.mrf.mxu0
    %v4330 = vadd.f32 0.0, %v4329
    %4331 = vdwg.mxu0
    %4332 = vmatprep.subr.mxu0 0.0
    %4333 = vmatpush1.msra.mxu0 0.0
    %4334 = vmatprep.subr.mxu0 0.0
    %4335 = vmatpush1.msra.mxu0 0.0
    %4336 = vmatprep.subr.mxu0 0.0
    %4337 = vmatpush1.msra.mxu0 0.0
    %4338 = vmatprep.subr.mxu0 0.0
    %4339 = vmatpush1.msra.mxu0 0.0
    %4340 = vmatprep.subr.mxu0 0.0
    %4341 = vmatpush1.msra.mxu0 0.0
    %4342 = vmatprep.subr.mxu0 0.0
    %4343 = vmatpush1.msra.mxu0 0.0
    %4344 = vmatprep.subr.mxu0 0.0
    %4345 = vmatpush1.msra.mxu0 0.0
    %4346 = vmatprep.subr.mxu0 0.0
    %4347 = vmatpush1.msra.mxu0 0.0
    %4348 = vmatprep.subr.mxu0 0.0
    %4349 = vmatpush1.msra.mxu0 0.0
    %4350 = vmatprep.subr.mxu0 0.0
    %4351 = vmatpush1.msra.mxu0 0.0
    %4352 = vmatprep.subr.mxu0 0.0
    %4353 = vmatpush1.msra.mxu0 0.0
    %4354 = vmatprep.subr.mxu0 0.0
    %4355 = vmatpush1.msra.mxu0 0.0
    %4356 = vmatprep.subr.mxu0 0.0
    %4357 = vmatpush1.msra.mxu0 0.0
    %4358 = vmatprep.subr.mxu0 0.0
    %4359 = vmatpush1.msra.mxu0 0.0
    %4360 = vmatprep.subr.mxu0 0.0
    %4361 = vmatpush1.msra.mxu0 0.0
    %4362 = vmatprep.subr.mxu0 %v4117
    %4363 = vmatpush1.msra.mxu0 %v4114
    %4364 = vmatprep.subr.mxu0 0.0
    %4365 = vmatpush2.msra.mxu0 0.0
    %4366 = vmatprep.subr.mxu0 0.0
    %4367 = vmatpush2.msra.mxu0 0.0
    %4368 = vmatprep.subr.mxu0 0.0
    %4369 = vmatpush2.msra.mxu0 0.0
    %4370 = vmatprep.subr.mxu0 0.0
    %4371 = vmatpush2.msra.mxu0 0.0
    %4372 = vmatprep.subr.mxu0 0.0
    %4373 = vmatpush2.msra.mxu0 0.0
    %4374 = vmatprep.subr.mxu0 0.0
    %4375 = vmatpush2.msra.mxu0 0.0
    %4376 = vmatprep.subr.mxu0 0.0
    %4377 = vmatpush2.msra.mxu0 0.0
    %4378 = vmatprep.subr.mxu0 0.0
    %4379 = vmatpush2.msra.mxu0 0.0
    %4380 = vmatprep.subr.mxu0 0.0
    %4381 = vmatpush2.msra.mxu0 0.0
    %4382 = vmatprep.subr.mxu0 0.0
    %4383 = vmatpush2.msra.mxu0 0.0
    %4384 = vmatprep.subr.mxu0 0.0
    %4385 = vmatpush2.msra.mxu0 0.0
    %4386 = vmatprep.subr.mxu0 0.0
    %4387 = vmatpush2.msra.mxu0 0.0
    %4388 = vmatprep.subr.mxu0 0.0
    %4389 = vmatpush2.msra.mxu0 0.0
    %4390 = vmatprep.subr.mxu0 0.0
    %4391 = vmatpush2.msra.mxu0 0.0
    %4392 = vmatprep.subr.mxu0 0.0
    %4393 = vmatpush2.msra.mxu0 0.0
    %4394 = vmatprep.subr.mxu0 0.0
    %4395 = vmatpush2.msra.mxu0 0.0
    %4396 = vmatprep.mubr.f32.mxu0 0.0
    %4397 = vmatmul.mubr.f32.gmra.mxu0 %v4093
    %v4398 = vpop.f32.mrf.mxu0
    %v4399 = vadd.f32 0.0, %v4398
    %v4400 = vpop.f32.mrf.mxu0
    %v4401 = vadd.f32 0.0, %v4400
    %4402 = vdwg.mxu0
    %v4404 = vsel %vm4091, %v4087, 0
    %v4407 = vsel %vm3294, %v4023, 0
    %v4410 = vsel %vm3294, %v4024, 0
    %v4413 = vsel %vm3294, %v4025, 0
    %v4416 = vsel %vm3294, %v4026, 0
    %v4419 = vsel %vm3294, %v4027, 0
    %v4422 = vsel %vm3294, %v4028, 0
    %v4425 = vsel %vm3294, %v4029, 0
    %v4428 = vsel %vm3294, %v4030, 0
    %4430 = vmatprep.subr.mxu0 0.0
    %4431 = vmatpush1.msra.mxu0 0.0
    %4432 = vmatprep.subr.mxu0 0.0
    %4433 = vmatpush1.msra.mxu0 0.0
    %4434 = vmatprep.subr.mxu0 0.0
    %4435 = vmatpush1.msra.mxu0 0.0
    %4436 = vmatprep.subr.mxu0 0.0
    %4437 = vmatpush1.msra.mxu0 0.0
    %4438 = vmatprep.subr.mxu0 0.0
    %4439 = vmatpush1.msra.mxu0 0.0
    %4440 = vmatprep.subr.mxu0 0.0
    %4441 = vmatpush1.msra.mxu0 0.0
    %4442 = vmatprep.subr.mxu0 0.0
    %4443 = vmatpush1.msra.mxu0 0.0
    %4444 = vmatprep.subr.mxu0 0.0
    %4445 = vmatpush1.msra.mxu0 0.0
    %4446 = vmatprep.subr.mxu0 0.0
    %4447 = vmatpush1.msra.mxu0 0.0
    %4448 = vmatprep.subr.mxu0 0.0
    %4449 = vmatpush1.msra.mxu0 0.0
    %4450 = vmatprep.subr.mxu0 0.0
    %4451 = vmatpush1.msra.mxu0 0.0
    %4452 = vmatprep.subr.mxu0 0.0
    %4453 = vmatpush1.msra.mxu0 0.0
    %4454 = vmatprep.subr.mxu0 0.0
    %4455 = vmatpush1.msra.mxu0 0.0
    %4456 = vmatprep.subr.mxu0 0.0
    %4457 = vmatpush1.msra.mxu0 0.0
    %4458 = vmatprep.subr.mxu0 0.0
    %4459 = vmatpush1.msra.mxu0 0.0
    %4460 = vmatprep.subr.mxu0 %v4410
    %4461 = vmatpush1.msra.mxu0 %v4407
    %4462 = vmatprep.subr.mxu0 0.0
    %4463 = vmatpush2.msra.mxu0 0.0
    %4464 = vmatprep.subr.mxu0 0.0
    %4465 = vmatpush2.msra.mxu0 0.0
    %4466 = vmatprep.subr.mxu0 0.0
    %4467 = vmatpush2.msra.mxu0 0.0
    %4468 = vmatprep.subr.mxu0 0.0
    %4469 = vmatpush2.msra.mxu0 0.0
    %4470 = vmatprep.subr.mxu0 0.0
    %4471 = vmatpush2.msra.mxu0 0.0
    %4472 = vmatprep.subr.mxu0 0.0
    %4473 = vmatpush2.msra.mxu0 0.0
    %4474 = vmatprep.subr.mxu0 0.0
    %4475 = vmatpush2.msra.mxu0 0.0
    %4476 = vmatprep.subr.mxu0 0.0
    %4477 = vmatpush2.msra.mxu0 0.0
    %4478 = vmatprep.subr.mxu0 0.0
    %4479 = vmatpush2.msra.mxu0 0.0
    %4480 = vmatprep.subr.mxu0 0.0
    %4481 = vmatpush2.msra.mxu0 0.0
    %4482 = vmatprep.subr.mxu0 0.0
    %4483 = vmatpush2.msra.mxu0 0.0
    %4484 = vmatprep.subr.mxu0 0.0
    %4485 = vmatpush2.msra.mxu0 0.0
    %4486 = vmatprep.subr.mxu0 0.0
    %4487 = vmatpush2.msra.mxu0 0.0
    %4488 = vmatprep.subr.mxu0 0.0
    %4489 = vmatpush2.msra.mxu0 0.0
    %4490 = vmatprep.subr.mxu0 0.0
    %4491 = vmatpush2.msra.mxu0 0.0
    %4492 = vmatprep.subr.mxu0 0.0
    %4493 = vmatpush2.msra.mxu0 0.0
    %4494 = vmatprep.mubr.f32.mxu0 0.0
    %4495 = vmatmul.mubr.f32.gmra.mxu0 %v4404
    %v4496 = vpop.f32.mrf.mxu0
    %v4497 = vadd.f32 %v4186, %v4496
    %v4498 = vpop.f32.mrf.mxu0
    %v4499 = vadd.f32 %v4188, %v4498
    %4500 = vdwg.mxu0
    %4501 = vmatprep.subr.mxu0 0.0
    %4502 = vmatpush1.msra.mxu0 0.0
    %4503 = vmatprep.subr.mxu0 0.0
    %4504 = vmatpush1.msra.mxu0 0.0
    %4505 = vmatprep.subr.mxu0 0.0
    %4506 = vmatpush1.msra.mxu0 0.0
    %4507 = vmatprep.subr.mxu0 0.0
    %4508 = vmatpush1.msra.mxu0 0.0
    %4509 = vmatprep.subr.mxu0 0.0
    %4510 = vmatpush1.msra.mxu0 0.0
    %4511 = vmatprep.subr.mxu0 0.0
    %4512 = vmatpush1.msra.mxu0 0.0
    %4513 = vmatprep.subr.mxu0 0.0
    %4514 = vmatpush1.msra.mxu0 0.0
    %4515 = vmatprep.subr.mxu0 0.0
    %4516 = vmatpush1.msra.mxu0 0.0
    %4517 = vmatprep.subr.mxu0 0.0
    %4518 = vmatpush1.msra.mxu0 0.0
    %4519 = vmatprep.subr.mxu0 0.0
    %4520 = vmatpush1.msra.mxu0 0.0
    %4521 = vmatprep.subr.mxu0 0.0
    %4522 = vmatpush1.msra.mxu0 0.0
    %4523 = vmatprep.subr.mxu0 0.0
    %4524 = vmatpush1.msra.mxu0 0.0
    %4525 = vmatprep.subr.mxu0 0.0
    %4526 = vmatpush1.msra.mxu0 0.0
    %4527 = vmatprep.subr.mxu0 0.0
    %4528 = vmatpush1.msra.mxu0 0.0
    %4529 = vmatprep.subr.mxu0 0.0
    %4530 = vmatpush1.msra.mxu0 0.0
    %4531 = vmatprep.subr.mxu0 %v4416
    %4532 = vmatpush1.msra.mxu0 %v4413
    %4533 = vmatprep.subr.mxu0 0.0
    %4534 = vmatpush2.msra.mxu0 0.0
    %4535 = vmatprep.subr.mxu0 0.0
    %4536 = vmatpush2.msra.mxu0 0.0
    %4537 = vmatprep.subr.mxu0 0.0
    %4538 = vmatpush2.msra.mxu0 0.0
    %4539 = vmatprep.subr.mxu0 0.0
    %4540 = vmatpush2.msra.mxu0 0.0
    %4541 = vmatprep.subr.mxu0 0.0
    %4542 = vmatpush2.msra.mxu0 0.0
    %4543 = vmatprep.subr.mxu0 0.0
    %4544 = vmatpush2.msra.mxu0 0.0
    %4545 = vmatprep.subr.mxu0 0.0
    %4546 = vmatpush2.msra.mxu0 0.0
    %4547 = vmatprep.subr.mxu0 0.0
    %4548 = vmatpush2.msra.mxu0 0.0
    %4549 = vmatprep.subr.mxu0 0.0
    %4550 = vmatpush2.msra.mxu0 0.0
    %4551 = vmatprep.subr.mxu0 0.0
    %4552 = vmatpush2.msra.mxu0 0.0
    %4553 = vmatprep.subr.mxu0 0.0
    %4554 = vmatpush2.msra.mxu0 0.0
    %4555 = vmatprep.subr.mxu0 0.0
    %4556 = vmatpush2.msra.mxu0 0.0
    %4557 = vmatprep.subr.mxu0 0.0
    %4558 = vmatpush2.msra.mxu0 0.0
    %4559 = vmatprep.subr.mxu0 0.0
    %4560 = vmatpush2.msra.mxu0 0.0
    %4561 = vmatprep.subr.mxu0 0.0
    %4562 = vmatpush2.msra.mxu0 0.0
    %4563 = vmatprep.subr.mxu0 0.0
    %4564 = vmatpush2.msra.mxu0 0.0
    %4565 = vmatprep.mubr.f32.mxu0 0.0
    %4566 = vmatmul.mubr.f32.gmra.mxu0 %v4404
    %v4567 = vpop.f32.mrf.mxu0
    %v4568 = vadd.f32 %v4257, %v4567
    %v4569 = vpop.f32.mrf.mxu0
    %v4570 = vadd.f32 %v4259, %v4569
    %4571 = vdwg.mxu0
    %4572 = vmatprep.subr.mxu0 0.0
    %4573 = vmatpush1.msra.mxu0 0.0
    %4574 = vmatprep.subr.mxu0 0.0
    %4575 = vmatpush1.msra.mxu0 0.0
    %4576 = vmatprep.subr.mxu0 0.0
    %4577 = vmatpush1.msra.mxu0 0.0
    %4578 = vmatprep.subr.mxu0 0.0
    %4579 = vmatpush1.msra.mxu0 0.0
    %4580 = vmatprep.subr.mxu0 0.0
    %4581 = vmatpush1.msra.mxu0 0.0
    %4582 = vmatprep.subr.mxu0 0.0
    %4583 = vmatpush1.msra.mxu0 0.0
    %4584 = vmatprep.subr.mxu0 0.0
    %4585 = vmatpush1.msra.mxu0 0.0
    %4586 = vmatprep.subr.mxu0 0.0
    %4587 = vmatpush1.msra.mxu0 0.0
    %4588 = vmatprep.subr.mxu0 0.0
    %4589 = vmatpush1.msra.mxu0 0.0
    %4590 = vmatprep.subr.mxu0 0.0
    %4591 = vmatpush1.msra.mxu0 0.0
    %4592 = vmatprep.subr.mxu0 0.0
    %4593 = vmatpush1.msra.mxu0 0.0
    %4594 = vmatprep.subr.mxu0 0.0
    %4595 = vmatpush1.msra.mxu0 0.0
    %4596 = vmatprep.subr.mxu0 0.0
    %4597 = vmatpush1.msra.mxu0 0.0
    %4598 = vmatprep.subr.mxu0 0.0
    %4599 = vmatpush1.msra.mxu0 0.0
    %4600 = vmatprep.subr.mxu0 0.0
    %4601 = vmatpush1.msra.mxu0 0.0
    %4602 = vmatprep.subr.mxu0 %v4422
    %4603 = vmatpush1.msra.mxu0 %v4419
    %4604 = vmatprep.subr.mxu0 0.0
    %4605 = vmatpush2.msra.mxu0 0.0
    %4606 = vmatprep.subr.mxu0 0.0
    %4607 = vmatpush2.msra.mxu0 0.0
    %4608 = vmatprep.subr.mxu0 0.0
    %4609 = vmatpush2.msra.mxu0 0.0
    %4610 = vmatprep.subr.mxu0 0.0
    %4611 = vmatpush2.msra.mxu0 0.0
    %4612 = vmatprep.subr.mxu0 0.0
    %4613 = vmatpush2.msra.mxu0 0.0
    %4614 = vmatprep.subr.mxu0 0.0
    %4615 = vmatpush2.msra.mxu0 0.0
    %4616 = vmatprep.subr.mxu0 0.0
    %4617 = vmatpush2.msra.mxu0 0.0
    %4618 = vmatprep.subr.mxu0 0.0
    %4619 = vmatpush2.msra.mxu0 0.0
    %4620 = vmatprep.subr.mxu0 0.0
    %4621 = vmatpush2.msra.mxu0 0.0
    %4622 = vmatprep.subr.mxu0 0.0
    %4623 = vmatpush2.msra.mxu0 0.0
    %4624 = vmatprep.subr.mxu0 0.0
    %4625 = vmatpush2.msra.mxu0 0.0
    %4626 = vmatprep.subr.mxu0 0.0
    %4627 = vmatpush2.msra.mxu0 0.0
    %4628 = vmatprep.subr.mxu0 0.0
    %4629 = vmatpush2.msra.mxu0 0.0
    %4630 = vmatprep.subr.mxu0 0.0
    %4631 = vmatpush2.msra.mxu0 0.0
    %4632 = vmatprep.subr.mxu0 0.0
    %4633 = vmatpush2.msra.mxu0 0.0
    %4634 = vmatprep.subr.mxu0 0.0
    %4635 = vmatpush2.msra.mxu0 0.0
    %4636 = vmatprep.mubr.f32.mxu0 0.0
    %4637 = vmatmul.mubr.f32.gmra.mxu0 %v4404
    %v4638 = vpop.f32.mrf.mxu0
    %v4639 = vadd.f32 %v4328, %v4638
    %v4640 = vpop.f32.mrf.mxu0
    %v4641 = vadd.f32 %v4330, %v4640
    %4642 = vdwg.mxu0
    %4643 = vmatprep.subr.mxu0 0.0
    %4644 = vmatpush1.msra.mxu0 0.0
    %4645 = vmatprep.subr.mxu0 0.0
    %4646 = vmatpush1.msra.mxu0 0.0
    %4647 = vmatprep.subr.mxu0 0.0
    %4648 = vmatpush1.msra.mxu0 0.0
    %4649 = vmatprep.subr.mxu0 0.0
    %4650 = vmatpush1.msra.mxu0 0.0
    %4651 = vmatprep.subr.mxu0 0.0
    %4652 = vmatpush1.msra.mxu0 0.0
    %4653 = vmatprep.subr.mxu0 0.0
    %4654 = vmatpush1.msra.mxu0 0.0
    %4655 = vmatprep.subr.mxu0 0.0
    %4656 = vmatpush1.msra.mxu0 0.0
    %4657 = vmatprep.subr.mxu0 0.0
    %4658 = vmatpush1.msra.mxu0 0.0
    %4659 = vmatprep.subr.mxu0 0.0
    %4660 = vmatpush1.msra.mxu0 0.0
    %4661 = vmatprep.subr.mxu0 0.0
    %4662 = vmatpush1.msra.mxu0 0.0
    %4663 = vmatprep.subr.mxu0 0.0
    %4664 = vmatpush1.msra.mxu0 0.0
    %4665 = vmatprep.subr.mxu0 0.0
    %4666 = vmatpush1.msra.mxu0 0.0
    %4667 = vmatprep.subr.mxu0 0.0
    %4668 = vmatpush1.msra.mxu0 0.0
    %4669 = vmatprep.subr.mxu0 0.0
    %4670 = vmatpush1.msra.mxu0 0.0
    %4671 = vmatprep.subr.mxu0 0.0
    %4672 = vmatpush1.msra.mxu0 0.0
    %4673 = vmatprep.subr.mxu0 %v4428
    %4674 = vmatpush1.msra.mxu0 %v4425
    %4675 = vmatprep.subr.mxu0 0.0
    %4676 = vmatpush2.msra.mxu0 0.0
    %4677 = vmatprep.subr.mxu0 0.0
    %4678 = vmatpush2.msra.mxu0 0.0
    %4679 = vmatprep.subr.mxu0 0.0
    %4680 = vmatpush2.msra.mxu0 0.0
    %4681 = vmatprep.subr.mxu0 0.0
    %4682 = vmatpush2.msra.mxu0 0.0
    %4683 = vmatprep.subr.mxu0 0.0
    %4684 = vmatpush2.msra.mxu0 0.0
    %4685 = vmatprep.subr.mxu0 0.0
    %4686 = vmatpush2.msra.mxu0 0.0
    %4687 = vmatprep.subr.mxu0 0.0
    %4688 = vmatpush2.msra.mxu0 0.0
    %4689 = vmatprep.subr.mxu0 0.0
    %4690 = vmatpush2.msra.mxu0 0.0
    %4691 = vmatprep.subr.mxu0 0.0
    %4692 = vmatpush2.msra.mxu0 0.0
    %4693 = vmatprep.subr.mxu0 0.0
    %4694 = vmatpush2.msra.mxu0 0.0
    %4695 = vmatprep.subr.mxu0 0.0
    %4696 = vmatpush2.msra.mxu0 0.0
    %4697 = vmatprep.subr.mxu0 0.0
    %4698 = vmatpush2.msra.mxu0 0.0
    %4699 = vmatprep.subr.mxu0 0.0
    %4700 = vmatpush2.msra.mxu0 0.0
    %4701 = vmatprep.subr.mxu0 0.0
    %4702 = vmatpush2.msra.mxu0 0.0
    %4703 = vmatprep.subr.mxu0 0.0
    %4704 = vmatpush2.msra.mxu0 0.0
    %4705 = vmatprep.subr.mxu0 0.0
    %4706 = vmatpush2.msra.mxu0 0.0
    %4707 = vmatprep.mubr.f32.mxu0 0.0
    %4708 = vmatmul.mubr.f32.gmra.mxu0 %v4404
    %v4709 = vpop.f32.mrf.mxu0
    %v4710 = vadd.f32 %v4399, %v4709
    %v4711 = vpop.f32.mrf.mxu0
    %v4712 = vadd.f32 %v4401, %v4711
    %4713 = vdwg.mxu0
    %v4714 = vmax.f32 %v4088, %v31
    %s4715 = scalar_lea.vmem %s3, 8
    %v4716 = vld [vmem:[%s4715] sm:$0xf]
    %v4718 = vsel %vm4091, %v4716, 0
    %v4721 = vsel %vm3294, %v4039, 0
    %v4724 = vsel %vm3294, %v4040, 0
    %v4727 = vsel %vm3294, %v4041, 0
    %v4730 = vsel %vm3294, %v4042, 0
    %v4733 = vsel %vm3294, %v4043, 0
    %v4736 = vsel %vm3294, %v4044, 0
    %v4739 = vsel %vm3294, %v4045, 0
    %v4742 = vsel %vm3294, %v4046, 0
    %4744 = vmatprep.subr.mxu0 0.0
    %4745 = vmatpush1.msra.mxu0 0.0
    %4746 = vmatprep.subr.mxu0 0.0
    %4747 = vmatpush1.msra.mxu0 0.0
    %4748 = vmatprep.subr.mxu0 0.0
    %4749 = vmatpush1.msra.mxu0 0.0
    %4750 = vmatprep.subr.mxu0 0.0
    %4751 = vmatpush1.msra.mxu0 0.0
    %4752 = vmatprep.subr.mxu0 0.0
    %4753 = vmatpush1.msra.mxu0 0.0
    %4754 = vmatprep.subr.mxu0 0.0
    %4755 = vmatpush1.msra.mxu0 0.0
    %4756 = vmatprep.subr.mxu0 0.0
    %4757 = vmatpush1.msra.mxu0 0.0
    %4758 = vmatprep.subr.mxu0 0.0
    %4759 = vmatpush1.msra.mxu0 0.0
    %4760 = vmatprep.subr.mxu0 0.0
    %4761 = vmatpush1.msra.mxu0 0.0
    %4762 = vmatprep.subr.mxu0 0.0
    %4763 = vmatpush1.msra.mxu0 0.0
    %4764 = vmatprep.subr.mxu0 0.0
    %4765 = vmatpush1.msra.mxu0 0.0
    %4766 = vmatprep.subr.mxu0 0.0
    %4767 = vmatpush1.msra.mxu0 0.0
    %4768 = vmatprep.subr.mxu0 0.0
    %4769 = vmatpush1.msra.mxu0 0.0
    %4770 = vmatprep.subr.mxu0 0.0
    %4771 = vmatpush1.msra.mxu0 0.0
    %4772 = vmatprep.subr.mxu0 0.0
    %4773 = vmatpush1.msra.mxu0 0.0
    %4774 = vmatprep.subr.mxu0 %v4724
    %4775 = vmatpush1.msra.mxu0 %v4721
    %4776 = vmatprep.subr.mxu0 0.0
    %4777 = vmatpush2.msra.mxu0 0.0
    %4778 = vmatprep.subr.mxu0 0.0
    %4779 = vmatpush2.msra.mxu0 0.0
    %4780 = vmatprep.subr.mxu0 0.0
    %4781 = vmatpush2.msra.mxu0 0.0
    %4782 = vmatprep.subr.mxu0 0.0
    %4783 = vmatpush2.msra.mxu0 0.0
    %4784 = vmatprep.subr.mxu0 0.0
    %4785 = vmatpush2.msra.mxu0 0.0
    %4786 = vmatprep.subr.mxu0 0.0
    %4787 = vmatpush2.msra.mxu0 0.0
    %4788 = vmatprep.subr.mxu0 0.0
    %4789 = vmatpush2.msra.mxu0 0.0
    %4790 = vmatprep.subr.mxu0 0.0
    %4791 = vmatpush2.msra.mxu0 0.0
    %4792 = vmatprep.subr.mxu0 0.0
    %4793 = vmatpush2.msra.mxu0 0.0
    %4794 = vmatprep.subr.mxu0 0.0
    %4795 = vmatpush2.msra.mxu0 0.0
    %4796 = vmatprep.subr.mxu0 0.0
    %4797 = vmatpush2.msra.mxu0 0.0
    %4798 = vmatprep.subr.mxu0 0.0
    %4799 = vmatpush2.msra.mxu0 0.0
    %4800 = vmatprep.subr.mxu0 0.0
    %4801 = vmatpush2.msra.mxu0 0.0
    %4802 = vmatprep.subr.mxu0 0.0
    %4803 = vmatpush2.msra.mxu0 0.0
    %4804 = vmatprep.subr.mxu0 0.0
    %4805 = vmatpush2.msra.mxu0 0.0
    %4806 = vmatprep.subr.mxu0 0.0
    %4807 = vmatpush2.msra.mxu0 0.0
    %4808 = vmatprep.mubr.f32.mxu0 0.0
    %4809 = vmatmul.mubr.f32.gmra.mxu0 %v4718
    %v4810 = vpop.f32.mrf.mxu0
    %v4811 = vadd.f32 0.0, %v4810
    %v4812 = vpop.f32.mrf.mxu0
    %v4813 = vadd.f32 0.0, %v4812
    %4814 = vdwg.mxu0
    %4815 = vmatprep.subr.mxu0 0.0
    %4816 = vmatpush1.msra.mxu0 0.0
    %4817 = vmatprep.subr.mxu0 0.0
    %4818 = vmatpush1.msra.mxu0 0.0
    %4819 = vmatprep.subr.mxu0 0.0
    %4820 = vmatpush1.msra.mxu0 0.0
    %4821 = vmatprep.subr.mxu0 0.0
    %4822 = vmatpush1.msra.mxu0 0.0
    %4823 = vmatprep.subr.mxu0 0.0
    %4824 = vmatpush1.msra.mxu0 0.0
    %4825 = vmatprep.subr.mxu0 0.0
    %4826 = vmatpush1.msra.mxu0 0.0
    %4827 = vmatprep.subr.mxu0 0.0
    %4828 = vmatpush1.msra.mxu0 0.0
    %4829 = vmatprep.subr.mxu0 0.0
    %4830 = vmatpush1.msra.mxu0 0.0
    %4831 = vmatprep.subr.mxu0 0.0
    %4832 = vmatpush1.msra.mxu0 0.0
    %4833 = vmatprep.subr.mxu0 0.0
    %4834 = vmatpush1.msra.mxu0 0.0
    %4835 = vmatprep.subr.mxu0 0.0
    %4836 = vmatpush1.msra.mxu0 0.0
    %4837 = vmatprep.subr.mxu0 0.0
    %4838 = vmatpush1.msra.mxu0 0.0
    %4839 = vmatprep.subr.mxu0 0.0
    %4840 = vmatpush1.msra.mxu0 0.0
    %4841 = vmatprep.subr.mxu0 0.0
    %4842 = vmatpush1.msra.mxu0 0.0
    %4843 = vmatprep.subr.mxu0 0.0
    %4844 = vmatpush1.msra.mxu0 0.0
    %4845 = vmatprep.subr.mxu0 %v4730
    %4846 = vmatpush1.msra.mxu0 %v4727
    %4847 = vmatprep.subr.mxu0 0.0
    %4848 = vmatpush2.msra.mxu0 0.0
    %4849 = vmatprep.subr.mxu0 0.0
    %4850 = vmatpush2.msra.mxu0 0.0
    %4851 = vmatprep.subr.mxu0 0.0
    %4852 = vmatpush2.msra.mxu0 0.0
    %4853 = vmatprep.subr.mxu0 0.0
    %4854 = vmatpush2.msra.mxu0 0.0
    %4855 = vmatprep.subr.mxu0 0.0
    %4856 = vmatpush2.msra.mxu0 0.0
    %4857 = vmatprep.subr.mxu0 0.0
    %4858 = vmatpush2.msra.mxu0 0.0
    %4859 = vmatprep.subr.mxu0 0.0
    %4860 = vmatpush2.msra.mxu0 0.0
    %4861 = vmatprep.subr.mxu0 0.0
    %4862 = vmatpush2.msra.mxu0 0.0
    %4863 = vmatprep.subr.mxu0 0.0
    %4864 = vmatpush2.msra.mxu0 0.0
    %4865 = vmatprep.subr.mxu0 0.0
    %4866 = vmatpush2.msra.mxu0 0.0
    %4867 = vmatprep.subr.mxu0 0.0
    %4868 = vmatpush2.msra.mxu0 0.0
    %4869 = vmatprep.subr.mxu0 0.0
    %4870 = vmatpush2.msra.mxu0 0.0
    %4871 = vmatprep.subr.mxu0 0.0
    %4872 = vmatpush2.msra.mxu0 0.0
    %4873 = vmatprep.subr.mxu0 0.0
    %4874 = vmatpush2.msra.mxu0 0.0
    %4875 = vmatprep.subr.mxu0 0.0
    %4876 = vmatpush2.msra.mxu0 0.0
    %4877 = vmatprep.subr.mxu0 0.0
    %4878 = vmatpush2.msra.mxu0 0.0
    %4879 = vmatprep.mubr.f32.mxu0 0.0
    %4880 = vmatmul.mubr.f32.gmra.mxu0 %v4718
    %v4881 = vpop.f32.mrf.mxu0
    %v4882 = vadd.f32 0.0, %v4881
    %v4883 = vpop.f32.mrf.mxu0
    %v4884 = vadd.f32 0.0, %v4883
    %4885 = vdwg.mxu0
    %4886 = vmatprep.subr.mxu0 0.0
    %4887 = vmatpush1.msra.mxu0 0.0
    %4888 = vmatprep.subr.mxu0 0.0
    %4889 = vmatpush1.msra.mxu0 0.0
    %4890 = vmatprep.subr.mxu0 0.0
    %4891 = vmatpush1.msra.mxu0 0.0
    %4892 = vmatprep.subr.mxu0 0.0
    %4893 = vmatpush1.msra.mxu0 0.0
    %4894 = vmatprep.subr.mxu0 0.0
    %4895 = vmatpush1.msra.mxu0 0.0
    %4896 = vmatprep.subr.mxu0 0.0
    %4897 = vmatpush1.msra.mxu0 0.0
    %4898 = vmatprep.subr.mxu0 0.0
    %4899 = vmatpush1.msra.mxu0 0.0
    %4900 = vmatprep.subr.mxu0 0.0
    %4901 = vmatpush1.msra.mxu0 0.0
    %4902 = vmatprep.subr.mxu0 0.0
    %4903 = vmatpush1.msra.mxu0 0.0
    %4904 = vmatprep.subr.mxu0 0.0
    %4905 = vmatpush1.msra.mxu0 0.0
    %4906 = vmatprep.subr.mxu0 0.0
    %4907 = vmatpush1.msra.mxu0 0.0
    %4908 = vmatprep.subr.mxu0 0.0
    %4909 = vmatpush1.msra.mxu0 0.0
    %4910 = vmatprep.subr.mxu0 0.0
    %4911 = vmatpush1.msra.mxu0 0.0
    %4912 = vmatprep.subr.mxu0 0.0
    %4913 = vmatpush1.msra.mxu0 0.0
    %4914 = vmatprep.subr.mxu0 0.0
    %4915 = vmatpush1.msra.mxu0 0.0
    %4916 = vmatprep.subr.mxu0 %v4736
    %4917 = vmatpush1.msra.mxu0 %v4733
    %4918 = vmatprep.subr.mxu0 0.0
    %4919 = vmatpush2.msra.mxu0 0.0
    %4920 = vmatprep.subr.mxu0 0.0
    %4921 = vmatpush2.msra.mxu0 0.0
    %4922 = vmatprep.subr.mxu0 0.0
    %4923 = vmatpush2.msra.mxu0 0.0
    %4924 = vmatprep.subr.mxu0 0.0
    %4925 = vmatpush2.msra.mxu0 0.0
    %4926 = vmatprep.subr.mxu0 0.0
    %4927 = vmatpush2.msra.mxu0 0.0
    %4928 = vmatprep.subr.mxu0 0.0
    %4929 = vmatpush2.msra.mxu0 0.0
    %4930 = vmatprep.subr.mxu0 0.0
    %4931 = vmatpush2.msra.mxu0 0.0
    %4932 = vmatprep.subr.mxu0 0.0
    %4933 = vmatpush2.msra.mxu0 0.0
    %4934 = vmatprep.subr.mxu0 0.0
    %4935 = vmatpush2.msra.mxu0 0.0
    %4936 = vmatprep.subr.mxu0 0.0
    %4937 = vmatpush2.msra.mxu0 0.0
    %4938 = vmatprep.subr.mxu0 0.0
    %4939 = vmatpush2.msra.mxu0 0.0
    %4940 = vmatprep.subr.mxu0 0.0
    %4941 = vmatpush2.msra.mxu0 0.0
    %4942 = vmatprep.subr.mxu0 0.0
    %4943 = vmatpush2.msra.mxu0 0.0
    %4944 = vmatprep.subr.mxu0 0.0
    %4945 = vmatpush2.msra.mxu0 0.0
    %4946 = vmatprep.subr.mxu0 0.0
    %4947 = vmatpush2.msra.mxu0 0.0
    %4948 = vmatprep.subr.mxu0 0.0
    %4949 = vmatpush2.msra.mxu0 0.0
    %4950 = vmatprep.mubr.f32.mxu0 0.0
    %4951 = vmatmul.mubr.f32.gmra.mxu0 %v4718
    %v4952 = vpop.f32.mrf.mxu0
    %v4953 = vadd.f32 0.0, %v4952
    %v4954 = vpop.f32.mrf.mxu0
    %v4955 = vadd.f32 0.0, %v4954
    %4956 = vdwg.mxu0
    %4957 = vmatprep.subr.mxu0 0.0
    %4958 = vmatpush1.msra.mxu0 0.0
    %4959 = vmatprep.subr.mxu0 0.0
    %4960 = vmatpush1.msra.mxu0 0.0
    %4961 = vmatprep.subr.mxu0 0.0
    %4962 = vmatpush1.msra.mxu0 0.0
    %4963 = vmatprep.subr.mxu0 0.0
    %4964 = vmatpush1.msra.mxu0 0.0
    %4965 = vmatprep.subr.mxu0 0.0
    %4966 = vmatpush1.msra.mxu0 0.0
    %4967 = vmatprep.subr.mxu0 0.0
    %4968 = vmatpush1.msra.mxu0 0.0
    %4969 = vmatprep.subr.mxu0 0.0
    %4970 = vmatpush1.msra.mxu0 0.0
    %4971 = vmatprep.subr.mxu0 0.0
    %4972 = vmatpush1.msra.mxu0 0.0
    %4973 = vmatprep.subr.mxu0 0.0
    %4974 = vmatpush1.msra.mxu0 0.0
    %4975 = vmatprep.subr.mxu0 0.0
    %4976 = vmatpush1.msra.mxu0 0.0
    %4977 = vmatprep.subr.mxu0 0.0
    %4978 = vmatpush1.msra.mxu0 0.0
    %4979 = vmatprep.subr.mxu0 0.0
    %4980 = vmatpush1.msra.mxu0 0.0
    %4981 = vmatprep.subr.mxu0 0.0
    %4982 = vmatpush1.msra.mxu0 0.0
    %4983 = vmatprep.subr.mxu0 0.0
    %4984 = vmatpush1.msra.mxu0 0.0
    %4985 = vmatprep.subr.mxu0 0.0
    %4986 = vmatpush1.msra.mxu0 0.0
    %4987 = vmatprep.subr.mxu0 %v4742
    %4988 = vmatpush1.msra.mxu0 %v4739
    %4989 = vmatprep.subr.mxu0 0.0
    %4990 = vmatpush2.msra.mxu0 0.0
    %4991 = vmatprep.subr.mxu0 0.0
    %4992 = vmatpush2.msra.mxu0 0.0
    %4993 = vmatprep.subr.mxu0 0.0
    %4994 = vmatpush2.msra.mxu0 0.0
    %4995 = vmatprep.subr.mxu0 0.0
    %4996 = vmatpush2.msra.mxu0 0.0
    %4997 = vmatprep.subr.mxu0 0.0
    %4998 = vmatpush2.msra.mxu0 0.0
    %4999 = vmatprep.subr.mxu0 0.0
    %5000 = vmatpush2.msra.mxu0 0.0
    %5001 = vmatprep.subr.mxu0 0.0
    %5002 = vmatpush2.msra.mxu0 0.0
    %5003 = vmatprep.subr.mxu0 0.0
    %5004 = vmatpush2.msra.mxu0 0.0
    %5005 = vmatprep.subr.mxu0 0.0
    %5006 = vmatpush2.msra.mxu0 0.0
    %5007 = vmatprep.subr.mxu0 0.0
    %5008 = vmatpush2.msra.mxu0 0.0
    %5009 = vmatprep.subr.mxu0 0.0
    %5010 = vmatpush2.msra.mxu0 0.0
    %5011 = vmatprep.subr.mxu0 0.0
    %5012 = vmatpush2.msra.mxu0 0.0
    %5013 = vmatprep.subr.mxu0 0.0
    %5014 = vmatpush2.msra.mxu0 0.0
    %5015 = vmatprep.subr.mxu0 0.0
    %5016 = vmatpush2.msra.mxu0 0.0
    %5017 = vmatprep.subr.mxu0 0.0
    %5018 = vmatpush2.msra.mxu0 0.0
    %5019 = vmatprep.subr.mxu0 0.0
    %5020 = vmatpush2.msra.mxu0 0.0
    %5021 = vmatprep.mubr.f32.mxu0 0.0
    %5022 = vmatmul.mubr.f32.gmra.mxu0 %v4718
    %v5023 = vpop.f32.mrf.mxu0
    %v5024 = vadd.f32 0.0, %v5023
    %v5025 = vpop.f32.mrf.mxu0
    %v5026 = vadd.f32 0.0, %v5025
    %5027 = vdwg.mxu0
    %v5028 = vadd.f32 %v4497, %v4811
    %v5029 = vadd.f32 %v4499, %v4813
    %v5030 = vadd.f32 %v4568, %v4882
    %v5031 = vadd.f32 %v4570, %v4884
    %v5032 = vadd.f32 %v4639, %v4953
    %v5033 = vadd.f32 %v4641, %v4955
    %v5034 = vadd.f32 %v4710, %v5024
    %v5035 = vadd.f32 %v4712, %v5026
    %v5036 = vmax.f32 %v4714, %v32
    %s5037 = scalar_lea.vmem %s3, 12
    %v5038 = vld [vmem:[%s5037] sm:$0xf]
    %v5040 = vsel %vm4091, %v5038, 0
    %v5043 = vsel %vm3294, %v4047, 0
    %v5046 = vsel %vm3294, %v4048, 0
    %v5049 = vsel %vm3294, %v4049, 0
    %v5052 = vsel %vm3294, %v4050, 0
    %v5055 = vsel %vm3294, %v4051, 0
    %v5058 = vsel %vm3294, %v4052, 0
    %v5061 = vsel %vm3294, %v4053, 0
    %v5064 = vsel %vm3294, %v4054, 0
    %5066 = vmatprep.subr.mxu0 0.0
    %5067 = vmatpush1.msra.mxu0 0.0
    %5068 = vmatprep.subr.mxu0 0.0
    %5069 = vmatpush1.msra.mxu0 0.0
    %5070 = vmatprep.subr.mxu0 0.0
    %5071 = vmatpush1.msra.mxu0 0.0
    %5072 = vmatprep.subr.mxu0 0.0
    %5073 = vmatpush1.msra.mxu0 0.0
    %5074 = vmatprep.subr.mxu0 0.0
    %5075 = vmatpush1.msra.mxu0 0.0
    %5076 = vmatprep.subr.mxu0 0.0
    %5077 = vmatpush1.msra.mxu0 0.0
    %5078 = vmatprep.subr.mxu0 0.0
    %5079 = vmatpush1.msra.mxu0 0.0
    %5080 = vmatprep.subr.mxu0 0.0
    %5081 = vmatpush1.msra.mxu0 0.0
    %5082 = vmatprep.subr.mxu0 0.0
    %5083 = vmatpush1.msra.mxu0 0.0
    %5084 = vmatprep.subr.mxu0 0.0
    %5085 = vmatpush1.msra.mxu0 0.0
    %5086 = vmatprep.subr.mxu0 0.0
    %5087 = vmatpush1.msra.mxu0 0.0
    %5088 = vmatprep.subr.mxu0 0.0
    %5089 = vmatpush1.msra.mxu0 0.0
    %5090 = vmatprep.subr.mxu0 0.0
    %5091 = vmatpush1.msra.mxu0 0.0
    %5092 = vmatprep.subr.mxu0 0.0
    %5093 = vmatpush1.msra.mxu0 0.0
    %5094 = vmatprep.subr.mxu0 0.0
    %5095 = vmatpush1.msra.mxu0 0.0
    %5096 = vmatprep.subr.mxu0 %v5046
    %5097 = vmatpush1.msra.mxu0 %v5043
    %5098 = vmatprep.subr.mxu0 0.0
    %5099 = vmatpush2.msra.mxu0 0.0
    %5100 = vmatprep.subr.mxu0 0.0
    %5101 = vmatpush2.msra.mxu0 0.0
    %5102 = vmatprep.subr.mxu0 0.0
    %5103 = vmatpush2.msra.mxu0 0.0
    %5104 = vmatprep.subr.mxu0 0.0
    %5105 = vmatpush2.msra.mxu0 0.0
    %5106 = vmatprep.subr.mxu0 0.0
    %5107 = vmatpush2.msra.mxu0 0.0
    %5108 = vmatprep.subr.mxu0 0.0
    %5109 = vmatpush2.msra.mxu0 0.0
    %5110 = vmatprep.subr.mxu0 0.0
    %5111 = vmatpush2.msra.mxu0 0.0
    %5112 = vmatprep.subr.mxu0 0.0
    %5113 = vmatpush2.msra.mxu0 0.0
    %5114 = vmatprep.subr.mxu0 0.0
    %5115 = vmatpush2.msra.mxu0 0.0
    %5116 = vmatprep.subr.mxu0 0.0
    %5117 = vmatpush2.msra.mxu0 0.0
    %5118 = vmatprep.subr.mxu0 0.0
    %5119 = vmatpush2.msra.mxu0 0.0
    %5120 = vmatprep.subr.mxu0 0.0
    %5121 = vmatpush2.msra.mxu0 0.0
    %5122 = vmatprep.subr.mxu0 0.0
    %5123 = vmatpush2.msra.mxu0 0.0
    %5124 = vmatprep.subr.mxu0 0.0
    %5125 = vmatpush2.msra.mxu0 0.0
    %5126 = vmatprep.subr.mxu0 0.0
    %5127 = vmatpush2.msra.mxu0 0.0
    %5128 = vmatprep.subr.mxu0 0.0
    %5129 = vmatpush2.msra.mxu0 0.0
    %5130 = vmatprep.mubr.f32.mxu0 0.0
    %5131 = vmatmul.mubr.f32.gmra.mxu0 %v5040
    %v5132 = vpop.f32.mrf.mxu0
    %v5133 = vadd.f32 0.0, %v5132
    %v5134 = vpop.f32.mrf.mxu0
    %v5135 = vadd.f32 0.0, %v5134
    %5136 = vdwg.mxu0
    %5137 = vmatprep.subr.mxu0 0.0
    %5138 = vmatpush1.msra.mxu0 0.0
    %5139 = vmatprep.subr.mxu0 0.0
    %5140 = vmatpush1.msra.mxu0 0.0
    %5141 = vmatprep.subr.mxu0 0.0
    %5142 = vmatpush1.msra.mxu0 0.0
    %5143 = vmatprep.subr.mxu0 0.0
    %5144 = vmatpush1.msra.mxu0 0.0
    %5145 = vmatprep.subr.mxu0 0.0
    %5146 = vmatpush1.msra.mxu0 0.0
    %5147 = vmatprep.subr.mxu0 0.0
    %5148 = vmatpush1.msra.mxu0 0.0
    %5149 = vmatprep.subr.mxu0 0.0
    %5150 = vmatpush1.msra.mxu0 0.0
    %5151 = vmatprep.subr.mxu0 0.0
    %5152 = vmatpush1.msra.mxu0 0.0
    %5153 = vmatprep.subr.mxu0 0.0
    %5154 = vmatpush1.msra.mxu0 0.0
    %5155 = vmatprep.subr.mxu0 0.0
    %5156 = vmatpush1.msra.mxu0 0.0
    %5157 = vmatprep.subr.mxu0 0.0
    %5158 = vmatpush1.msra.mxu0 0.0
    %5159 = vmatprep.subr.mxu0 0.0
    %5160 = vmatpush1.msra.mxu0 0.0
    %5161 = vmatprep.subr.mxu0 0.0
    %5162 = vmatpush1.msra.mxu0 0.0
    %5163 = vmatprep.subr.mxu0 0.0
    %5164 = vmatpush1.msra.mxu0 0.0
    %5165 = vmatprep.subr.mxu0 0.0
    %5166 = vmatpush1.msra.mxu0 0.0
    %5167 = vmatprep.subr.mxu0 %v5052
    %5168 = vmatpush1.msra.mxu0 %v5049
    %5169 = vmatprep.subr.mxu0 0.0
    %5170 = vmatpush2.msra.mxu0 0.0
    %5171 = vmatprep.subr.mxu0 0.0
    %5172 = vmatpush2.msra.mxu0 0.0
    %5173 = vmatprep.subr.mxu0 0.0
    %5174 = vmatpush2.msra.mxu0 0.0
    %5175 = vmatprep.subr.mxu0 0.0
    %5176 = vmatpush2.msra.mxu0 0.0
    %5177 = vmatprep.subr.mxu0 0.0
    %5178 = vmatpush2.msra.mxu0 0.0
    %5179 = vmatprep.subr.mxu0 0.0
    %5180 = vmatpush2.msra.mxu0 0.0
    %5181 = vmatprep.subr.mxu0 0.0
    %5182 = vmatpush2.msra.mxu0 0.0
    %5183 = vmatprep.subr.mxu0 0.0
    %5184 = vmatpush2.msra.mxu0 0.0
    %5185 = vmatprep.subr.mxu0 0.0
    %5186 = vmatpush2.msra.mxu0 0.0
    %5187 = vmatprep.subr.mxu0 0.0
    %5188 = vmatpush2.msra.mxu0 0.0
    %5189 = vmatprep.subr.mxu0 0.0
    %5190 = vmatpush2.msra.mxu0 0.0
    %5191 = vmatprep.subr.mxu0 0.0
    %5192 = vmatpush2.msra.mxu0 0.0
    %5193 = vmatprep.subr.mxu0 0.0
    %5194 = vmatpush2.msra.mxu0 0.0
    %5195 = vmatprep.subr.mxu0 0.0
    %5196 = vmatpush2.msra.mxu0 0.0
    %5197 = vmatprep.subr.mxu0 0.0
    %5198 = vmatpush2.msra.mxu0 0.0
    %5199 = vmatprep.subr.mxu0 0.0
    %5200 = vmatpush2.msra.mxu0 0.0
    %5201 = vmatprep.mubr.f32.mxu0 0.0
    %5202 = vmatmul.mubr.f32.gmra.mxu0 %v5040
    %v5203 = vpop.f32.mrf.mxu0
    %v5204 = vadd.f32 0.0, %v5203
    %v5205 = vpop.f32.mrf.mxu0
    %v5206 = vadd.f32 0.0, %v5205
    %5207 = vdwg.mxu0
    %5208 = vmatprep.subr.mxu0 0.0
    %5209 = vmatpush1.msra.mxu0 0.0
    %5210 = vmatprep.subr.mxu0 0.0
    %5211 = vmatpush1.msra.mxu0 0.0
    %5212 = vmatprep.subr.mxu0 0.0
    %5213 = vmatpush1.msra.mxu0 0.0
    %5214 = vmatprep.subr.mxu0 0.0
    %5215 = vmatpush1.msra.mxu0 0.0
    %5216 = vmatprep.subr.mxu0 0.0
    %5217 = vmatpush1.msra.mxu0 0.0
    %5218 = vmatprep.subr.mxu0 0.0
    %5219 = vmatpush1.msra.mxu0 0.0
    %5220 = vmatprep.subr.mxu0 0.0
    %5221 = vmatpush1.msra.mxu0 0.0
    %5222 = vmatprep.subr.mxu0 0.0
    %5223 = vmatpush1.msra.mxu0 0.0
    %5224 = vmatprep.subr.mxu0 0.0
    %5225 = vmatpush1.msra.mxu0 0.0
    %5226 = vmatprep.subr.mxu0 0.0
    %5227 = vmatpush1.msra.mxu0 0.0
    %5228 = vmatprep.subr.mxu0 0.0
    %5229 = vmatpush1.msra.mxu0 0.0
    %5230 = vmatprep.subr.mxu0 0.0
    %5231 = vmatpush1.msra.mxu0 0.0
    %5232 = vmatprep.subr.mxu0 0.0
    %5233 = vmatpush1.msra.mxu0 0.0
    %5234 = vmatprep.subr.mxu0 0.0
    %5235 = vmatpush1.msra.mxu0 0.0
    %5236 = vmatprep.subr.mxu0 0.0
    %5237 = vmatpush1.msra.mxu0 0.0
    %5238 = vmatprep.subr.mxu0 %v5058
    %5239 = vmatpush1.msra.mxu0 %v5055
    %5240 = vmatprep.subr.mxu0 0.0
    %5241 = vmatpush2.msra.mxu0 0.0
    %5242 = vmatprep.subr.mxu0 0.0
    %5243 = vmatpush2.msra.mxu0 0.0
    %5244 = vmatprep.subr.mxu0 0.0
    %5245 = vmatpush2.msra.mxu0 0.0
    %5246 = vmatprep.subr.mxu0 0.0
    %5247 = vmatpush2.msra.mxu0 0.0
    %5248 = vmatprep.subr.mxu0 0.0
    %5249 = vmatpush2.msra.mxu0 0.0
    %5250 = vmatprep.subr.mxu0 0.0
    %5251 = vmatpush2.msra.mxu0 0.0
    %5252 = vmatprep.subr.mxu0 0.0
    %5253 = vmatpush2.msra.mxu0 0.0
    %5254 = vmatprep.subr.mxu0 0.0
    %5255 = vmatpush2.msra.mxu0 0.0
    %5256 = vmatprep.subr.mxu0 0.0
    %5257 = vmatpush2.msra.mxu0 0.0
    %5258 = vmatprep.subr.mxu0 0.0
    %5259 = vmatpush2.msra.mxu0 0.0
    %5260 = vmatprep.subr.mxu0 0.0
    %5261 = vmatpush2.msra.mxu0 0.0
    %5262 = vmatprep.subr.mxu0 0.0
    %5263 = vmatpush2.msra.mxu0 0.0
    %5264 = vmatprep.subr.mxu0 0.0
    %5265 = vmatpush2.msra.mxu0 0.0
    %5266 = vmatprep.subr.mxu0 0.0
    %5267 = vmatpush2.msra.mxu0 0.0
    %5268 = vmatprep.subr.mxu0 0.0
    %5269 = vmatpush2.msra.mxu0 0.0
    %5270 = vmatprep.subr.mxu0 0.0
    %5271 = vmatpush2.msra.mxu0 0.0
    %5272 = vmatprep.mubr.f32.mxu0 0.0
    %5273 = vmatmul.mubr.f32.gmra.mxu0 %v5040
    %v5274 = vpop.f32.mrf.mxu0
    %v5275 = vadd.f32 0.0, %v5274
    %v5276 = vpop.f32.mrf.mxu0
    %v5277 = vadd.f32 0.0, %v5276
    %5278 = vdwg.mxu0
    %5279 = vmatprep.subr.mxu0 0.0
    %5280 = vmatpush1.msra.mxu0 0.0
    %5281 = vmatprep.subr.mxu0 0.0
    %5282 = vmatpush1.msra.mxu0 0.0
    %5283 = vmatprep.subr.mxu0 0.0
    %5284 = vmatpush1.msra.mxu0 0.0
    %5285 = vmatprep.subr.mxu0 0.0
    %5286 = vmatpush1.msra.mxu0 0.0
    %5287 = vmatprep.subr.mxu0 0.0
    %5288 = vmatpush1.msra.mxu0 0.0
    %5289 = vmatprep.subr.mxu0 0.0
    %5290 = vmatpush1.msra.mxu0 0.0
    %5291 = vmatprep.subr.mxu0 0.0
    %5292 = vmatpush1.msra.mxu0 0.0
    %5293 = vmatprep.subr.mxu0 0.0
    %5294 = vmatpush1.msra.mxu0 0.0
    %5295 = vmatprep.subr.mxu0 0.0
    %5296 = vmatpush1.msra.mxu0 0.0
    %5297 = vmatprep.subr.mxu0 0.0
    %5298 = vmatpush1.msra.mxu0 0.0
    %5299 = vmatprep.subr.mxu0 0.0
    %5300 = vmatpush1.msra.mxu0 0.0
    %5301 = vmatprep.subr.mxu0 0.0
    %5302 = vmatpush1.msra.mxu0 0.0
    %5303 = vmatprep.subr.mxu0 0.0
    %5304 = vmatpush1.msra.mxu0 0.0
    %5305 = vmatprep.subr.mxu0 0.0
    %5306 = vmatpush1.msra.mxu0 0.0
    %5307 = vmatprep.subr.mxu0 0.0
    %5308 = vmatpush1.msra.mxu0 0.0
    %5309 = vmatprep.subr.mxu0 %v5064
    %5310 = vmatpush1.msra.mxu0 %v5061
    %5311 = vmatprep.subr.mxu0 0.0
    %5312 = vmatpush2.msra.mxu0 0.0
    %5313 = vmatprep.subr.mxu0 0.0
    %5314 = vmatpush2.msra.mxu0 0.0
    %5315 = vmatprep.subr.mxu0 0.0
    %5316 = vmatpush2.msra.mxu0 0.0
    %5317 = vmatprep.subr.mxu0 0.0
    %5318 = vmatpush2.msra.mxu0 0.0
    %5319 = vmatprep.subr.mxu0 0.0
    %5320 = vmatpush2.msra.mxu0 0.0
    %5321 = vmatprep.subr.mxu0 0.0
    %5322 = vmatpush2.msra.mxu0 0.0
    %5323 = vmatprep.subr.mxu0 0.0
    %5324 = vmatpush2.msra.mxu0 0.0
    %5325 = vmatprep.subr.mxu0 0.0
    %5326 = vmatpush2.msra.mxu0 0.0
    %5327 = vmatprep.subr.mxu0 0.0
    %5328 = vmatpush2.msra.mxu0 0.0
    %5329 = vmatprep.subr.mxu0 0.0
    %5330 = vmatpush2.msra.mxu0 0.0
    %5331 = vmatprep.subr.mxu0 0.0
    %5332 = vmatpush2.msra.mxu0 0.0
    %5333 = vmatprep.subr.mxu0 0.0
    %5334 = vmatpush2.msra.mxu0 0.0
    %5335 = vmatprep.subr.mxu0 0.0
    %5336 = vmatpush2.msra.mxu0 0.0
    %5337 = vmatprep.subr.mxu0 0.0
    %5338 = vmatpush2.msra.mxu0 0.0
    %5339 = vmatprep.subr.mxu0 0.0
    %5340 = vmatpush2.msra.mxu0 0.0
    %5341 = vmatprep.subr.mxu0 0.0
    %5342 = vmatpush2.msra.mxu0 0.0
    %5343 = vmatprep.mubr.f32.mxu0 0.0
    %5344 = vmatmul.mubr.f32.gmra.mxu0 %v5040
    %v5345 = vpop.f32.mrf.mxu0
    %v5346 = vadd.f32 0.0, %v5345
    %v5347 = vpop.f32.mrf.mxu0
    %v5348 = vadd.f32 0.0, %v5347
    %5349 = vdwg.mxu0
    %v5350 = vadd.f32 %v5028, %v5133
    %v5351 = vadd.f32 %v5029, %v5135
    %v5352 = vadd.f32 %v5030, %v5204
    %v5353 = vadd.f32 %v5031, %v5206
    %v5354 = vadd.f32 %v5032, %v5275
    %v5355 = vadd.f32 %v5033, %v5277
    %v5356 = vadd.f32 %v5034, %v5346
    %v5357 = vadd.f32 %v5035, %v5348
    %v5358 = vmax.f32 %v5036, %v33
    %s5359 = scalar_lea.vmem %s3, 16
    %v5360 = vld [vmem:[%s5359] sm:$0xf]
    %v5362 = vsel %vm4091, %v5360, 0
    %v5365 = vsel %vm3294, %v4055, 0
    %v5368 = vsel %vm3294, %v4056, 0
    %v5371 = vsel %vm3294, %v4057, 0
    %v5374 = vsel %vm3294, %v4058, 0
    %v5377 = vsel %vm3294, %v4059, 0
    %v5380 = vsel %vm3294, %v4060, 0
    %v5383 = vsel %vm3294, %v4061, 0
    %v5386 = vsel %vm3294, %v4062, 0
    %5388 = vmatprep.subr.mxu0 0.0
    %5389 = vmatpush1.msra.mxu0 0.0
    %5390 = vmatprep.subr.mxu0 0.0
    %5391 = vmatpush1.msra.mxu0 0.0
    %5392 = vmatprep.subr.mxu0 0.0
    %5393 = vmatpush1.msra.mxu0 0.0
    %5394 = vmatprep.subr.mxu0 0.0
    %5395 = vmatpush1.msra.mxu0 0.0
    %5396 = vmatprep.subr.mxu0 0.0
    %5397 = vmatpush1.msra.mxu0 0.0
    %5398 = vmatprep.subr.mxu0 0.0
    %5399 = vmatpush1.msra.mxu0 0.0
    %5400 = vmatprep.subr.mxu0 0.0
    %5401 = vmatpush1.msra.mxu0 0.0
    %5402 = vmatprep.subr.mxu0 0.0
    %5403 = vmatpush1.msra.mxu0 0.0
    %5404 = vmatprep.subr.mxu0 0.0
    %5405 = vmatpush1.msra.mxu0 0.0
    %5406 = vmatprep.subr.mxu0 0.0
    %5407 = vmatpush1.msra.mxu0 0.0
    %5408 = vmatprep.subr.mxu0 0.0
    %5409 = vmatpush1.msra.mxu0 0.0
    %5410 = vmatprep.subr.mxu0 0.0
    %5411 = vmatpush1.msra.mxu0 0.0
    %5412 = vmatprep.subr.mxu0 0.0
    %5413 = vmatpush1.msra.mxu0 0.0
    %5414 = vmatprep.subr.mxu0 0.0
    %5415 = vmatpush1.msra.mxu0 0.0
    %5416 = vmatprep.subr.mxu0 0.0
    %5417 = vmatpush1.msra.mxu0 0.0
    %5418 = vmatprep.subr.mxu0 %v5368
    %5419 = vmatpush1.msra.mxu0 %v5365
    %5420 = vmatprep.subr.mxu0 0.0
    %5421 = vmatpush2.msra.mxu0 0.0
    %5422 = vmatprep.subr.mxu0 0.0
    %5423 = vmatpush2.msra.mxu0 0.0
    %5424 = vmatprep.subr.mxu0 0.0
    %5425 = vmatpush2.msra.mxu0 0.0
    %5426 = vmatprep.subr.mxu0 0.0
    %5427 = vmatpush2.msra.mxu0 0.0
    %5428 = vmatprep.subr.mxu0 0.0
    %5429 = vmatpush2.msra.mxu0 0.0
    %5430 = vmatprep.subr.mxu0 0.0
    %5431 = vmatpush2.msra.mxu0 0.0
    %5432 = vmatprep.subr.mxu0 0.0
    %5433 = vmatpush2.msra.mxu0 0.0
    %5434 = vmatprep.subr.mxu0 0.0
    %5435 = vmatpush2.msra.mxu0 0.0
    %5436 = vmatprep.subr.mxu0 0.0
    %5437 = vmatpush2.msra.mxu0 0.0
    %5438 = vmatprep.subr.mxu0 0.0
    %5439 = vmatpush2.msra.mxu0 0.0
    %5440 = vmatprep.subr.mxu0 0.0
    %5441 = vmatpush2.msra.mxu0 0.0
    %5442 = vmatprep.subr.mxu0 0.0
    %5443 = vmatpush2.msra.mxu0 0.0
    %5444 = vmatprep.subr.mxu0 0.0
    %5445 = vmatpush2.msra.mxu0 0.0
    %5446 = vmatprep.subr.mxu0 0.0
    %5447 = vmatpush2.msra.mxu0 0.0
    %5448 = vmatprep.subr.mxu0 0.0
    %5449 = vmatpush2.msra.mxu0 0.0
    %5450 = vmatprep.subr.mxu0 0.0
    %5451 = vmatpush2.msra.mxu0 0.0
    %5452 = vmatprep.mubr.f32.mxu0 0.0
    %5453 = vmatmul.mubr.f32.gmra.mxu0 %v5362
    %v5454 = vpop.f32.mrf.mxu0
    %v5455 = vadd.f32 0.0, %v5454
    %v5456 = vpop.f32.mrf.mxu0
    %v5457 = vadd.f32 0.0, %v5456
    %5458 = vdwg.mxu0
    %5459 = vmatprep.subr.mxu0 0.0
    %5460 = vmatpush1.msra.mxu0 0.0
    %5461 = vmatprep.subr.mxu0 0.0
    %5462 = vmatpush1.msra.mxu0 0.0
    %5463 = vmatprep.subr.mxu0 0.0
    %5464 = vmatpush1.msra.mxu0 0.0
    %5465 = vmatprep.subr.mxu0 0.0
    %5466 = vmatpush1.msra.mxu0 0.0
    %5467 = vmatprep.subr.mxu0 0.0
    %5468 = vmatpush1.msra.mxu0 0.0
    %5469 = vmatprep.subr.mxu0 0.0
    %5470 = vmatpush1.msra.mxu0 0.0
    %5471 = vmatprep.subr.mxu0 0.0
    %5472 = vmatpush1.msra.mxu0 0.0
    %5473 = vmatprep.subr.mxu0 0.0
    %5474 = vmatpush1.msra.mxu0 0.0
    %5475 = vmatprep.subr.mxu0 0.0
    %5476 = vmatpush1.msra.mxu0 0.0
    %5477 = vmatprep.subr.mxu0 0.0
    %5478 = vmatpush1.msra.mxu0 0.0
    %5479 = vmatprep.subr.mxu0 0.0
    %5480 = vmatpush1.msra.mxu0 0.0
    %5481 = vmatprep.subr.mxu0 0.0
    %5482 = vmatpush1.msra.mxu0 0.0
    %5483 = vmatprep.subr.mxu0 0.0
    %5484 = vmatpush1.msra.mxu0 0.0
    %5485 = vmatprep.subr.mxu0 0.0
    %5486 = vmatpush1.msra.mxu0 0.0
    %5487 = vmatprep.subr.mxu0 0.0
    %5488 = vmatpush1.msra.mxu0 0.0
    %5489 = vmatprep.subr.mxu0 %v5374
    %5490 = vmatpush1.msra.mxu0 %v5371
    %5491 = vmatprep.subr.mxu0 0.0
    %5492 = vmatpush2.msra.mxu0 0.0
    %5493 = vmatprep.subr.mxu0 0.0
    %5494 = vmatpush2.msra.mxu0 0.0
    %5495 = vmatprep.subr.mxu0 0.0
    %5496 = vmatpush2.msra.mxu0 0.0
    %5497 = vmatprep.subr.mxu0 0.0
    %5498 = vmatpush2.msra.mxu0 0.0
    %5499 = vmatprep.subr.mxu0 0.0
    %5500 = vmatpush2.msra.mxu0 0.0
    %5501 = vmatprep.subr.mxu0 0.0
    %5502 = vmatpush2.msra.mxu0 0.0
    %5503 = vmatprep.subr.mxu0 0.0
    %5504 = vmatpush2.msra.mxu0 0.0
    %5505 = vmatprep.subr.mxu0 0.0
    %5506 = vmatpush2.msra.mxu0 0.0
    %5507 = vmatprep.subr.mxu0 0.0
    %5508 = vmatpush2.msra.mxu0 0.0
    %5509 = vmatprep.subr.mxu0 0.0
    %5510 = vmatpush2.msra.mxu0 0.0
    %5511 = vmatprep.subr.mxu0 0.0
    %5512 = vmatpush2.msra.mxu0 0.0
    %5513 = vmatprep.subr.mxu0 0.0
    %5514 = vmatpush2.msra.mxu0 0.0
    %5515 = vmatprep.subr.mxu0 0.0
    %5516 = vmatpush2.msra.mxu0 0.0
    %5517 = vmatprep.subr.mxu0 0.0
    %5518 = vmatpush2.msra.mxu0 0.0
    %5519 = vmatprep.subr.mxu0 0.0
    %5520 = vmatpush2.msra.mxu0 0.0
    %5521 = vmatprep.subr.mxu0 0.0
    %5522 = vmatpush2.msra.mxu0 0.0
    %5523 = vmatprep.mubr.f32.mxu0 0.0
    %5524 = vmatmul.mubr.f32.gmra.mxu0 %v5362
    %v5525 = vpop.f32.mrf.mxu0
    %v5526 = vadd.f32 0.0, %v5525
    %v5527 = vpop.f32.mrf.mxu0
    %v5528 = vadd.f32 0.0, %v5527
    %5529 = vdwg.mxu0
    %5530 = vmatprep.subr.mxu0 0.0
    %5531 = vmatpush1.msra.mxu0 0.0
    %5532 = vmatprep.subr.mxu0 0.0
    %5533 = vmatpush1.msra.mxu0 0.0
    %5534 = vmatprep.subr.mxu0 0.0
    %5535 = vmatpush1.msra.mxu0 0.0
    %5536 = vmatprep.subr.mxu0 0.0
    %5537 = vmatpush1.msra.mxu0 0.0
    %5538 = vmatprep.subr.mxu0 0.0
    %5539 = vmatpush1.msra.mxu0 0.0
    %5540 = vmatprep.subr.mxu0 0.0
    %5541 = vmatpush1.msra.mxu0 0.0
    %5542 = vmatprep.subr.mxu0 0.0
    %5543 = vmatpush1.msra.mxu0 0.0
    %5544 = vmatprep.subr.mxu0 0.0
    %5545 = vmatpush1.msra.mxu0 0.0
    %5546 = vmatprep.subr.mxu0 0.0
    %5547 = vmatpush1.msra.mxu0 0.0
    %5548 = vmatprep.subr.mxu0 0.0
    %5549 = vmatpush1.msra.mxu0 0.0
    %5550 = vmatprep.subr.mxu0 0.0
    %5551 = vmatpush1.msra.mxu0 0.0
    %5552 = vmatprep.subr.mxu0 0.0
    %5553 = vmatpush1.msra.mxu0 0.0
    %5554 = vmatprep.subr.mxu0 0.0
    %5555 = vmatpush1.msra.mxu0 0.0
    %5556 = vmatprep.subr.mxu0 0.0
    %5557 = vmatpush1.msra.mxu0 0.0
    %5558 = vmatprep.subr.mxu0 0.0
    %5559 = vmatpush1.msra.mxu0 0.0
    %5560 = vmatprep.subr.mxu0 %v5380
    %5561 = vmatpush1.msra.mxu0 %v5377
    %5562 = vmatprep.subr.mxu0 0.0
    %5563 = vmatpush2.msra.mxu0 0.0
    %5564 = vmatprep.subr.mxu0 0.0
    %5565 = vmatpush2.msra.mxu0 0.0
    %5566 = vmatprep.subr.mxu0 0.0
    %5567 = vmatpush2.msra.mxu0 0.0
    %5568 = vmatprep.subr.mxu0 0.0
    %5569 = vmatpush2.msra.mxu0 0.0
    %5570 = vmatprep.subr.mxu0 0.0
    %5571 = vmatpush2.msra.mxu0 0.0
    %5572 = vmatprep.subr.mxu0 0.0
    %5573 = vmatpush2.msra.mxu0 0.0
    %5574 = vmatprep.subr.mxu0 0.0
    %5575 = vmatpush2.msra.mxu0 0.0
    %5576 = vmatprep.subr.mxu0 0.0
    %5577 = vmatpush2.msra.mxu0 0.0
    %5578 = vmatprep.subr.mxu0 0.0
    %5579 = vmatpush2.msra.mxu0 0.0
    %5580 = vmatprep.subr.mxu0 0.0
    %5581 = vmatpush2.msra.mxu0 0.0
    %5582 = vmatprep.subr.mxu0 0.0
    %5583 = vmatpush2.msra.mxu0 0.0
    %5584 = vmatprep.subr.mxu0 0.0
    %5585 = vmatpush2.msra.mxu0 0.0
    %5586 = vmatprep.subr.mxu0 0.0
    %5587 = vmatpush2.msra.mxu0 0.0
    %5588 = vmatprep.subr.mxu0 0.0
    %5589 = vmatpush2.msra.mxu0 0.0
    %5590 = vmatprep.subr.mxu0 0.0
    %5591 = vmatpush2.msra.mxu0 0.0
    %5592 = vmatprep.subr.mxu0 0.0
    %5593 = vmatpush2.msra.mxu0 0.0
    %5594 = vmatprep.mubr.f32.mxu0 0.0
    %5595 = vmatmul.mubr.f32.gmra.mxu0 %v5362
    %v5596 = vpop.f32.mrf.mxu0
    %v5597 = vadd.f32 0.0, %v5596
    %v5598 = vpop.f32.mrf.mxu0
    %v5599 = vadd.f32 0.0, %v5598
    %5600 = vdwg.mxu0
    %5601 = vmatprep.subr.mxu0 0.0
    %5602 = vmatpush1.msra.mxu0 0.0
    %5603 = vmatprep.subr.mxu0 0.0
    %5604 = vmatpush1.msra.mxu0 0.0
    %5605 = vmatprep.subr.mxu0 0.0
    %5606 = vmatpush1.msra.mxu0 0.0
    %5607 = vmatprep.subr.mxu0 0.0
    %5608 = vmatpush1.msra.mxu0 0.0
    %5609 = vmatprep.subr.mxu0 0.0
    %5610 = vmatpush1.msra.mxu0 0.0
    %5611 = vmatprep.subr.mxu0 0.0
    %5612 = vmatpush1.msra.mxu0 0.0
    %5613 = vmatprep.subr.mxu0 0.0
    %5614 = vmatpush1.msra.mxu0 0.0
    %5615 = vmatprep.subr.mxu0 0.0
    %5616 = vmatpush1.msra.mxu0 0.0
    %5617 = vmatprep.subr.mxu0 0.0
    %5618 = vmatpush1.msra.mxu0 0.0
    %5619 = vmatprep.subr.mxu0 0.0
    %5620 = vmatpush1.msra.mxu0 0.0
    %5621 = vmatprep.subr.mxu0 0.0
    %5622 = vmatpush1.msra.mxu0 0.0
    %5623 = vmatprep.subr.mxu0 0.0
    %5624 = vmatpush1.msra.mxu0 0.0
    %5625 = vmatprep.subr.mxu0 0.0
    %5626 = vmatpush1.msra.mxu0 0.0
    %5627 = vmatprep.subr.mxu0 0.0
    %5628 = vmatpush1.msra.mxu0 0.0
    %5629 = vmatprep.subr.mxu0 0.0
    %5630 = vmatpush1.msra.mxu0 0.0
    %5631 = vmatprep.subr.mxu0 %v5386
    %5632 = vmatpush1.msra.mxu0 %v5383
    %5633 = vmatprep.subr.mxu0 0.0
    %5634 = vmatpush2.msra.mxu0 0.0
    %5635 = vmatprep.subr.mxu0 0.0
    %5636 = vmatpush2.msra.mxu0 0.0
    %5637 = vmatprep.subr.mxu0 0.0
    %5638 = vmatpush2.msra.mxu0 0.0
    %5639 = vmatprep.subr.mxu0 0.0
    %5640 = vmatpush2.msra.mxu0 0.0
    %5641 = vmatprep.subr.mxu0 0.0
    %5642 = vmatpush2.msra.mxu0 0.0
    %5643 = vmatprep.subr.mxu0 0.0
    %5644 = vmatpush2.msra.mxu0 0.0
    %5645 = vmatprep.subr.mxu0 0.0
    %5646 = vmatpush2.msra.mxu0 0.0
    %5647 = vmatprep.subr.mxu0 0.0
    %5648 = vmatpush2.msra.mxu0 0.0
    %5649 = vmatprep.subr.mxu0 0.0
    %5650 = vmatpush2.msra.mxu0 0.0
    %5651 = vmatprep.subr.mxu0 0.0
    %5652 = vmatpush2.msra.mxu0 0.0
    %5653 = vmatprep.subr.mxu0 0.0
    %5654 = vmatpush2.msra.mxu0 0.0
    %5655 = vmatprep.subr.mxu0 0.0
    %5656 = vmatpush2.msra.mxu0 0.0
    %5657 = vmatprep.subr.mxu0 0.0
    %5658 = vmatpush2.msra.mxu0 0.0
    %5659 = vmatprep.subr.mxu0 0.0
    %5660 = vmatpush2.msra.mxu0 0.0
    %5661 = vmatprep.subr.mxu0 0.0
    %5662 = vmatpush2.msra.mxu0 0.0
    %5663 = vmatprep.subr.mxu0 0.0
    %5664 = vmatpush2.msra.mxu0 0.0
    %5665 = vmatprep.mubr.f32.mxu0 0.0
    %5666 = vmatmul.mubr.f32.gmra.mxu0 %v5362
    %v5667 = vpop.f32.mrf.mxu0
    %v5668 = vadd.f32 0.0, %v5667
    %v5669 = vpop.f32.mrf.mxu0
    %v5670 = vadd.f32 0.0, %v5669
    %5671 = vdwg.mxu0
    %v5672 = vadd.f32 %v5350, %v5455
    %v5673 = vadd.f32 %v5351, %v5457
    %v5674 = vadd.f32 %v5352, %v5526
    %v5675 = vadd.f32 %v5353, %v5528
    %v5676 = vadd.f32 %v5354, %v5597
    %v5677 = vadd.f32 %v5355, %v5599
    %v5678 = vadd.f32 %v5356, %v5668
    %v5679 = vadd.f32 %v5357, %v5670
    %v5680 = vmax.f32 %v5358, %v34
    %s5681 = scalar_lea.vmem %s3, 20
    %v5682 = vld [vmem:[%s5681] sm:$0xf]
    %v5684 = vsel %vm4091, %v5682, 0
    %v5687 = vsel %vm3294, %v4063, 0
    %v5690 = vsel %vm3294, %v4064, 0
    %v5693 = vsel %vm3294, %v4065, 0
    %v5696 = vsel %vm3294, %v4066, 0
    %v5699 = vsel %vm3294, %v4067, 0
    %v5702 = vsel %vm3294, %v4068, 0
    %v5705 = vsel %vm3294, %v4069, 0
    %v5708 = vsel %vm3294, %v4070, 0
    %5710 = vmatprep.subr.mxu0 0.0
    %5711 = vmatpush1.msra.mxu0 0.0
    %5712 = vmatprep.subr.mxu0 0.0
    %5713 = vmatpush1.msra.mxu0 0.0
    %5714 = vmatprep.subr.mxu0 0.0
    %5715 = vmatpush1.msra.mxu0 0.0
    %5716 = vmatprep.subr.mxu0 0.0
    %5717 = vmatpush1.msra.mxu0 0.0
    %5718 = vmatprep.subr.mxu0 0.0
    %5719 = vmatpush1.msra.mxu0 0.0
    %5720 = vmatprep.subr.mxu0 0.0
    %5721 = vmatpush1.msra.mxu0 0.0
    %5722 = vmatprep.subr.mxu0 0.0
    %5723 = vmatpush1.msra.mxu0 0.0
    %5724 = vmatprep.subr.mxu0 0.0
    %5725 = vmatpush1.msra.mxu0 0.0
    %5726 = vmatprep.subr.mxu0 0.0
    %5727 = vmatpush1.msra.mxu0 0.0
    %5728 = vmatprep.subr.mxu0 0.0
    %5729 = vmatpush1.msra.mxu0 0.0
    %5730 = vmatprep.subr.mxu0 0.0
    %5731 = vmatpush1.msra.mxu0 0.0
    %5732 = vmatprep.subr.mxu0 0.0
    %5733 = vmatpush1.msra.mxu0 0.0
    %5734 = vmatprep.subr.mxu0 0.0
    %5735 = vmatpush1.msra.mxu0 0.0
    %5736 = vmatprep.subr.mxu0 0.0
    %5737 = vmatpush1.msra.mxu0 0.0
    %5738 = vmatprep.subr.mxu0 0.0
    %5739 = vmatpush1.msra.mxu0 0.0
    %5740 = vmatprep.subr.mxu0 %v5690
    %5741 = vmatpush1.msra.mxu0 %v5687
    %5742 = vmatprep.subr.mxu0 0.0
    %5743 = vmatpush2.msra.mxu0 0.0
    %5744 = vmatprep.subr.mxu0 0.0
    %5745 = vmatpush2.msra.mxu0 0.0
    %5746 = vmatprep.subr.mxu0 0.0
    %5747 = vmatpush2.msra.mxu0 0.0
    %5748 = vmatprep.subr.mxu0 0.0
    %5749 = vmatpush2.msra.mxu0 0.0
    %5750 = vmatprep.subr.mxu0 0.0
    %5751 = vmatpush2.msra.mxu0 0.0
    %5752 = vmatprep.subr.mxu0 0.0
    %5753 = vmatpush2.msra.mxu0 0.0
    %5754 = vmatprep.subr.mxu0 0.0
    %5755 = vmatpush2.msra.mxu0 0.0
    %5756 = vmatprep.subr.mxu0 0.0
    %5757 = vmatpush2.msra.mxu0 0.0
    %5758 = vmatprep.subr.mxu0 0.0
    %5759 = vmatpush2.msra.mxu0 0.0
    %5760 = vmatprep.subr.mxu0 0.0
    %5761 = vmatpush2.msra.mxu0 0.0
    %5762 = vmatprep.subr.mxu0 0.0
    %5763 = vmatpush2.msra.mxu0 0.0
    %5764 = vmatprep.subr.mxu0 0.0
    %5765 = vmatpush2.msra.mxu0 0.0
    %5766 = vmatprep.subr.mxu0 0.0
    %5767 = vmatpush2.msra.mxu0 0.0
    %5768 = vmatprep.subr.mxu0 0.0
    %5769 = vmatpush2.msra.mxu0 0.0
    %5770 = vmatprep.subr.mxu0 0.0
    %5771 = vmatpush2.msra.mxu0 0.0
    %5772 = vmatprep.subr.mxu0 0.0
    %5773 = vmatpush2.msra.mxu0 0.0
    %5774 = vmatprep.mubr.f32.mxu0 0.0
    %5775 = vmatmul.mubr.f32.gmra.mxu0 %v5684
    %v5776 = vpop.f32.mrf.mxu0
    %v5777 = vadd.f32 0.0, %v5776
    %v5778 = vpop.f32.mrf.mxu0
    %v5779 = vadd.f32 0.0, %v5778
    %5780 = vdwg.mxu0
    %5781 = vmatprep.subr.mxu0 0.0
    %5782 = vmatpush1.msra.mxu0 0.0
    %5783 = vmatprep.subr.mxu0 0.0
    %5784 = vmatpush1.msra.mxu0 0.0
    %5785 = vmatprep.subr.mxu0 0.0
    %5786 = vmatpush1.msra.mxu0 0.0
    %5787 = vmatprep.subr.mxu0 0.0
    %5788 = vmatpush1.msra.mxu0 0.0
    %5789 = vmatprep.subr.mxu0 0.0
    %5790 = vmatpush1.msra.mxu0 0.0
    %5791 = vmatprep.subr.mxu0 0.0
    %5792 = vmatpush1.msra.mxu0 0.0
    %5793 = vmatprep.subr.mxu0 0.0
    %5794 = vmatpush1.msra.mxu0 0.0
    %5795 = vmatprep.subr.mxu0 0.0
    %5796 = vmatpush1.msra.mxu0 0.0
    %5797 = vmatprep.subr.mxu0 0.0
    %5798 = vmatpush1.msra.mxu0 0.0
    %5799 = vmatprep.subr.mxu0 0.0
    %5800 = vmatpush1.msra.mxu0 0.0
    %5801 = vmatprep.subr.mxu0 0.0
    %5802 = vmatpush1.msra.mxu0 0.0
    %5803 = vmatprep.subr.mxu0 0.0
    %5804 = vmatpush1.msra.mxu0 0.0
    %5805 = vmatprep.subr.mxu0 0.0
    %5806 = vmatpush1.msra.mxu0 0.0
    %5807 = vmatprep.subr.mxu0 0.0
    %5808 = vmatpush1.msra.mxu0 0.0
    %5809 = vmatprep.subr.mxu0 0.0
    %5810 = vmatpush1.msra.mxu0 0.0
    %5811 = vmatprep.subr.mxu0 %v5696
    %5812 = vmatpush1.msra.mxu0 %v5693
    %5813 = vmatprep.subr.mxu0 0.0
    %5814 = vmatpush2.msra.mxu0 0.0
    %5815 = vmatprep.subr.mxu0 0.0
    %5816 = vmatpush2.msra.mxu0 0.0
    %5817 = vmatprep.subr.mxu0 0.0
    %5818 = vmatpush2.msra.mxu0 0.0
    %5819 = vmatprep.subr.mxu0 0.0
    %5820 = vmatpush2.msra.mxu0 0.0
    %5821 = vmatprep.subr.mxu0 0.0
    %5822 = vmatpush2.msra.mxu0 0.0
    %5823 = vmatprep.subr.mxu0 0.0
    %5824 = vmatpush2.msra.mxu0 0.0
    %5825 = vmatprep.subr.mxu0 0.0
    %5826 = vmatpush2.msra.mxu0 0.0
    %5827 = vmatprep.subr.mxu0 0.0
    %5828 = vmatpush2.msra.mxu0 0.0
    %5829 = vmatprep.subr.mxu0 0.0
    %5830 = vmatpush2.msra.mxu0 0.0
    %5831 = vmatprep.subr.mxu0 0.0
    %5832 = vmatpush2.msra.mxu0 0.0
    %5833 = vmatprep.subr.mxu0 0.0
    %5834 = vmatpush2.msra.mxu0 0.0
    %5835 = vmatprep.subr.mxu0 0.0
    %5836 = vmatpush2.msra.mxu0 0.0
    %5837 = vmatprep.subr.mxu0 0.0
    %5838 = vmatpush2.msra.mxu0 0.0
    %5839 = vmatprep.subr.mxu0 0.0
    %5840 = vmatpush2.msra.mxu0 0.0
    %5841 = vmatprep.subr.mxu0 0.0
    %5842 = vmatpush2.msra.mxu0 0.0
    %5843 = vmatprep.subr.mxu0 0.0
    %5844 = vmatpush2.msra.mxu0 0.0
    %5845 = vmatprep.mubr.f32.mxu0 0.0
    %5846 = vmatmul.mubr.f32.gmra.mxu0 %v5684
    %v5847 = vpop.f32.mrf.mxu0
    %v5848 = vadd.f32 0.0, %v5847
    %v5849 = vpop.f32.mrf.mxu0
    %v5850 = vadd.f32 0.0, %v5849
    %5851 = vdwg.mxu0
    %5852 = vmatprep.subr.mxu0 0.0
    %5853 = vmatpush1.msra.mxu0 0.0
    %5854 = vmatprep.subr.mxu0 0.0
    %5855 = vmatpush1.msra.mxu0 0.0
    %5856 = vmatprep.subr.mxu0 0.0
    %5857 = vmatpush1.msra.mxu0 0.0
    %5858 = vmatprep.subr.mxu0 0.0
    %5859 = vmatpush1.msra.mxu0 0.0
    %5860 = vmatprep.subr.mxu0 0.0
    %5861 = vmatpush1.msra.mxu0 0.0
    %5862 = vmatprep.subr.mxu0 0.0
    %5863 = vmatpush1.msra.mxu0 0.0
    %5864 = vmatprep.subr.mxu0 0.0
    %5865 = vmatpush1.msra.mxu0 0.0
    %5866 = vmatprep.subr.mxu0 0.0
    %5867 = vmatpush1.msra.mxu0 0.0
    %5868 = vmatprep.subr.mxu0 0.0
    %5869 = vmatpush1.msra.mxu0 0.0
    %5870 = vmatprep.subr.mxu0 0.0
    %5871 = vmatpush1.msra.mxu0 0.0
    %5872 = vmatprep.subr.mxu0 0.0
    %5873 = vmatpush1.msra.mxu0 0.0
    %5874 = vmatprep.subr.mxu0 0.0
    %5875 = vmatpush1.msra.mxu0 0.0
    %5876 = vmatprep.subr.mxu0 0.0
    %5877 = vmatpush1.msra.mxu0 0.0
    %5878 = vmatprep.subr.mxu0 0.0
    %5879 = vmatpush1.msra.mxu0 0.0
    %5880 = vmatprep.subr.mxu0 0.0
    %5881 = vmatpush1.msra.mxu0 0.0
    %5882 = vmatprep.subr.mxu0 %v5702
    %5883 = vmatpush1.msra.mxu0 %v5699
    %5884 = vmatprep.subr.mxu0 0.0
    %5885 = vmatpush2.msra.mxu0 0.0
    %5886 = vmatprep.subr.mxu0 0.0
    %5887 = vmatpush2.msra.mxu0 0.0
    %5888 = vmatprep.subr.mxu0 0.0
    %5889 = vmatpush2.msra.mxu0 0.0
    %5890 = vmatprep.subr.mxu0 0.0
    %5891 = vmatpush2.msra.mxu0 0.0
    %5892 = vmatprep.subr.mxu0 0.0
    %5893 = vmatpush2.msra.mxu0 0.0
    %5894 = vmatprep.subr.mxu0 0.0
    %5895 = vmatpush2.msra.mxu0 0.0
    %5896 = vmatprep.subr.mxu0 0.0
    %5897 = vmatpush2.msra.mxu0 0.0
    %5898 = vmatprep.subr.mxu0 0.0
    %5899 = vmatpush2.msra.mxu0 0.0
    %5900 = vmatprep.subr.mxu0 0.0
    %5901 = vmatpush2.msra.mxu0 0.0
    %5902 = vmatprep.subr.mxu0 0.0
    %5903 = vmatpush2.msra.mxu0 0.0
    %5904 = vmatprep.subr.mxu0 0.0
    %5905 = vmatpush2.msra.mxu0 0.0
    %5906 = vmatprep.subr.mxu0 0.0
    %5907 = vmatpush2.msra.mxu0 0.0
    %5908 = vmatprep.subr.mxu0 0.0
    %5909 = vmatpush2.msra.mxu0 0.0
    %5910 = vmatprep.subr.mxu0 0.0
    %5911 = vmatpush2.msra.mxu0 0.0
    %5912 = vmatprep.subr.mxu0 0.0
    %5913 = vmatpush2.msra.mxu0 0.0
    %5914 = vmatprep.subr.mxu0 0.0
    %5915 = vmatpush2.msra.mxu0 0.0
    %5916 = vmatprep.mubr.f32.mxu0 0.0
    %5917 = vmatmul.mubr.f32.gmra.mxu0 %v5684
    %v5918 = vpop.f32.mrf.mxu0
    %v5919 = vadd.f32 0.0, %v5918
    %v5920 = vpop.f32.mrf.mxu0
    %v5921 = vadd.f32 0.0, %v5920
    %5922 = vdwg.mxu0
    %5923 = vmatprep.subr.mxu0 0.0
    %5924 = vmatpush1.msra.mxu0 0.0
    %5925 = vmatprep.subr.mxu0 0.0
    %5926 = vmatpush1.msra.mxu0 0.0
    %5927 = vmatprep.subr.mxu0 0.0
    %5928 = vmatpush1.msra.mxu0 0.0
    %5929 = vmatprep.subr.mxu0 0.0
    %5930 = vmatpush1.msra.mxu0 0.0
    %5931 = vmatprep.subr.mxu0 0.0
    %5932 = vmatpush1.msra.mxu0 0.0
    %5933 = vmatprep.subr.mxu0 0.0
    %5934 = vmatpush1.msra.mxu0 0.0
    %5935 = vmatprep.subr.mxu0 0.0
    %5936 = vmatpush1.msra.mxu0 0.0
    %5937 = vmatprep.subr.mxu0 0.0
    %5938 = vmatpush1.msra.mxu0 0.0
    %5939 = vmatprep.subr.mxu0 0.0
    %5940 = vmatpush1.msra.mxu0 0.0
    %5941 = vmatprep.subr.mxu0 0.0
    %5942 = vmatpush1.msra.mxu0 0.0
    %5943 = vmatprep.subr.mxu0 0.0
    %5944 = vmatpush1.msra.mxu0 0.0
    %5945 = vmatprep.subr.mxu0 0.0
    %5946 = vmatpush1.msra.mxu0 0.0
    %5947 = vmatprep.subr.mxu0 0.0
    %5948 = vmatpush1.msra.mxu0 0.0
    %5949 = vmatprep.subr.mxu0 0.0
    %5950 = vmatpush1.msra.mxu0 0.0
    %5951 = vmatprep.subr.mxu0 0.0
    %5952 = vmatpush1.msra.mxu0 0.0
    %5953 = vmatprep.subr.mxu0 %v5708
    %5954 = vmatpush1.msra.mxu0 %v5705
    %5955 = vmatprep.subr.mxu0 0.0
    %5956 = vmatpush2.msra.mxu0 0.0
    %5957 = vmatprep.subr.mxu0 0.0
    %5958 = vmatpush2.msra.mxu0 0.0
    %5959 = vmatprep.subr.mxu0 0.0
    %5960 = vmatpush2.msra.mxu0 0.0
    %5961 = vmatprep.subr.mxu0 0.0
    %5962 = vmatpush2.msra.mxu0 0.0
    %5963 = vmatprep.subr.mxu0 0.0
    %5964 = vmatpush2.msra.mxu0 0.0
    %5965 = vmatprep.subr.mxu0 0.0
    %5966 = vmatpush2.msra.mxu0 0.0
    %5967 = vmatprep.subr.mxu0 0.0
    %5968 = vmatpush2.msra.mxu0 0.0
    %5969 = vmatprep.subr.mxu0 0.0
    %5970 = vmatpush2.msra.mxu0 0.0
    %5971 = vmatprep.subr.mxu0 0.0
    %5972 = vmatpush2.msra.mxu0 0.0
    %5973 = vmatprep.subr.mxu0 0.0
    %5974 = vmatpush2.msra.mxu0 0.0
    %5975 = vmatprep.subr.mxu0 0.0
    %5976 = vmatpush2.msra.mxu0 0.0
    %5977 = vmatprep.subr.mxu0 0.0
    %5978 = vmatpush2.msra.mxu0 0.0
    %5979 = vmatprep.subr.mxu0 0.0
    %5980 = vmatpush2.msra.mxu0 0.0
    %5981 = vmatprep.subr.mxu0 0.0
    %5982 = vmatpush2.msra.mxu0 0.0
    %5983 = vmatprep.subr.mxu0 0.0
    %5984 = vmatpush2.msra.mxu0 0.0
    %5985 = vmatprep.subr.mxu0 0.0
    %5986 = vmatpush2.msra.mxu0 0.0
    %5987 = vmatprep.mubr.f32.mxu0 0.0
    %5988 = vmatmul.mubr.f32.gmra.mxu0 %v5684
    %v5989 = vpop.f32.mrf.mxu0
    %v5990 = vadd.f32 0.0, %v5989
    %v5991 = vpop.f32.mrf.mxu0
    %v5992 = vadd.f32 0.0, %v5991
    %5993 = vdwg.mxu0
    %v5994 = vadd.f32 %v5672, %v5777
    %v5995 = vadd.f32 %v5673, %v5779
    %v5996 = vadd.f32 %v5674, %v5848
    %v5997 = vadd.f32 %v5675, %v5850
    %v5998 = vadd.f32 %v5676, %v5919
    %v5999 = vadd.f32 %v5677, %v5921
    %v6000 = vadd.f32 %v5678, %v5990
    %v6001 = vadd.f32 %v5679, %v5992
    %v6002 = vmax.f32 %v5680, %v35
    %s6003 = scalar_lea.vmem %s3, 24
    %v6004 = vld [vmem:[%s6003] sm:$0xf]
    %v6006 = vsel %vm4091, %v6004, 0
    %v6009 = vsel %vm3294, %v4071, 0
    %v6012 = vsel %vm3294, %v4072, 0
    %v6015 = vsel %vm3294, %v4073, 0
    %v6018 = vsel %vm3294, %v4074, 0
    %v6021 = vsel %vm3294, %v4075, 0
    %v6024 = vsel %vm3294, %v4076, 0
    %v6027 = vsel %vm3294, %v4077, 0
    %v6030 = vsel %vm3294, %v4078, 0
    %6032 = vmatprep.subr.mxu0 0.0
    %6033 = vmatpush1.msra.mxu0 0.0
    %6034 = vmatprep.subr.mxu0 0.0
    %6035 = vmatpush1.msra.mxu0 0.0
    %6036 = vmatprep.subr.mxu0 0.0
    %6037 = vmatpush1.msra.mxu0 0.0
    %6038 = vmatprep.subr.mxu0 0.0
    %6039 = vmatpush1.msra.mxu0 0.0
    %6040 = vmatprep.subr.mxu0 0.0
    %6041 = vmatpush1.msra.mxu0 0.0
    %6042 = vmatprep.subr.mxu0 0.0
    %6043 = vmatpush1.msra.mxu0 0.0
    %6044 = vmatprep.subr.mxu0 0.0
    %6045 = vmatpush1.msra.mxu0 0.0
    %6046 = vmatprep.subr.mxu0 0.0
    %6047 = vmatpush1.msra.mxu0 0.0
    %6048 = vmatprep.subr.mxu0 0.0
    %6049 = vmatpush1.msra.mxu0 0.0
    %6050 = vmatprep.subr.mxu0 0.0
    %6051 = vmatpush1.msra.mxu0 0.0
    %6052 = vmatprep.subr.mxu0 0.0
    %6053 = vmatpush1.msra.mxu0 0.0
    %6054 = vmatprep.subr.mxu0 0.0
    %6055 = vmatpush1.msra.mxu0 0.0
    %6056 = vmatprep.subr.mxu0 0.0
    %6057 = vmatpush1.msra.mxu0 0.0
    %6058 = vmatprep.subr.mxu0 0.0
    %6059 = vmatpush1.msra.mxu0 0.0
    %6060 = vmatprep.subr.mxu0 0.0
    %6061 = vmatpush1.msra.mxu0 0.0
    %6062 = vmatprep.subr.mxu0 %v6012
    %6063 = vmatpush1.msra.mxu0 %v6009
    %6064 = vmatprep.subr.mxu0 0.0
    %6065 = vmatpush2.msra.mxu0 0.0
    %6066 = vmatprep.subr.mxu0 0.0
    %6067 = vmatpush2.msra.mxu0 0.0
    %6068 = vmatprep.subr.mxu0 0.0
    %6069 = vmatpush2.msra.mxu0 0.0
    %6070 = vmatprep.subr.mxu0 0.0
    %6071 = vmatpush2.msra.mxu0 0.0
    %6072 = vmatprep.subr.mxu0 0.0
    %6073 = vmatpush2.msra.mxu0 0.0
    %6074 = vmatprep.subr.mxu0 0.0
    %6075 = vmatpush2.msra.mxu0 0.0
    %6076 = vmatprep.subr.mxu0 0.0
    %6077 = vmatpush2.msra.mxu0 0.0
    %6078 = vmatprep.subr.mxu0 0.0
    %6079 = vmatpush2.msra.mxu0 0.0
    %6080 = vmatprep.subr.mxu0 0.0
    %6081 = vmatpush2.msra.mxu0 0.0
    %6082 = vmatprep.subr.mxu0 0.0
    %6083 = vmatpush2.msra.mxu0 0.0
    %6084 = vmatprep.subr.mxu0 0.0
    %6085 = vmatpush2.msra.mxu0 0.0
    %6086 = vmatprep.subr.mxu0 0.0
    %6087 = vmatpush2.msra.mxu0 0.0
    %6088 = vmatprep.subr.mxu0 0.0
    %6089 = vmatpush2.msra.mxu0 0.0
    %6090 = vmatprep.subr.mxu0 0.0
    %6091 = vmatpush2.msra.mxu0 0.0
    %6092 = vmatprep.subr.mxu0 0.0
    %6093 = vmatpush2.msra.mxu0 0.0
    %6094 = vmatprep.subr.mxu0 0.0
    %6095 = vmatpush2.msra.mxu0 0.0
    %6096 = vmatprep.mubr.f32.mxu0 0.0
    %6097 = vmatmul.mubr.f32.gmra.mxu0 %v6006
    %v6098 = vpop.f32.mrf.mxu0
    %v6099 = vadd.f32 0.0, %v6098
    %v6100 = vpop.f32.mrf.mxu0
    %v6101 = vadd.f32 0.0, %v6100
    %6102 = vdwg.mxu0
    %6103 = vmatprep.subr.mxu0 0.0
    %6104 = vmatpush1.msra.mxu0 0.0
    %6105 = vmatprep.subr.mxu0 0.0
    %6106 = vmatpush1.msra.mxu0 0.0
    %6107 = vmatprep.subr.mxu0 0.0
    %6108 = vmatpush1.msra.mxu0 0.0
    %6109 = vmatprep.subr.mxu0 0.0
    %6110 = vmatpush1.msra.mxu0 0.0
    %6111 = vmatprep.subr.mxu0 0.0
    %6112 = vmatpush1.msra.mxu0 0.0
    %6113 = vmatprep.subr.mxu0 0.0
    %6114 = vmatpush1.msra.mxu0 0.0
    %6115 = vmatprep.subr.mxu0 0.0
    %6116 = vmatpush1.msra.mxu0 0.0
    %6117 = vmatprep.subr.mxu0 0.0
    %6118 = vmatpush1.msra.mxu0 0.0
    %6119 = vmatprep.subr.mxu0 0.0
    %6120 = vmatpush1.msra.mxu0 0.0
    %6121 = vmatprep.subr.mxu0 0.0
    %6122 = vmatpush1.msra.mxu0 0.0
    %6123 = vmatprep.subr.mxu0 0.0
    %6124 = vmatpush1.msra.mxu0 0.0
    %6125 = vmatprep.subr.mxu0 0.0
    %6126 = vmatpush1.msra.mxu0 0.0
    %6127 = vmatprep.subr.mxu0 0.0
    %6128 = vmatpush1.msra.mxu0 0.0
    %6129 = vmatprep.subr.mxu0 0.0
    %6130 = vmatpush1.msra.mxu0 0.0
    %6131 = vmatprep.subr.mxu0 0.0
    %6132 = vmatpush1.msra.mxu0 0.0
    %6133 = vmatprep.subr.mxu0 %v6018
    %6134 = vmatpush1.msra.mxu0 %v6015
    %6135 = vmatprep.subr.mxu0 0.0
    %6136 = vmatpush2.msra.mxu0 0.0
    %6137 = vmatprep.subr.mxu0 0.0
    %6138 = vmatpush2.msra.mxu0 0.0
    %6139 = vmatprep.subr.mxu0 0.0
    %6140 = vmatpush2.msra.mxu0 0.0
    %6141 = vmatprep.subr.mxu0 0.0
    %6142 = vmatpush2.msra.mxu0 0.0
    %6143 = vmatprep.subr.mxu0 0.0
    %6144 = vmatpush2.msra.mxu0 0.0
    %6145 = vmatprep.subr.mxu0 0.0
    %6146 = vmatpush2.msra.mxu0 0.0
    %6147 = vmatprep.subr.mxu0 0.0
    %6148 = vmatpush2.msra.mxu0 0.0
    %6149 = vmatprep.subr.mxu0 0.0
    %6150 = vmatpush2.msra.mxu0 0.0
    %6151 = vmatprep.subr.mxu0 0.0
    %6152 = vmatpush2.msra.mxu0 0.0
    %6153 = vmatprep.subr.mxu0 0.0
    %6154 = vmatpush2.msra.mxu0 0.0
    %6155 = vmatprep.subr.mxu0 0.0
    %6156 = vmatpush2.msra.mxu0 0.0
    %6157 = vmatprep.subr.mxu0 0.0
    %6158 = vmatpush2.msra.mxu0 0.0
    %6159 = vmatprep.subr.mxu0 0.0
    %6160 = vmatpush2.msra.mxu0 0.0
    %6161 = vmatprep.subr.mxu0 0.0
    %6162 = vmatpush2.msra.mxu0 0.0
    %6163 = vmatprep.subr.mxu0 0.0
    %6164 = vmatpush2.msra.mxu0 0.0
    %6165 = vmatprep.subr.mxu0 0.0
    %6166 = vmatpush2.msra.mxu0 0.0
    %6167 = vmatprep.mubr.f32.mxu0 0.0
    %6168 = vmatmul.mubr.f32.gmra.mxu0 %v6006
    %v6169 = vpop.f32.mrf.mxu0
    %v6170 = vadd.f32 0.0, %v6169
    %v6171 = vpop.f32.mrf.mxu0
    %v6172 = vadd.f32 0.0, %v6171
    %6173 = vdwg.mxu0
    %6174 = vmatprep.subr.mxu0 0.0
    %6175 = vmatpush1.msra.mxu0 0.0
    %6176 = vmatprep.subr.mxu0 0.0
    %6177 = vmatpush1.msra.mxu0 0.0
    %6178 = vmatprep.subr.mxu0 0.0
    %6179 = vmatpush1.msra.mxu0 0.0
    %6180 = vmatprep.subr.mxu0 0.0
    %6181 = vmatpush1.msra.mxu0 0.0
    %6182 = vmatprep.subr.mxu0 0.0
    %6183 = vmatpush1.msra.mxu0 0.0
    %6184 = vmatprep.subr.mxu0 0.0
    %6185 = vmatpush1.msra.mxu0 0.0
    %6186 = vmatprep.subr.mxu0 0.0
    %6187 = vmatpush1.msra.mxu0 0.0
    %6188 = vmatprep.subr.mxu0 0.0
    %6189 = vmatpush1.msra.mxu0 0.0
    %6190 = vmatprep.subr.mxu0 0.0
    %6191 = vmatpush1.msra.mxu0 0.0
    %6192 = vmatprep.subr.mxu0 0.0
    %6193 = vmatpush1.msra.mxu0 0.0
    %6194 = vmatprep.subr.mxu0 0.0
    %6195 = vmatpush1.msra.mxu0 0.0
    %6196 = vmatprep.subr.mxu0 0.0
    %6197 = vmatpush1.msra.mxu0 0.0
    %6198 = vmatprep.subr.mxu0 0.0
    %6199 = vmatpush1.msra.mxu0 0.0
    %6200 = vmatprep.subr.mxu0 0.0
    %6201 = vmatpush1.msra.mxu0 0.0
    %6202 = vmatprep.subr.mxu0 0.0
    %6203 = vmatpush1.msra.mxu0 0.0
    %6204 = vmatprep.subr.mxu0 %v6024
    %6205 = vmatpush1.msra.mxu0 %v6021
    %6206 = vmatprep.subr.mxu0 0.0
    %6207 = vmatpush2.msra.mxu0 0.0
    %6208 = vmatprep.subr.mxu0 0.0
    %6209 = vmatpush2.msra.mxu0 0.0
    %6210 = vmatprep.subr.mxu0 0.0
    %6211 = vmatpush2.msra.mxu0 0.0
    %6212 = vmatprep.subr.mxu0 0.0
    %6213 = vmatpush2.msra.mxu0 0.0
    %6214 = vmatprep.subr.mxu0 0.0
    %6215 = vmatpush2.msra.mxu0 0.0
    %6216 = vmatprep.subr.mxu0 0.0
    %6217 = vmatpush2.msra.mxu0 0.0
    %6218 = vmatprep.subr.mxu0 0.0
    %6219 = vmatpush2.msra.mxu0 0.0
    %6220 = vmatprep.subr.mxu0 0.0
    %6221 = vmatpush2.msra.mxu0 0.0
    %6222 = vmatprep.subr.mxu0 0.0
    %6223 = vmatpush2.msra.mxu0 0.0
    %6224 = vmatprep.subr.mxu0 0.0
    %6225 = vmatpush2.msra.mxu0 0.0
    %6226 = vmatprep.subr.mxu0 0.0
    %6227 = vmatpush2.msra.mxu0 0.0
    %6228 = vmatprep.subr.mxu0 0.0
    %6229 = vmatpush2.msra.mxu0 0.0
    %6230 = vmatprep.subr.mxu0 0.0
    %6231 = vmatpush2.msra.mxu0 0.0
    %6232 = vmatprep.subr.mxu0 0.0
    %6233 = vmatpush2.msra.mxu0 0.0
    %6234 = vmatprep.subr.mxu0 0.0
    %6235 = vmatpush2.msra.mxu0 0.0
    %6236 = vmatprep.subr.mxu0 0.0
    %6237 = vmatpush2.msra.mxu0 0.0
    %6238 = vmatprep.mubr.f32.mxu0 0.0
    %6239 = vmatmul.mubr.f32.gmra.mxu0 %v6006
    %v6240 = vpop.f32.mrf.mxu0
    %v6241 = vadd.f32 0.0, %v6240
    %v6242 = vpop.f32.mrf.mxu0
    %v6243 = vadd.f32 0.0, %v6242
    %6244 = vdwg.mxu0
    %6245 = vmatprep.subr.mxu0 0.0
    %6246 = vmatpush1.msra.mxu0 0.0
    %6247 = vmatprep.subr.mxu0 0.0
    %6248 = vmatpush1.msra.mxu0 0.0
    %6249 = vmatprep.subr.mxu0 0.0
    %6250 = vmatpush1.msra.mxu0 0.0
    %6251 = vmatprep.subr.mxu0 0.0
    %6252 = vmatpush1.msra.mxu0 0.0
    %6253 = vmatprep.subr.mxu0 0.0
    %6254 = vmatpush1.msra.mxu0 0.0
    %6255 = vmatprep.subr.mxu0 0.0
    %6256 = vmatpush1.msra.mxu0 0.0
    %6257 = vmatprep.subr.mxu0 0.0
    %6258 = vmatpush1.msra.mxu0 0.0
    %6259 = vmatprep.subr.mxu0 0.0
    %6260 = vmatpush1.msra.mxu0 0.0
    %6261 = vmatprep.subr.mxu0 0.0
    %6262 = vmatpush1.msra.mxu0 0.0
    %6263 = vmatprep.subr.mxu0 0.0
    %6264 = vmatpush1.msra.mxu0 0.0
    %6265 = vmatprep.subr.mxu0 0.0
    %6266 = vmatpush1.msra.mxu0 0.0
    %6267 = vmatprep.subr.mxu0 0.0
    %6268 = vmatpush1.msra.mxu0 0.0
    %6269 = vmatprep.subr.mxu0 0.0
    %6270 = vmatpush1.msra.mxu0 0.0
    %6271 = vmatprep.subr.mxu0 0.0
    %6272 = vmatpush1.msra.mxu0 0.0
    %6273 = vmatprep.subr.mxu0 0.0
    %6274 = vmatpush1.msra.mxu0 0.0
    %6275 = vmatprep.subr.mxu0 %v6030
    %6276 = vmatpush1.msra.mxu0 %v6027
    %6277 = vmatprep.subr.mxu0 0.0
    %6278 = vmatpush2.msra.mxu0 0.0
    %6279 = vmatprep.subr.mxu0 0.0
    %6280 = vmatpush2.msra.mxu0 0.0
    %6281 = vmatprep.subr.mxu0 0.0
    %6282 = vmatpush2.msra.mxu0 0.0
    %6283 = vmatprep.subr.mxu0 0.0
    %6284 = vmatpush2.msra.mxu0 0.0
    %6285 = vmatprep.subr.mxu0 0.0
    %6286 = vmatpush2.msra.mxu0 0.0
    %6287 = vmatprep.subr.mxu0 0.0
    %6288 = vmatpush2.msra.mxu0 0.0
    %6289 = vmatprep.subr.mxu0 0.0
    %6290 = vmatpush2.msra.mxu0 0.0
    %6291 = vmatprep.subr.mxu0 0.0
    %6292 = vmatpush2.msra.mxu0 0.0
    %6293 = vmatprep.subr.mxu0 0.0
    %6294 = vmatpush2.msra.mxu0 0.0
    %6295 = vmatprep.subr.mxu0 0.0
    %6296 = vmatpush2.msra.mxu0 0.0
    %6297 = vmatprep.subr.mxu0 0.0
    %6298 = vmatpush2.msra.mxu0 0.0
    %6299 = vmatprep.subr.mxu0 0.0
    %6300 = vmatpush2.msra.mxu0 0.0
    %6301 = vmatprep.subr.mxu0 0.0
    %6302 = vmatpush2.msra.mxu0 0.0
    %6303 = vmatprep.subr.mxu0 0.0
    %6304 = vmatpush2.msra.mxu0 0.0
    %6305 = vmatprep.subr.mxu0 0.0
    %6306 = vmatpush2.msra.mxu0 0.0
    %6307 = vmatprep.subr.mxu0 0.0
    %6308 = vmatpush2.msra.mxu0 0.0
    %6309 = vmatprep.mubr.f32.mxu0 0.0
    %6310 = vmatmul.mubr.f32.gmra.mxu0 %v6006
    %v6311 = vpop.f32.mrf.mxu0
    %v6312 = vadd.f32 0.0, %v6311
    %v6313 = vpop.f32.mrf.mxu0
    %v6314 = vadd.f32 0.0, %v6313
    %6315 = vdwg.mxu0
    %v6316 = vadd.f32 %v5994, %v6099
    %v6317 = vadd.f32 %v5995, %v6101
    %v6318 = vadd.f32 %v5996, %v6170
    %v6319 = vadd.f32 %v5997, %v6172
    %v6320 = vadd.f32 %v5998, %v6241
    %v6321 = vadd.f32 %v5999, %v6243
    %v6322 = vadd.f32 %v6000, %v6312
    %v6323 = vadd.f32 %v6001, %v6314
    %v6324 = vmax.f32 %v6002, %v36
    %s6325 = scalar_lea.vmem %s3, 28
    %v6326 = vld [vmem:[%s6325] sm:$0xf]
    %v6328 = vsel %vm4091, %v6326, 0
    %v6331 = vsel %vm3294, %v4079, 0
    %v6334 = vsel %vm3294, %v4080, 0
    %v6337 = vsel %vm3294, %v4081, 0
    %v6340 = vsel %vm3294, %v4082, 0
    %v6343 = vsel %vm3294, %v4083, 0
    %v6346 = vsel %vm3294, %v4084, 0
    %v6349 = vsel %vm3294, %v4085, 0
    %v6352 = vsel %vm3294, %v4086, 0
    %6354 = vmatprep.subr.mxu0 0.0
    %6355 = vmatpush1.msra.mxu0 0.0
    %6356 = vmatprep.subr.mxu0 0.0
    %6357 = vmatpush1.msra.mxu0 0.0
    %6358 = vmatprep.subr.mxu0 0.0
    %6359 = vmatpush1.msra.mxu0 0.0
    %6360 = vmatprep.subr.mxu0 0.0
    %6361 = vmatpush1.msra.mxu0 0.0
    %6362 = vmatprep.subr.mxu0 0.0
    %6363 = vmatpush1.msra.mxu0 0.0
    %6364 = vmatprep.subr.mxu0 0.0
    %6365 = vmatpush1.msra.mxu0 0.0
    %6366 = vmatprep.subr.mxu0 0.0
    %6367 = vmatpush1.msra.mxu0 0.0
    %6368 = vmatprep.subr.mxu0 0.0
    %6369 = vmatpush1.msra.mxu0 0.0
    %6370 = vmatprep.subr.mxu0 0.0
    %6371 = vmatpush1.msra.mxu0 0.0
    %6372 = vmatprep.subr.mxu0 0.0
    %6373 = vmatpush1.msra.mxu0 0.0
    %6374 = vmatprep.subr.mxu0 0.0
    %6375 = vmatpush1.msra.mxu0 0.0
    %6376 = vmatprep.subr.mxu0 0.0
    %6377 = vmatpush1.msra.mxu0 0.0
    %6378 = vmatprep.subr.mxu0 0.0
    %6379 = vmatpush1.msra.mxu0 0.0
    %6380 = vmatprep.subr.mxu0 0.0
    %6381 = vmatpush1.msra.mxu0 0.0
    %6382 = vmatprep.subr.mxu0 0.0
    %6383 = vmatpush1.msra.mxu0 0.0
    %6384 = vmatprep.subr.mxu0 %v6334
    %6385 = vmatpush1.msra.mxu0 %v6331
    %6386 = vmatprep.subr.mxu0 0.0
    %6387 = vmatpush2.msra.mxu0 0.0
    %6388 = vmatprep.subr.mxu0 0.0
    %6389 = vmatpush2.msra.mxu0 0.0
    %6390 = vmatprep.subr.mxu0 0.0
    %6391 = vmatpush2.msra.mxu0 0.0
    %6392 = vmatprep.subr.mxu0 0.0
    %6393 = vmatpush2.msra.mxu0 0.0
    %6394 = vmatprep.subr.mxu0 0.0
    %6395 = vmatpush2.msra.mxu0 0.0
    %6396 = vmatprep.subr.mxu0 0.0
    %6397 = vmatpush2.msra.mxu0 0.0
    %6398 = vmatprep.subr.mxu0 0.0
    %6399 = vmatpush2.msra.mxu0 0.0
    %6400 = vmatprep.subr.mxu0 0.0
    %6401 = vmatpush2.msra.mxu0 0.0
    %6402 = vmatprep.subr.mxu0 0.0
    %6403 = vmatpush2.msra.mxu0 0.0
    %6404 = vmatprep.subr.mxu0 0.0
    %6405 = vmatpush2.msra.mxu0 0.0
    %6406 = vmatprep.subr.mxu0 0.0
    %6407 = vmatpush2.msra.mxu0 0.0
    %6408 = vmatprep.subr.mxu0 0.0
    %6409 = vmatpush2.msra.mxu0 0.0
    %6410 = vmatprep.subr.mxu0 0.0
    %6411 = vmatpush2.msra.mxu0 0.0
    %6412 = vmatprep.subr.mxu0 0.0
    %6413 = vmatpush2.msra.mxu0 0.0
    %6414 = vmatprep.subr.mxu0 0.0
    %6415 = vmatpush2.msra.mxu0 0.0
    %6416 = vmatprep.subr.mxu0 0.0
    %6417 = vmatpush2.msra.mxu0 0.0
    %6418 = vmatprep.mubr.f32.mxu0 0.0
    %6419 = vmatmul.mubr.f32.gmra.mxu0 %v6328
    %v6420 = vpop.f32.mrf.mxu0
    %v6421 = vadd.f32 0.0, %v6420
    %v6422 = vpop.f32.mrf.mxu0
    %v6423 = vadd.f32 0.0, %v6422
    %6424 = vdwg.mxu0
    %6425 = vmatprep.subr.mxu0 0.0
    %6426 = vmatpush1.msra.mxu0 0.0
    %6427 = vmatprep.subr.mxu0 0.0
    %6428 = vmatpush1.msra.mxu0 0.0
    %6429 = vmatprep.subr.mxu0 0.0
    %6430 = vmatpush1.msra.mxu0 0.0
    %6431 = vmatprep.subr.mxu0 0.0
    %6432 = vmatpush1.msra.mxu0 0.0
    %6433 = vmatprep.subr.mxu0 0.0
    %6434 = vmatpush1.msra.mxu0 0.0
    %6435 = vmatprep.subr.mxu0 0.0
    %6436 = vmatpush1.msra.mxu0 0.0
    %6437 = vmatprep.subr.mxu0 0.0
    %6438 = vmatpush1.msra.mxu0 0.0
    %6439 = vmatprep.subr.mxu0 0.0
    %6440 = vmatpush1.msra.mxu0 0.0
    %6441 = vmatprep.subr.mxu0 0.0
    %6442 = vmatpush1.msra.mxu0 0.0
    %6443 = vmatprep.subr.mxu0 0.0
    %6444 = vmatpush1.msra.mxu0 0.0
    %6445 = vmatprep.subr.mxu0 0.0
    %6446 = vmatpush1.msra.mxu0 0.0
    %6447 = vmatprep.subr.mxu0 0.0
    %6448 = vmatpush1.msra.mxu0 0.0
    %6449 = vmatprep.subr.mxu0 0.0
    %6450 = vmatpush1.msra.mxu0 0.0
    %6451 = vmatprep.subr.mxu0 0.0
    %6452 = vmatpush1.msra.mxu0 0.0
    %6453 = vmatprep.subr.mxu0 0.0
    %6454 = vmatpush1.msra.mxu0 0.0
    %6455 = vmatprep.subr.mxu0 %v6340
    %6456 = vmatpush1.msra.mxu0 %v6337
    %6457 = vmatprep.subr.mxu0 0.0
    %6458 = vmatpush2.msra.mxu0 0.0
    %6459 = vmatprep.subr.mxu0 0.0
    %6460 = vmatpush2.msra.mxu0 0.0
    %6461 = vmatprep.subr.mxu0 0.0
    %6462 = vmatpush2.msra.mxu0 0.0
    %6463 = vmatprep.subr.mxu0 0.0
    %6464 = vmatpush2.msra.mxu0 0.0
    %6465 = vmatprep.subr.mxu0 0.0
    %6466 = vmatpush2.msra.mxu0 0.0
    %6467 = vmatprep.subr.mxu0 0.0
    %6468 = vmatpush2.msra.mxu0 0.0
    %6469 = vmatprep.subr.mxu0 0.0
    %6470 = vmatpush2.msra.mxu0 0.0
    %6471 = vmatprep.subr.mxu0 0.0
    %6472 = vmatpush2.msra.mxu0 0.0
    %6473 = vmatprep.subr.mxu0 0.0
    %6474 = vmatpush2.msra.mxu0 0.0
    %6475 = vmatprep.subr.mxu0 0.0
    %6476 = vmatpush2.msra.mxu0 0.0
    %6477 = vmatprep.subr.mxu0 0.0
    %6478 = vmatpush2.msra.mxu0 0.0
    %6479 = vmatprep.subr.mxu0 0.0
    %6480 = vmatpush2.msra.mxu0 0.0
    %6481 = vmatprep.subr.mxu0 0.0
    %6482 = vmatpush2.msra.mxu0 0.0
    %6483 = vmatprep.subr.mxu0 0.0
    %6484 = vmatpush2.msra.mxu0 0.0
    %6485 = vmatprep.subr.mxu0 0.0
    %6486 = vmatpush2.msra.mxu0 0.0
    %6487 = vmatprep.subr.mxu0 0.0
    %6488 = vmatpush2.msra.mxu0 0.0
    %6489 = vmatprep.mubr.f32.mxu0 0.0
    %6490 = vmatmul.mubr.f32.gmra.mxu0 %v6328
    %v6491 = vpop.f32.mrf.mxu0
    %v6492 = vadd.f32 0.0, %v6491
    %v6493 = vpop.f32.mrf.mxu0
    %v6494 = vadd.f32 0.0, %v6493
    %6495 = vdwg.mxu0
    %6496 = vmatprep.subr.mxu0 0.0
    %6497 = vmatpush1.msra.mxu0 0.0
    %6498 = vmatprep.subr.mxu0 0.0
    %6499 = vmatpush1.msra.mxu0 0.0
    %6500 = vmatprep.subr.mxu0 0.0
    %6501 = vmatpush1.msra.mxu0 0.0
    %6502 = vmatprep.subr.mxu0 0.0
    %6503 = vmatpush1.msra.mxu0 0.0
    %6504 = vmatprep.subr.mxu0 0.0
    %6505 = vmatpush1.msra.mxu0 0.0
    %6506 = vmatprep.subr.mxu0 0.0
    %6507 = vmatpush1.msra.mxu0 0.0
    %6508 = vmatprep.subr.mxu0 0.0
    %6509 = vmatpush1.msra.mxu0 0.0
    %6510 = vmatprep.subr.mxu0 0.0
    %6511 = vmatpush1.msra.mxu0 0.0
    %6512 = vmatprep.subr.mxu0 0.0
    %6513 = vmatpush1.msra.mxu0 0.0
    %6514 = vmatprep.subr.mxu0 0.0
    %6515 = vmatpush1.msra.mxu0 0.0
    %6516 = vmatprep.subr.mxu0 0.0
    %6517 = vmatpush1.msra.mxu0 0.0
    %6518 = vmatprep.subr.mxu0 0.0
    %6519 = vmatpush1.msra.mxu0 0.0
    %6520 = vmatprep.subr.mxu0 0.0
    %6521 = vmatpush1.msra.mxu0 0.0
    %6522 = vmatprep.subr.mxu0 0.0
    %6523 = vmatpush1.msra.mxu0 0.0
    %6524 = vmatprep.subr.mxu0 0.0
    %6525 = vmatpush1.msra.mxu0 0.0
    %6526 = vmatprep.subr.mxu0 %v6346
    %6527 = vmatpush1.msra.mxu0 %v6343
    %6528 = vmatprep.subr.mxu0 0.0
    %6529 = vmatpush2.msra.mxu0 0.0
    %6530 = vmatprep.subr.mxu0 0.0
    %6531 = vmatpush2.msra.mxu0 0.0
    %6532 = vmatprep.subr.mxu0 0.0
    %6533 = vmatpush2.msra.mxu0 0.0
    %6534 = vmatprep.subr.mxu0 0.0
    %6535 = vmatpush2.msra.mxu0 0.0
    %6536 = vmatprep.subr.mxu0 0.0
    %6537 = vmatpush2.msra.mxu0 0.0
    %6538 = vmatprep.subr.mxu0 0.0
    %6539 = vmatpush2.msra.mxu0 0.0
    %6540 = vmatprep.subr.mxu0 0.0
    %6541 = vmatpush2.msra.mxu0 0.0
    %6542 = vmatprep.subr.mxu0 0.0
    %6543 = vmatpush2.msra.mxu0 0.0
    %6544 = vmatprep.subr.mxu0 0.0
    %6545 = vmatpush2.msra.mxu0 0.0
    %6546 = vmatprep.subr.mxu0 0.0
    %6547 = vmatpush2.msra.mxu0 0.0
    %6548 = vmatprep.subr.mxu0 0.0
    %6549 = vmatpush2.msra.mxu0 0.0
    %6550 = vmatprep.subr.mxu0 0.0
    %6551 = vmatpush2.msra.mxu0 0.0
    %6552 = vmatprep.subr.mxu0 0.0
    %6553 = vmatpush2.msra.mxu0 0.0
    %6554 = vmatprep.subr.mxu0 0.0
    %6555 = vmatpush2.msra.mxu0 0.0
    %6556 = vmatprep.subr.mxu0 0.0
    %6557 = vmatpush2.msra.mxu0 0.0
    %6558 = vmatprep.subr.mxu0 0.0
    %6559 = vmatpush2.msra.mxu0 0.0
    %6560 = vmatprep.mubr.f32.mxu0 0.0
    %6561 = vmatmul.mubr.f32.gmra.mxu0 %v6328
    %v6562 = vpop.f32.mrf.mxu0
    %v6563 = vadd.f32 0.0, %v6562
    %v6564 = vpop.f32.mrf.mxu0
    %v6565 = vadd.f32 0.0, %v6564
    %6566 = vdwg.mxu0
    %6567 = vmatprep.subr.mxu0 0.0
    %6568 = vmatpush1.msra.mxu0 0.0
    %6569 = vmatprep.subr.mxu0 0.0
    %6570 = vmatpush1.msra.mxu0 0.0
    %6571 = vmatprep.subr.mxu0 0.0
    %6572 = vmatpush1.msra.mxu0 0.0
    %6573 = vmatprep.subr.mxu0 0.0
    %6574 = vmatpush1.msra.mxu0 0.0
    %6575 = vmatprep.subr.mxu0 0.0
    %6576 = vmatpush1.msra.mxu0 0.0
    %6577 = vmatprep.subr.mxu0 0.0
    %6578 = vmatpush1.msra.mxu0 0.0
    %6579 = vmatprep.subr.mxu0 0.0
    %6580 = vmatpush1.msra.mxu0 0.0
    %6581 = vmatprep.subr.mxu0 0.0
    %6582 = vmatpush1.msra.mxu0 0.0
    %6583 = vmatprep.subr.mxu0 0.0
    %6584 = vmatpush1.msra.mxu0 0.0
    %6585 = vmatprep.subr.mxu0 0.0
    %6586 = vmatpush1.msra.mxu0 0.0
    %6587 = vmatprep.subr.mxu0 0.0
    %6588 = vmatpush1.msra.mxu0 0.0
    %6589 = vmatprep.subr.mxu0 0.0
    %6590 = vmatpush1.msra.mxu0 0.0
    %6591 = vmatprep.subr.mxu0 0.0
    %6592 = vmatpush1.msra.mxu0 0.0
    %6593 = vmatprep.subr.mxu0 0.0
    %6594 = vmatpush1.msra.mxu0 0.0
    %6595 = vmatprep.subr.mxu0 0.0
    %6596 = vmatpush1.msra.mxu0 0.0
    %6597 = vmatprep.subr.mxu0 %v6352
    %6598 = vmatpush1.msra.mxu0 %v6349
    %6599 = vmatprep.subr.mxu0 0.0
    %6600 = vmatpush2.msra.mxu0 0.0
    %6601 = vmatprep.subr.mxu0 0.0
    %6602 = vmatpush2.msra.mxu0 0.0
    %6603 = vmatprep.subr.mxu0 0.0
    %6604 = vmatpush2.msra.mxu0 0.0
    %6605 = vmatprep.subr.mxu0 0.0
    %6606 = vmatpush2.msra.mxu0 0.0
    %6607 = vmatprep.subr.mxu0 0.0
    %6608 = vmatpush2.msra.mxu0 0.0
    %6609 = vmatprep.subr.mxu0 0.0
    %6610 = vmatpush2.msra.mxu0 0.0
    %6611 = vmatprep.subr.mxu0 0.0
    %6612 = vmatpush2.msra.mxu0 0.0
    %6613 = vmatprep.subr.mxu0 0.0
    %6614 = vmatpush2.msra.mxu0 0.0
    %6615 = vmatprep.subr.mxu0 0.0
    %6616 = vmatpush2.msra.mxu0 0.0
    %6617 = vmatprep.subr.mxu0 0.0
    %6618 = vmatpush2.msra.mxu0 0.0
    %6619 = vmatprep.subr.mxu0 0.0
    %6620 = vmatpush2.msra.mxu0 0.0
    %6621 = vmatprep.subr.mxu0 0.0
    %6622 = vmatpush2.msra.mxu0 0.0
    %6623 = vmatprep.subr.mxu0 0.0
    %6624 = vmatpush2.msra.mxu0 0.0
    %6625 = vmatprep.subr.mxu0 0.0
    %6626 = vmatpush2.msra.mxu0 0.0
    %6627 = vmatprep.subr.mxu0 0.0
    %6628 = vmatpush2.msra.mxu0 0.0
    %6629 = vmatprep.subr.mxu0 0.0
    %6630 = vmatpush2.msra.mxu0 0.0
    %6631 = vmatprep.mubr.f32.mxu0 0.0
    %6632 = vmatmul.mubr.f32.gmra.mxu0 %v6328
    %v6633 = vpop.f32.mrf.mxu0
    %v6634 = vadd.f32 0.0, %v6633
    %v6635 = vpop.f32.mrf.mxu0
    %v6636 = vadd.f32 0.0, %v6635
    %6637 = vdwg.mxu0
    %v6638 = vadd.f32 %v6316, %v6421
    %v6639 = vadd.f32 %v6317, %v6423
    %v6640 = vadd.f32 %v6318, %v6492
    %v6641 = vadd.f32 %v6319, %v6494
    %v6642 = vadd.f32 %v6320, %v6563
    %v6643 = vadd.f32 %v6321, %v6565
    %v6644 = vadd.f32 %v6322, %v6634
    %v6645 = vadd.f32 %v6323, %v6636
    %v6646 = vmax.f32 %v6324, %v37
    %v6648 = vlaneseq
    %v6649 = vshrl.u32 %v6648, 7
    %v6650 = vsub.s32 0, %v6649
    %v6651 = vrot.slane %v6646, %v6650
    %v6652 = vlaneseq
    %v6653 = vshrl.u32 %v6652, 7
    %v6654 = vsub.s32 1, %v6653
    %v6655 = vrot.slane %v6646, %v6654
    %v6656 = vlaneseq
    %v6657 = vshrl.u32 %v6656, 7
    %v6658 = vsub.s32 2, %v6657
    %v6659 = vrot.slane %v6646, %v6658
    %v6660 = vlaneseq
    %v6661 = vshrl.u32 %v6660, 7
    %v6662 = vsub.s32 3, %v6661
    %v6663 = vrot.slane %v6646, %v6662
    %v6664 = vlaneseq
    %v6665 = vshrl.u32 %v6664, 7
    %v6666 = vsub.s32 4, %v6665
    %v6667 = vrot.slane %v6646, %v6666
    %v6668 = vlaneseq
    %v6669 = vshrl.u32 %v6668, 7
    %v6670 = vsub.s32 5, %v6669
    %v6671 = vrot.slane %v6646, %v6670
    %v6672 = vlaneseq
    %v6673 = vshrl.u32 %v6672, 7
    %v6674 = vsub.s32 6, %v6673
    %v6675 = vrot.slane %v6646, %v6674
    %v6676 = vlaneseq
    %v6677 = vshrl.u32 %v6676, 7
    %v6678 = vsub.s32 7, %v6677
    %v6679 = vrot.slane %v6646, %v6678
    %v6688 = vmul.f32 %v6638, %v6651
    %v6689 = vmul.f32 %v6639, %v6655
    %v6690 = vmul.f32 %v6640, %v6659
    %v6691 = vmul.f32 %v6641, %v6663
    %v6692 = vmul.f32 %v6642, %v6667
    %v6693 = vmul.f32 %v6643, %v6671
    %v6694 = vmul.f32 %v6644, %v6675
    %v6695 = vmul.f32 %v6645, %v6679
    %v6696 = vadd.f32 %v6688, 0.0
    %v6697 = vadd.f32 %v6696, %v6689
    %v6698 = vadd.f32 %v6697, %v6690
    %v6699 = vadd.f32 %v6698, %v6691
    %v6700 = vadd.f32 %v6699, %v6692
    %v6701 = vadd.f32 %v6700, %v6693
    %v6702 = vadd.f32 %v6701, %v6694
    %v6703 = vadd.f32 %v6702, %v6695
    %v6704 = vmul.f32 %v6703, 0.125
    %v6705 = vld [vmem:[%s7] sm:$0x1]
    %v6706 = vld [vmem:[%s6] sm:$0xff]
    %v6707 = vld [vmem:[%s6 + $0x8] sm:$0xff]
    %v6708 = vld [vmem:[%s6 + $0x10] sm:$0xff]
    %v6709 = vld [vmem:[%s6 + $0x18] sm:$0xff]
    %v6710 = vld [vmem:[%s6 + $0x20] sm:$0xff]
    %v6711 = vld [vmem:[%s6 + $0x28] sm:$0xff]
    %v6712 = vld [vmem:[%s6 + $0x30] sm:$0xff]
    %v6713 = vld [vmem:[%s6 + $0x38] sm:$0xff]
    %vm6714 = vcmask 523264
    %v6716 = vsel %vm6714, %v6704, 0
    %6718 = vmatprep.subr.mxu0 0.0
    %6719 = vmatpush1.msra.mxu0 0.0
    %6720 = vmatprep.subr.mxu0 0.0
    %6721 = vmatpush1.msra.mxu0 0.0
    %6722 = vmatprep.subr.mxu0 0.0
    %6723 = vmatpush1.msra.mxu0 0.0
    %6724 = vmatprep.subr.mxu0 0.0
    %6725 = vmatpush1.msra.mxu0 0.0
    %6726 = vmatprep.subr.mxu0 0.0
    %6727 = vmatpush1.msra.mxu0 0.0
    %6728 = vmatprep.subr.mxu0 0.0
    %6729 = vmatpush1.msra.mxu0 0.0
    %6730 = vmatprep.subr.mxu0 0.0
    %6731 = vmatpush1.msra.mxu0 0.0
    %6732 = vmatprep.subr.mxu0 0.0
    %6733 = vmatpush1.msra.mxu0 0.0
    %6734 = vmatprep.subr.mxu0 0.0
    %6735 = vmatpush1.msra.mxu0 %v6713
    %6736 = vmatprep.subr.mxu0 0.0
    %6737 = vmatpush1.msra.mxu0 %v6712
    %6738 = vmatprep.subr.mxu0 0.0
    %6739 = vmatpush1.msra.mxu0 %v6711
    %6740 = vmatprep.subr.mxu0 0.0
    %6741 = vmatpush1.msra.mxu0 %v6710
    %6742 = vmatprep.subr.mxu0 0.0
    %6743 = vmatpush1.msra.mxu0 %v6709
    %6744 = vmatprep.subr.mxu0 0.0
    %6745 = vmatpush1.msra.mxu0 %v6708
    %6746 = vmatprep.subr.mxu0 0.0
    %6747 = vmatpush1.msra.mxu0 %v6707
    %6748 = vmatprep.subr.mxu0 0.0
    %6749 = vmatpush1.msra.mxu0 %v6706
    %6750 = vmatprep.subr.mxu0 0.0
    %6751 = vmatpush2.msra.mxu0 0.0
    %6752 = vmatprep.subr.mxu0 0.0
    %6753 = vmatpush2.msra.mxu0 0.0
    %6754 = vmatprep.subr.mxu0 0.0
    %6755 = vmatpush2.msra.mxu0 0.0
    %6756 = vmatprep.subr.mxu0 0.0
    %6757 = vmatpush2.msra.mxu0 0.0
    %6758 = vmatprep.subr.mxu0 0.0
    %6759 = vmatpush2.msra.mxu0 0.0
    %6760 = vmatprep.subr.mxu0 0.0
    %6761 = vmatpush2.msra.mxu0 0.0
    %6762 = vmatprep.subr.mxu0 0.0
    %6763 = vmatpush2.msra.mxu0 0.0
    %6764 = vmatprep.subr.mxu0 0.0
    %6765 = vmatpush2.msra.mxu0 0.0
    %6766 = vmatprep.subr.mxu0 0.0
    %6767 = vmatpush2.msra.mxu0 0.0
    %6768 = vmatprep.subr.mxu0 0.0
    %6769 = vmatpush2.msra.mxu0 0.0
    %6770 = vmatprep.subr.mxu0 0.0
    %6771 = vmatpush2.msra.mxu0 0.0
    %6772 = vmatprep.subr.mxu0 0.0
    %6773 = vmatpush2.msra.mxu0 0.0
    %6774 = vmatprep.subr.mxu0 0.0
    %6775 = vmatpush2.msra.mxu0 0.0
    %6776 = vmatprep.subr.mxu0 0.0
    %6777 = vmatpush2.msra.mxu0 0.0
    %6778 = vmatprep.subr.mxu0 0.0
    %6779 = vmatpush2.msra.mxu0 0.0
    %6780 = vmatprep.subr.mxu0 0.0
    %6781 = vmatpush2.msra.mxu0 0.0
    %6782 = vmatprep.mubr.f32.mxu0 0.0
    %6783 = vmatmul.mubr.f32.gmra.mxu0 %v6716
    %v6784 = vpop.f32.mrf.mxu0
    %v6785 = vadd.f32 0.0, %v6784
    %v6786 = vpop.f32.mrf.mxu0
    %6787 = vdwg.mxu0
    %v6788 = vadd.f32 %v6705, %v6785
    %s6789 = scalar_lea.vmem %s6, 64
    %v6790 = vld [vmem:[%s6789] sm:$0xff]
    %v6791 = vld [vmem:[%s6789 + $0x8] sm:$0xff]
    %v6792 = vld [vmem:[%s6789 + $0x10] sm:$0xff]
    %v6793 = vld [vmem:[%s6789 + $0x18] sm:$0xff]
    %v6794 = vld [vmem:[%s6789 + $0x20] sm:$0xff]
    %v6795 = vld [vmem:[%s6789 + $0x28] sm:$0xff]
    %v6796 = vld [vmem:[%s6789 + $0x30] sm:$0xff]
    %v6797 = vld [vmem:[%s6789 + $0x38] sm:$0xff]
    %v6798 = vrot.slane %v6704, 1
    %v6799 = vsel %vm6714, %v6798, 0
    %6801 = vmatprep.subr.mxu0 0.0
    %6802 = vmatpush1.msra.mxu0 0.0
    %6803 = vmatprep.subr.mxu0 0.0
    %6804 = vmatpush1.msra.mxu0 0.0
    %6805 = vmatprep.subr.mxu0 0.0
    %6806 = vmatpush1.msra.mxu0 0.0
    %6807 = vmatprep.subr.mxu0 0.0
    %6808 = vmatpush1.msra.mxu0 0.0
    %6809 = vmatprep.subr.mxu0 0.0
    %6810 = vmatpush1.msra.mxu0 0.0
    %6811 = vmatprep.subr.mxu0 0.0
    %6812 = vmatpush1.msra.mxu0 0.0
    %6813 = vmatprep.subr.mxu0 0.0
    %6814 = vmatpush1.msra.mxu0 0.0
    %6815 = vmatprep.subr.mxu0 0.0
    %6816 = vmatpush1.msra.mxu0 0.0
    %6817 = vmatprep.subr.mxu0 0.0
    %6818 = vmatpush1.msra.mxu0 %v6797
    %6819 = vmatprep.subr.mxu0 0.0
    %6820 = vmatpush1.msra.mxu0 %v6796
    %6821 = vmatprep.subr.mxu0 0.0
    %6822 = vmatpush1.msra.mxu0 %v6795
    %6823 = vmatprep.subr.mxu0 0.0
    %6824 = vmatpush1.msra.mxu0 %v6794
    %6825 = vmatprep.subr.mxu0 0.0
    %6826 = vmatpush1.msra.mxu0 %v6793
    %6827 = vmatprep.subr.mxu0 0.0
    %6828 = vmatpush1.msra.mxu0 %v6792
    %6829 = vmatprep.subr.mxu0 0.0
    %6830 = vmatpush1.msra.mxu0 %v6791
    %6831 = vmatprep.subr.mxu0 0.0
    %6832 = vmatpush1.msra.mxu0 %v6790
    %6833 = vmatprep.subr.mxu0 0.0
    %6834 = vmatpush2.msra.mxu0 0.0
    %6835 = vmatprep.subr.mxu0 0.0
    %6836 = vmatpush2.msra.mxu0 0.0
    %6837 = vmatprep.subr.mxu0 0.0
    %6838 = vmatpush2.msra.mxu0 0.0
    %6839 = vmatprep.subr.mxu0 0.0
    %6840 = vmatpush2.msra.mxu0 0.0
    %6841 = vmatprep.subr.mxu0 0.0
    %6842 = vmatpush2.msra.mxu0 0.0
    %6843 = vmatprep.subr.mxu0 0.0
    %6844 = vmatpush2.msra.mxu0 0.0
    %6845 = vmatprep.subr.mxu0 0.0
    %6846 = vmatpush2.msra.mxu0 0.0
    %6847 = vmatprep.subr.mxu0 0.0
    %6848 = vmatpush2.msra.mxu0 0.0
    %6849 = vmatprep.subr.mxu0 0.0
    %6850 = vmatpush2.msra.mxu0 0.0
    %6851 = vmatprep.subr.mxu0 0.0
    %6852 = vmatpush2.msra.mxu0 0.0
    %6853 = vmatprep.subr.mxu0 0.0
    %6854 = vmatpush2.msra.mxu0 0.0
    %6855 = vmatprep.subr.mxu0 0.0
    %6856 = vmatpush2.msra.mxu0 0.0
    %6857 = vmatprep.subr.mxu0 0.0
    %6858 = vmatpush2.msra.mxu0 0.0
    %6859 = vmatprep.subr.mxu0 0.0
    %6860 = vmatpush2.msra.mxu0 0.0
    %6861 = vmatprep.subr.mxu0 0.0
    %6862 = vmatpush2.msra.mxu0 0.0
    %6863 = vmatprep.subr.mxu0 0.0
    %6864 = vmatpush2.msra.mxu0 0.0
    %6865 = vmatprep.mubr.f32.mxu0 0.0
    %6866 = vmatmul.mubr.f32.gmra.mxu0 %v6799
    %v6867 = vpop.f32.mrf.mxu0
    %v6868 = vadd.f32 0.0, %v6867
    %v6869 = vpop.f32.mrf.mxu0
    %6870 = vdwg.mxu0
    %v6871 = vadd.f32 %v6788, %v6868
    %s6872 = scalar_lea.vmem %s6, 128
    %v6873 = vld [vmem:[%s6872] sm:$0xff]
    %v6874 = vld [vmem:[%s6872 + $0x8] sm:$0xff]
    %v6875 = vld [vmem:[%s6872 + $0x10] sm:$0xff]
    %v6876 = vld [vmem:[%s6872 + $0x18] sm:$0xff]
    %v6877 = vld [vmem:[%s6872 + $0x20] sm:$0xff]
    %v6878 = vld [vmem:[%s6872 + $0x28] sm:$0xff]
    %v6879 = vld [vmem:[%s6872 + $0x30] sm:$0xff]
    %v6880 = vld [vmem:[%s6872 + $0x38] sm:$0xff]
    %v6881 = vrot.slane %v6704, 2
    %v6882 = vsel %vm6714, %v6881, 0
    %6884 = vmatprep.subr.mxu0 0.0
    %6885 = vmatpush1.msra.mxu0 0.0
    %6886 = vmatprep.subr.mxu0 0.0
    %6887 = vmatpush1.msra.mxu0 0.0
    %6888 = vmatprep.subr.mxu0 0.0
    %6889 = vmatpush1.msra.mxu0 0.0
    %6890 = vmatprep.subr.mxu0 0.0
    %6891 = vmatpush1.msra.mxu0 0.0
    %6892 = vmatprep.subr.mxu0 0.0
    %6893 = vmatpush1.msra.mxu0 0.0
    %6894 = vmatprep.subr.mxu0 0.0
    %6895 = vmatpush1.msra.mxu0 0.0
    %6896 = vmatprep.subr.mxu0 0.0
    %6897 = vmatpush1.msra.mxu0 0.0
    %6898 = vmatprep.subr.mxu0 0.0
    %6899 = vmatpush1.msra.mxu0 0.0
    %6900 = vmatprep.subr.mxu0 0.0
    %6901 = vmatpush1.msra.mxu0 %v6880
    %6902 = vmatprep.subr.mxu0 0.0
    %6903 = vmatpush1.msra.mxu0 %v6879
    %6904 = vmatprep.subr.mxu0 0.0
    %6905 = vmatpush1.msra.mxu0 %v6878
    %6906 = vmatprep.subr.mxu0 0.0
    %6907 = vmatpush1.msra.mxu0 %v6877
    %6908 = vmatprep.subr.mxu0 0.0
    %6909 = vmatpush1.msra.mxu0 %v6876
    %6910 = vmatprep.subr.mxu0 0.0
    %6911 = vmatpush1.msra.mxu0 %v6875
    %6912 = vmatprep.subr.mxu0 0.0
    %6913 = vmatpush1.msra.mxu0 %v6874
    %6914 = vmatprep.subr.mxu0 0.0
    %6915 = vmatpush1.msra.mxu0 %v6873
    %6916 = vmatprep.subr.mxu0 0.0
    %6917 = vmatpush2.msra.mxu0 0.0
    %6918 = vmatprep.subr.mxu0 0.0
    %6919 = vmatpush2.msra.mxu0 0.0
    %6920 = vmatprep.subr.mxu0 0.0
    %6921 = vmatpush2.msra.mxu0 0.0
    %6922 = vmatprep.subr.mxu0 0.0
    %6923 = vmatpush2.msra.mxu0 0.0
    %6924 = vmatprep.subr.mxu0 0.0
    %6925 = vmatpush2.msra.mxu0 0.0
    %6926 = vmatprep.subr.mxu0 0.0
    %6927 = vmatpush2.msra.mxu0 0.0
    %6928 = vmatprep.subr.mxu0 0.0
    %6929 = vmatpush2.msra.mxu0 0.0
    %6930 = vmatprep.subr.mxu0 0.0
    %6931 = vmatpush2.msra.mxu0 0.0
    %6932 = vmatprep.subr.mxu0 0.0
    %6933 = vmatpush2.msra.mxu0 0.0
    %6934 = vmatprep.subr.mxu0 0.0
    %6935 = vmatpush2.msra.mxu0 0.0
    %6936 = vmatprep.subr.mxu0 0.0
    %6937 = vmatpush2.msra.mxu0 0.0
    %6938 = vmatprep.subr.mxu0 0.0
    %6939 = vmatpush2.msra.mxu0 0.0
    %6940 = vmatprep.subr.mxu0 0.0
    %6941 = vmatpush2.msra.mxu0 0.0
    %6942 = vmatprep.subr.mxu0 0.0
    %6943 = vmatpush2.msra.mxu0 0.0
    %6944 = vmatprep.subr.mxu0 0.0
    %6945 = vmatpush2.msra.mxu0 0.0
    %6946 = vmatprep.subr.mxu0 0.0
    %6947 = vmatpush2.msra.mxu0 0.0
    %6948 = vmatprep.mubr.f32.mxu0 0.0
    %6949 = vmatmul.mubr.f32.gmra.mxu0 %v6882
    %v6950 = vpop.f32.mrf.mxu0
    %v6951 = vadd.f32 0.0, %v6950
    %v6952 = vpop.f32.mrf.mxu0
    %6953 = vdwg.mxu0
    %v6954 = vadd.f32 %v6871, %v6951
    %s6955 = scalar_lea.vmem %s6, 192
    %v6956 = vld [vmem:[%s6955] sm:$0xff]
    %v6957 = vld [vmem:[%s6955 + $0x8] sm:$0xff]
    %v6958 = vld [vmem:[%s6955 + $0x10] sm:$0xff]
    %v6959 = vld [vmem:[%s6955 + $0x18] sm:$0xff]
    %v6960 = vld [vmem:[%s6955 + $0x20] sm:$0xff]
    %v6961 = vld [vmem:[%s6955 + $0x28] sm:$0xff]
    %v6962 = vld [vmem:[%s6955 + $0x30] sm:$0xff]
    %v6963 = vld [vmem:[%s6955 + $0x38] sm:$0xff]
    %v6964 = vrot.slane %v6704, 3
    %v6965 = vsel %vm6714, %v6964, 0
    %6967 = vmatprep.subr.mxu0 0.0
    %6968 = vmatpush1.msra.mxu0 0.0
    %6969 = vmatprep.subr.mxu0 0.0
    %6970 = vmatpush1.msra.mxu0 0.0
    %6971 = vmatprep.subr.mxu0 0.0
    %6972 = vmatpush1.msra.mxu0 0.0
    %6973 = vmatprep.subr.mxu0 0.0
    %6974 = vmatpush1.msra.mxu0 0.0
    %6975 = vmatprep.subr.mxu0 0.0
    %6976 = vmatpush1.msra.mxu0 0.0
    %6977 = vmatprep.subr.mxu0 0.0
    %6978 = vmatpush1.msra.mxu0 0.0
    %6979 = vmatprep.subr.mxu0 0.0
    %6980 = vmatpush1.msra.mxu0 0.0
    %6981 = vmatprep.subr.mxu0 0.0
    %6982 = vmatpush1.msra.mxu0 0.0
    %6983 = vmatprep.subr.mxu0 0.0
    %6984 = vmatpush1.msra.mxu0 %v6963
    %6985 = vmatprep.subr.mxu0 0.0
    %6986 = vmatpush1.msra.mxu0 %v6962
    %6987 = vmatprep.subr.mxu0 0.0
    %6988 = vmatpush1.msra.mxu0 %v6961
    %6989 = vmatprep.subr.mxu0 0.0
    %6990 = vmatpush1.msra.mxu0 %v6960
    %6991 = vmatprep.subr.mxu0 0.0
    %6992 = vmatpush1.msra.mxu0 %v6959
    %6993 = vmatprep.subr.mxu0 0.0
    %6994 = vmatpush1.msra.mxu0 %v6958
    %6995 = vmatprep.subr.mxu0 0.0
    %6996 = vmatpush1.msra.mxu0 %v6957
    %6997 = vmatprep.subr.mxu0 0.0
    %6998 = vmatpush1.msra.mxu0 %v6956
    %6999 = vmatprep.subr.mxu0 0.0
    %7000 = vmatpush2.msra.mxu0 0.0
    %7001 = vmatprep.subr.mxu0 0.0
    %7002 = vmatpush2.msra.mxu0 0.0
    %7003 = vmatprep.subr.mxu0 0.0
    %7004 = vmatpush2.msra.mxu0 0.0
    %7005 = vmatprep.subr.mxu0 0.0
    %7006 = vmatpush2.msra.mxu0 0.0
    %7007 = vmatprep.subr.mxu0 0.0
    %7008 = vmatpush2.msra.mxu0 0.0
    %7009 = vmatprep.subr.mxu0 0.0
    %7010 = vmatpush2.msra.mxu0 0.0
    %7011 = vmatprep.subr.mxu0 0.0
    %7012 = vmatpush2.msra.mxu0 0.0
    %7013 = vmatprep.subr.mxu0 0.0
    %7014 = vmatpush2.msra.mxu0 0.0
    %7015 = vmatprep.subr.mxu0 0.0
    %7016 = vmatpush2.msra.mxu0 0.0
    %7017 = vmatprep.subr.mxu0 0.0
    %7018 = vmatpush2.msra.mxu0 0.0
    %7019 = vmatprep.subr.mxu0 0.0
    %7020 = vmatpush2.msra.mxu0 0.0
    %7021 = vmatprep.subr.mxu0 0.0
    %7022 = vmatpush2.msra.mxu0 0.0
    %7023 = vmatprep.subr.mxu0 0.0
    %7024 = vmatpush2.msra.mxu0 0.0
    %7025 = vmatprep.subr.mxu0 0.0
    %7026 = vmatpush2.msra.mxu0 0.0
    %7027 = vmatprep.subr.mxu0 0.0
    %7028 = vmatpush2.msra.mxu0 0.0
    %7029 = vmatprep.subr.mxu0 0.0
    %7030 = vmatpush2.msra.mxu0 0.0
    %7031 = vmatprep.mubr.f32.mxu0 0.0
    %7032 = vmatmul.mubr.f32.gmra.mxu0 %v6965
    %v7033 = vpop.f32.mrf.mxu0
    %v7034 = vadd.f32 0.0, %v7033
    %v7035 = vpop.f32.mrf.mxu0
    %7036 = vdwg.mxu0
    %v7037 = vadd.f32 %v6954, %v7034
    %vm7038 = vcmask 253952
    %7039 = vst.msk [vmem:[#allocation2] sm:$0x1] %vm7038, %v7037
    %v7040 = vld [vmem:[%s7] sm:$0x1]
    %v7041 = vld [vmem:[%s6] sm:$0xff]
    %v7042 = vld [vmem:[%s6 + $0x8] sm:$0xff]
    %v7043 = vld [vmem:[%s6 + $0x10] sm:$0xff]
    %v7044 = vld [vmem:[%s6 + $0x18] sm:$0xff]
    %v7045 = vld [vmem:[%s6 + $0x20] sm:$0xff]
    %v7046 = vld [vmem:[%s6 + $0x28] sm:$0xff]
    %v7047 = vld [vmem:[%s6 + $0x30] sm:$0xff]
    %v7048 = vld [vmem:[%s6 + $0x38] sm:$0xff]
    %7049 = vrot.lane.b32.xlu0 %v6704, 64
    %v7050 = vpop.permute.xlu0 %7049
    %v7051 = vsel %vm6714, %v7050, 0
    %7053 = vmatprep.subr.mxu0 0.0
    %7054 = vmatpush1.msra.mxu0 0.0
    %7055 = vmatprep.subr.mxu0 0.0
    %7056 = vmatpush1.msra.mxu0 0.0
    %7057 = vmatprep.subr.mxu0 0.0
    %7058 = vmatpush1.msra.mxu0 0.0
    %7059 = vmatprep.subr.mxu0 0.0
    %7060 = vmatpush1.msra.mxu0 0.0
    %7061 = vmatprep.subr.mxu0 0.0
    %7062 = vmatpush1.msra.mxu0 0.0
    %7063 = vmatprep.subr.mxu0 0.0
    %7064 = vmatpush1.msra.mxu0 0.0
    %7065 = vmatprep.subr.mxu0 0.0
    %7066 = vmatpush1.msra.mxu0 0.0
    %7067 = vmatprep.subr.mxu0 0.0
    %7068 = vmatpush1.msra.mxu0 0.0
    %7069 = vmatprep.subr.mxu0 0.0
    %7070 = vmatpush1.msra.mxu0 %v7048
    %7071 = vmatprep.subr.mxu0 0.0
    %7072 = vmatpush1.msra.mxu0 %v7047
    %7073 = vmatprep.subr.mxu0 0.0
    %7074 = vmatpush1.msra.mxu0 %v7046
    %7075 = vmatprep.subr.mxu0 0.0
    %7076 = vmatpush1.msra.mxu0 %v7045
    %7077 = vmatprep.subr.mxu0 0.0
    %7078 = vmatpush1.msra.mxu0 %v7044
    %7079 = vmatprep.subr.mxu0 0.0
    %7080 = vmatpush1.msra.mxu0 %v7043
    %7081 = vmatprep.subr.mxu0 0.0
    %7082 = vmatpush1.msra.mxu0 %v7042
    %7083 = vmatprep.subr.mxu0 0.0
    %7084 = vmatpush1.msra.mxu0 %v7041
    %7085 = vmatprep.subr.mxu0 0.0
    %7086 = vmatpush2.msra.mxu0 0.0
    %7087 = vmatprep.subr.mxu0 0.0
    %7088 = vmatpush2.msra.mxu0 0.0
    %7089 = vmatprep.subr.mxu0 0.0
    %7090 = vmatpush2.msra.mxu0 0.0
    %7091 = vmatprep.subr.mxu0 0.0
    %7092 = vmatpush2.msra.mxu0 0.0
    %7093 = vmatprep.subr.mxu0 0.0
    %7094 = vmatpush2.msra.mxu0 0.0
    %7095 = vmatprep.subr.mxu0 0.0
    %7096 = vmatpush2.msra.mxu0 0.0
    %7097 = vmatprep.subr.mxu0 0.0
    %7098 = vmatpush2.msra.mxu0 0.0
    %7099 = vmatprep.subr.mxu0 0.0
    %7100 = vmatpush2.msra.mxu0 0.0
    %7101 = vmatprep.subr.mxu0 0.0
    %7102 = vmatpush2.msra.mxu0 0.0
    %7103 = vmatprep.subr.mxu0 0.0
    %7104 = vmatpush2.msra.mxu0 0.0
    %7105 = vmatprep.subr.mxu0 0.0
    %7106 = vmatpush2.msra.mxu0 0.0
    %7107 = vmatprep.subr.mxu0 0.0
    %7108 = vmatpush2.msra.mxu0 0.0
    %7109 = vmatprep.subr.mxu0 0.0
    %7110 = vmatpush2.msra.mxu0 0.0
    %7111 = vmatprep.subr.mxu0 0.0
    %7112 = vmatpush2.msra.mxu0 0.0
    %7113 = vmatprep.subr.mxu0 0.0
    %7114 = vmatpush2.msra.mxu0 0.0
    %7115 = vmatprep.subr.mxu0 0.0
    %7116 = vmatpush2.msra.mxu0 0.0
    %7117 = vmatprep.mubr.f32.mxu0 0.0
    %7118 = vmatmul.mubr.f32.gmra.mxu0 %v7051
    %v7119 = vpop.f32.mrf.mxu0
    %v7120 = vadd.f32 0.0, %v7119
    %v7121 = vpop.f32.mrf.mxu0
    %7122 = vdwg.mxu0
    %v7123 = vadd.f32 %v7040, %v7120
    %v7124 = vld [vmem:[%s6789] sm:$0xff]
    %v7125 = vld [vmem:[%s6789 + $0x8] sm:$0xff]
    %v7126 = vld [vmem:[%s6789 + $0x10] sm:$0xff]
    %v7127 = vld [vmem:[%s6789 + $0x18] sm:$0xff]
    %v7128 = vld [vmem:[%s6789 + $0x20] sm:$0xff]
    %v7129 = vld [vmem:[%s6789 + $0x28] sm:$0xff]
    %v7130 = vld [vmem:[%s6789 + $0x30] sm:$0xff]
    %v7131 = vld [vmem:[%s6789 + $0x38] sm:$0xff]
    %7132 = vrot.lane.b32.xlu0 %v6798, 64
    %v7133 = vpop.permute.xlu0 %7132
    %v7134 = vsel %vm6714, %v7133, 0
    %7136 = vmatprep.subr.mxu0 0.0
    %7137 = vmatpush1.msra.mxu0 0.0
    %7138 = vmatprep.subr.mxu0 0.0
    %7139 = vmatpush1.msra.mxu0 0.0
    %7140 = vmatprep.subr.mxu0 0.0
    %7141 = vmatpush1.msra.mxu0 0.0
    %7142 = vmatprep.subr.mxu0 0.0
    %7143 = vmatpush1.msra.mxu0 0.0
    %7144 = vmatprep.subr.mxu0 0.0
    %7145 = vmatpush1.msra.mxu0 0.0
    %7146 = vmatprep.subr.mxu0 0.0
    %7147 = vmatpush1.msra.mxu0 0.0
    %7148 = vmatprep.subr.mxu0 0.0
    %7149 = vmatpush1.msra.mxu0 0.0
    %7150 = vmatprep.subr.mxu0 0.0
    %7151 = vmatpush1.msra.mxu0 0.0
    %7152 = vmatprep.subr.mxu0 0.0
    %7153 = vmatpush1.msra.mxu0 %v7131
    %7154 = vmatprep.subr.mxu0 0.0
    %7155 = vmatpush1.msra.mxu0 %v7130
    %7156 = vmatprep.subr.mxu0 0.0
    %7157 = vmatpush1.msra.mxu0 %v7129
    %7158 = vmatprep.subr.mxu0 0.0
    %7159 = vmatpush1.msra.mxu0 %v7128
    %7160 = vmatprep.subr.mxu0 0.0
    %7161 = vmatpush1.msra.mxu0 %v7127
    %7162 = vmatprep.subr.mxu0 0.0
    %7163 = vmatpush1.msra.mxu0 %v7126
    %7164 = vmatprep.subr.mxu0 0.0
    %7165 = vmatpush1.msra.mxu0 %v7125
    %7166 = vmatprep.subr.mxu0 0.0
    %7167 = vmatpush1.msra.mxu0 %v7124
    %7168 = vmatprep.subr.mxu0 0.0
    %7169 = vmatpush2.msra.mxu0 0.0
    %7170 = vmatprep.subr.mxu0 0.0
    %7171 = vmatpush2.msra.mxu0 0.0
    %7172 = vmatprep.subr.mxu0 0.0
    %7173 = vmatpush2.msra.mxu0 0.0
    %7174 = vmatprep.subr.mxu0 0.0
    %7175 = vmatpush2.msra.mxu0 0.0
    %7176 = vmatprep.subr.mxu0 0.0
    %7177 = vmatpush2.msra.mxu0 0.0
    %7178 = vmatprep.subr.mxu0 0.0
    %7179 = vmatpush2.msra.mxu0 0.0
    %7180 = vmatprep.subr.mxu0 0.0
    %7181 = vmatpush2.msra.mxu0 0.0
    %7182 = vmatprep.subr.mxu0 0.0
    %7183 = vmatpush2.msra.mxu0 0.0
    %7184 = vmatprep.subr.mxu0 0.0
    %7185 = vmatpush2.msra.mxu0 0.0
    %7186 = vmatprep.subr.mxu0 0.0
    %7187 = vmatpush2.msra.mxu0 0.0
    %7188 = vmatprep.subr.mxu0 0.0
    %7189 = vmatpush2.msra.mxu0 0.0
    %7190 = vmatprep.subr.mxu0 0.0
    %7191 = vmatpush2.msra.mxu0 0.0
    %7192 = vmatprep.subr.mxu0 0.0
    %7193 = vmatpush2.msra.mxu0 0.0
    %7194 = vmatprep.subr.mxu0 0.0
    %7195 = vmatpush2.msra.mxu0 0.0
    %7196 = vmatprep.subr.mxu0 0.0
    %7197 = vmatpush2.msra.mxu0 0.0
    %7198 = vmatprep.subr.mxu0 0.0
    %7199 = vmatpush2.msra.mxu0 0.0
    %7200 = vmatprep.mubr.f32.mxu0 0.0
    %7201 = vmatmul.mubr.f32.gmra.mxu0 %v7134
    %v7202 = vpop.f32.mrf.mxu0
    %v7203 = vadd.f32 0.0, %v7202
    %v7204 = vpop.f32.mrf.mxu0
    %7205 = vdwg.mxu0
    %v7206 = vadd.f32 %v7123, %v7203
    %v7207 = vld [vmem:[%s6872] sm:$0xff]
    %v7208 = vld [vmem:[%s6872 + $0x8] sm:$0xff]
    %v7209 = vld [vmem:[%s6872 + $0x10] sm:$0xff]
    %v7210 = vld [vmem:[%s6872 + $0x18] sm:$0xff]
    %v7211 = vld [vmem:[%s6872 + $0x20] sm:$0xff]
    %v7212 = vld [vmem:[%s6872 + $0x28] sm:$0xff]
    %v7213 = vld [vmem:[%s6872 + $0x30] sm:$0xff]
    %v7214 = vld [vmem:[%s6872 + $0x38] sm:$0xff]
    %7215 = vrot.lane.b32.xlu0 %v6881, 64
    %v7216 = vpop.permute.xlu0 %7215
    %v7217 = vsel %vm6714, %v7216, 0
    %7219 = vmatprep.subr.mxu0 0.0
    %7220 = vmatpush1.msra.mxu0 0.0
    %7221 = vmatprep.subr.mxu0 0.0
    %7222 = vmatpush1.msra.mxu0 0.0
    %7223 = vmatprep.subr.mxu0 0.0
    %7224 = vmatpush1.msra.mxu0 0.0
    %7225 = vmatprep.subr.mxu0 0.0
    %7226 = vmatpush1.msra.mxu0 0.0
    %7227 = vmatprep.subr.mxu0 0.0
    %7228 = vmatpush1.msra.mxu0 0.0
    %7229 = vmatprep.subr.mxu0 0.0
    %7230 = vmatpush1.msra.mxu0 0.0
    %7231 = vmatprep.subr.mxu0 0.0
    %7232 = vmatpush1.msra.mxu0 0.0
    %7233 = vmatprep.subr.mxu0 0.0
    %7234 = vmatpush1.msra.mxu0 0.0
    %7235 = vmatprep.subr.mxu0 0.0
    %7236 = vmatpush1.msra.mxu0 %v7214
    %7237 = vmatprep.subr.mxu0 0.0
    %7238 = vmatpush1.msra.mxu0 %v7213
    %7239 = vmatprep.subr.mxu0 0.0
    %7240 = vmatpush1.msra.mxu0 %v7212
    %7241 = vmatprep.subr.mxu0 0.0
    %7242 = vmatpush1.msra.mxu0 %v7211
    %7243 = vmatprep.subr.mxu0 0.0
    %7244 = vmatpush1.msra.mxu0 %v7210
    %7245 = vmatprep.subr.mxu0 0.0
    %7246 = vmatpush1.msra.mxu0 %v7209
    %7247 = vmatprep.subr.mxu0 0.0
    %7248 = vmatpush1.msra.mxu0 %v7208
    %7249 = vmatprep.subr.mxu0 0.0
    %7250 = vmatpush1.msra.mxu0 %v7207
    %7251 = vmatprep.subr.mxu0 0.0
    %7252 = vmatpush2.msra.mxu0 0.0
    %7253 = vmatprep.subr.mxu0 0.0
    %7254 = vmatpush2.msra.mxu0 0.0
    %7255 = vmatprep.subr.mxu0 0.0
    %7256 = vmatpush2.msra.mxu0 0.0
    %7257 = vmatprep.subr.mxu0 0.0
    %7258 = vmatpush2.msra.mxu0 0.0
    %7259 = vmatprep.subr.mxu0 0.0
    %7260 = vmatpush2.msra.mxu0 0.0
    %7261 = vmatprep.subr.mxu0 0.0
    %7262 = vmatpush2.msra.mxu0 0.0
    %7263 = vmatprep.subr.mxu0 0.0
    %7264 = vmatpush2.msra.mxu0 0.0
    %7265 = vmatprep.subr.mxu0 0.0
    %7266 = vmatpush2.msra.mxu0 0.0
    %7267 = vmatprep.subr.mxu0 0.0
    %7268 = vmatpush2.msra.mxu0 0.0
    %7269 = vmatprep.subr.mxu0 0.0
    %7270 = vmatpush2.msra.mxu0 0.0
    %7271 = vmatprep.subr.mxu0 0.0
    %7272 = vmatpush2.msra.mxu0 0.0
    %7273 = vmatprep.subr.mxu0 0.0
    %7274 = vmatpush2.msra.mxu0 0.0
    %7275 = vmatprep.subr.mxu0 0.0
    %7276 = vmatpush2.msra.mxu0 0.0
    %7277 = vmatprep.subr.mxu0 0.0
    %7278 = vmatpush2.msra.mxu0 0.0
    %7279 = vmatprep.subr.mxu0 0.0
    %7280 = vmatpush2.msra.mxu0 0.0
    %7281 = vmatprep.subr.mxu0 0.0
    %7282 = vmatpush2.msra.mxu0 0.0
    %7283 = vmatprep.mubr.f32.mxu0 0.0
    %7284 = vmatmul.mubr.f32.gmra.mxu0 %v7217
    %v7285 = vpop.f32.mrf.mxu0
    %v7286 = vadd.f32 0.0, %v7285
    %v7287 = vpop.f32.mrf.mxu0
    %7288 = vdwg.mxu0
    %v7289 = vadd.f32 %v7206, %v7286
    %v7290 = vld [vmem:[%s6955] sm:$0xff]
    %v7291 = vld [vmem:[%s6955 + $0x8] sm:$0xff]
    %v7292 = vld [vmem:[%s6955 + $0x10] sm:$0xff]
    %v7293 = vld [vmem:[%s6955 + $0x18] sm:$0xff]
    %v7294 = vld [vmem:[%s6955 + $0x20] sm:$0xff]
    %v7295 = vld [vmem:[%s6955 + $0x28] sm:$0xff]
    %v7296 = vld [vmem:[%s6955 + $0x30] sm:$0xff]
    %v7297 = vld [vmem:[%s6955 + $0x38] sm:$0xff]
    %7298 = vrot.lane.b32.xlu0 %v6964, 64
    %v7299 = vpop.permute.xlu0 %7298
    %v7300 = vsel %vm6714, %v7299, 0
    %7302 = vmatprep.subr.mxu0 0.0
    %7303 = vmatpush1.msra.mxu0 0.0
    %7304 = vmatprep.subr.mxu0 0.0
    %7305 = vmatpush1.msra.mxu0 0.0
    %7306 = vmatprep.subr.mxu0 0.0
    %7307 = vmatpush1.msra.mxu0 0.0
    %7308 = vmatprep.subr.mxu0 0.0
    %7309 = vmatpush1.msra.mxu0 0.0
    %7310 = vmatprep.subr.mxu0 0.0
    %7311 = vmatpush1.msra.mxu0 0.0
    %7312 = vmatprep.subr.mxu0 0.0
    %7313 = vmatpush1.msra.mxu0 0.0
    %7314 = vmatprep.subr.mxu0 0.0
    %7315 = vmatpush1.msra.mxu0 0.0
    %7316 = vmatprep.subr.mxu0 0.0
    %7317 = vmatpush1.msra.mxu0 0.0
    %7318 = vmatprep.subr.mxu0 0.0
    %7319 = vmatpush1.msra.mxu0 %v7297
    %7320 = vmatprep.subr.mxu0 0.0
    %7321 = vmatpush1.msra.mxu0 %v7296
    %7322 = vmatprep.subr.mxu0 0.0
    %7323 = vmatpush1.msra.mxu0 %v7295
    %7324 = vmatprep.subr.mxu0 0.0
    %7325 = vmatpush1.msra.mxu0 %v7294
    %7326 = vmatprep.subr.mxu0 0.0
    %7327 = vmatpush1.msra.mxu0 %v7293
    %7328 = vmatprep.subr.mxu0 0.0
    %7329 = vmatpush1.msra.mxu0 %v7292
    %7330 = vmatprep.subr.mxu0 0.0
    %7331 = vmatpush1.msra.mxu0 %v7291
    %7332 = vmatprep.subr.mxu0 0.0
    %7333 = vmatpush1.msra.mxu0 %v7290
    %7334 = vmatprep.subr.mxu0 0.0
    %7335 = vmatpush2.msra.mxu0 0.0
    %7336 = vmatprep.subr.mxu0 0.0
    %7337 = vmatpush2.msra.mxu0 0.0
    %7338 = vmatprep.subr.mxu0 0.0
    %7339 = vmatpush2.msra.mxu0 0.0
    %7340 = vmatprep.subr.mxu0 0.0
    %7341 = vmatpush2.msra.mxu0 0.0
    %7342 = vmatprep.subr.mxu0 0.0
    %7343 = vmatpush2.msra.mxu0 0.0
    %7344 = vmatprep.subr.mxu0 0.0
    %7345 = vmatpush2.msra.mxu0 0.0
    %7346 = vmatprep.subr.mxu0 0.0
    %7347 = vmatpush2.msra.mxu0 0.0
    %7348 = vmatprep.subr.mxu0 0.0
    %7349 = vmatpush2.msra.mxu0 0.0
    %7350 = vmatprep.subr.mxu0 0.0
    %7351 = vmatpush2.msra.mxu0 0.0
    %7352 = vmatprep.subr.mxu0 0.0
    %7353 = vmatpush2.msra.mxu0 0.0
    %7354 = vmatprep.subr.mxu0 0.0
    %7355 = vmatpush2.msra.mxu0 0.0
    %7356 = vmatprep.subr.mxu0 0.0
    %7357 = vmatpush2.msra.mxu0 0.0
    %7358 = vmatprep.subr.mxu0 0.0
    %7359 = vmatpush2.msra.mxu0 0.0
    %7360 = vmatprep.subr.mxu0 0.0
    %7361 = vmatpush2.msra.mxu0 0.0
    %7362 = vmatprep.subr.mxu0 0.0
    %7363 = vmatpush2.msra.mxu0 0.0
    %7364 = vmatprep.subr.mxu0 0.0
    %7365 = vmatpush2.msra.mxu0 0.0
    %7366 = vmatprep.mubr.f32.mxu0 0.0
    %7367 = vmatmul.mubr.f32.gmra.mxu0 %v7300
    %v7368 = vpop.f32.mrf.mxu0
    %v7369 = vadd.f32 0.0, %v7368
    %v7370 = vpop.f32.mrf.mxu0
    %7371 = vdwg.mxu0
    %v7372 = vadd.f32 %v7289, %v7369
    %7373 = vst.msk [vmem:[#allocation2 + $0x1] sm:$0x1] %vm7038, %v7372
    // Predicated region
    $region34: #{encoder_forward.1} parent=1 // pred_check
      _
    $region35: #{encoder_forward.1} parent=1 // pred_check_branch
      %7375 = sbr.rel (0) target = $region37
    $region36: #{encoder_forward.1} parent=1 // pred_region
      %s7377 = ssub.s32 32, 32
      %7378 = vsyncadd [#allocation3], %s7377
      %s7380 = sshll.u32 [#allocation2], 4
      %s7381 = int_to_ptr.vmem [resolvable:$true] %s7380
      %7383 = dma.vmem_to_hbm [thread:$0]  %s7381, 32, %s8, [#allocation3]
    $region37: #{encoder_forward.1} parent=1 // pred_fallthru
      _
    // Predicated region
    $region38: #{encoder_forward.1} parent=1 // pred_check
      _
    $region39: #{encoder_forward.1} parent=1 // pred_check_branch
      %7385 = sbr.rel (0) target = $region41
    $region40: #{encoder_forward.1} parent=1 // pred_region
      %7386 = dma.done [#allocation3], 32
    $region41: #{encoder_forward.1} parent=1 // pred_fallthru
      _
    %7387 = vsyncpa [#allocation3], 1

</llo_original>
